<compile_context>
chip_gen: v7x
topology: tpu7x:2x2x1
jax: 0.10.0
libtpu: 0.0.40
codegen_flags: <defaults>
</compile_context>

<pallas_src>
import functools

import numpy as np

import jax
import jax.numpy as jnp
from jax.experimental import pallas as pl
from jax.experimental.pallas import tpu as pltpu

KSIZE = 5
PAD = 2
NUM_FILTERS = 30
TLU_THRESHOLD = 3.0
CHANNEL_GROUP = 3                      # channels processed per tap-slice load

# Conservative resident-set budget: fits v5e's 16 MiB scoped-VMEM default and
# is far under v7x's 64 MiB physical VMEM.
_WORKING_SET_BUDGET = 12 * 1024 * 1024
# Hard cap for the TH = H fallback path (H not a multiple of 8).
_HARD_WORKING_SET_CAP = 40 * 1024 * 1024
# Explicit scoped-VMEM limit passed to the compiler (<= 64 MiB v7x physical).
_VMEM_LIMIT_BYTES = 48 * 1024 * 1024


def _working_set_bytes(TH, H, W, group):
    """Honest per-step VMEM estimate: double-buffered I/O + scratch + temps."""
    out_block = NUM_FILTERS * TH * W * 4            # one (30, TH, W) f32 block
    in_image = (H + 2 * PAD) * (W + 2 * PAD) * 4    # one padded image
    shift_scratch = KSIZE * (TH + 2 * PAD) * W * 4  # dx-shifted planes
    temp_planes = (group + 2) * TH * W * 4          # live elementwise temps
    return 2 * out_block + 2 * in_image + shift_scratch + temp_planes


def _choose_row_tile(N, H, W, group):
    """Largest row tile TH (multiple of 8, dividing H) within the VMEM budget.

    When N == 1, prefer TH <= H/2 so the grid has >= 2 steps for the two
    TensorCores on v7x.
    """
    if H % 8 != 0:
        return H  # single block fallback; caller enforces the hard cap
    cands = [th for th in range(8, H + 1, 8) if H % th == 0]
    fitting = [th for th in cands
               if _working_set_bytes(th, H, W, group) <= _WORKING_SET_BUDGET]
    if not fitting:
        return 8  # smallest legal tile; caller enforces the hard cap
    th = max(fitting)
    if N == 1 and th == H:
        halves = [t for t in fitting if t <= H // 2]
        if halves:
            th = max(halves)
    return th


def _hpf_kernel(xp_ref, o_ref, shift_ref, *, TH, W, w_taps, group):
    # xp_ref   : VMEM (H+4, W+4)    full padded single-channel image
    # o_ref    : VMEM (30, TH, W)   output block for row block `i`
    # shift_ref: VMEM (5, TH+4, W)  dx-shifted (lane-aligned) image planes
    # w_taps   : numpy (30, 5, 5)   fixed SRM weights, baked in at trace time
    i = pl.program_id(1)
    row0 = pl.multiple_of(i * TH, TH)

    # Hoist the 5 horizontal (dx) lane shifts: each is done once per row block
    # instead of once per tap per channel.
    for dx in range(KSIZE):
        shift_ref[dx] = xp_ref[pl.ds(row0, TH + 2 * PAD), pl.ds(dx, W)]

    # Channel groups of `group`, tap-inner: every (dy, dx) tap slice is loaded
    # once (lane-aligned, static sublane offset) and FMA'd into `group`
    # accumulators.  Taps whose weights are exactly zero for the whole group
    # are skipped at trace time (zero border of the padded 3x3 SRM filters).
    for g0 in range(0, NUM_FILTERS, group):
        chans = list(range(g0, min(g0 + group, NUM_FILTERS)))
        accs = {c: None for c in chans}
        for dy in range(KSIZE):
            for dx in range(KSIZE):
                ws = {c: float(w_taps[c, dy, dx]) for c in chans}
                if all(w == 0.0 for w in ws.values()):
                    continue
                tap = shift_ref[dx, pl.ds(dy, TH), :]      # (TH, W), aligned
                for c in chans:
                    w = ws[c]
                    if w == 0.0:
                        continue
                    contrib = tap * w
                    accs[c] = contrib if accs[c] is None else accs[c] + contrib
        for c in chans:
            acc = accs[c]
            if acc is None:                                 # all-zero filter
                acc = jnp.zeros((TH, W), jnp.float32)
            o_ref[c] = jnp.clip(acc, -TLU_THRESHOLD, TLU_THRESHOLD)


def hpf_forward(x_nchw, hpf_weight, *, channel_group=CHANNEL_GROUP):
    """x_nchw: (N, 1, H, W); hpf_weight: (30, 1, 5, 5) CONCRETE (host) weights.

    The filter bank is a fixed module constant (requires_grad=False), so it is
    specialized into the kernel at trace time.  Returns (N, 30, H, W) float32.
    """
    N, C, H, W = x_nchw.shape
    assert C == 1, "HPF expects a single input channel"
    w_np = np.asarray(jax.device_get(hpf_weight), dtype=np.float32)
    w_np = w_np.reshape(NUM_FILTERS, KSIZE, KSIZE)

    # Glue (plain JAX): 'same' zero padding for the 5x5 conv.
    x = x_nchw[:, 0, :, :].astype(jnp.float32)              # (N, H, W)
    x_pad = jnp.pad(x, ((0, 0), (PAD, PAD), (PAD, PAD)))    # (N, H+4, W+4)

    TH = _choose_row_tile(N, H, W, channel_group)
    n_rb = H // TH
    ws_bytes = _working_set_bytes(TH, H, W, channel_group)
    if ws_bytes > _HARD_WORKING_SET_CAP:
        raise ValueError(
            f"HPF working set {ws_bytes} B exceeds the {_HARD_WORKING_SET_CAP} B "
            f"VMEM cap (H={H}, W={W}); image too large for the TH={TH} fallback.")

    # TODO(synk): for W < 128 the lane axis is under-occupied (masked stores);
    # a repacked multi-row-per-lane-group layout would be the fast path there.

    kernel = functools.partial(_hpf_kernel, TH=TH, W=W, w_taps=w_np,
                               group=channel_group)

    out = pl.pallas_call(
        kernel,
        out_shape=jax.ShapeDtypeStruct((N, NUM_FILTERS, H, W), jnp.float32),
        grid_spec=pltpu.PrefetchScalarGridSpec(
            num_scalar_prefetch=0,
            grid=(N, n_rb),
            in_specs=[
                # Full padded image per batch element; the row halo is sliced
                # in-kernel, so the block index is constant across row steps.
                pl.BlockSpec((None, H + 2 * PAD, W + 2 * PAD),
                             lambda n, i: (n, 0, 0)),
            ],
            out_specs=pl.BlockSpec((None, NUM_FILTERS, TH, W),
                                   lambda n, i: (n, 0, i, 0)),
            scratch_shapes=[
                pltpu.VMEM((KSIZE, TH + 2 * PAD, W), jnp.float32),
            ],
        ),
        compiler_params=pltpu.CompilerParams(
            dimension_semantics=("parallel", "parallel"),
            vmem_limit_bytes=_VMEM_LIMIT_BYTES),
    )(x_pad)
    return out


def make_hpf_weight(key):
    """Deterministic synthetic stand-in for all_normalized_hpf_list.

    Shape (30, 1, 5, 5).  Half the filters mimic the 3x3 filters that the
    original module zero-pads to 5x5 (zero border), which also exercises the
    zero-tap specialization in the kernel.
    """
    # TODO(synk): the real SRM filter constants (all_normalized_hpf_list) are
    # external data not available in-script; this stand-in matches shape/layout.
    w = jax.random.normal(key, (NUM_FILTERS, KSIZE, KSIZE), dtype=jnp.float32)
    w = w / 12.0  # mimic SRM normalization scale
    border_mask = jnp.zeros((KSIZE, KSIZE), dtype=jnp.float32)
    border_mask = border_mask.at[1:4, 1:4].set(1.0)
    masks = jnp.concatenate(
        [jnp.broadcast_to(border_mask, (15, KSIZE, KSIZE)),
         jnp.ones((15, KSIZE, KSIZE), dtype=jnp.float32)], axis=0)
    w = w * masks
    return w.reshape(NUM_FILTERS, 1, KSIZE, KSIZE)


def reference_hpf(x_nchw, hpf_weight):
    """Pure-JAX reference (lax conv) for a sanity check."""
    out = jax.lax.conv_general_dilated(
        x_nchw, hpf_weight,
        window_strides=(1, 1), padding="SAME",
        dimension_numbers=("NCHW", "OIHW", "NCHW"))
    return jnp.clip(out, -TLU_THRESHOLD, TLU_THRESHOLD)


if __name__ == "__main__":
    key = jax.random.PRNGKey(0)
    k_x, k_w = jax.random.split(key)

    N, C, H, W = 2, 1, 16, 16
    x = jax.random.normal(k_x, (N, C, H, W), dtype=jnp.float32) * 4.0
    hpf_weight = make_hpf_weight(k_w)

    out = jax.block_until_ready(hpf_forward(x, hpf_weight))
    ref = jax.block_until_ready(reference_hpf(x, hpf_weight))

    assert out.shape == (N, NUM_FILTERS, H, W), out.shape
    assert jnp.allclose(out, ref, atol=1e-4, rtol=1e-4), "mismatch vs reference"

    print("KERNEL_OK")
</pallas_src>

<mosaic_0001>
module attributes {stable_mosaic.version = 11 : i64} {
  func.func @_hpf_kernel(%arg0: i32, %arg1: i32, %arg2: memref<1x20x20xf32, #tpu.memory_space<vmem>>, %arg3: memref<1x30x16x16xf32, #tpu.memory_space<vmem>>, %arg4: memref<5x20x16xf32, #tpu.memory_space<vmem>>) attributes {dimension_semantics = [#tpu.dimension_semantics<parallel>, #tpu.dimension_semantics<parallel>], iteration_bounds = array<i64: 2, 1>, scalar_prefetch = 0 : i64, scratch_operands = 1 : i64, tpu.core_type = #tpu.core_type<tc>, window_params = [{transform_indices = @transform_0, window_bounds = array<i64: 1, 20, 20>}, {transform_indices = @transform_1, window_bounds = array<i64: 1, 30, 16, 16>}]} {
    %c16_i32 = arith.constant 16 : i32
    %0 = arith.muli %arg1, %c16_i32 : i32
    %1 = tpu.assume_multiple %0, 16 : i32
    %c0 = arith.constant 0 : index
    %2 = arith.index_cast %1 : i32 to index
    %c0_0 = arith.constant 0 : index
    %3 = vector.load %arg2[%c0, %2, %c0_0] : memref<1x20x20xf32, #tpu.memory_space<vmem>>, vector<1x20x16xf32>
    %4 = vector.shape_cast %3 : vector<1x20x16xf32> to vector<20x16xf32>
    %c0_1 = arith.constant 0 : index
    %c0_2 = arith.constant 0 : index
    %c0_3 = arith.constant 0 : index
    %5 = vector.load %arg4[%c0_1, %c0_2, %c0_3] : memref<5x20x16xf32, #tpu.memory_space<vmem>>, vector<1x20x16xf32>
    %6 = vector.shape_cast %5 : vector<1x20x16xf32> to vector<20x16xf32>
    %7 = vector.shape_cast %4 : vector<20x16xf32> to vector<1x20x16xf32>
    tpu.vector_store %arg4[%c0_1, %c0_2, %c0_3], %7 {strides = array<i32>} : memref<5x20x16xf32, #tpu.memory_space<vmem>>, vector<1x20x16xf32>,
    %c0_4 = arith.constant 0 : index
    %8 = arith.index_cast %1 : i32 to index
    %c1 = arith.constant 1 : index
    %9 = vector.load %arg2[%c0_4, %8, %c1] : memref<1x20x20xf32, #tpu.memory_space<vmem>>, vector<1x20x16xf32>
    %10 = vector.shape_cast %9 : vector<1x20x16xf32> to vector<20x16xf32>
    %c1_5 = arith.constant 1 : index
    %c0_6 = arith.constant 0 : index
    %c0_7 = arith.constant 0 : index
    %11 = vector.load %arg4[%c1_5, %c0_6, %c0_7] : memref<5x20x16xf32, #tpu.memory_space<vmem>>, vector<1x20x16xf32>
    %12 = vector.shape_cast %11 : vector<1x20x16xf32> to vector<20x16xf32>
    %13 = vector.shape_cast %10 : vector<20x16xf32> to vector<1x20x16xf32>
    tpu.vector_store %arg4[%c1_5, %c0_6, %c0_7], %13 {strides = array<i32>} : memref<5x20x16xf32, #tpu.memory_space<vmem>>, vector<1x20x16xf32>,
    %c0_8 = arith.constant 0 : index
    %14 = arith.index_cast %1 : i32 to index
    %c2 = arith.constant 2 : index
    %15 = vector.load %arg2[%c0_8, %14, %c2] : memref<1x20x20xf32, #tpu.memory_space<vmem>>, vector<1x20x16xf32>
    %16 = vector.shape_cast %15 : vector<1x20x16xf32> to vector<20x16xf32>
    %c2_9 = arith.constant 2 : index
    %c0_10 = arith.constant 0 : index
    %c0_11 = arith.constant 0 : index
    %17 = vector.load %arg4[%c2_9, %c0_10, %c0_11] : memref<5x20x16xf32, #tpu.memory_space<vmem>>, vector<1x20x16xf32>
    %18 = vector.shape_cast %17 : vector<1x20x16xf32> to vector<20x16xf32>
    %19 = vector.shape_cast %16 : vector<20x16xf32> to vector<1x20x16xf32>
    tpu.vector_store %arg4[%c2_9, %c0_10, %c0_11], %19 {strides = array<i32>} : memref<5x20x16xf32, #tpu.memory_space<vmem>>, vector<1x20x16xf32>,
    %c0_12 = arith.constant 0 : index
    %20 = arith.index_cast %1 : i32 to index
    %c3 = arith.constant 3 : index
    %21 = vector.load %arg2[%c0_12, %20, %c3] : memref<1x20x20xf32, #tpu.memory_space<vmem>>, vector<1x20x16xf32>
    %22 = vector.shape_cast %21 : vector<1x20x16xf32> to vector<20x16xf32>
    %c3_13 = arith.constant 3 : index
    %c0_14 = arith.constant 0 : index
    %c0_15 = arith.constant 0 : index
    %23 = vector.load %arg4[%c3_13, %c0_14, %c0_15] : memref<5x20x16xf32, #tpu.memory_space<vmem>>, vector<1x20x16xf32>
    %24 = vector.shape_cast %23 : vector<1x20x16xf32> to vector<20x16xf32>
    %25 = vector.shape_cast %22 : vector<20x16xf32> to vector<1x20x16xf32>
    tpu.vector_store %arg4[%c3_13, %c0_14, %c0_15], %25 {strides = array<i32>} : memref<5x20x16xf32, #tpu.memory_space<vmem>>, vector<1x20x16xf32>,
    %c0_16 = arith.constant 0 : index
    %26 = arith.index_cast %1 : i32 to index
    %c4 = arith.constant 4 : index
    %27 = vector.load %arg2[%c0_16, %26, %c4] : memref<1x20x20xf32, #tpu.memory_space<vmem>>, vector<1x20x16xf32>
    %28 = vector.shape_cast %27 : vector<1x20x16xf32> to vector<20x16xf32>
    %c4_17 = arith.constant 4 : index
    %c0_18 = arith.constant 0 : index
    %c0_19 = arith.constant 0 : index
    %29 = vector.load %arg4[%c4_17, %c0_18, %c0_19] : memref<5x20x16xf32, #tpu.memory_space<vmem>>, vector<1x20x16xf32>
    %30 = vector.shape_cast %29 : vector<1x20x16xf32> to vector<20x16xf32>
    %31 = vector.shape_cast %28 : vector<20x16xf32> to vector<1x20x16xf32>
    tpu.vector_store %arg4[%c4_17, %c0_18, %c0_19], %31 {strides = array<i32>} : memref<5x20x16xf32, #tpu.memory_space<vmem>>, vector<1x20x16xf32>,
    %c1_20 = arith.constant 1 : index
    %c1_21 = arith.constant 1 : index
    %c0_22 = arith.constant 0 : index
    %32 = vector.load %arg4[%c1_20, %c1_21, %c0_22] : memref<5x20x16xf32, #tpu.memory_space<vmem>>, vector<1x16x16xf32>
    %33 = vector.shape_cast %32 : vector<1x16x16xf32> to vector<16x16xf32>
    %cst = arith.constant -0.0956849679 : f32
    %34 = vector.broadcast %cst : f32 to vector<16x16xf32>
    %35 = arith.mulf %33, %34 : vector<16x16xf32>
    %cst_23 = arith.constant -0.147299632 : f32
    %36 = vector.broadcast %cst_23 : f32 to vector<16x16xf32>
    %37 = arith.mulf %33, %36 : vector<16x16xf32>
    %cst_24 = arith.constant -0.039517574 : f32
    %38 = vector.broadcast %cst_24 : f32 to vector<16x16xf32>
    %39 = arith.mulf %33, %38 : vector<16x16xf32>
    %c2_25 = arith.constant 2 : index
    %c1_26 = arith.constant 1 : index
    %c0_27 = arith.constant 0 : index
    %40 = vector.load %arg4[%c2_25, %c1_26, %c0_27] : memref<5x20x16xf32, #tpu.memory_space<vmem>>, vector<1x16x16xf32>
    %41 = vector.shape_cast %40 : vector<1x16x16xf32> to vector<16x16xf32>
    %cst_28 = arith.constant 0.0247638151 : f32
    %42 = vector.broadcast %cst_28 : f32 to vector<16x16xf32>
    %43 = arith.mulf %41, %42 : vector<16x16xf32>
    %44 = arith.addf %35, %43 : vector<16x16xf32>
    %cst_29 = arith.constant -0.0176275168 : f32
    %45 = vector.broadcast %cst_29 : f32 to vector<16x16xf32>
    %46 = arith.mulf %41, %45 : vector<16x16xf32>
    %47 = arith.addf %37, %46 : vector<16x16xf32>
    %cst_30 = arith.constant 0.041681394 : f32
    %48 = vector.broadcast %cst_30 : f32 to vector<16x16xf32>
    %49 = arith.mulf %41, %48 : vector<16x16xf32>
    %50 = arith.addf %39, %49 : vector<16x16xf32>
    %c3_31 = arith.constant 3 : index
    %c1_32 = arith.constant 1 : index
    %c0_33 = arith.constant 0 : index
    %51 = vector.load %arg4[%c3_31, %c1_32, %c0_33] : memref<5x20x16xf32, #tpu.memory_space<vmem>>, vector<1x16x16xf32>
    %52 = vector.shape_cast %51 : vector<1x16x16xf32> to vector<16x16xf32>
    %cst_34 = arith.constant -0.109211326 : f32
    %53 = vector.broadcast %cst_34 : f32 to vector<16x16xf32>
    %54 = arith.mulf %52, %53 : vector<16x16xf32>
    %55 = arith.addf %44, %54 : vector<16x16xf32>
    %cst_35 = arith.constant 0.0768692344 : f32
    %56 = vector.broadcast %cst_35 : f32 to vector<16x16xf32>
    %57 = arith.mulf %52, %56 : vector<16x16xf32>
    %58 = arith.addf %47, %57 : vector<16x16xf32>
    %cst_36 = arith.constant -0.062406376 : f32
    %59 = vector.broadcast %cst_36 : f32 to vector<16x16xf32>
    %60 = arith.mulf %52, %59 : vector<16x16xf32>
    %61 = arith.addf %50, %60 : vector<16x16xf32>
    %c1_37 = arith.constant 1 : index
    %c2_38 = arith.constant 2 : index
    %c0_39 = arith.constant 0 : index
    %62 = vector.load %arg4[%c1_37, %c2_38, %c0_39] : memref<5x20x16xf32, #tpu.memory_space<vmem>>, vector<1x16x16xf32>
    %63 = vector.shape_cast %62 : vector<1x16x16xf32> to vector<16x16xf32>
    %cst_40 = arith.constant 0.080334343 : f32
    %64 = vector.broadcast %cst_40 : f32 to vector<16x16xf32>
    %65 = arith.mulf %63, %64 : vector<16x16xf32>
    %66 = arith.addf %55, %65 : vector<16x16xf32>
    %cst_41 = arith.constant -0.200203136 : f32
    %67 = vector.broadcast %cst_41 : f32 to vector<16x16xf32>
    %68 = arith.mulf %63, %67 : vector<16x16xf32>
    %69 = arith.addf %58, %68 : vector<16x16xf32>
    %cst_42 = arith.constant 0.00158879347 : f32
    %70 = vector.broadcast %cst_42 : f32 to vector<16x16xf32>
    %71 = arith.mulf %63, %70 : vector<16x16xf32>
    %72 = arith.addf %61, %71 : vector<16x16xf32>
    %c2_43 = arith.constant 2 : index
    %c2_44 = arith.constant 2 : index
    %c0_45 = arith.constant 0 : index
    %73 = vector.load %arg4[%c2_43, %c2_44, %c0_45] : memref<5x20x16xf32, #tpu.memory_space<vmem>>, vector<1x16x16xf32>
    %74 = vector.shape_cast %73 : vector<1x16x16xf32> to vector<16x16xf32>
    %cst_46 = arith.constant -0.108425014 : f32
    %75 = vector.broadcast %cst_46 : f32 to vector<16x16xf32>
    %76 = arith.mulf %74, %75 : vector<16x16xf32>
    %77 = arith.addf %66, %76 : vector<16x16xf32>
    %cst_47 = arith.constant -0.139757857 : f32
    %78 = vector.broadcast %cst_47 : f32 to vector<16x16xf32>
    %79 = arith.mulf %74, %78 : vector<16x16xf32>
    %80 = arith.addf %69, %79 : vector<16x16xf32>
    %cst_48 = arith.constant 0.0880145803 : f32
    %81 = vector.broadcast %cst_48 : f32 to vector<16x16xf32>
    %82 = arith.mulf %74, %81 : vector<16x16xf32>
    %83 = arith.addf %72, %82 : vector<16x16xf32>
    %c3_49 = arith.constant 3 : index
    %c2_50 = arith.constant 2 : index
    %c0_51 = arith.constant 0 : index
    %84 = vector.load %arg4[%c3_49, %c2_50, %c0_51] : memref<5x20x16xf32, #tpu.memory_space<vmem>>, vector<1x16x16xf32>
    %85 = vector.shape_cast %84 : vector<1x16x16xf32> to vector<16x16xf32>
    %cst_52 = arith.constant -0.0623911507 : f32
    %86 = vector.broadcast %cst_52 : f32 to vector<16x16xf32>
    %87 = arith.mulf %85, %86 : vector<16x16xf32>
    %88 = arith.addf %77, %87 : vector<16x16xf32>
    %cst_53 = arith.constant -0.0391529836 : f32
    %89 = vector.broadcast %cst_53 : f32 to vector<16x16xf32>
    %90 = arith.mulf %85, %89 : vector<16x16xf32>
    %91 = arith.addf %80, %90 : vector<16x16xf32>
    %cst_54 = arith.constant 0.0777964815 : f32
    %92 = vector.broadcast %cst_54 : f32 to vector<16x16xf32>
    %93 = arith.mulf %85, %92 : vector<16x16xf32>
    %94 = arith.addf %83, %93 : vector<16x16xf32>
    %c1_55 = arith.constant 1 : index
    %c3_56 = arith.constant 3 : index
    %c0_57 = arith.constant 0 : index
    %95 = vector.load %arg4[%c1_55, %c3_56, %c0_57] : memref<5x20x16xf32, #tpu.memory_space<vmem>>, vector<1x16x16xf32>
    %96 = vector.shape_cast %95 : vector<1x16x16xf32> to vector<16x16xf32>
    %cst_58 = arith.constant -0.0991916283 : f32
    %97 = vector.broadcast %cst_58 : f32 to vector<16x16xf32>
    %98 = arith.mulf %96, %97 : vector<16x16xf32>
    %99 = arith.addf %88, %98 : vector<16x16xf32>
    %cst_59 = arith.constant -0.137560204 : f32
    %100 = vector.broadcast %cst_59 : f32 to vector<16x16xf32>
    %101 = arith.mulf %96, %100 : vector<16x16xf32>
    %102 = arith.addf %91, %101 : vector<16x16xf32>
    %cst_60 = arith.constant 0.118282549 : f32
    %103 = vector.broadcast %cst_60 : f32 to vector<16x16xf32>
    %104 = arith.mulf %96, %103 : vector<16x16xf32>
    %105 = arith.addf %94, %104 : vector<16x16xf32>
    %c2_61 = arith.constant 2 : index
    %c3_62 = arith.constant 3 : index
    %c0_63 = arith.constant 0 : index
    %106 = vector.load %arg4[%c2_61, %c3_62, %c0_63] : memref<5x20x16xf32, #tpu.memory_space<vmem>>, vector<1x16x16xf32>
    %107 = vector.shape_cast %106 : vector<1x16x16xf32> to vector<16x16xf32>
    %cst_64 = arith.constant -0.00577130308 : f32
    %108 = vector.broadcast %cst_64 : f32 to vector<16x16xf32>
    %109 = arith.mulf %107, %108 : vector<16x16xf32>
    %110 = arith.addf %99, %109 : vector<16x16xf32>
    %cst_65 = arith.constant -0.0228707716 : f32
    %111 = vector.broadcast %cst_65 : f32 to vector<16x16xf32>
    %112 = arith.mulf %107, %111 : vector<16x16xf32>
    %113 = arith.addf %102, %112 : vector<16x16xf32>
    %cst_66 = arith.constant -0.0940446257 : f32
    %114 = vector.broadcast %cst_66 : f32 to vector<16x16xf32>
    %115 = arith.mulf %107, %114 : vector<16x16xf32>
    %116 = arith.addf %105, %115 : vector<16x16xf32>
    %c3_67 = arith.constant 3 : index
    %c3_68 = arith.constant 3 : index
    %c0_69 = arith.constant 0 : index
    %117 = vector.load %arg4[%c3_67, %c3_68, %c0_69] : memref<5x20x16xf32, #tpu.memory_space<vmem>>, vector<1x16x16xf32>
    %118 = vector.shape_cast %117 : vector<1x16x16xf32> to vector<16x16xf32>
    %cst_70 = arith.constant -0.0796715691 : f32
    %119 = vector.broadcast %cst_70 : f32 to vector<16x16xf32>
    %120 = arith.mulf %118, %119 : vector<16x16xf32>
    %121 = arith.addf %110, %120 : vector<16x16xf32>
    %cst_71 = arith.constant -0.0599141978 : f32
    %122 = vector.broadcast %cst_71 : f32 to vector<16x16xf32>
    %123 = arith.mulf %118, %122 : vector<16x16xf32>
    %124 = arith.addf %113, %123 : vector<16x16xf32>
    %cst_72 = arith.constant 0.0508794226 : f32
    %125 = vector.broadcast %cst_72 : f32 to vector<16x16xf32>
    %126 = arith.mulf %118, %125 : vector<16x16xf32>
    %127 = arith.addf %116, %126 : vector<16x16xf32>
    %cst_73 = arith.constant -3.000000e+00 : f32
    %cst_74 = arith.constant 3.000000e+00 : f32
    %128 = vector.broadcast %cst_73 : f32 to vector<16x16xf32>
    %129 = arith.maximumf %128, %121 : vector<16x16xf32>
    %130 = vector.broadcast %cst_74 : f32 to vector<16x16xf32>
    %131 = arith.minimumf %130, %129 : vector<16x16xf32>
    %c0_75 = arith.constant 0 : index
    %c0_76 = arith.constant 0 : index
    %c0_77 = arith.constant 0 : index
    %c0_78 = arith.constant 0 : index
    %132 = vector.load %arg3[%c0_75, %c0_76, %c0_77, %c0_78] : memref<1x30x16x16xf32, #tpu.memory_space<vmem>>, vector<1x1x16x16xf32>
    %133 = vector.shape_cast %132 : vector<1x1x16x16xf32> to vector<16x16xf32>
    %134 = vector.shape_cast %131 : vector<16x16xf32> to vector<1x1x16x16xf32>
    tpu.vector_store %arg3[%c0_75, %c0_76, %c0_77, %c0_78], %134 {strides = array<i32>} : memref<1x30x16x16xf32, #tpu.memory_space<vmem>>, vector<1x1x16x16xf32>,
    %cst_79 = arith.constant -3.000000e+00 : f32
    %cst_80 = arith.constant 3.000000e+00 : f32
    %135 = vector.broadcast %cst_79 : f32 to vector<16x16xf32>
    %136 = arith.maximumf %135, %124 : vector<16x16xf32>
    %137 = vector.broadcast %cst_80 : f32 to vector<16x16xf32>
    %138 = arith.minimumf %137, %136 : vector<16x16xf32>
    %c0_81 = arith.constant 0 : index
    %c1_82 = arith.constant 1 : index
    %c0_83 = arith.constant 0 : index
    %c0_84 = arith.constant 0 : index
    %139 = vector.load %arg3[%c0_81, %c1_82, %c0_83, %c0_84] : memref<1x30x16x16xf32, #tpu.memory_space<vmem>>, vector<1x1x16x16xf32>
    %140 = vector.shape_cast %139 : vector<1x1x16x16xf32> to vector<16x16xf32>
    %141 = vector.shape_cast %138 : vector<16x16xf32> to vector<1x1x16x16xf32>
    tpu.vector_store %arg3[%c0_81, %c1_82, %c0_83, %c0_84], %141 {strides = array<i32>} : memref<1x30x16x16xf32, #tpu.memory_space<vmem>>, vector<1x1x16x16xf32>,
    %cst_85 = arith.constant -3.000000e+00 : f32
    %cst_86 = arith.constant 3.000000e+00 : f32
    %142 = vector.broadcast %cst_85 : f32 to vector<16x16xf32>
    %143 = arith.maximumf %142, %127 : vector<16x16xf32>
    %144 = vector.broadcast %cst_86 : f32 to vector<16x16xf32>
    %145 = arith.minimumf %144, %143 : vector<16x16xf32>
    %c0_87 = arith.constant 0 : index
    %c2_88 = arith.constant 2 : index
    %c0_89 = arith.constant 0 : index
    %c0_90 = arith.constant 0 : index
    %146 = vector.load %arg3[%c0_87, %c2_88, %c0_89, %c0_90] : memref<1x30x16x16xf32, #tpu.memory_space<vmem>>, vector<1x1x16x16xf32>
    %147 = vector.shape_cast %146 : vector<1x1x16x16xf32> to vector<16x16xf32>
    %148 = vector.shape_cast %145 : vector<16x16xf32> to vector<1x1x16x16xf32>
    tpu.vector_store %arg3[%c0_87, %c2_88, %c0_89, %c0_90], %148 {strides = array<i32>} : memref<1x30x16x16xf32, #tpu.memory_space<vmem>>, vector<1x1x16x16xf32>,
    %c1_91 = arith.constant 1 : index
    %c1_92 = arith.constant 1 : index
    %c0_93 = arith.constant 0 : index
    %149 = vector.load %arg4[%c1_91, %c1_92, %c0_93] : memref<5x20x16xf32, #tpu.memory_space<vmem>>, vector<1x16x16xf32>
    %150 = vector.shape_cast %149 : vector<1x16x16xf32> to vector<16x16xf32>
    %cst_94 = arith.constant 0.0472630151 : f32
    %151 = vector.broadcast %cst_94 : f32 to vector<16x16xf32>
    %152 = arith.mulf %150, %151 : vector<16x16xf32>
    %cst_95 = arith.constant 0.0516483225 : f32
    %153 = vector.broadcast %cst_95 : f32 to vector<16x16xf32>
    %154 = arith.mulf %150, %153 : vector<16x16xf32>
    %cst_96 = arith.constant 0.115193881 : f32
    %155 = vector.broadcast %cst_96 : f32 to vector<16x16xf32>
    %156 = arith.mulf %150, %155 : vector<16x16xf32>
    %c2_97 = arith.constant 2 : index
    %c1_98 = arith.constant 1 : index
    %c0_99 = arith.constant 0 : index
    %157 = vector.load %arg4[%c2_97, %c1_98, %c0_99] : memref<5x20x16xf32, #tpu.memory_space<vmem>>, vector<1x16x16xf32>
    %158 = vector.shape_cast %157 : vector<1x16x16xf32> to vector<16x16xf32>
    %cst_100 = arith.constant -0.0806174725 : f32
    %159 = vector.broadcast %cst_100 : f32 to vector<16x16xf32>
    %160 = arith.mulf %158, %159 : vector<16x16xf32>
    %161 = arith.addf %152, %160 : vector<16x16xf32>
    %cst_101 = arith.constant 0.109977417 : f32
    %162 = vector.broadcast %cst_101 : f32 to vector<16x16xf32>
    %163 = arith.mulf %158, %162 : vector<16x16xf32>
    %164 = arith.addf %154, %163 : vector<16x16xf32>
    %cst_102 = arith.constant -0.149295464 : f32
    %165 = vector.broadcast %cst_102 : f32 to vector<16x16xf32>
    %166 = arith.mulf %158, %165 : vector<16x16xf32>
    %167 = arith.addf %156, %166 : vector<16x16xf32>
    %c3_103 = arith.constant 3 : index
    %c1_104 = arith.constant 1 : index
    %c0_105 = arith.constant 0 : index
    %168 = vector.load %arg4[%c3_103, %c1_104, %c0_105] : memref<5x20x16xf32, #tpu.memory_space<vmem>>, vector<1x16x16xf32>
    %169 = vector.shape_cast %168 : vector<1x16x16xf32> to vector<16x16xf32>
    %cst_106 = arith.constant -5.07655961E-4 : f32
    %170 = vector.broadcast %cst_106 : f32 to vector<16x16xf32>
    %171 = arith.mulf %169, %170 : vector<16x16xf32>
    %172 = arith.addf %161, %171 : vector<16x16xf32>
    %cst_107 = arith.constant 0.0529654734 : f32
    %173 = vector.broadcast %cst_107 : f32 to vector<16x16xf32>
    %174 = arith.mulf %169, %173 : vector<16x16xf32>
    %175 = arith.addf %164, %174 : vector<16x16xf32>
    %cst_108 = arith.constant 0.0367146321 : f32
    %176 = vector.broadcast %cst_108 : f32 to vector<16x16xf32>
    %177 = arith.mulf %169, %176 : vector<16x16xf32>
    %178 = arith.addf %167, %177 : vector<16x16xf32>
    %c1_109 = arith.constant 1 : index
    %c2_110 = arith.constant 2 : index
    %c0_111 = arith.constant 0 : index
    %179 = vector.load %arg4[%c1_109, %c2_110, %c0_111] : memref<5x20x16xf32, #tpu.memory_space<vmem>>, vector<1x16x16xf32>
    %180 = vector.shape_cast %179 : vector<1x16x16xf32> to vector<16x16xf32>
    %cst_112 = arith.constant -0.139452204 : f32
    %181 = vector.broadcast %cst_112 : f32 to vector<16x16xf32>
    %182 = arith.mulf %180, %181 : vector<16x16xf32>
    %183 = arith.addf %172, %182 : vector<16x16xf32>
    %cst_113 = arith.constant 0.037861079 : f32
    %184 = vector.broadcast %cst_113 : f32 to vector<16x16xf32>
    %185 = arith.mulf %180, %184 : vector<16x16xf32>
    %186 = arith.addf %175, %185 : vector<16x16xf32>
    %cst_114 = arith.constant -0.122316808 : f32
    %187 = vector.broadcast %cst_114 : f32 to vector<16x16xf32>
    %188 = arith.mulf %180, %187 : vector<16x16xf32>
    %189 = arith.addf %178, %188 : vector<16x16xf32>
    %c2_115 = arith.constant 2 : index
    %c2_116 = arith.constant 2 : index
    %c0_117 = arith.constant 0 : index
    %190 = vector.load %arg4[%c2_115, %c2_116, %c0_117] : memref<5x20x16xf32, #tpu.memory_space<vmem>>, vector<1x16x16xf32>
    %191 = vector.shape_cast %190 : vector<1x16x16xf32> to vector<16x16xf32>
    %cst_118 = arith.constant 0.091818057 : f32
    %192 = vector.broadcast %cst_118 : f32 to vector<16x16xf32>
    %193 = arith.mulf %191, %192 : vector<16x16xf32>
    %194 = arith.addf %183, %193 : vector<16x16xf32>
    %cst_119 = arith.constant -0.0811700299 : f32
    %195 = vector.broadcast %cst_119 : f32 to vector<16x16xf32>
    %196 = arith.mulf %191, %195 : vector<16x16xf32>
    %197 = arith.addf %186, %196 : vector<16x16xf32>
    %cst_120 = arith.constant 0.0420119129 : f32
    %198 = vector.broadcast %cst_120 : f32 to vector<16x16xf32>
    %199 = arith.mulf %191, %198 : vector<16x16xf32>
    %200 = arith.addf %189, %199 : vector<16x16xf32>
    %c3_121 = arith.constant 3 : index
    %c2_122 = arith.constant 2 : index
    %c0_123 = arith.constant 0 : index
    %201 = vector.load %arg4[%c3_121, %c2_122, %c0_123] : memref<5x20x16xf32, #tpu.memory_space<vmem>>, vector<1x16x16xf32>
    %202 = vector.shape_cast %201 : vector<1x16x16xf32> to vector<16x16xf32>
    %cst_124 = arith.constant -0.0594281144 : f32
    %203 = vector.broadcast %cst_124 : f32 to vector<16x16xf32>
    %204 = arith.mulf %202, %203 : vector<16x16xf32>
    %205 = arith.addf %194, %204 : vector<16x16xf32>
    %cst_125 = arith.constant 4.605547E-4 : f32
    %206 = vector.broadcast %cst_125 : f32 to vector<16x16xf32>
    %207 = arith.mulf %202, %206 : vector<16x16xf32>
    %208 = arith.addf %197, %207 : vector<16x16xf32>
    %cst_126 = arith.constant -0.0160222258 : f32
    %209 = vector.broadcast %cst_126 : f32 to vector<16x16xf32>
    %210 = arith.mulf %202, %209 : vector<16x16xf32>
    %211 = arith.addf %200, %210 : vector<16x16xf32>
    %c1_127 = arith.constant 1 : index
    %c3_128 = arith.constant 3 : index
    %c0_129 = arith.constant 0 : index
    %212 = vector.load %arg4[%c1_127, %c3_128, %c0_129] : memref<5x20x16xf32, #tpu.memory_space<vmem>>, vector<1x16x16xf32>
    %213 = vector.shape_cast %212 : vector<1x16x16xf32> to vector<16x16xf32>
    %cst_130 = arith.constant 0.00739769684 : f32
    %214 = vector.broadcast %cst_130 : f32 to vector<16x16xf32>
    %215 = arith.mulf %213, %214 : vector<16x16xf32>
    %216 = arith.addf %205, %215 : vector<16x16xf32>
    %cst_131 = arith.constant -8.339380e-03 : f32
    %217 = vector.broadcast %cst_131 : f32 to vector<16x16xf32>
    %218 = arith.mulf %213, %217 : vector<16x16xf32>
    %219 = arith.addf %208, %218 : vector<16x16xf32>
    %cst_132 = arith.constant 0.0650996863 : f32
    %220 = vector.broadcast %cst_132 : f32 to vector<16x16xf32>
    %221 = arith.mulf %213, %220 : vector<16x16xf32>
    %222 = arith.addf %211, %221 : vector<16x16xf32>
    %c2_133 = arith.constant 2 : index
    %c3_134 = arith.constant 3 : index
    %c0_135 = arith.constant 0 : index
    %223 = vector.load %arg4[%c2_133, %c3_134, %c0_135] : memref<5x20x16xf32, #tpu.memory_space<vmem>>, vector<1x16x16xf32>
    %224 = vector.shape_cast %223 : vector<1x16x16xf32> to vector<16x16xf32>
    %cst_136 = arith.constant 0.0055691991 : f32
    %225 = vector.broadcast %cst_136 : f32 to vector<16x16xf32>
    %226 = arith.mulf %224, %225 : vector<16x16xf32>
    %227 = arith.addf %216, %226 : vector<16x16xf32>
    %cst_137 = arith.constant 0.123628467 : f32
    %228 = vector.broadcast %cst_137 : f32 to vector<16x16xf32>
    %229 = arith.mulf %224, %228 : vector<16x16xf32>
    %230 = arith.addf %219, %229 : vector<16x16xf32>
    %cst_138 = arith.constant 0.11296913 : f32
    %231 = vector.broadcast %cst_138 : f32 to vector<16x16xf32>
    %232 = arith.mulf %224, %231 : vector<16x16xf32>
    %233 = arith.addf %222, %232 : vector<16x16xf32>
    %c3_139 = arith.constant 3 : index
    %c3_140 = arith.constant 3 : index
    %c0_141 = arith.constant 0 : index
    %234 = vector.load %arg4[%c3_139, %c3_140, %c0_141] : memref<5x20x16xf32, #tpu.memory_space<vmem>>, vector<1x16x16xf32>
    %235 = vector.shape_cast %234 : vector<1x16x16xf32> to vector<16x16xf32>
    %cst_142 = arith.constant 0.00754665583 : f32
    %236 = vector.broadcast %cst_142 : f32 to vector<16x16xf32>
    %237 = arith.mulf %235, %236 : vector<16x16xf32>
    %238 = arith.addf %227, %237 : vector<16x16xf32>
    %cst_143 = arith.constant -0.0274252445 : f32
    %239 = vector.broadcast %cst_143 : f32 to vector<16x16xf32>
    %240 = arith.mulf %235, %239 : vector<16x16xf32>
    %241 = arith.addf %230, %240 : vector<16x16xf32>
    %cst_144 = arith.constant 0.00859332178 : f32
    %242 = vector.broadcast %cst_144 : f32 to vector<16x16xf32>
    %243 = arith.mulf %235, %242 : vector<16x16xf32>
    %244 = arith.addf %233, %243 : vector<16x16xf32>
    %cst_145 = arith.constant -3.000000e+00 : f32
    %cst_146 = arith.constant 3.000000e+00 : f32
    %245 = vector.broadcast %cst_145 : f32 to vector<16x16xf32>
    %246 = arith.maximumf %245, %238 : vector<16x16xf32>
    %247 = vector.broadcast %cst_146 : f32 to vector<16x16xf32>
    %248 = arith.minimumf %247, %246 : vector<16x16xf32>
    %c0_147 = arith.constant 0 : index
    %c3_148 = arith.constant 3 : index
    %c0_149 = arith.constant 0 : index
    %c0_150 = arith.constant 0 : index
    %249 = vector.load %arg3[%c0_147, %c3_148, %c0_149, %c0_150] : memref<1x30x16x16xf32, #tpu.memory_space<vmem>>, vector<1x1x16x16xf32>
    %250 = vector.shape_cast %249 : vector<1x1x16x16xf32> to vector<16x16xf32>
    %251 = vector.shape_cast %248 : vector<16x16xf32> to vector<1x1x16x16xf32>
    tpu.vector_store %arg3[%c0_147, %c3_148, %c0_149, %c0_150], %251 {strides = array<i32>} : memref<1x30x16x16xf32, #tpu.memory_space<vmem>>, vector<1x1x16x16xf32>,
    %cst_151 = arith.constant -3.000000e+00 : f32
    %cst_152 = arith.constant 3.000000e+00 : f32
    %252 = vector.broadcast %cst_151 : f32 to vector<16x16xf32>
    %253 = arith.maximumf %252, %241 : vector<16x16xf32>
    %254 = vector.broadcast %cst_152 : f32 to vector<16x16xf32>
    %255 = arith.minimumf %254, %253 : vector<16x16xf32>
    %c0_153 = arith.constant 0 : index
    %c4_154 = arith.constant 4 : index
    %c0_155 = arith.constant 0 : index
    %c0_156 = arith.constant 0 : index
    %256 = vector.load %arg3[%c0_153, %c4_154, %c0_155, %c0_156] : memref<1x30x16x16xf32, #tpu.memory_space<vmem>>, vector<1x1x16x16xf32>
    %257 = vector.shape_cast %256 : vector<1x1x16x16xf32> to vector<16x16xf32>
    %258 = vector.shape_cast %255 : vector<16x16xf32> to vector<1x1x16x16xf32>
    tpu.vector_store %arg3[%c0_153, %c4_154, %c0_155, %c0_156], %258 {strides = array<i32>} : memref<1x30x16x16xf32, #tpu.memory_space<vmem>>, vector<1x1x16x16xf32>,
    %cst_157 = arith.constant -3.000000e+00 : f32
    %cst_158 = arith.constant 3.000000e+00 : f32
    %259 = vector.broadcast %cst_157 : f32 to vector<16x16xf32>
    %260 = arith.maximumf %259, %244 : vector<16x16xf32>
    %261 = vector.broadcast %cst_158 : f32 to vector<16x16xf32>
    %262 = arith.minimumf %261, %260 : vector<16x16xf32>
    %c0_159 = arith.constant 0 : index
    %c5 = arith.constant 5 : index
    %c0_160 = arith.constant 0 : index
    %c0_161 = arith.constant 0 : index
    %263 = vector.load %arg3[%c0_159, %c5, %c0_160, %c0_161] : memref<1x30x16x16xf32, #tpu.memory_space<vmem>>, vector<1x1x16x16xf32>
    %264 = vector.shape_cast %263 : vector<1x1x16x16xf32> to vector<16x16xf32>
    %265 = vector.shape_cast %262 : vector<16x16xf32> to vector<1x1x16x16xf32>
    tpu.vector_store %arg3[%c0_159, %c5, %c0_160, %c0_161], %265 {strides = array<i32>} : memref<1x30x16x16xf32, #tpu.memory_space<vmem>>, vector<1x1x16x16xf32>,
    %c1_162 = arith.constant 1 : index
    %c1_163 = arith.constant 1 : index
    %c0_164 = arith.constant 0 : index
    %266 = vector.load %arg4[%c1_162, %c1_163, %c0_164] : memref<5x20x16xf32, #tpu.memory_space<vmem>>, vector<1x16x16xf32>
    %267 = vector.shape_cast %266 : vector<1x16x16xf32> to vector<16x16xf32>
    %cst_165 = arith.constant -0.0243074019 : f32
    %268 = vector.broadcast %cst_165 : f32 to vector<16x16xf32>
    %269 = arith.mulf %267, %268 : vector<16x16xf32>
    %cst_166 = arith.constant 0.0909343883 : f32
    %270 = vector.broadcast %cst_166 : f32 to vector<16x16xf32>
    %271 = arith.mulf %267, %270 : vector<16x16xf32>
    %cst_167 = arith.constant -0.0199712254 : f32
    %272 = vector.broadcast %cst_167 : f32 to vector<16x16xf32>
    %273 = arith.mulf %267, %272 : vector<16x16xf32>
    %c2_168 = arith.constant 2 : index
    %c1_169 = arith.constant 1 : index
    %c0_170 = arith.constant 0 : index
    %274 = vector.load %arg4[%c2_168, %c1_169, %c0_170] : memref<5x20x16xf32, #tpu.memory_space<vmem>>, vector<1x16x16xf32>
    %275 = vector.shape_cast %274 : vector<1x16x16xf32> to vector<16x16xf32>
    %cst_171 = arith.constant -0.0388300493 : f32
    %276 = vector.broadcast %cst_171 : f32 to vector<16x16xf32>
    %277 = arith.mulf %275, %276 : vector<16x16xf32>
    %278 = arith.addf %269, %277 : vector<16x16xf32>
    %cst_172 = arith.constant 0.0111174779 : f32
    %279 = vector.broadcast %cst_172 : f32 to vector<16x16xf32>
    %280 = arith.mulf %275, %279 : vector<16x16xf32>
    %281 = arith.addf %271, %280 : vector<16x16xf32>
    %cst_173 = arith.constant -0.139010489 : f32
    %282 = vector.broadcast %cst_173 : f32 to vector<16x16xf32>
    %283 = arith.mulf %275, %282 : vector<16x16xf32>
    %284 = arith.addf %273, %283 : vector<16x16xf32>
    %c3_174 = arith.constant 3 : index
    %c1_175 = arith.constant 1 : index
    %c0_176 = arith.constant 0 : index
    %285 = vector.load %arg4[%c3_174, %c1_175, %c0_176] : memref<5x20x16xf32, #tpu.memory_space<vmem>>, vector<1x16x16xf32>
    %286 = vector.shape_cast %285 : vector<1x16x16xf32> to vector<16x16xf32>
    %cst_177 = arith.constant 0.0439605601 : f32
    %287 = vector.broadcast %cst_177 : f32 to vector<16x16xf32>
    %288 = arith.mulf %286, %287 : vector<16x16xf32>
    %289 = arith.addf %278, %288 : vector<16x16xf32>
    %cst_178 = arith.constant 0.143008336 : f32
    %290 = vector.broadcast %cst_178 : f32 to vector<16x16xf32>
    %291 = arith.mulf %286, %290 : vector<16x16xf32>
    %292 = arith.addf %281, %291 : vector<16x16xf32>
    %cst_179 = arith.constant -0.0224335622 : f32
    %293 = vector.broadcast %cst_179 : f32 to vector<16x16xf32>
    %294 = arith.mulf %286, %293 : vector<16x16xf32>
    %295 = arith.addf %284, %294 : vector<16x16xf32>
    %c1_180 = arith.constant 1 : index
    %c2_181 = arith.constant 2 : index
    %c0_182 = arith.constant 0 : index
    %296 = vector.load %arg4[%c1_180, %c2_181, %c0_182] : memref<5x20x16xf32, #tpu.memory_space<vmem>>, vector<1x16x16xf32>
    %297 = vector.shape_cast %296 : vector<1x16x16xf32> to vector<16x16xf32>
    %cst_183 = arith.constant 5.263560e-02 : f32
    %298 = vector.broadcast %cst_183 : f32 to vector<16x16xf32>
    %299 = arith.mulf %297, %298 : vector<16x16xf32>
    %300 = arith.addf %289, %299 : vector<16x16xf32>
    %cst_184 = arith.constant 0.0921449065 : f32
    %301 = vector.broadcast %cst_184 : f32 to vector<16x16xf32>
    %302 = arith.mulf %297, %301 : vector<16x16xf32>
    %303 = arith.addf %292, %302 : vector<16x16xf32>
    %cst_185 = arith.constant 0.299517602 : f32
    %304 = vector.broadcast %cst_185 : f32 to vector<16x16xf32>
    %305 = arith.mulf %297, %304 : vector<16x16xf32>
    %306 = arith.addf %295, %305 : vector<16x16xf32>
    %c2_186 = arith.constant 2 : index
    %c2_187 = arith.constant 2 : index
    %c0_188 = arith.constant 0 : index
    %307 = vector.load %arg4[%c2_186, %c2_187, %c0_188] : memref<5x20x16xf32, #tpu.memory_space<vmem>>, vector<1x16x16xf32>
    %308 = vector.shape_cast %307 : vector<1x16x16xf32> to vector<16x16xf32>
    %cst_189 = arith.constant -7.664920e-02 : f32
    %309 = vector.broadcast %cst_189 : f32 to vector<16x16xf32>
    %310 = arith.mulf %308, %309 : vector<16x16xf32>
    %311 = arith.addf %300, %310 : vector<16x16xf32>
    %cst_190 = arith.constant -0.0149315009 : f32
    %312 = vector.broadcast %cst_190 : f32 to vector<16x16xf32>
    %313 = arith.mulf %308, %312 : vector<16x16xf32>
    %314 = arith.addf %303, %313 : vector<16x16xf32>
    %cst_191 = arith.constant 1.862820e-02 : f32
    %315 = vector.broadcast %cst_191 : f32 to vector<16x16xf32>
    %316 = arith.mulf %308, %315 : vector<16x16xf32>
    %317 = arith.addf %306, %316 : vector<16x16xf32>
    %c3_192 = arith.constant 3 : index
    %c2_193 = arith.constant 2 : index
    %c0_194 = arith.constant 0 : index
    %318 = vector.load %arg4[%c3_192, %c2_193, %c0_194] : memref<5x20x16xf32, #tpu.memory_space<vmem>>, vector<1x16x16xf32>
    %319 = vector.shape_cast %318 : vector<1x16x16xf32> to vector<16x16xf32>
    %cst_195 = arith.constant 0.0454627164 : f32
    %320 = vector.broadcast %cst_195 : f32 to vector<16x16xf32>
    %321 = arith.mulf %319, %320 : vector<16x16xf32>
    %322 = arith.addf %311, %321 : vector<16x16xf32>
    %cst_196 = arith.constant -0.0967602357 : f32
    %323 = vector.broadcast %cst_196 : f32 to vector<16x16xf32>
    %324 = arith.mulf %319, %323 : vector<16x16xf32>
    %325 = arith.addf %314, %324 : vector<16x16xf32>
    %cst_197 = arith.constant -0.0170548744 : f32
    %326 = vector.broadcast %cst_197 : f32 to vector<16x16xf32>
    %327 = arith.mulf %319, %326 : vector<16x16xf32>
    %328 = arith.addf %317, %327 : vector<16x16xf32>
    %c1_198 = arith.constant 1 : index
    %c3_199 = arith.constant 3 : index
    %c0_200 = arith.constant 0 : index
    %329 = vector.load %arg4[%c1_198, %c3_199, %c0_200] : memref<5x20x16xf32, #tpu.memory_space<vmem>>, vector<1x16x16xf32>
    %330 = vector.shape_cast %329 : vector<1x16x16xf32> to vector<16x16xf32>
    %cst_201 = arith.constant -0.245577872 : f32
    %331 = vector.broadcast %cst_201 : f32 to vector<16x16xf32>
    %332 = arith.mulf %330, %331 : vector<16x16xf32>
    %333 = arith.addf %322, %332 : vector<16x16xf32>
    %cst_202 = arith.constant 0.0618706532 : f32
    %334 = vector.broadcast %cst_202 : f32 to vector<16x16xf32>
    %335 = arith.mulf %330, %334 : vector<16x16xf32>
    %336 = arith.addf %325, %335 : vector<16x16xf32>
    %cst_203 = arith.constant 0.013812541 : f32
    %337 = vector.broadcast %cst_203 : f32 to vector<16x16xf32>
    %338 = arith.mulf %330, %337 : vector<16x16xf32>
    %339 = arith.addf %328, %338 : vector<16x16xf32>
    %c2_204 = arith.constant 2 : index
    %c3_205 = arith.constant 3 : index
    %c0_206 = arith.constant 0 : index
    %340 = vector.load %arg4[%c2_204, %c3_205, %c0_206] : memref<5x20x16xf32, #tpu.memory_space<vmem>>, vector<1x16x16xf32>
    %341 = vector.shape_cast %340 : vector<1x16x16xf32> to vector<16x16xf32>
    %cst_207 = arith.constant 0.0767967477 : f32
    %342 = vector.broadcast %cst_207 : f32 to vector<16x16xf32>
    %343 = arith.mulf %341, %342 : vector<16x16xf32>
    %344 = arith.addf %333, %343 : vector<16x16xf32>
    %cst_208 = arith.constant 0.0881480947 : f32
    %345 = vector.broadcast %cst_208 : f32 to vector<16x16xf32>
    %346 = arith.mulf %341, %345 : vector<16x16xf32>
    %347 = arith.addf %336, %346 : vector<16x16xf32>
    %cst_209 = arith.constant -0.04668786 : f32
    %348 = vector.broadcast %cst_209 : f32 to vector<16x16xf32>
    %349 = arith.mulf %341, %348 : vector<16x16xf32>
    %350 = arith.addf %339, %349 : vector<16x16xf32>
    %c3_210 = arith.constant 3 : index
    %c3_211 = arith.constant 3 : index
    %c0_212 = arith.constant 0 : index
    %351 = vector.load %arg4[%c3_210, %c3_211, %c0_212] : memref<5x20x16xf32, #tpu.memory_space<vmem>>, vector<1x16x16xf32>
    %352 = vector.shape_cast %351 : vector<1x16x16xf32> to vector<16x16xf32>
    %cst_213 = arith.constant 0.0610054769 : f32
    %353 = vector.broadcast %cst_213 : f32 to vector<16x16xf32>
    %354 = arith.mulf %352, %353 : vector<16x16xf32>
    %355 = arith.addf %344, %354 : vector<16x16xf32>
    %cst_214 = arith.constant 0.0256651025 : f32
    %356 = vector.broadcast %cst_214 : f32 to vector<16x16xf32>
    %357 = arith.mulf %352, %356 : vector<16x16xf32>
    %358 = arith.addf %347, %357 : vector<16x16xf32>
    %cst_215 = arith.constant -0.0507033467 : f32
    %359 = vector.broadcast %cst_215 : f32 to vector<16x16xf32>
    %360 = arith.mulf %352, %359 : vector<16x16xf32>
    %361 = arith.addf %350, %360 : vector<16x16xf32>
    %cst_216 = arith.constant -3.000000e+00 : f32
    %cst_217 = arith.constant 3.000000e+00 : f32
    %362 = vector.broadcast %cst_216 : f32 to vector<16x16xf32>
    %363 = arith.maximumf %362, %355 : vector<16x16xf32>
    %364 = vector.broadcast %cst_217 : f32 to vector<16x16xf32>
    %365 = arith.minimumf %364, %363 : vector<16x16xf32>
    %c0_218 = arith.constant 0 : index
    %c6 = arith.constant 6 : index
    %c0_219 = arith.constant 0 : index
    %c0_220 = arith.constant 0 : index
    %366 = vector.load %arg3[%c0_218, %c6, %c0_219, %c0_220] : memref<1x30x16x16xf32, #tpu.memory_space<vmem>>, vector<1x1x16x16xf32>
    %367 = vector.shape_cast %366 : vector<1x1x16x16xf32> to vector<16x16xf32>
    %368 = vector.shape_cast %365 : vector<16x16xf32> to vector<1x1x16x16xf32>
    tpu.vector_store %arg3[%c0_218, %c6, %c0_219, %c0_220], %368 {strides = array<i32>} : memref<1x30x16x16xf32, #tpu.memory_space<vmem>>, vector<1x1x16x16xf32>,
    %cst_221 = arith.constant -3.000000e+00 : f32
    %cst_222 = arith.constant 3.000000e+00 : f32
    %369 = vector.broadcast %cst_221 : f32 to vector<16x16xf32>
    %370 = arith.maximumf %369, %358 : vector<16x16xf32>
    %371 = vector.broadcast %cst_222 : f32 to vector<16x16xf32>
    %372 = arith.minimumf %371, %370 : vector<16x16xf32>
    %c0_223 = arith.constant 0 : index
    %c7 = arith.constant 7 : index
    %c0_224 = arith.constant 0 : index
    %c0_225 = arith.constant 0 : index
    %373 = vector.load %arg3[%c0_223, %c7, %c0_224, %c0_225] : memref<1x30x16x16xf32, #tpu.memory_space<vmem>>, vector<1x1x16x16xf32>
    %374 = vector.shape_cast %373 : vector<1x1x16x16xf32> to vector<16x16xf32>
    %375 = vector.shape_cast %372 : vector<16x16xf32> to vector<1x1x16x16xf32>
    tpu.vector_store %arg3[%c0_223, %c7, %c0_224, %c0_225], %375 {strides = array<i32>} : memref<1x30x16x16xf32, #tpu.memory_space<vmem>>, vector<1x1x16x16xf32>,
    %cst_226 = arith.constant -3.000000e+00 : f32
    %cst_227 = arith.constant 3.000000e+00 : f32
    %376 = vector.broadcast %cst_226 : f32 to vector<16x16xf32>
    %377 = arith.maximumf %376, %361 : vector<16x16xf32>
    %378 = vector.broadcast %cst_227 : f32 to vector<16x16xf32>
    %379 = arith.minimumf %378, %377 : vector<16x16xf32>
    %c0_228 = arith.constant 0 : index
    %c8 = arith.constant 8 : index
    %c0_229 = arith.constant 0 : index
    %c0_230 = arith.constant 0 : index
    %380 = vector.load %arg3[%c0_228, %c8, %c0_229, %c0_230] : memref<1x30x16x16xf32, #tpu.memory_space<vmem>>, vector<1x1x16x16xf32>
    %381 = vector.shape_cast %380 : vector<1x1x16x16xf32> to vector<16x16xf32>
    %382 = vector.shape_cast %379 : vector<16x16xf32> to vector<1x1x16x16xf32>
    tpu.vector_store %arg3[%c0_228, %c8, %c0_229, %c0_230], %382 {strides = array<i32>} : memref<1x30x16x16xf32, #tpu.memory_space<vmem>>, vector<1x1x16x16xf32>,
    %c1_231 = arith.constant 1 : index
    %c1_232 = arith.constant 1 : index
    %c0_233 = arith.constant 0 : index
    %383 = vector.load %arg4[%c1_231, %c1_232, %c0_233] : memref<5x20x16xf32, #tpu.memory_space<vmem>>, vector<1x16x16xf32>
    %384 = vector.shape_cast %383 : vector<1x16x16xf32> to vector<16x16xf32>
    %cst_234 = arith.constant 0.135723874 : f32
    %385 = vector.broadcast %cst_234 : f32 to vector<16x16xf32>
    %386 = arith.mulf %384, %385 : vector<16x16xf32>
    %cst_235 = arith.constant 0.00929643679 : f32
    %387 = vector.broadcast %cst_235 : f32 to vector<16x16xf32>
    %388 = arith.mulf %384, %387 : vector<16x16xf32>
    %cst_236 = arith.constant 0.125925779 : f32
    %389 = vector.broadcast %cst_236 : f32 to vector<16x16xf32>
    %390 = arith.mulf %384, %389 : vector<16x16xf32>
    %c2_237 = arith.constant 2 : index
    %c1_238 = arith.constant 1 : index
    %c0_239 = arith.constant 0 : index
    %391 = vector.load %arg4[%c2_237, %c1_238, %c0_239] : memref<5x20x16xf32, #tpu.memory_space<vmem>>, vector<1x16x16xf32>
    %392 = vector.shape_cast %391 : vector<1x16x16xf32> to vector<16x16xf32>
    %cst_240 = arith.constant -0.0306892339 : f32
    %393 = vector.broadcast %cst_240 : f32 to vector<16x16xf32>
    %394 = arith.mulf %392, %393 : vector<16x16xf32>
    %395 = arith.addf %386, %394 : vector<16x16xf32>
    %cst_241 = arith.constant 0.0668476447 : f32
    %396 = vector.broadcast %cst_241 : f32 to vector<16x16xf32>
    %397 = arith.mulf %392, %396 : vector<16x16xf32>
    %398 = arith.addf %388, %397 : vector<16x16xf32>
    %cst_242 = arith.constant 0.106738381 : f32
    %399 = vector.broadcast %cst_242 : f32 to vector<16x16xf32>
    %400 = arith.mulf %392, %399 : vector<16x16xf32>
    %401 = arith.addf %390, %400 : vector<16x16xf32>
    %c3_243 = arith.constant 3 : index
    %c1_244 = arith.constant 1 : index
    %c0_245 = arith.constant 0 : index
    %402 = vector.load %arg4[%c3_243, %c1_244, %c0_245] : memref<5x20x16xf32, #tpu.memory_space<vmem>>, vector<1x16x16xf32>
    %403 = vector.shape_cast %402 : vector<1x16x16xf32> to vector<16x16xf32>
    %cst_246 = arith.constant 0.0716301575 : f32
    %404 = vector.broadcast %cst_246 : f32 to vector<16x16xf32>
    %405 = arith.mulf %403, %404 : vector<16x16xf32>
    %406 = arith.addf %395, %405 : vector<16x16xf32>
    %cst_247 = arith.constant 0.0439458229 : f32
    %407 = vector.broadcast %cst_247 : f32 to vector<16x16xf32>
    %408 = arith.mulf %403, %407 : vector<16x16xf32>
    %409 = arith.addf %398, %408 : vector<16x16xf32>
    %cst_248 = arith.constant -0.0925028994 : f32
    %410 = vector.broadcast %cst_248 : f32 to vector<16x16xf32>
    %411 = arith.mulf %403, %410 : vector<16x16xf32>
    %412 = arith.addf %401, %411 : vector<16x16xf32>
    %c1_249 = arith.constant 1 : index
    %c2_250 = arith.constant 2 : index
    %c0_251 = arith.constant 0 : index
    %413 = vector.load %arg4[%c1_249, %c2_250, %c0_251] : memref<5x20x16xf32, #tpu.memory_space<vmem>>, vector<1x16x16xf32>
    %414 = vector.shape_cast %413 : vector<1x16x16xf32> to vector<16x16xf32>
    %cst_252 = arith.constant 0.0198930074 : f32
    %415 = vector.broadcast %cst_252 : f32 to vector<16x16xf32>
    %416 = arith.mulf %414, %415 : vector<16x16xf32>
    %417 = arith.addf %406, %416 : vector<16x16xf32>
    %cst_253 = arith.constant 0.0800917596 : f32
    %418 = vector.broadcast %cst_253 : f32 to vector<16x16xf32>
    %419 = arith.mulf %414, %418 : vector<16x16xf32>
    %420 = arith.addf %409, %419 : vector<16x16xf32>
    %cst_254 = arith.constant -0.0325581469 : f32
    %421 = vector.broadcast %cst_254 : f32 to vector<16x16xf32>
    %422 = arith.mulf %414, %421 : vector<16x16xf32>
    %423 = arith.addf %412, %422 : vector<16x16xf32>
    %c2_255 = arith.constant 2 : index
    %c2_256 = arith.constant 2 : index
    %c0_257 = arith.constant 0 : index
    %424 = vector.load %arg4[%c2_255, %c2_256, %c0_257] : memref<5x20x16xf32, #tpu.memory_space<vmem>>, vector<1x16x16xf32>
    %425 = vector.shape_cast %424 : vector<1x16x16xf32> to vector<16x16xf32>
    %cst_258 = arith.constant 0.0339896344 : f32
    %426 = vector.broadcast %cst_258 : f32 to vector<16x16xf32>
    %427 = arith.mulf %425, %426 : vector<16x16xf32>
    %428 = arith.addf %417, %427 : vector<16x16xf32>
    %cst_259 = arith.constant 0.0439066254 : f32
    %429 = vector.broadcast %cst_259 : f32 to vector<16x16xf32>
    %430 = arith.mulf %425, %429 : vector<16x16xf32>
    %431 = arith.addf %420, %430 : vector<16x16xf32>
    %cst_260 = arith.constant -0.0403789245 : f32
    %432 = vector.broadcast %cst_260 : f32 to vector<16x16xf32>
    %433 = arith.mulf %425, %432 : vector<16x16xf32>
    %434 = arith.addf %423, %433 : vector<16x16xf32>
    %c3_261 = arith.constant 3 : index
    %c2_262 = arith.constant 2 : index
    %c0_263 = arith.constant 0 : index
    %435 = vector.load %arg4[%c3_261, %c2_262, %c0_263] : memref<5x20x16xf32, #tpu.memory_space<vmem>>, vector<1x16x16xf32>
    %436 = vector.shape_cast %435 : vector<1x16x16xf32> to vector<16x16xf32>
    %cst_264 = arith.constant 5.491720e-02 : f32
    %437 = vector.broadcast %cst_264 : f32 to vector<16x16xf32>
    %438 = arith.mulf %436, %437 : vector<16x16xf32>
    %439 = arith.addf %428, %438 : vector<16x16xf32>
    %cst_265 = arith.constant -0.0567529686 : f32
    %440 = vector.broadcast %cst_265 : f32 to vector<16x16xf32>
    %441 = arith.mulf %436, %440 : vector<16x16xf32>
    %442 = arith.addf %431, %441 : vector<16x16xf32>
    %cst_266 = arith.constant -0.0866289958 : f32
    %443 = vector.broadcast %cst_266 : f32 to vector<16x16xf32>
    %444 = arith.mulf %436, %443 : vector<16x16xf32>
    %445 = arith.addf %434, %444 : vector<16x16xf32>
    %c1_267 = arith.constant 1 : index
    %c3_268 = arith.constant 3 : index
    %c0_269 = arith.constant 0 : index
    %446 = vector.load %arg4[%c1_267, %c3_268, %c0_269] : memref<5x20x16xf32, #tpu.memory_space<vmem>>, vector<1x16x16xf32>
    %447 = vector.shape_cast %446 : vector<1x16x16xf32> to vector<16x16xf32>
    %cst_270 = arith.constant 0.0603766926 : f32
    %448 = vector.broadcast %cst_270 : f32 to vector<16x16xf32>
    %449 = arith.mulf %447, %448 : vector<16x16xf32>
    %450 = arith.addf %439, %449 : vector<16x16xf32>
    %cst_271 = arith.constant -0.114640497 : f32
    %451 = vector.broadcast %cst_271 : f32 to vector<16x16xf32>
    %452 = arith.mulf %447, %451 : vector<16x16xf32>
    %453 = arith.addf %442, %452 : vector<16x16xf32>
    %cst_272 = arith.constant -0.0654518679 : f32
    %454 = vector.broadcast %cst_272 : f32 to vector<16x16xf32>
    %455 = arith.mulf %447, %454 : vector<16x16xf32>
    %456 = arith.addf %445, %455 : vector<16x16xf32>
    %c2_273 = arith.constant 2 : index
    %c3_274 = arith.constant 3 : index
    %c0_275 = arith.constant 0 : index
    %457 = vector.load %arg4[%c2_273, %c3_274, %c0_275] : memref<5x20x16xf32, #tpu.memory_space<vmem>>, vector<1x16x16xf32>
    %458 = vector.shape_cast %457 : vector<1x16x16xf32> to vector<16x16xf32>
    %cst_276 = arith.constant 0.00479721418 : f32
    %459 = vector.broadcast %cst_276 : f32 to vector<16x16xf32>
    %460 = arith.mulf %458, %459 : vector<16x16xf32>
    %461 = arith.addf %450, %460 : vector<16x16xf32>
    %cst_277 = arith.constant 0.0240621865 : f32
    %462 = vector.broadcast %cst_277 : f32 to vector<16x16xf32>
    %463 = arith.mulf %458, %462 : vector<16x16xf32>
    %464 = arith.addf %453, %463 : vector<16x16xf32>
    %cst_278 = arith.constant -0.0540399365 : f32
    %465 = vector.broadcast %cst_278 : f32 to vector<16x16xf32>
    %466 = arith.mulf %458, %465 : vector<16x16xf32>
    %467 = arith.addf %456, %466 : vector<16x16xf32>
    %c3_279 = arith.constant 3 : index
    %c3_280 = arith.constant 3 : index
    %c0_281 = arith.constant 0 : index
    %468 = vector.load %arg4[%c3_279, %c3_280, %c0_281] : memref<5x20x16xf32, #tpu.memory_space<vmem>>, vector<1x16x16xf32>
    %469 = vector.shape_cast %468 : vector<1x16x16xf32> to vector<16x16xf32>
    %cst_282 = arith.constant 0.0270458832 : f32
    %470 = vector.broadcast %cst_282 : f32 to vector<16x16xf32>
    %471 = arith.mulf %469, %470 : vector<16x16xf32>
    %472 = arith.addf %461, %471 : vector<16x16xf32>
    %cst_283 = arith.constant -0.0387147553 : f32
    %473 = vector.broadcast %cst_283 : f32 to vector<16x16xf32>
    %474 = arith.mulf %469, %473 : vector<16x16xf32>
    %475 = arith.addf %464, %474 : vector<16x16xf32>
    %cst_284 = arith.constant -0.0134353479 : f32
    %476 = vector.broadcast %cst_284 : f32 to vector<16x16xf32>
    %477 = arith.mulf %469, %476 : vector<16x16xf32>
    %478 = arith.addf %467, %477 : vector<16x16xf32>
    %cst_285 = arith.constant -3.000000e+00 : f32
    %cst_286 = arith.constant 3.000000e+00 : f32
    %479 = vector.broadcast %cst_285 : f32 to vector<16x16xf32>
    %480 = arith.maximumf %479, %472 : vector<16x16xf32>
    %481 = vector.broadcast %cst_286 : f32 to vector<16x16xf32>
    %482 = arith.minimumf %481, %480 : vector<16x16xf32>
    %c0_287 = arith.constant 0 : index
    %c9 = arith.constant 9 : index
    %c0_288 = arith.constant 0 : index
    %c0_289 = arith.constant 0 : index
    %483 = vector.load %arg3[%c0_287, %c9, %c0_288, %c0_289] : memref<1x30x16x16xf32, #tpu.memory_space<vmem>>, vector<1x1x16x16xf32>
    %484 = vector.shape_cast %483 : vector<1x1x16x16xf32> to vector<16x16xf32>
    %485 = vector.shape_cast %482 : vector<16x16xf32> to vector<1x1x16x16xf32>
    tpu.vector_store %arg3[%c0_287, %c9, %c0_288, %c0_289], %485 {strides = array<i32>} : memref<1x30x16x16xf32, #tpu.memory_space<vmem>>, vector<1x1x16x16xf32>,
    %cst_290 = arith.constant -3.000000e+00 : f32
    %cst_291 = arith.constant 3.000000e+00 : f32
    %486 = vector.broadcast %cst_290 : f32 to vector<16x16xf32>
    %487 = arith.maximumf %486, %475 : vector<16x16xf32>
    %488 = vector.broadcast %cst_291 : f32 to vector<16x16xf32>
    %489 = arith.minimumf %488, %487 : vector<16x16xf32>
    %c0_292 = arith.constant 0 : index
    %c10 = arith.constant 10 : index
    %c0_293 = arith.constant 0 : index
    %c0_294 = arith.constant 0 : index
    %490 = vector.load %arg3[%c0_292, %c10, %c0_293, %c0_294] : memref<1x30x16x16xf32, #tpu.memory_space<vmem>>, vector<1x1x16x16xf32>
    %491 = vector.shape_cast %490 : vector<1x1x16x16xf32> to vector<16x16xf32>
    %492 = vector.shape_cast %489 : vector<16x16xf32> to vector<1x1x16x16xf32>
    tpu.vector_store %arg3[%c0_292, %c10, %c0_293, %c0_294], %492 {strides = array<i32>} : memref<1x30x16x16xf32, #tpu.memory_space<vmem>>, vector<1x1x16x16xf32>,
    %cst_295 = arith.constant -3.000000e+00 : f32
    %cst_296 = arith.constant 3.000000e+00 : f32
    %493 = vector.broadcast %cst_295 : f32 to vector<16x16xf32>
    %494 = arith.maximumf %493, %478 : vector<16x16xf32>
    %495 = vector.broadcast %cst_296 : f32 to vector<16x16xf32>
    %496 = arith.minimumf %495, %494 : vector<16x16xf32>
    %c0_297 = arith.constant 0 : index
    %c11 = arith.constant 11 : index
    %c0_298 = arith.constant 0 : index
    %c0_299 = arith.constant 0 : index
    %497 = vector.load %arg3[%c0_297, %c11, %c0_298, %c0_299] : memref<1x30x16x16xf32, #tpu.memory_space<vmem>>, vector<1x1x16x16xf32>
    %498 = vector.shape_cast %497 : vector<1x1x16x16xf32> to vector<16x16xf32>
    %499 = vector.shape_cast %496 : vector<16x16xf32> to vector<1x1x16x16xf32>
    tpu.vector_store %arg3[%c0_297, %c11, %c0_298, %c0_299], %499 {strides = array<i32>} : memref<1x30x16x16xf32, #tpu.memory_space<vmem>>, vector<1x1x16x16xf32>,
    %c1_300 = arith.constant 1 : index
    %c1_301 = arith.constant 1 : index
    %c0_302 = arith.constant 0 : index
    %500 = vector.load %arg4[%c1_300, %c1_301, %c0_302] : memref<5x20x16xf32, #tpu.memory_space<vmem>>, vector<1x16x16xf32>
    %501 = vector.shape_cast %500 : vector<1x16x16xf32> to vector<16x16xf32>
    %cst_303 = arith.constant -0.00912555773 : f32
    %502 = vector.broadcast %cst_303 : f32 to vector<16x16xf32>
    %503 = arith.mulf %501, %502 : vector<16x16xf32>
    %cst_304 = arith.constant 0.0166514926 : f32
    %504 = vector.broadcast %cst_304 : f32 to vector<16x16xf32>
    %505 = arith.mulf %501, %504 : vector<16x16xf32>
    %cst_305 = arith.constant 0.0311056376 : f32
    %506 = vector.broadcast %cst_305 : f32 to vector<16x16xf32>
    %507 = arith.mulf %501, %506 : vector<16x16xf32>
    %c2_306 = arith.constant 2 : index
    %c1_307 = arith.constant 1 : index
    %c0_308 = arith.constant 0 : index
    %508 = vector.load %arg4[%c2_306, %c1_307, %c0_308] : memref<5x20x16xf32, #tpu.memory_space<vmem>>, vector<1x16x16xf32>
    %509 = vector.shape_cast %508 : vector<1x16x16xf32> to vector<16x16xf32>
    %cst_309 = arith.constant -9.09176364E-4 : f32
    %510 = vector.broadcast %cst_309 : f32 to vector<16x16xf32>
    %511 = arith.mulf %509, %510 : vector<16x16xf32>
    %512 = arith.addf %503, %511 : vector<16x16xf32>
    %cst_310 = arith.constant -0.0132434843 : f32
    %513 = vector.broadcast %cst_310 : f32 to vector<16x16xf32>
    %514 = arith.mulf %509, %513 : vector<16x16xf32>
    %515 = arith.addf %505, %514 : vector<16x16xf32>
    %cst_311 = arith.constant 0.0822251066 : f32
    %516 = vector.broadcast %cst_311 : f32 to vector<16x16xf32>
    %517 = arith.mulf %509, %516 : vector<16x16xf32>
    %518 = arith.addf %507, %517 : vector<16x16xf32>
    %c3_312 = arith.constant 3 : index
    %c1_313 = arith.constant 1 : index
    %c0_314 = arith.constant 0 : index
    %519 = vector.load %arg4[%c3_312, %c1_313, %c0_314] : memref<5x20x16xf32, #tpu.memory_space<vmem>>, vector<1x16x16xf32>
    %520 = vector.shape_cast %519 : vector<1x16x16xf32> to vector<16x16xf32>
    %cst_315 = arith.constant -0.091673918 : f32
    %521 = vector.broadcast %cst_315 : f32 to vector<16x16xf32>
    %522 = arith.mulf %520, %521 : vector<16x16xf32>
    %523 = arith.addf %512, %522 : vector<16x16xf32>
    %cst_316 = arith.constant -0.0722987726 : f32
    %524 = vector.broadcast %cst_316 : f32 to vector<16x16xf32>
    %525 = arith.mulf %520, %524 : vector<16x16xf32>
    %526 = arith.addf %515, %525 : vector<16x16xf32>
    %cst_317 = arith.constant 0.0938211083 : f32
    %527 = vector.broadcast %cst_317 : f32 to vector<16x16xf32>
    %528 = arith.mulf %520, %527 : vector<16x16xf32>
    %529 = arith.addf %518, %528 : vector<16x16xf32>
    %c1_318 = arith.constant 1 : index
    %c2_319 = arith.constant 2 : index
    %c0_320 = arith.constant 0 : index
    %530 = vector.load %arg4[%c1_318, %c2_319, %c0_320] : memref<5x20x16xf32, #tpu.memory_space<vmem>>, vector<1x16x16xf32>
    %531 = vector.shape_cast %530 : vector<1x16x16xf32> to vector<16x16xf32>
    %cst_321 = arith.constant -0.0656187758 : f32
    %532 = vector.broadcast %cst_321 : f32 to vector<16x16xf32>
    %533 = arith.mulf %531, %532 : vector<16x16xf32>
    %534 = arith.addf %523, %533 : vector<16x16xf32>
    %cst_322 = arith.constant -0.22453247 : f32
    %535 = vector.broadcast %cst_322 : f32 to vector<16x16xf32>
    %536 = arith.mulf %531, %535 : vector<16x16xf32>
    %537 = arith.addf %526, %536 : vector<16x16xf32>
    %cst_323 = arith.constant 0.00180007331 : f32
    %538 = vector.broadcast %cst_323 : f32 to vector<16x16xf32>
    %539 = arith.mulf %531, %538 : vector<16x16xf32>
    %540 = arith.addf %529, %539 : vector<16x16xf32>
    %c2_324 = arith.constant 2 : index
    %c2_325 = arith.constant 2 : index
    %c0_326 = arith.constant 0 : index
    %541 = vector.load %arg4[%c2_324, %c2_325, %c0_326] : memref<5x20x16xf32, #tpu.memory_space<vmem>>, vector<1x16x16xf32>
    %542 = vector.shape_cast %541 : vector<1x16x16xf32> to vector<16x16xf32>
    %cst_327 = arith.constant -0.0564682782 : f32
    %543 = vector.broadcast %cst_327 : f32 to vector<16x16xf32>
    %544 = arith.mulf %542, %543 : vector<16x16xf32>
    %545 = arith.addf %534, %544 : vector<16x16xf32>
    %cst_328 = arith.constant 0.0901723876 : f32
    %546 = vector.broadcast %cst_328 : f32 to vector<16x16xf32>
    %547 = arith.mulf %542, %546 : vector<16x16xf32>
    %548 = arith.addf %537, %547 : vector<16x16xf32>
    %cst_329 = arith.constant -0.0351332538 : f32
    %549 = vector.broadcast %cst_329 : f32 to vector<16x16xf32>
    %550 = arith.mulf %542, %549 : vector<16x16xf32>
    %551 = arith.addf %540, %550 : vector<16x16xf32>
    %c3_330 = arith.constant 3 : index
    %c2_331 = arith.constant 2 : index
    %c0_332 = arith.constant 0 : index
    %552 = vector.load %arg4[%c3_330, %c2_331, %c0_332] : memref<5x20x16xf32, #tpu.memory_space<vmem>>, vector<1x16x16xf32>
    %553 = vector.shape_cast %552 : vector<1x16x16xf32> to vector<16x16xf32>
    %cst_333 = arith.constant 0.0104177408 : f32
    %554 = vector.broadcast %cst_333 : f32 to vector<16x16xf32>
    %555 = arith.mulf %553, %554 : vector<16x16xf32>
    %556 = arith.addf %545, %555 : vector<16x16xf32>
    %cst_334 = arith.constant 0.155041888 : f32
    %557 = vector.broadcast %cst_334 : f32 to vector<16x16xf32>
    %558 = arith.mulf %553, %557 : vector<16x16xf32>
    %559 = arith.addf %548, %558 : vector<16x16xf32>
    %cst_335 = arith.constant 0.149527594 : f32
    %560 = vector.broadcast %cst_335 : f32 to vector<16x16xf32>
    %561 = arith.mulf %553, %560 : vector<16x16xf32>
    %562 = arith.addf %551, %561 : vector<16x16xf32>
    %c1_336 = arith.constant 1 : index
    %c3_337 = arith.constant 3 : index
    %c0_338 = arith.constant 0 : index
    %563 = vector.load %arg4[%c1_336, %c3_337, %c0_338] : memref<5x20x16xf32, #tpu.memory_space<vmem>>, vector<1x16x16xf32>
    %564 = vector.shape_cast %563 : vector<1x16x16xf32> to vector<16x16xf32>
    %cst_339 = arith.constant 0.0435893051 : f32
    %565 = vector.broadcast %cst_339 : f32 to vector<16x16xf32>
    %566 = arith.mulf %564, %565 : vector<16x16xf32>
    %567 = arith.addf %556, %566 : vector<16x16xf32>
    %cst_340 = arith.constant 0.0263150763 : f32
    %568 = vector.broadcast %cst_340 : f32 to vector<16x16xf32>
    %569 = arith.mulf %564, %568 : vector<16x16xf32>
    %570 = arith.addf %559, %569 : vector<16x16xf32>
    %cst_341 = arith.constant -0.171685413 : f32
    %571 = vector.broadcast %cst_341 : f32 to vector<16x16xf32>
    %572 = arith.mulf %564, %571 : vector<16x16xf32>
    %573 = arith.addf %562, %572 : vector<16x16xf32>
    %c2_342 = arith.constant 2 : index
    %c3_343 = arith.constant 3 : index
    %c0_344 = arith.constant 0 : index
    %574 = vector.load %arg4[%c2_342, %c3_343, %c0_344] : memref<5x20x16xf32, #tpu.memory_space<vmem>>, vector<1x16x16xf32>
    %575 = vector.shape_cast %574 : vector<1x16x16xf32> to vector<16x16xf32>
    %cst_345 = arith.constant -0.0577256717 : f32
    %576 = vector.broadcast %cst_345 : f32 to vector<16x16xf32>
    %577 = arith.mulf %575, %576 : vector<16x16xf32>
    %578 = arith.addf %567, %577 : vector<16x16xf32>
    %cst_346 = arith.constant -0.110576384 : f32
    %579 = vector.broadcast %cst_346 : f32 to vector<16x16xf32>
    %580 = arith.mulf %575, %579 : vector<16x16xf32>
    %581 = arith.addf %570, %580 : vector<16x16xf32>
    %cst_347 = arith.constant 0.0233287979 : f32
    %582 = vector.broadcast %cst_347 : f32 to vector<16x16xf32>
    %583 = arith.mulf %575, %582 : vector<16x16xf32>
    %584 = arith.addf %573, %583 : vector<16x16xf32>
    %c3_348 = arith.constant 3 : index
    %c3_349 = arith.constant 3 : index
    %c0_350 = arith.constant 0 : index
    %585 = vector.load %arg4[%c3_348, %c3_349, %c0_350] : memref<5x20x16xf32, #tpu.memory_space<vmem>>, vector<1x16x16xf32>
    %586 = vector.shape_cast %585 : vector<1x16x16xf32> to vector<16x16xf32>
    %cst_351 = arith.constant -0.0457821675 : f32
    %587 = vector.broadcast %cst_351 : f32 to vector<16x16xf32>
    %588 = arith.mulf %586, %587 : vector<16x16xf32>
    %589 = arith.addf %578, %588 : vector<16x16xf32>
    %cst_352 = arith.constant 0.0206855014 : f32
    %590 = vector.broadcast %cst_352 : f32 to vector<16x16xf32>
    %591 = arith.mulf %586, %590 : vector<16x16xf32>
    %592 = arith.addf %581, %591 : vector<16x16xf32>
    %cst_353 = arith.constant -0.0071117091 : f32
    %593 = vector.broadcast %cst_353 : f32 to vector<16x16xf32>
    %594 = arith.mulf %586, %593 : vector<16x16xf32>
    %595 = arith.addf %584, %594 : vector<16x16xf32>
    %cst_354 = arith.constant -3.000000e+00 : f32
    %cst_355 = arith.constant 3.000000e+00 : f32
    %596 = vector.broadcast %cst_354 : f32 to vector<16x16xf32>
    %597 = arith.maximumf %596, %589 : vector<16x16xf32>
    %598 = vector.broadcast %cst_355 : f32 to vector<16x16xf32>
    %599 = arith.minimumf %598, %597 : vector<16x16xf32>
    %c0_356 = arith.constant 0 : index
    %c12 = arith.constant 12 : index
    %c0_357 = arith.constant 0 : index
    %c0_358 = arith.constant 0 : index
    %600 = vector.load %arg3[%c0_356, %c12, %c0_357, %c0_358] : memref<1x30x16x16xf32, #tpu.memory_space<vmem>>, vector<1x1x16x16xf32>
    %601 = vector.shape_cast %600 : vector<1x1x16x16xf32> to vector<16x16xf32>
    %602 = vector.shape_cast %599 : vector<16x16xf32> to vector<1x1x16x16xf32>
    tpu.vector_store %arg3[%c0_356, %c12, %c0_357, %c0_358], %602 {strides = array<i32>} : memref<1x30x16x16xf32, #tpu.memory_space<vmem>>, vector<1x1x16x16xf32>,
    %cst_359 = arith.constant -3.000000e+00 : f32
    %cst_360 = arith.constant 3.000000e+00 : f32
    %603 = vector.broadcast %cst_359 : f32 to vector<16x16xf32>
    %604 = arith.maximumf %603, %592 : vector<16x16xf32>
    %605 = vector.broadcast %cst_360 : f32 to vector<16x16xf32>
    %606 = arith.minimumf %605, %604 : vector<16x16xf32>
    %c0_361 = arith.constant 0 : index
    %c13 = arith.constant 13 : index
    %c0_362 = arith.constant 0 : index
    %c0_363 = arith.constant 0 : index
    %607 = vector.load %arg3[%c0_361, %c13, %c0_362, %c0_363] : memref<1x30x16x16xf32, #tpu.memory_space<vmem>>, vector<1x1x16x16xf32>
    %608 = vector.shape_cast %607 : vector<1x1x16x16xf32> to vector<16x16xf32>
    %609 = vector.shape_cast %606 : vector<16x16xf32> to vector<1x1x16x16xf32>
    tpu.vector_store %arg3[%c0_361, %c13, %c0_362, %c0_363], %609 {strides = array<i32>} : memref<1x30x16x16xf32, #tpu.memory_space<vmem>>, vector<1x1x16x16xf32>,
    %cst_364 = arith.constant -3.000000e+00 : f32
    %cst_365 = arith.constant 3.000000e+00 : f32
    %610 = vector.broadcast %cst_364 : f32 to vector<16x16xf32>
    %611 = arith.maximumf %610, %595 : vector<16x16xf32>
    %612 = vector.broadcast %cst_365 : f32 to vector<16x16xf32>
    %613 = arith.minimumf %612, %611 : vector<16x16xf32>
    %c0_366 = arith.constant 0 : index
    %c14 = arith.constant 14 : index
    %c0_367 = arith.constant 0 : index
    %c0_368 = arith.constant 0 : index
    %614 = vector.load %arg3[%c0_366, %c14, %c0_367, %c0_368] : memref<1x30x16x16xf32, #tpu.memory_space<vmem>>, vector<1x1x16x16xf32>
    %615 = vector.shape_cast %614 : vector<1x1x16x16xf32> to vector<16x16xf32>
    %616 = vector.shape_cast %613 : vector<16x16xf32> to vector<1x1x16x16xf32>
    tpu.vector_store %arg3[%c0_366, %c14, %c0_367, %c0_368], %616 {strides = array<i32>} : memref<1x30x16x16xf32, #tpu.memory_space<vmem>>, vector<1x1x16x16xf32>,
    %c0_369 = arith.constant 0 : index
    %c0_370 = arith.constant 0 : index
    %c0_371 = arith.constant 0 : index
    %617 = vector.load %arg4[%c0_369, %c0_370, %c0_371] : memref<5x20x16xf32, #tpu.memory_space<vmem>>, vector<1x16x16xf32>
    %618 = vector.shape_cast %617 : vector<1x16x16xf32> to vector<16x16xf32>
    %cst_372 = arith.constant 0.141670078 : f32
    %619 = vector.broadcast %cst_372 : f32 to vector<16x16xf32>
    %620 = arith.mulf %618, %619 : vector<16x16xf32>
    %cst_373 = arith.constant -0.140633062 : f32
    %621 = vector.broadcast %cst_373 : f32 to vector<16x16xf32>
    %622 = arith.mulf %618, %621 : vector<16x16xf32>
    %cst_374 = arith.constant 0.0635588542 : f32
    %623 = vector.broadcast %cst_374 : f32 to vector<16x16xf32>
    %624 = arith.mulf %618, %623 : vector<16x16xf32>
    %c1_375 = arith.constant 1 : index
    %c0_376 = arith.constant 0 : index
    %c0_377 = arith.constant 0 : index
    %625 = vector.load %arg4[%c1_375, %c0_376, %c0_377] : memref<5x20x16xf32, #tpu.memory_space<vmem>>, vector<1x16x16xf32>
    %626 = vector.shape_cast %625 : vector<1x16x16xf32> to vector<16x16xf32>
    %cst_378 = arith.constant -0.10975375 : f32
    %627 = vector.broadcast %cst_378 : f32 to vector<16x16xf32>
    %628 = arith.mulf %626, %627 : vector<16x16xf32>
    %629 = arith.addf %620, %628 : vector<16x16xf32>
    %cst_379 = arith.constant 0.0181770567 : f32
    %630 = vector.broadcast %cst_379 : f32 to vector<16x16xf32>
    %631 = arith.mulf %626, %630 : vector<16x16xf32>
    %632 = arith.addf %622, %631 : vector<16x16xf32>
    %cst_380 = arith.constant 0.0299151521 : f32
    %633 = vector.broadcast %cst_380 : f32 to vector<16x16xf32>
    %634 = arith.mulf %626, %633 : vector<16x16xf32>
    %635 = arith.addf %624, %634 : vector<16x16xf32>
    %c2_381 = arith.constant 2 : index
    %c0_382 = arith.constant 0 : index
    %c0_383 = arith.constant 0 : index
    %636 = vector.load %arg4[%c2_381, %c0_382, %c0_383] : memref<5x20x16xf32, #tpu.memory_space<vmem>>, vector<1x16x16xf32>
    %637 = vector.shape_cast %636 : vector<1x16x16xf32> to vector<16x16xf32>
    %cst_384 = arith.constant -0.0209212136 : f32
    %638 = vector.broadcast %cst_384 : f32 to vector<16x16xf32>
    %639 = arith.mulf %637, %638 : vector<16x16xf32>
    %640 = arith.addf %629, %639 : vector<16x16xf32>
    %cst_385 = arith.constant 0.103141107 : f32
    %641 = vector.broadcast %cst_385 : f32 to vector<16x16xf32>
    %642 = arith.mulf %637, %641 : vector<16x16xf32>
    %643 = arith.addf %632, %642 : vector<16x16xf32>
    %cst_386 = arith.constant -0.0056593339 : f32
    %644 = vector.broadcast %cst_386 : f32 to vector<16x16xf32>
    %645 = arith.mulf %637, %644 : vector<16x16xf32>
    %646 = arith.addf %635, %645 : vector<16x16xf32>
    %c3_387 = arith.constant 3 : index
    %c0_388 = arith.constant 0 : index
    %c0_389 = arith.constant 0 : index
    %647 = vector.load %arg4[%c3_387, %c0_388, %c0_389] : memref<5x20x16xf32, #tpu.memory_space<vmem>>, vector<1x16x16xf32>
    %648 = vector.shape_cast %647 : vector<1x16x16xf32> to vector<16x16xf32>
    %cst_390 = arith.constant 0.12543489 : f32
    %649 = vector.broadcast %cst_390 : f32 to vector<16x16xf32>
    %650 = arith.mulf %648, %649 : vector<16x16xf32>
    %651 = arith.addf %640, %650 : vector<16x16xf32>
    %cst_391 = arith.constant -0.135706276 : f32
    %652 = vector.broadcast %cst_391 : f32 to vector<16x16xf32>
    %653 = arith.mulf %648, %652 : vector<16x16xf32>
    %654 = arith.addf %643, %653 : vector<16x16xf32>
    %cst_392 = arith.constant 0.0413182974 : f32
    %655 = vector.broadcast %cst_392 : f32 to vector<16x16xf32>
    %656 = arith.mulf %648, %655 : vector<16x16xf32>
    %657 = arith.addf %646, %656 : vector<16x16xf32>
    %c4_393 = arith.constant 4 : index
    %c0_394 = arith.constant 0 : index
    %c0_395 = arith.constant 0 : index
    %658 = vector.load %arg4[%c4_393, %c0_394, %c0_395] : memref<5x20x16xf32, #tpu.memory_space<vmem>>, vector<1x16x16xf32>
    %659 = vector.shape_cast %658 : vector<1x16x16xf32> to vector<16x16xf32>
    %cst_396 = arith.constant 0.0357754603 : f32
    %660 = vector.broadcast %cst_396 : f32 to vector<16x16xf32>
    %661 = arith.mulf %659, %660 : vector<16x16xf32>
    %662 = arith.addf %651, %661 : vector<16x16xf32>
    %cst_397 = arith.constant 0.0466526598 : f32
    %663 = vector.broadcast %cst_397 : f32 to vector<16x16xf32>
    %664 = arith.mulf %659, %663 : vector<16x16xf32>
    %665 = arith.addf %654, %664 : vector<16x16xf32>
    %cst_398 = arith.constant 0.0851796939 : f32
    %666 = vector.broadcast %cst_398 : f32 to vector<16x16xf32>
    %667 = arith.mulf %659, %666 : vector<16x16xf32>
    %668 = arith.addf %657, %667 : vector<16x16xf32>
    %c0_399 = arith.constant 0 : index
    %c1_400 = arith.constant 1 : index
    %c0_401 = arith.constant 0 : index
    %669 = vector.load %arg4[%c0_399, %c1_400, %c0_401] : memref<5x20x16xf32, #tpu.memory_space<vmem>>, vector<1x16x16xf32>
    %670 = vector.shape_cast %669 : vector<1x16x16xf32> to vector<16x16xf32>
    %cst_402 = arith.constant 7.100200e-02 : f32
    %671 = vector.broadcast %cst_402 : f32 to vector<16x16xf32>
    %672 = arith.mulf %670, %671 : vector<16x16xf32>
    %673 = arith.addf %662, %672 : vector<16x16xf32>
    %cst_403 = arith.constant -0.0877591297 : f32
    %674 = vector.broadcast %cst_403 : f32 to vector<16x16xf32>
    %675 = arith.mulf %670, %674 : vector<16x16xf32>
    %676 = arith.addf %665, %675 : vector<16x16xf32>
    %cst_404 = arith.constant -0.0392847508 : f32
    %677 = vector.broadcast %cst_404 : f32 to vector<16x16xf32>
    %678 = arith.mulf %670, %677 : vector<16x16xf32>
    %679 = arith.addf %668, %678 : vector<16x16xf32>
    %c1_405 = arith.constant 1 : index
    %c1_406 = arith.constant 1 : index
    %c0_407 = arith.constant 0 : index
    %680 = vector.load %arg4[%c1_405, %c1_406, %c0_407] : memref<5x20x16xf32, #tpu.memory_space<vmem>>, vector<1x16x16xf32>
    %681 = vector.shape_cast %680 : vector<1x16x16xf32> to vector<16x16xf32>
    %cst_408 = arith.constant 0.0187730435 : f32
    %682 = vector.broadcast %cst_408 : f32 to vector<16x16xf32>
    %683 = arith.mulf %681, %682 : vector<16x16xf32>
    %684 = arith.addf %673, %683 : vector<16x16xf32>
    %cst_409 = arith.constant -0.0234924182 : f32
    %685 = vector.broadcast %cst_409 : f32 to vector<16x16xf32>
    %686 = arith.mulf %681, %685 : vector<16x16xf32>
    %687 = arith.addf %676, %686 : vector<16x16xf32>
    %cst_410 = arith.constant 0.145840779 : f32
    %688 = vector.broadcast %cst_410 : f32 to vector<16x16xf32>
    %689 = arith.mulf %681, %688 : vector<16x16xf32>
    %690 = arith.addf %679, %689 : vector<16x16xf32>
    %c2_411 = arith.constant 2 : index
    %c1_412 = arith.constant 1 : index
    %c0_413 = arith.constant 0 : index
    %691 = vector.load %arg4[%c2_411, %c1_412, %c0_413] : memref<5x20x16xf32, #tpu.memory_space<vmem>>, vector<1x16x16xf32>
    %692 = vector.shape_cast %691 : vector<1x16x16xf32> to vector<16x16xf32>
    %cst_414 = arith.constant 0.00975210499 : f32
    %693 = vector.broadcast %cst_414 : f32 to vector<16x16xf32>
    %694 = arith.mulf %692, %693 : vector<16x16xf32>
    %695 = arith.addf %684, %694 : vector<16x16xf32>
    %cst_415 = arith.constant 0.0118311821 : f32
    %696 = vector.broadcast %cst_415 : f32 to vector<16x16xf32>
    %697 = arith.mulf %692, %696 : vector<16x16xf32>
    %698 = arith.addf %687, %697 : vector<16x16xf32>
    %cst_416 = arith.constant 0.110278659 : f32
    %699 = vector.broadcast %cst_416 : f32 to vector<16x16xf32>
    %700 = arith.mulf %692, %699 : vector<16x16xf32>
    %701 = arith.addf %690, %700 : vector<16x16xf32>
    %c3_417 = arith.constant 3 : index
    %c1_418 = arith.constant 1 : index
    %c0_419 = arith.constant 0 : index
    %702 = vector.load %arg4[%c3_417, %c1_418, %c0_419] : memref<5x20x16xf32, #tpu.memory_space<vmem>>, vector<1x16x16xf32>
    %703 = vector.shape_cast %702 : vector<1x16x16xf32> to vector<16x16xf32>
    %cst_420 = arith.constant 0.0347736962 : f32
    %704 = vector.broadcast %cst_420 : f32 to vector<16x16xf32>
    %705 = arith.mulf %703, %704 : vector<16x16xf32>
    %706 = arith.addf %695, %705 : vector<16x16xf32>
    %cst_421 = arith.constant 6.266980e-02 : f32
    %707 = vector.broadcast %cst_421 : f32 to vector<16x16xf32>
    %708 = arith.mulf %703, %707 : vector<16x16xf32>
    %709 = arith.addf %698, %708 : vector<16x16xf32>
    %cst_422 = arith.constant -0.0730691925 : f32
    %710 = vector.broadcast %cst_422 : f32 to vector<16x16xf32>
    %711 = arith.mulf %703, %710 : vector<16x16xf32>
    %712 = arith.addf %701, %711 : vector<16x16xf32>
    %c4_423 = arith.constant 4 : index
    %c1_424 = arith.constant 1 : index
    %c0_425 = arith.constant 0 : index
    %713 = vector.load %arg4[%c4_423, %c1_424, %c0_425] : memref<5x20x16xf32, #tpu.memory_space<vmem>>, vector<1x16x16xf32>
    %714 = vector.shape_cast %713 : vector<1x16x16xf32> to vector<16x16xf32>
    %cst_426 = arith.constant 0.0128520383 : f32
    %715 = vector.broadcast %cst_426 : f32 to vector<16x16xf32>
    %716 = arith.mulf %714, %715 : vector<16x16xf32>
    %717 = arith.addf %706, %716 : vector<16x16xf32>
    %cst_427 = arith.constant -0.0227725077 : f32
    %718 = vector.broadcast %cst_427 : f32 to vector<16x16xf32>
    %719 = arith.mulf %714, %718 : vector<16x16xf32>
    %720 = arith.addf %709, %719 : vector<16x16xf32>
    %cst_428 = arith.constant 0.115173034 : f32
    %721 = vector.broadcast %cst_428 : f32 to vector<16x16xf32>
    %722 = arith.mulf %714, %721 : vector<16x16xf32>
    %723 = arith.addf %712, %722 : vector<16x16xf32>
    %c0_429 = arith.constant 0 : index
    %c2_430 = arith.constant 2 : index
    %c0_431 = arith.constant 0 : index
    %724 = vector.load %arg4[%c0_429, %c2_430, %c0_431] : memref<5x20x16xf32, #tpu.memory_space<vmem>>, vector<1x16x16xf32>
    %725 = vector.shape_cast %724 : vector<1x16x16xf32> to vector<16x16xf32>
    %cst_432 = arith.constant -0.112508662 : f32
    %726 = vector.broadcast %cst_432 : f32 to vector<16x16xf32>
    %727 = arith.mulf %725, %726 : vector<16x16xf32>
    %728 = arith.addf %717, %727 : vector<16x16xf32>
    %cst_433 = arith.constant -0.0368232802 : f32
    %729 = vector.broadcast %cst_433 : f32 to vector<16x16xf32>
    %730 = arith.mulf %725, %729 : vector<16x16xf32>
    %731 = arith.addf %720, %730 : vector<16x16xf32>
    %cst_434 = arith.constant -0.146178767 : f32
    %732 = vector.broadcast %cst_434 : f32 to vector<16x16xf32>
    %733 = arith.mulf %725, %732 : vector<16x16xf32>
    %734 = arith.addf %723, %733 : vector<16x16xf32>
    %c1_435 = arith.constant 1 : index
    %c2_436 = arith.constant 2 : index
    %c0_437 = arith.constant 0 : index
    %735 = vector.load %arg4[%c1_435, %c2_436, %c0_437] : memref<5x20x16xf32, #tpu.memory_space<vmem>>, vector<1x16x16xf32>
    %736 = vector.shape_cast %735 : vector<1x16x16xf32> to vector<16x16xf32>
    %cst_438 = arith.constant -0.107749589 : f32
    %737 = vector.broadcast %cst_438 : f32 to vector<16x16xf32>
    %738 = arith.mulf %736, %737 : vector<16x16xf32>
    %739 = arith.addf %728, %738 : vector<16x16xf32>
    %cst_439 = arith.constant -0.128126979 : f32
    %740 = vector.broadcast %cst_439 : f32 to vector<16x16xf32>
    %741 = arith.mulf %736, %740 : vector<16x16xf32>
    %742 = arith.addf %731, %741 : vector<16x16xf32>
    %cst_440 = arith.constant -0.0459630303 : f32
    %743 = vector.broadcast %cst_440 : f32 to vector<16x16xf32>
    %744 = arith.mulf %736, %743 : vector<16x16xf32>
    %745 = arith.addf %734, %744 : vector<16x16xf32>
    %c2_441 = arith.constant 2 : index
    %c2_442 = arith.constant 2 : index
    %c0_443 = arith.constant 0 : index
    %746 = vector.load %arg4[%c2_441, %c2_442, %c0_443] : memref<5x20x16xf32, #tpu.memory_space<vmem>>, vector<1x16x16xf32>
    %747 = vector.shape_cast %746 : vector<1x16x16xf32> to vector<16x16xf32>
    %cst_444 = arith.constant 0.203298196 : f32
    %748 = vector.broadcast %cst_444 : f32 to vector<16x16xf32>
    %749 = arith.mulf %747, %748 : vector<16x16xf32>
    %750 = arith.addf %739, %749 : vector<16x16xf32>
    %cst_445 = arith.constant 0.0386450216 : f32
    %751 = vector.broadcast %cst_445 : f32 to vector<16x16xf32>
    %752 = arith.mulf %747, %751 : vector<16x16xf32>
    %753 = arith.addf %742, %752 : vector<16x16xf32>
    %cst_446 = arith.constant -0.0170461275 : f32
    %754 = vector.broadcast %cst_446 : f32 to vector<16x16xf32>
    %755 = arith.mulf %747, %754 : vector<16x16xf32>
    %756 = arith.addf %745, %755 : vector<16x16xf32>
    %c3_447 = arith.constant 3 : index
    %c2_448 = arith.constant 2 : index
    %c0_449 = arith.constant 0 : index
    %757 = vector.load %arg4[%c3_447, %c2_448, %c0_449] : memref<5x20x16xf32, #tpu.memory_space<vmem>>, vector<1x16x16xf32>
    %758 = vector.shape_cast %757 : vector<1x16x16xf32> to vector<16x16xf32>
    %cst_450 = arith.constant 0.0897737517 : f32
    %759 = vector.broadcast %cst_450 : f32 to vector<16x16xf32>
    %760 = arith.mulf %758, %759 : vector<16x16xf32>
    %761 = arith.addf %750, %760 : vector<16x16xf32>
    %cst_451 = arith.constant -0.0613577403 : f32
    %762 = vector.broadcast %cst_451 : f32 to vector<16x16xf32>
    %763 = arith.mulf %758, %762 : vector<16x16xf32>
    %764 = arith.addf %753, %763 : vector<16x16xf32>
    %cst_452 = arith.constant -0.13998048 : f32
    %765 = vector.broadcast %cst_452 : f32 to vector<16x16xf32>
    %766 = arith.mulf %758, %765 : vector<16x16xf32>
    %767 = arith.addf %756, %766 : vector<16x16xf32>
    %c4_453 = arith.constant 4 : index
    %c2_454 = arith.constant 2 : index
    %c0_455 = arith.constant 0 : index
    %768 = vector.load %arg4[%c4_453, %c2_454, %c0_455] : memref<5x20x16xf32, #tpu.memory_space<vmem>>, vector<1x16x16xf32>
    %769 = vector.shape_cast %768 : vector<1x16x16xf32> to vector<16x16xf32>
    %cst_456 = arith.constant -0.0160962511 : f32
    %770 = vector.broadcast %cst_456 : f32 to vector<16x16xf32>
    %771 = arith.mulf %769, %770 : vector<16x16xf32>
    %772 = arith.addf %761, %771 : vector<16x16xf32>
    %cst_457 = arith.constant 0.0313220471 : f32
    %773 = vector.broadcast %cst_457 : f32 to vector<16x16xf32>
    %774 = arith.mulf %769, %773 : vector<16x16xf32>
    %775 = arith.addf %764, %774 : vector<16x16xf32>
    %cst_458 = arith.constant 0.126223579 : f32
    %776 = vector.broadcast %cst_458 : f32 to vector<16x16xf32>
    %777 = arith.mulf %769, %776 : vector<16x16xf32>
    %778 = arith.addf %767, %777 : vector<16x16xf32>
    %c0_459 = arith.constant 0 : index
    %c3_460 = arith.constant 3 : index
    %c0_461 = arith.constant 0 : index
    %779 = vector.load %arg4[%c0_459, %c3_460, %c0_461] : memref<5x20x16xf32, #tpu.memory_space<vmem>>, vector<1x16x16xf32>
    %780 = vector.shape_cast %779 : vector<1x16x16xf32> to vector<16x16xf32>
    %cst_462 = arith.constant 0.212229386 : f32
    %781 = vector.broadcast %cst_462 : f32 to vector<16x16xf32>
    %782 = arith.mulf %780, %781 : vector<16x16xf32>
    %783 = arith.addf %772, %782 : vector<16x16xf32>
    %cst_463 = arith.constant -0.16538167 : f32
    %784 = vector.broadcast %cst_463 : f32 to vector<16x16xf32>
    %785 = arith.mulf %780, %784 : vector<16x16xf32>
    %786 = arith.addf %775, %785 : vector<16x16xf32>
    %cst_464 = arith.constant -0.014304176 : f32
    %787 = vector.broadcast %cst_464 : f32 to vector<16x16xf32>
    %788 = arith.mulf %780, %787 : vector<16x16xf32>
    %789 = arith.addf %778, %788 : vector<16x16xf32>
    %c1_465 = arith.constant 1 : index
    %c3_466 = arith.constant 3 : index
    %c0_467 = arith.constant 0 : index
    %790 = vector.load %arg4[%c1_465, %c3_466, %c0_467] : memref<5x20x16xf32, #tpu.memory_space<vmem>>, vector<1x16x16xf32>
    %791 = vector.shape_cast %790 : vector<1x16x16xf32> to vector<16x16xf32>
    %cst_468 = arith.constant 0.0715885535 : f32
    %792 = vector.broadcast %cst_468 : f32 to vector<16x16xf32>
    %793 = arith.mulf %791, %792 : vector<16x16xf32>
    %794 = arith.addf %783, %793 : vector<16x16xf32>
    %cst_469 = arith.constant -0.156693682 : f32
    %795 = vector.broadcast %cst_469 : f32 to vector<16x16xf32>
    %796 = arith.mulf %791, %795 : vector<16x16xf32>
    %797 = arith.addf %786, %796 : vector<16x16xf32>
    %cst_470 = arith.constant -0.069710426 : f32
    %798 = vector.broadcast %cst_470 : f32 to vector<16x16xf32>
    %799 = arith.mulf %791, %798 : vector<16x16xf32>
    %800 = arith.addf %789, %799 : vector<16x16xf32>
    %c2_471 = arith.constant 2 : index
    %c3_472 = arith.constant 3 : index
    %c0_473 = arith.constant 0 : index
    %801 = vector.load %arg4[%c2_471, %c3_472, %c0_473] : memref<5x20x16xf32, #tpu.memory_space<vmem>>, vector<1x16x16xf32>
    %802 = vector.shape_cast %801 : vector<1x16x16xf32> to vector<16x16xf32>
    %cst_474 = arith.constant -0.137796119 : f32
    %803 = vector.broadcast %cst_474 : f32 to vector<16x16xf32>
    %804 = arith.mulf %802, %803 : vector<16x16xf32>
    %805 = arith.addf %794, %804 : vector<16x16xf32>
    %cst_475 = arith.constant -0.00261750631 : f32
    %806 = vector.broadcast %cst_475 : f32 to vector<16x16xf32>
    %807 = arith.mulf %802, %806 : vector<16x16xf32>
    %808 = arith.addf %797, %807 : vector<16x16xf32>
    %cst_476 = arith.constant -0.121326856 : f32
    %809 = vector.broadcast %cst_476 : f32 to vector<16x16xf32>
    %810 = arith.mulf %802, %809 : vector<16x16xf32>
    %811 = arith.addf %800, %810 : vector<16x16xf32>
    %c3_477 = arith.constant 3 : index
    %c3_478 = arith.constant 3 : index
    %c0_479 = arith.constant 0 : index
    %812 = vector.load %arg4[%c3_477, %c3_478, %c0_479] : memref<5x20x16xf32, #tpu.memory_space<vmem>>, vector<1x16x16xf32>
    %813 = vector.shape_cast %812 : vector<1x16x16xf32> to vector<16x16xf32>
    %cst_480 = arith.constant 0.0931231454 : f32
    %814 = vector.broadcast %cst_480 : f32 to vector<16x16xf32>
    %815 = arith.mulf %813, %814 : vector<16x16xf32>
    %816 = arith.addf %805, %815 : vector<16x16xf32>
    %cst_481 = arith.constant -0.0566851348 : f32
    %817 = vector.broadcast %cst_481 : f32 to vector<16x16xf32>
    %818 = arith.mulf %813, %817 : vector<16x16xf32>
    %819 = arith.addf %808, %818 : vector<16x16xf32>
    %cst_482 = arith.constant 0.0158629473 : f32
    %820 = vector.broadcast %cst_482 : f32 to vector<16x16xf32>
    %821 = arith.mulf %813, %820 : vector<16x16xf32>
    %822 = arith.addf %811, %821 : vector<16x16xf32>
    %c4_483 = arith.constant 4 : index
    %c3_484 = arith.constant 3 : index
    %c0_485 = arith.constant 0 : index
    %823 = vector.load %arg4[%c4_483, %c3_484, %c0_485] : memref<5x20x16xf32, #tpu.memory_space<vmem>>, vector<1x16x16xf32>
    %824 = vector.shape_cast %823 : vector<1x16x16xf32> to vector<16x16xf32>
    %cst_486 = arith.constant 0.0405010767 : f32
    %825 = vector.broadcast %cst_486 : f32 to vector<16x16xf32>
    %826 = arith.mulf %824, %825 : vector<16x16xf32>
    %827 = arith.addf %816, %826 : vector<16x16xf32>
    %cst_487 = arith.constant -0.0584228896 : f32
    %828 = vector.broadcast %cst_487 : f32 to vector<16x16xf32>
    %829 = arith.mulf %824, %828 : vector<16x16xf32>
    %830 = arith.addf %819, %829 : vector<16x16xf32>
    %cst_488 = arith.constant 0.0930923447 : f32
    %831 = vector.broadcast %cst_488 : f32 to vector<16x16xf32>
    %832 = arith.mulf %824, %831 : vector<16x16xf32>
    %833 = arith.addf %822, %832 : vector<16x16xf32>
    %c0_489 = arith.constant 0 : index
    %c4_490 = arith.constant 4 : index
    %c0_491 = arith.constant 0 : index
    %834 = vector.load %arg4[%c0_489, %c4_490, %c0_491] : memref<5x20x16xf32, #tpu.memory_space<vmem>>, vector<1x16x16xf32>
    %835 = vector.shape_cast %834 : vector<1x16x16xf32> to vector<16x16xf32>
    %cst_492 = arith.constant 0.0344925039 : f32
    %836 = vector.broadcast %cst_492 : f32 to vector<16x16xf32>
    %837 = arith.mulf %835, %836 : vector<16x16xf32>
    %838 = arith.addf %827, %837 : vector<16x16xf32>
    %cst_493 = arith.constant -0.195186928 : f32
    %839 = vector.broadcast %cst_493 : f32 to vector<16x16xf32>
    %840 = arith.mulf %835, %839 : vector<16x16xf32>
    %841 = arith.addf %830, %840 : vector<16x16xf32>
    %cst_494 = arith.constant -0.0504603088 : f32
    %842 = vector.broadcast %cst_494 : f32 to vector<16x16xf32>
    %843 = arith.mulf %835, %842 : vector<16x16xf32>
    %844 = arith.addf %833, %843 : vector<16x16xf32>
    %c1_495 = arith.constant 1 : index
    %c4_496 = arith.constant 4 : index
    %c0_497 = arith.constant 0 : index
    %845 = vector.load %arg4[%c1_495, %c4_496, %c0_497] : memref<5x20x16xf32, #tpu.memory_space<vmem>>, vector<1x16x16xf32>
    %846 = vector.shape_cast %845 : vector<1x16x16xf32> to vector<16x16xf32>
    %cst_498 = arith.constant -0.0849393829 : f32
    %847 = vector.broadcast %cst_498 : f32 to vector<16x16xf32>
    %848 = arith.mulf %846, %847 : vector<16x16xf32>
    %849 = arith.addf %838, %848 : vector<16x16xf32>
    %cst_499 = arith.constant -1.4616338E-4 : f32
    %850 = vector.broadcast %cst_499 : f32 to vector<16x16xf32>
    %851 = arith.mulf %846, %850 : vector<16x16xf32>
    %852 = arith.addf %841, %851 : vector<16x16xf32>
    %cst_500 = arith.constant 0.087817274 : f32
    %853 = vector.broadcast %cst_500 : f32 to vector<16x16xf32>
    %854 = arith.mulf %846, %853 : vector<16x16xf32>
    %855 = arith.addf %844, %854 : vector<16x16xf32>
    %c2_501 = arith.constant 2 : index
    %c4_502 = arith.constant 4 : index
    %c0_503 = arith.constant 0 : index
    %856 = vector.load %arg4[%c2_501, %c4_502, %c0_503] : memref<5x20x16xf32, #tpu.memory_space<vmem>>, vector<1x16x16xf32>
    %857 = vector.shape_cast %856 : vector<1x16x16xf32> to vector<16x16xf32>
    %cst_504 = arith.constant -0.0346509553 : f32
    %858 = vector.broadcast %cst_504 : f32 to vector<16x16xf32>
    %859 = arith.mulf %857, %858 : vector<16x16xf32>
    %860 = arith.addf %849, %859 : vector<16x16xf32>
    %cst_505 = arith.constant 0.00830773544 : f32
    %861 = vector.broadcast %cst_505 : f32 to vector<16x16xf32>
    %862 = arith.mulf %857, %861 : vector<16x16xf32>
    %863 = arith.addf %852, %862 : vector<16x16xf32>
    %cst_506 = arith.constant -0.0100057693 : f32
    %864 = vector.broadcast %cst_506 : f32 to vector<16x16xf32>
    %865 = arith.mulf %857, %864 : vector<16x16xf32>
    %866 = arith.addf %855, %865 : vector<16x16xf32>
    %c3_507 = arith.constant 3 : index
    %c4_508 = arith.constant 4 : index
    %c0_509 = arith.constant 0 : index
    %867 = vector.load %arg4[%c3_507, %c4_508, %c0_509] : memref<5x20x16xf32, #tpu.memory_space<vmem>>, vector<1x16x16xf32>
    %868 = vector.shape_cast %867 : vector<1x16x16xf32> to vector<16x16xf32>
    %cst_510 = arith.constant -6.66727283E-6 : f32
    %869 = vector.broadcast %cst_510 : f32 to vector<16x16xf32>
    %870 = arith.mulf %868, %869 : vector<16x16xf32>
    %871 = arith.addf %860, %870 : vector<16x16xf32>
    %cst_511 = arith.constant 0.00647435337 : f32
    %872 = vector.broadcast %cst_511 : f32 to vector<16x16xf32>
    %873 = arith.mulf %868, %872 : vector<16x16xf32>
    %874 = arith.addf %863, %873 : vector<16x16xf32>
    %cst_512 = arith.constant 0.0328682698 : f32
    %875 = vector.broadcast %cst_512 : f32 to vector<16x16xf32>
    %876 = arith.mulf %868, %875 : vector<16x16xf32>
    %877 = arith.addf %866, %876 : vector<16x16xf32>
    %c4_513 = arith.constant 4 : index
    %c4_514 = arith.constant 4 : index
    %c0_515 = arith.constant 0 : index
    %878 = vector.load %arg4[%c4_513, %c4_514, %c0_515] : memref<5x20x16xf32, #tpu.memory_space<vmem>>, vector<1x16x16xf32>
    %879 = vector.shape_cast %878 : vector<1x16x16xf32> to vector<16x16xf32>
    %cst_516 = arith.constant -0.0355617665 : f32
    %880 = vector.broadcast %cst_516 : f32 to vector<16x16xf32>
    %881 = arith.mulf %879, %880 : vector<16x16xf32>
    %882 = arith.addf %871, %881 : vector<16x16xf32>
    %cst_517 = arith.constant 0.0841366276 : f32
    %883 = vector.broadcast %cst_517 : f32 to vector<16x16xf32>
    %884 = arith.mulf %879, %883 : vector<16x16xf32>
    %885 = arith.addf %874, %884 : vector<16x16xf32>
    %cst_518 = arith.constant -0.110386483 : f32
    %886 = vector.broadcast %cst_518 : f32 to vector<16x16xf32>
    %887 = arith.mulf %879, %886 : vector<16x16xf32>
    %888 = arith.addf %877, %887 : vector<16x16xf32>
    %cst_519 = arith.constant -3.000000e+00 : f32
    %cst_520 = arith.constant 3.000000e+00 : f32
    %889 = vector.broadcast %cst_519 : f32 to vector<16x16xf32>
    %890 = arith.maximumf %889, %882 : vector<16x16xf32>
    %891 = vector.broadcast %cst_520 : f32 to vector<16x16xf32>
    %892 = arith.minimumf %891, %890 : vector<16x16xf32>
    %c0_521 = arith.constant 0 : index
    %c15 = arith.constant 15 : index
    %c0_522 = arith.constant 0 : index
    %c0_523 = arith.constant 0 : index
    %893 = vector.load %arg3[%c0_521, %c15, %c0_522, %c0_523] : memref<1x30x16x16xf32, #tpu.memory_space<vmem>>, vector<1x1x16x16xf32>
    %894 = vector.shape_cast %893 : vector<1x1x16x16xf32> to vector<16x16xf32>
    %895 = vector.shape_cast %892 : vector<16x16xf32> to vector<1x1x16x16xf32>
    tpu.vector_store %arg3[%c0_521, %c15, %c0_522, %c0_523], %895 {strides = array<i32>} : memref<1x30x16x16xf32, #tpu.memory_space<vmem>>, vector<1x1x16x16xf32>,
    %cst_524 = arith.constant -3.000000e+00 : f32
    %cst_525 = arith.constant 3.000000e+00 : f32
    %896 = vector.broadcast %cst_524 : f32 to vector<16x16xf32>
    %897 = arith.maximumf %896, %885 : vector<16x16xf32>
    %898 = vector.broadcast %cst_525 : f32 to vector<16x16xf32>
    %899 = arith.minimumf %898, %897 : vector<16x16xf32>
    %c0_526 = arith.constant 0 : index
    %c16 = arith.constant 16 : index
    %c0_527 = arith.constant 0 : index
    %c0_528 = arith.constant 0 : index
    %900 = vector.load %arg3[%c0_526, %c16, %c0_527, %c0_528] : memref<1x30x16x16xf32, #tpu.memory_space<vmem>>, vector<1x1x16x16xf32>
    %901 = vector.shape_cast %900 : vector<1x1x16x16xf32> to vector<16x16xf32>
    %902 = vector.shape_cast %899 : vector<16x16xf32> to vector<1x1x16x16xf32>
    tpu.vector_store %arg3[%c0_526, %c16, %c0_527, %c0_528], %902 {strides = array<i32>} : memref<1x30x16x16xf32, #tpu.memory_space<vmem>>, vector<1x1x16x16xf32>,
    %cst_529 = arith.constant -3.000000e+00 : f32
    %cst_530 = arith.constant 3.000000e+00 : f32
    %903 = vector.broadcast %cst_529 : f32 to vector<16x16xf32>
    %904 = arith.maximumf %903, %888 : vector<16x16xf32>
    %905 = vector.broadcast %cst_530 : f32 to vector<16x16xf32>
    %906 = arith.minimumf %905, %904 : vector<16x16xf32>
    %c0_531 = arith.constant 0 : index
    %c17 = arith.constant 17 : index
    %c0_532 = arith.constant 0 : index
    %c0_533 = arith.constant 0 : index
    %907 = vector.load %arg3[%c0_531, %c17, %c0_532, %c0_533] : memref<1x30x16x16xf32, #tpu.memory_space<vmem>>, vector<1x1x16x16xf32>
    %908 = vector.shape_cast %907 : vector<1x1x16x16xf32> to vector<16x16xf32>
    %909 = vector.shape_cast %906 : vector<16x16xf32> to vector<1x1x16x16xf32>
    tpu.vector_store %arg3[%c0_531, %c17, %c0_532, %c0_533], %909 {strides = array<i32>} : memref<1x30x16x16xf32, #tpu.memory_space<vmem>>, vector<1x1x16x16xf32>,
    %c0_534 = arith.constant 0 : index
    %c0_535 = arith.constant 0 : index
    %c0_536 = arith.constant 0 : index
    %910 = vector.load %arg4[%c0_534, %c0_535, %c0_536] : memref<5x20x16xf32, #tpu.memory_space<vmem>>, vector<1x16x16xf32>
    %911 = vector.shape_cast %910 : vector<1x16x16xf32> to vector<16x16xf32>
    %cst_537 = arith.constant 0.114975922 : f32
    %912 = vector.broadcast %cst_537 : f32 to vector<16x16xf32>
    %913 = arith.mulf %911, %912 : vector<16x16xf32>
    %cst_538 = arith.constant -0.202540472 : f32
    %914 = vector.broadcast %cst_538 : f32 to vector<16x16xf32>
    %915 = arith.mulf %911, %914 : vector<16x16xf32>
    %cst_539 = arith.constant 0.0636141896 : f32
    %916 = vector.broadcast %cst_539 : f32 to vector<16x16xf32>
    %917 = arith.mulf %911, %916 : vector<16x16xf32>
    %c1_540 = arith.constant 1 : index
    %c0_541 = arith.constant 0 : index
    %c0_542 = arith.constant 0 : index
    %918 = vector.load %arg4[%c1_540, %c0_541, %c0_542] : memref<5x20x16xf32, #tpu.memory_space<vmem>>, vector<1x16x16xf32>
    %919 = vector.shape_cast %918 : vector<1x16x16xf32> to vector<16x16xf32>
    %cst_543 = arith.constant -0.0822767242 : f32
    %920 = vector.broadcast %cst_543 : f32 to vector<16x16xf32>
    %921 = arith.mulf %919, %920 : vector<16x16xf32>
    %922 = arith.addf %913, %921 : vector<16x16xf32>
    %cst_544 = arith.constant 0.0636911318 : f32
    %923 = vector.broadcast %cst_544 : f32 to vector<16x16xf32>
    %924 = arith.mulf %919, %923 : vector<16x16xf32>
    %925 = arith.addf %915, %924 : vector<16x16xf32>
    %cst_545 = arith.constant -0.121475361 : f32
    %926 = vector.broadcast %cst_545 : f32 to vector<16x16xf32>
    %927 = arith.mulf %919, %926 : vector<16x16xf32>
    %928 = arith.addf %917, %927 : vector<16x16xf32>
    %c2_546 = arith.constant 2 : index
    %c0_547 = arith.constant 0 : index
    %c0_548 = arith.constant 0 : index
    %929 = vector.load %arg4[%c2_546, %c0_547, %c0_548] : memref<5x20x16xf32, #tpu.memory_space<vmem>>, vector<1x16x16xf32>
    %930 = vector.shape_cast %929 : vector<1x16x16xf32> to vector<16x16xf32>
    %cst_549 = arith.constant -0.105576314 : f32
    %931 = vector.broadcast %cst_549 : f32 to vector<16x16xf32>
    %932 = arith.mulf %930, %931 : vector<16x16xf32>
    %933 = arith.addf %922, %932 : vector<16x16xf32>
    %cst_550 = arith.constant 0.034367457 : f32
    %934 = vector.broadcast %cst_550 : f32 to vector<16x16xf32>
    %935 = arith.mulf %930, %934 : vector<16x16xf32>
    %936 = arith.addf %925, %935 : vector<16x16xf32>
    %cst_551 = arith.constant -0.0112667428 : f32
    %937 = vector.broadcast %cst_551 : f32 to vector<16x16xf32>
    %938 = arith.mulf %930, %937 : vector<16x16xf32>
    %939 = arith.addf %928, %938 : vector<16x16xf32>
    %c3_552 = arith.constant 3 : index
    %c0_553 = arith.constant 0 : index
    %c0_554 = arith.constant 0 : index
    %940 = vector.load %arg4[%c3_552, %c0_553, %c0_554] : memref<5x20x16xf32, #tpu.memory_space<vmem>>, vector<1x16x16xf32>
    %941 = vector.shape_cast %940 : vector<1x16x16xf32> to vector<16x16xf32>
    %cst_555 = arith.constant -0.115203232 : f32
    %942 = vector.broadcast %cst_555 : f32 to vector<16x16xf32>
    %943 = arith.mulf %941, %942 : vector<16x16xf32>
    %944 = arith.addf %933, %943 : vector<16x16xf32>
    %cst_556 = arith.constant -0.0931878313 : f32
    %945 = vector.broadcast %cst_556 : f32 to vector<16x16xf32>
    %946 = arith.mulf %941, %945 : vector<16x16xf32>
    %947 = arith.addf %936, %946 : vector<16x16xf32>
    %cst_557 = arith.constant -0.0949109569 : f32
    %948 = vector.broadcast %cst_557 : f32 to vector<16x16xf32>
    %949 = arith.mulf %941, %948 : vector<16x16xf32>
    %950 = arith.addf %939, %949 : vector<16x16xf32>
    %c4_558 = arith.constant 4 : index
    %c0_559 = arith.constant 0 : index
    %c0_560 = arith.constant 0 : index
    %951 = vector.load %arg4[%c4_558, %c0_559, %c0_560] : memref<5x20x16xf32, #tpu.memory_space<vmem>>, vector<1x16x16xf32>
    %952 = vector.shape_cast %951 : vector<1x16x16xf32> to vector<16x16xf32>
    %cst_561 = arith.constant 0.0797429606 : f32
    %953 = vector.broadcast %cst_561 : f32 to vector<16x16xf32>
    %954 = arith.mulf %952, %953 : vector<16x16xf32>
    %955 = arith.addf %944, %954 : vector<16x16xf32>
    %cst_562 = arith.constant -7.133000e-02 : f32
    %956 = vector.broadcast %cst_562 : f32 to vector<16x16xf32>
    %957 = arith.mulf %952, %956 : vector<16x16xf32>
    %958 = arith.addf %947, %957 : vector<16x16xf32>
    %cst_563 = arith.constant -0.153181955 : f32
    %959 = vector.broadcast %cst_563 : f32 to vector<16x16xf32>
    %960 = arith.mulf %952, %959 : vector<16x16xf32>
    %961 = arith.addf %950, %960 : vector<16x16xf32>
    %c0_564 = arith.constant 0 : index
    %c1_565 = arith.constant 1 : index
    %c0_566 = arith.constant 0 : index
    %962 = vector.load %arg4[%c0_564, %c1_565, %c0_566] : memref<5x20x16xf32, #tpu.memory_space<vmem>>, vector<1x16x16xf32>
    %963 = vector.shape_cast %962 : vector<1x16x16xf32> to vector<16x16xf32>
    %cst_567 = arith.constant 0.191064849 : f32
    %964 = vector.broadcast %cst_567 : f32 to vector<16x16xf32>
    %965 = arith.mulf %963, %964 : vector<16x16xf32>
    %966 = arith.addf %955, %965 : vector<16x16xf32>
    %cst_568 = arith.constant 0.0965349748 : f32
    %967 = vector.broadcast %cst_568 : f32 to vector<16x16xf32>
    %968 = arith.mulf %963, %967 : vector<16x16xf32>
    %969 = arith.addf %958, %968 : vector<16x16xf32>
    %cst_569 = arith.constant 0.0826823189 : f32
    %970 = vector.broadcast %cst_569 : f32 to vector<16x16xf32>
    %971 = arith.mulf %963, %970 : vector<16x16xf32>
    %972 = arith.addf %961, %971 : vector<16x16xf32>
    %c1_570 = arith.constant 1 : index
    %c1_571 = arith.constant 1 : index
    %c0_572 = arith.constant 0 : index
    %973 = vector.load %arg4[%c1_570, %c1_571, %c0_572] : memref<5x20x16xf32, #tpu.memory_space<vmem>>, vector<1x16x16xf32>
    %974 = vector.shape_cast %973 : vector<1x16x16xf32> to vector<16x16xf32>
    %cst_573 = arith.constant -0.130566701 : f32
    %975 = vector.broadcast %cst_573 : f32 to vector<16x16xf32>
    %976 = arith.mulf %974, %975 : vector<16x16xf32>
    %977 = arith.addf %966, %976 : vector<16x16xf32>
    %cst_574 = arith.constant 0.0341539048 : f32
    %978 = vector.broadcast %cst_574 : f32 to vector<16x16xf32>
    %979 = arith.mulf %974, %978 : vector<16x16xf32>
    %980 = arith.addf %969, %979 : vector<16x16xf32>
    %cst_575 = arith.constant 0.0281179771 : f32
    %981 = vector.broadcast %cst_575 : f32 to vector<16x16xf32>
    %982 = arith.mulf %974, %981 : vector<16x16xf32>
    %983 = arith.addf %972, %982 : vector<16x16xf32>
    %c2_576 = arith.constant 2 : index
    %c1_577 = arith.constant 1 : index
    %c0_578 = arith.constant 0 : index
    %984 = vector.load %arg4[%c2_576, %c1_577, %c0_578] : memref<5x20x16xf32, #tpu.memory_space<vmem>>, vector<1x16x16xf32>
    %985 = vector.shape_cast %984 : vector<1x16x16xf32> to vector<16x16xf32>
    %cst_579 = arith.constant 0.0256147161 : f32
    %986 = vector.broadcast %cst_579 : f32 to vector<16x16xf32>
    %987 = arith.mulf %985, %986 : vector<16x16xf32>
    %988 = arith.addf %977, %987 : vector<16x16xf32>
    %cst_580 = arith.constant -0.0415528044 : f32
    %989 = vector.broadcast %cst_580 : f32 to vector<16x16xf32>
    %990 = arith.mulf %985, %989 : vector<16x16xf32>
    %991 = arith.addf %980, %990 : vector<16x16xf32>
    %cst_581 = arith.constant 0.169112459 : f32
    %992 = vector.broadcast %cst_581 : f32 to vector<16x16xf32>
    %993 = arith.mulf %985, %992 : vector<16x16xf32>
    %994 = arith.addf %983, %993 : vector<16x16xf32>
    %c3_582 = arith.constant 3 : index
    %c1_583 = arith.constant 1 : index
    %c0_584 = arith.constant 0 : index
    %995 = vector.load %arg4[%c3_582, %c1_583, %c0_584] : memref<5x20x16xf32, #tpu.memory_space<vmem>>, vector<1x16x16xf32>
    %996 = vector.shape_cast %995 : vector<1x16x16xf32> to vector<16x16xf32>
    %cst_585 = arith.constant 0.0481678545 : f32
    %997 = vector.broadcast %cst_585 : f32 to vector<16x16xf32>
    %998 = arith.mulf %996, %997 : vector<16x16xf32>
    %999 = arith.addf %988, %998 : vector<16x16xf32>
    %cst_586 = arith.constant 0.0415597893 : f32
    %1000 = vector.broadcast %cst_586 : f32 to vector<16x16xf32>
    %1001 = arith.mulf %996, %1000 : vector<16x16xf32>
    %1002 = arith.addf %991, %1001 : vector<16x16xf32>
    %cst_587 = arith.constant 0.00844515953 : f32
    %1003 = vector.broadcast %cst_587 : f32 to vector<16x16xf32>
    %1004 = arith.mulf %996, %1003 : vector<16x16xf32>
    %1005 = arith.addf %994, %1004 : vector<16x16xf32>
    %c4_588 = arith.constant 4 : index
    %c1_589 = arith.constant 1 : index
    %c0_590 = arith.constant 0 : index
    %1006 = vector.load %arg4[%c4_588, %c1_589, %c0_590] : memref<5x20x16xf32, #tpu.memory_space<vmem>>, vector<1x16x16xf32>
    %1007 = vector.shape_cast %1006 : vector<1x16x16xf32> to vector<16x16xf32>
    %cst_591 = arith.constant 0.107544124 : f32
    %1008 = vector.broadcast %cst_591 : f32 to vector<16x16xf32>
    %1009 = arith.mulf %1007, %1008 : vector<16x16xf32>
    %1010 = arith.addf %999, %1009 : vector<16x16xf32>
    %cst_592 = arith.constant -0.157391012 : f32
    %1011 = vector.broadcast %cst_592 : f32 to vector<16x16xf32>
    %1012 = arith.mulf %1007, %1011 : vector<16x16xf32>
    %1013 = arith.addf %1002, %1012 : vector<16x16xf32>
    %cst_593 = arith.constant 0.0912031233 : f32
    %1014 = vector.broadcast %cst_593 : f32 to vector<16x16xf32>
    %1015 = arith.mulf %1007, %1014 : vector<16x16xf32>
    %1016 = arith.addf %1005, %1015 : vector<16x16xf32>
    %c0_594 = arith.constant 0 : index
    %c2_595 = arith.constant 2 : index
    %c0_596 = arith.constant 0 : index
    %1017 = vector.load %arg4[%c0_594, %c2_595, %c0_596] : memref<5x20x16xf32, #tpu.memory_space<vmem>>, vector<1x16x16xf32>
    %1018 = vector.shape_cast %1017 : vector<1x16x16xf32> to vector<16x16xf32>
    %cst_597 = arith.constant -0.0294123963 : f32
    %1019 = vector.broadcast %cst_597 : f32 to vector<16x16xf32>
    %1020 = arith.mulf %1018, %1019 : vector<16x16xf32>
    %1021 = arith.addf %1010, %1020 : vector<16x16xf32>
    %cst_598 = arith.constant -6.921640e-02 : f32
    %1022 = vector.broadcast %cst_598 : f32 to vector<16x16xf32>
    %1023 = arith.mulf %1018, %1022 : vector<16x16xf32>
    %1024 = arith.addf %1013, %1023 : vector<16x16xf32>
    %cst_599 = arith.constant -0.0137557043 : f32
    %1025 = vector.broadcast %cst_599 : f32 to vector<16x16xf32>
    %1026 = arith.mulf %1018, %1025 : vector<16x16xf32>
    %1027 = arith.addf %1016, %1026 : vector<16x16xf32>
    %c1_600 = arith.constant 1 : index
    %c2_601 = arith.constant 2 : index
    %c0_602 = arith.constant 0 : index
    %1028 = vector.load %arg4[%c1_600, %c2_601, %c0_602] : memref<5x20x16xf32, #tpu.memory_space<vmem>>, vector<1x16x16xf32>
    %1029 = vector.shape_cast %1028 : vector<1x16x16xf32> to vector<16x16xf32>
    %cst_603 = arith.constant 0.0307764858 : f32
    %1030 = vector.broadcast %cst_603 : f32 to vector<16x16xf32>
    %1031 = arith.mulf %1029, %1030 : vector<16x16xf32>
    %1032 = arith.addf %1021, %1031 : vector<16x16xf32>
    %cst_604 = arith.constant -0.0626498908 : f32
    %1033 = vector.broadcast %cst_604 : f32 to vector<16x16xf32>
    %1034 = arith.mulf %1029, %1033 : vector<16x16xf32>
    %1035 = arith.addf %1024, %1034 : vector<16x16xf32>
    %cst_605 = arith.constant -0.0121544274 : f32
    %1036 = vector.broadcast %cst_605 : f32 to vector<16x16xf32>
    %1037 = arith.mulf %1029, %1036 : vector<16x16xf32>
    %1038 = arith.addf %1027, %1037 : vector<16x16xf32>
    %c2_606 = arith.constant 2 : index
    %c2_607 = arith.constant 2 : index
    %c0_608 = arith.constant 0 : index
    %1039 = vector.load %arg4[%c2_606, %c2_607, %c0_608] : memref<5x20x16xf32, #tpu.memory_space<vmem>>, vector<1x16x16xf32>
    %1040 = vector.shape_cast %1039 : vector<1x16x16xf32> to vector<16x16xf32>
    %cst_609 = arith.constant 0.107359707 : f32
    %1041 = vector.broadcast %cst_609 : f32 to vector<16x16xf32>
    %1042 = arith.mulf %1040, %1041 : vector<16x16xf32>
    %1043 = arith.addf %1032, %1042 : vector<16x16xf32>
    %cst_610 = arith.constant -0.108871885 : f32
    %1044 = vector.broadcast %cst_610 : f32 to vector<16x16xf32>
    %1045 = arith.mulf %1040, %1044 : vector<16x16xf32>
    %1046 = arith.addf %1035, %1045 : vector<16x16xf32>
    %cst_611 = arith.constant -0.00443149172 : f32
    %1047 = vector.broadcast %cst_611 : f32 to vector<16x16xf32>
    %1048 = arith.mulf %1040, %1047 : vector<16x16xf32>
    %1049 = arith.addf %1038, %1048 : vector<16x16xf32>
    %c3_612 = arith.constant 3 : index
    %c2_613 = arith.constant 2 : index
    %c0_614 = arith.constant 0 : index
    %1050 = vector.load %arg4[%c3_612, %c2_613, %c0_614] : memref<5x20x16xf32, #tpu.memory_space<vmem>>, vector<1x16x16xf32>
    %1051 = vector.shape_cast %1050 : vector<1x16x16xf32> to vector<16x16xf32>
    %cst_615 = arith.constant -0.113436542 : f32
    %1052 = vector.broadcast %cst_615 : f32 to vector<16x16xf32>
    %1053 = arith.mulf %1051, %1052 : vector<16x16xf32>
    %1054 = arith.addf %1043, %1053 : vector<16x16xf32>
    %cst_616 = arith.constant -0.0623123086 : f32
    %1055 = vector.broadcast %cst_616 : f32 to vector<16x16xf32>
    %1056 = arith.mulf %1051, %1055 : vector<16x16xf32>
    %1057 = arith.addf %1046, %1056 : vector<16x16xf32>
    %cst_617 = arith.constant 0.167511657 : f32
    %1058 = vector.broadcast %cst_617 : f32 to vector<16x16xf32>
    %1059 = arith.mulf %1051, %1058 : vector<16x16xf32>
    %1060 = arith.addf %1049, %1059 : vector<16x16xf32>
    %c4_618 = arith.constant 4 : index
    %c2_619 = arith.constant 2 : index
    %c0_620 = arith.constant 0 : index
    %1061 = vector.load %arg4[%c4_618, %c2_619, %c0_620] : memref<5x20x16xf32, #tpu.memory_space<vmem>>, vector<1x16x16xf32>
    %1062 = vector.shape_cast %1061 : vector<1x16x16xf32> to vector<16x16xf32>
    %cst_621 = arith.constant 0.0160442833 : f32
    %1063 = vector.broadcast %cst_621 : f32 to vector<16x16xf32>
    %1064 = arith.mulf %1062, %1063 : vector<16x16xf32>
    %1065 = arith.addf %1054, %1064 : vector<16x16xf32>
    %cst_622 = arith.constant -0.160074055 : f32
    %1066 = vector.broadcast %cst_622 : f32 to vector<16x16xf32>
    %1067 = arith.mulf %1062, %1066 : vector<16x16xf32>
    %1068 = arith.addf %1057, %1067 : vector<16x16xf32>
    %cst_623 = arith.constant 0.0605138838 : f32
    %1069 = vector.broadcast %cst_623 : f32 to vector<16x16xf32>
    %1070 = arith.mulf %1062, %1069 : vector<16x16xf32>
    %1071 = arith.addf %1060, %1070 : vector<16x16xf32>
    %c0_624 = arith.constant 0 : index
    %c3_625 = arith.constant 3 : index
    %c0_626 = arith.constant 0 : index
    %1072 = vector.load %arg4[%c0_624, %c3_625, %c0_626] : memref<5x20x16xf32, #tpu.memory_space<vmem>>, vector<1x16x16xf32>
    %1073 = vector.shape_cast %1072 : vector<1x16x16xf32> to vector<16x16xf32>
    %cst_627 = arith.constant 0.0588521324 : f32
    %1074 = vector.broadcast %cst_627 : f32 to vector<16x16xf32>
    %1075 = arith.mulf %1073, %1074 : vector<16x16xf32>
    %1076 = arith.addf %1065, %1075 : vector<16x16xf32>
    %cst_628 = arith.constant 0.0610860139 : f32
    %1077 = vector.broadcast %cst_628 : f32 to vector<16x16xf32>
    %1078 = arith.mulf %1073, %1077 : vector<16x16xf32>
    %1079 = arith.addf %1068, %1078 : vector<16x16xf32>
    %cst_629 = arith.constant 0.226650059 : f32
    %1080 = vector.broadcast %cst_629 : f32 to vector<16x16xf32>
    %1081 = arith.mulf %1073, %1080 : vector<16x16xf32>
    %1082 = arith.addf %1071, %1081 : vector<16x16xf32>
    %c1_630 = arith.constant 1 : index
    %c3_631 = arith.constant 3 : index
    %c0_632 = arith.constant 0 : index
    %1083 = vector.load %arg4[%c1_630, %c3_631, %c0_632] : memref<5x20x16xf32, #tpu.memory_space<vmem>>, vector<1x16x16xf32>
    %1084 = vector.shape_cast %1083 : vector<1x16x16xf32> to vector<16x16xf32>
    %cst_633 = arith.constant -0.0711846501 : f32
    %1085 = vector.broadcast %cst_633 : f32 to vector<16x16xf32>
    %1086 = arith.mulf %1084, %1085 : vector<16x16xf32>
    %1087 = arith.addf %1076, %1086 : vector<16x16xf32>
    %cst_634 = arith.constant -0.0412126891 : f32
    %1088 = vector.broadcast %cst_634 : f32 to vector<16x16xf32>
    %1089 = arith.mulf %1084, %1088 : vector<16x16xf32>
    %1090 = arith.addf %1079, %1089 : vector<16x16xf32>
    %cst_635 = arith.constant 0.076480262 : f32
    %1091 = vector.broadcast %cst_635 : f32 to vector<16x16xf32>
    %1092 = arith.mulf %1084, %1091 : vector<16x16xf32>
    %1093 = arith.addf %1082, %1092 : vector<16x16xf32>
    %c2_636 = arith.constant 2 : index
    %c3_637 = arith.constant 3 : index
    %c0_638 = arith.constant 0 : index
    %1094 = vector.load %arg4[%c2_636, %c3_637, %c0_638] : memref<5x20x16xf32, #tpu.memory_space<vmem>>, vector<1x16x16xf32>
    %1095 = vector.shape_cast %1094 : vector<1x16x16xf32> to vector<16x16xf32>
    %cst_639 = arith.constant 0.0677412376 : f32
    %1096 = vector.broadcast %cst_639 : f32 to vector<16x16xf32>
    %1097 = arith.mulf %1095, %1096 : vector<16x16xf32>
    %1098 = arith.addf %1087, %1097 : vector<16x16xf32>
    %cst_640 = arith.constant -0.0031319214 : f32
    %1099 = vector.broadcast %cst_640 : f32 to vector<16x16xf32>
    %1100 = arith.mulf %1095, %1099 : vector<16x16xf32>
    %1101 = arith.addf %1090, %1100 : vector<16x16xf32>
    %cst_641 = arith.constant 0.0222411733 : f32
    %1102 = vector.broadcast %cst_641 : f32 to vector<16x16xf32>
    %1103 = arith.mulf %1095, %1102 : vector<16x16xf32>
    %1104 = arith.addf %1093, %1103 : vector<16x16xf32>
    %c3_642 = arith.constant 3 : index
    %c3_643 = arith.constant 3 : index
    %c0_644 = arith.constant 0 : index
    %1105 = vector.load %arg4[%c3_642, %c3_643, %c0_644] : memref<5x20x16xf32, #tpu.memory_space<vmem>>, vector<1x16x16xf32>
    %1106 = vector.shape_cast %1105 : vector<1x16x16xf32> to vector<16x16xf32>
    %cst_645 = arith.constant 2.662710e-02 : f32
    %1107 = vector.broadcast %cst_645 : f32 to vector<16x16xf32>
    %1108 = arith.mulf %1106, %1107 : vector<16x16xf32>
    %1109 = arith.addf %1098, %1108 : vector<16x16xf32>
    %cst_646 = arith.constant -0.0703384653 : f32
    %1110 = vector.broadcast %cst_646 : f32 to vector<16x16xf32>
    %1111 = arith.mulf %1106, %1110 : vector<16x16xf32>
    %1112 = arith.addf %1101, %1111 : vector<16x16xf32>
    %cst_647 = arith.constant -0.0466132723 : f32
    %1113 = vector.broadcast %cst_647 : f32 to vector<16x16xf32>
    %1114 = arith.mulf %1106, %1113 : vector<16x16xf32>
    %1115 = arith.addf %1104, %1114 : vector<16x16xf32>
    %c4_648 = arith.constant 4 : index
    %c3_649 = arith.constant 3 : index
    %c0_650 = arith.constant 0 : index
    %1116 = vector.load %arg4[%c4_648, %c3_649, %c0_650] : memref<5x20x16xf32, #tpu.memory_space<vmem>>, vector<1x16x16xf32>
    %1117 = vector.shape_cast %1116 : vector<1x16x16xf32> to vector<16x16xf32>
    %cst_651 = arith.constant -0.101945281 : f32
    %1118 = vector.broadcast %cst_651 : f32 to vector<16x16xf32>
    %1119 = arith.mulf %1117, %1118 : vector<16x16xf32>
    %1120 = arith.addf %1109, %1119 : vector<16x16xf32>
    %cst_652 = arith.constant 0.0665055439 : f32
    %1121 = vector.broadcast %cst_652 : f32 to vector<16x16xf32>
    %1122 = arith.mulf %1117, %1121 : vector<16x16xf32>
    %1123 = arith.addf %1112, %1122 : vector<16x16xf32>
    %cst_653 = arith.constant 0.0411280282 : f32
    %1124 = vector.broadcast %cst_653 : f32 to vector<16x16xf32>
    %1125 = arith.mulf %1117, %1124 : vector<16x16xf32>
    %1126 = arith.addf %1115, %1125 : vector<16x16xf32>
    %c0_654 = arith.constant 0 : index
    %c4_655 = arith.constant 4 : index
    %c0_656 = arith.constant 0 : index
    %1127 = vector.load %arg4[%c0_654, %c4_655, %c0_656] : memref<5x20x16xf32, #tpu.memory_space<vmem>>, vector<1x16x16xf32>
    %1128 = vector.shape_cast %1127 : vector<1x16x16xf32> to vector<16x16xf32>
    %cst_657 = arith.constant -0.0629849583 : f32
    %1129 = vector.broadcast %cst_657 : f32 to vector<16x16xf32>
    %1130 = arith.mulf %1128, %1129 : vector<16x16xf32>
    %1131 = arith.addf %1120, %1130 : vector<16x16xf32>
    %cst_658 = arith.constant -0.0850368514 : f32
    %1132 = vector.broadcast %cst_658 : f32 to vector<16x16xf32>
    %1133 = arith.mulf %1128, %1132 : vector<16x16xf32>
    %1134 = arith.addf %1123, %1133 : vector<16x16xf32>
    %cst_659 = arith.constant -0.00355533231 : f32
    %1135 = vector.broadcast %cst_659 : f32 to vector<16x16xf32>
    %1136 = arith.mulf %1128, %1135 : vector<16x16xf32>
    %1137 = arith.addf %1126, %1136 : vector<16x16xf32>
    %c1_660 = arith.constant 1 : index
    %c4_661 = arith.constant 4 : index
    %c0_662 = arith.constant 0 : index
    %1138 = vector.load %arg4[%c1_660, %c4_661, %c0_662] : memref<5x20x16xf32, #tpu.memory_space<vmem>>, vector<1x16x16xf32>
    %1139 = vector.shape_cast %1138 : vector<1x16x16xf32> to vector<16x16xf32>
    %cst_663 = arith.constant -0.0356179588 : f32
    %1140 = vector.broadcast %cst_663 : f32 to vector<16x16xf32>
    %1141 = arith.mulf %1139, %1140 : vector<16x16xf32>
    %1142 = arith.addf %1131, %1141 : vector<16x16xf32>
    %cst_664 = arith.constant 0.00617540209 : f32
    %1143 = vector.broadcast %cst_664 : f32 to vector<16x16xf32>
    %1144 = arith.mulf %1139, %1143 : vector<16x16xf32>
    %1145 = arith.addf %1134, %1144 : vector<16x16xf32>
    %cst_665 = arith.constant 0.0158453751 : f32
    %1146 = vector.broadcast %cst_665 : f32 to vector<16x16xf32>
    %1147 = arith.mulf %1139, %1146 : vector<16x16xf32>
    %1148 = arith.addf %1137, %1147 : vector<16x16xf32>
    %c2_666 = arith.constant 2 : index
    %c4_667 = arith.constant 4 : index
    %c0_668 = arith.constant 0 : index
    %1149 = vector.load %arg4[%c2_666, %c4_667, %c0_668] : memref<5x20x16xf32, #tpu.memory_space<vmem>>, vector<1x16x16xf32>
    %1150 = vector.shape_cast %1149 : vector<1x16x16xf32> to vector<16x16xf32>
    %cst_669 = arith.constant -0.117150843 : f32
    %1151 = vector.broadcast %cst_669 : f32 to vector<16x16xf32>
    %1152 = arith.mulf %1150, %1151 : vector<16x16xf32>
    %1153 = arith.addf %1142, %1152 : vector<16x16xf32>
    %cst_670 = arith.constant 0.111300468 : f32
    %1154 = vector.broadcast %cst_670 : f32 to vector<16x16xf32>
    %1155 = arith.mulf %1150, %1154 : vector<16x16xf32>
    %1156 = arith.addf %1145, %1155 : vector<16x16xf32>
    %cst_671 = arith.constant -0.12203896 : f32
    %1157 = vector.broadcast %cst_671 : f32 to vector<16x16xf32>
    %1158 = arith.mulf %1150, %1157 : vector<16x16xf32>
    %1159 = arith.addf %1148, %1158 : vector<16x16xf32>
    %c3_672 = arith.constant 3 : index
    %c4_673 = arith.constant 4 : index
    %c0_674 = arith.constant 0 : index
    %1160 = vector.load %arg4[%c3_672, %c4_673, %c0_674] : memref<5x20x16xf32, #tpu.memory_space<vmem>>, vector<1x16x16xf32>
    %1161 = vector.shape_cast %1160 : vector<1x16x16xf32> to vector<16x16xf32>
    %cst_675 = arith.constant -0.0592115037 : f32
    %1162 = vector.broadcast %cst_675 : f32 to vector<16x16xf32>
    %1163 = arith.mulf %1161, %1162 : vector<16x16xf32>
    %1164 = arith.addf %1153, %1163 : vector<16x16xf32>
    %cst_676 = arith.constant -0.0893276557 : f32
    %1165 = vector.broadcast %cst_676 : f32 to vector<16x16xf32>
    %1166 = arith.mulf %1161, %1165 : vector<16x16xf32>
    %1167 = arith.addf %1156, %1166 : vector<16x16xf32>
    %cst_677 = arith.constant 0.0667381584 : f32
    %1168 = vector.broadcast %cst_677 : f32 to vector<16x16xf32>
    %1169 = arith.mulf %1161, %1168 : vector<16x16xf32>
    %1170 = arith.addf %1159, %1169 : vector<16x16xf32>
    %c4_678 = arith.constant 4 : index
    %c4_679 = arith.constant 4 : index
    %c0_680 = arith.constant 0 : index
    %1171 = vector.load %arg4[%c4_678, %c4_679, %c0_680] : memref<5x20x16xf32, #tpu.memory_space<vmem>>, vector<1x16x16xf32>
    %1172 = vector.shape_cast %1171 : vector<1x16x16xf32> to vector<16x16xf32>
    %cst_681 = arith.constant -0.226578251 : f32
    %1173 = vector.broadcast %cst_681 : f32 to vector<16x16xf32>
    %1174 = arith.mulf %1172, %1173 : vector<16x16xf32>
    %1175 = arith.addf %1164, %1174 : vector<16x16xf32>
    %cst_682 = arith.constant 0.0106908204 : f32
    %1176 = vector.broadcast %cst_682 : f32 to vector<16x16xf32>
    %1177 = arith.mulf %1172, %1176 : vector<16x16xf32>
    %1178 = arith.addf %1167, %1177 : vector<16x16xf32>
    %cst_683 = arith.constant -0.0328453518 : f32
    %1179 = vector.broadcast %cst_683 : f32 to vector<16x16xf32>
    %1180 = arith.mulf %1172, %1179 : vector<16x16xf32>
    %1181 = arith.addf %1170, %1180 : vector<16x16xf32>
    %cst_684 = arith.constant -3.000000e+00 : f32
    %cst_685 = arith.constant 3.000000e+00 : f32
    %1182 = vector.broadcast %cst_684 : f32 to vector<16x16xf32>
    %1183 = arith.maximumf %1182, %1175 : vector<16x16xf32>
    %1184 = vector.broadcast %cst_685 : f32 to vector<16x16xf32>
    %1185 = arith.minimumf %1184, %1183 : vector<16x16xf32>
    %c0_686 = arith.constant 0 : index
    %c18 = arith.constant 18 : index
    %c0_687 = arith.constant 0 : index
    %c0_688 = arith.constant 0 : index
    %1186 = vector.load %arg3[%c0_686, %c18, %c0_687, %c0_688] : memref<1x30x16x16xf32, #tpu.memory_space<vmem>>, vector<1x1x16x16xf32>
    %1187 = vector.shape_cast %1186 : vector<1x1x16x16xf32> to vector<16x16xf32>
    %1188 = vector.shape_cast %1185 : vector<16x16xf32> to vector<1x1x16x16xf32>
    tpu.vector_store %arg3[%c0_686, %c18, %c0_687, %c0_688], %1188 {strides = array<i32>} : memref<1x30x16x16xf32, #tpu.memory_space<vmem>>, vector<1x1x16x16xf32>,
    %cst_689 = arith.constant -3.000000e+00 : f32
    %cst_690 = arith.constant 3.000000e+00 : f32
    %1189 = vector.broadcast %cst_689 : f32 to vector<16x16xf32>
    %1190 = arith.maximumf %1189, %1178 : vector<16x16xf32>
    %1191 = vector.broadcast %cst_690 : f32 to vector<16x16xf32>
    %1192 = arith.minimumf %1191, %1190 : vector<16x16xf32>
    %c0_691 = arith.constant 0 : index
    %c19 = arith.constant 19 : index
    %c0_692 = arith.constant 0 : index
    %c0_693 = arith.constant 0 : index
    %1193 = vector.load %arg3[%c0_691, %c19, %c0_692, %c0_693] : memref<1x30x16x16xf32, #tpu.memory_space<vmem>>, vector<1x1x16x16xf32>
    %1194 = vector.shape_cast %1193 : vector<1x1x16x16xf32> to vector<16x16xf32>
    %1195 = vector.shape_cast %1192 : vector<16x16xf32> to vector<1x1x16x16xf32>
    tpu.vector_store %arg3[%c0_691, %c19, %c0_692, %c0_693], %1195 {strides = array<i32>} : memref<1x30x16x16xf32, #tpu.memory_space<vmem>>, vector<1x1x16x16xf32>,
    %cst_694 = arith.constant -3.000000e+00 : f32
    %cst_695 = arith.constant 3.000000e+00 : f32
    %1196 = vector.broadcast %cst_694 : f32 to vector<16x16xf32>
    %1197 = arith.maximumf %1196, %1181 : vector<16x16xf32>
    %1198 = vector.broadcast %cst_695 : f32 to vector<16x16xf32>
    %1199 = arith.minimumf %1198, %1197 : vector<16x16xf32>
    %c0_696 = arith.constant 0 : index
    %c20 = arith.constant 20 : index
    %c0_697 = arith.constant 0 : index
    %c0_698 = arith.constant 0 : index
    %1200 = vector.load %arg3[%c0_696, %c20, %c0_697, %c0_698] : memref<1x30x16x16xf32, #tpu.memory_space<vmem>>, vector<1x1x16x16xf32>
    %1201 = vector.shape_cast %1200 : vector<1x1x16x16xf32> to vector<16x16xf32>
    %1202 = vector.shape_cast %1199 : vector<16x16xf32> to vector<1x1x16x16xf32>
    tpu.vector_store %arg3[%c0_696, %c20, %c0_697, %c0_698], %1202 {strides = array<i32>} : memref<1x30x16x16xf32, #tpu.memory_space<vmem>>, vector<1x1x16x16xf32>,
    %c0_699 = arith.constant 0 : index
    %c0_700 = arith.constant 0 : index
    %c0_701 = arith.constant 0 : index
    %1203 = vector.load %arg4[%c0_699, %c0_700, %c0_701] : memref<5x20x16xf32, #tpu.memory_space<vmem>>, vector<1x16x16xf32>
    %1204 = vector.shape_cast %1203 : vector<1x16x16xf32> to vector<16x16xf32>
    %cst_702 = arith.constant 0.103192069 : f32
    %1205 = vector.broadcast %cst_702 : f32 to vector<16x16xf32>
    %1206 = arith.mulf %1204, %1205 : vector<16x16xf32>
    %cst_703 = arith.constant 0.0424643494 : f32
    %1207 = vector.broadcast %cst_703 : f32 to vector<16x16xf32>
    %1208 = arith.mulf %1204, %1207 : vector<16x16xf32>
    %cst_704 = arith.constant 0.0103812749 : f32
    %1209 = vector.broadcast %cst_704 : f32 to vector<16x16xf32>
    %1210 = arith.mulf %1204, %1209 : vector<16x16xf32>
    %c1_705 = arith.constant 1 : index
    %c0_706 = arith.constant 0 : index
    %c0_707 = arith.constant 0 : index
    %1211 = vector.load %arg4[%c1_705, %c0_706, %c0_707] : memref<5x20x16xf32, #tpu.memory_space<vmem>>, vector<1x16x16xf32>
    %1212 = vector.shape_cast %1211 : vector<1x16x16xf32> to vector<16x16xf32>
    %cst_708 = arith.constant -0.0958604142 : f32
    %1213 = vector.broadcast %cst_708 : f32 to vector<16x16xf32>
    %1214 = arith.mulf %1212, %1213 : vector<16x16xf32>
    %1215 = arith.addf %1206, %1214 : vector<16x16xf32>
    %cst_709 = arith.constant 0.116068453 : f32
    %1216 = vector.broadcast %cst_709 : f32 to vector<16x16xf32>
    %1217 = arith.mulf %1212, %1216 : vector<16x16xf32>
    %1218 = arith.addf %1208, %1217 : vector<16x16xf32>
    %cst_710 = arith.constant -0.0755011812 : f32
    %1219 = vector.broadcast %cst_710 : f32 to vector<16x16xf32>
    %1220 = arith.mulf %1212, %1219 : vector<16x16xf32>
    %1221 = arith.addf %1210, %1220 : vector<16x16xf32>
    %c2_711 = arith.constant 2 : index
    %c0_712 = arith.constant 0 : index
    %c0_713 = arith.constant 0 : index
    %1222 = vector.load %arg4[%c2_711, %c0_712, %c0_713] : memref<5x20x16xf32, #tpu.memory_space<vmem>>, vector<1x16x16xf32>
    %1223 = vector.shape_cast %1222 : vector<1x16x16xf32> to vector<16x16xf32>
    %cst_714 = arith.constant 1.778050e-02 : f32
    %1224 = vector.broadcast %cst_714 : f32 to vector<16x16xf32>
    %1225 = arith.mulf %1223, %1224 : vector<16x16xf32>
    %1226 = arith.addf %1215, %1225 : vector<16x16xf32>
    %cst_715 = arith.constant 0.0367540643 : f32
    %1227 = vector.broadcast %cst_715 : f32 to vector<16x16xf32>
    %1228 = arith.mulf %1223, %1227 : vector<16x16xf32>
    %1229 = arith.addf %1218, %1228 : vector<16x16xf32>
    %cst_716 = arith.constant 0.0505085178 : f32
    %1230 = vector.broadcast %cst_716 : f32 to vector<16x16xf32>
    %1231 = arith.mulf %1223, %1230 : vector<16x16xf32>
    %1232 = arith.addf %1221, %1231 : vector<16x16xf32>
    %c3_717 = arith.constant 3 : index
    %c0_718 = arith.constant 0 : index
    %c0_719 = arith.constant 0 : index
    %1233 = vector.load %arg4[%c3_717, %c0_718, %c0_719] : memref<5x20x16xf32, #tpu.memory_space<vmem>>, vector<1x16x16xf32>
    %1234 = vector.shape_cast %1233 : vector<1x16x16xf32> to vector<16x16xf32>
    %cst_720 = arith.constant -0.0807831883 : f32
    %1235 = vector.broadcast %cst_720 : f32 to vector<16x16xf32>
    %1236 = arith.mulf %1234, %1235 : vector<16x16xf32>
    %1237 = arith.addf %1226, %1236 : vector<16x16xf32>
    %cst_721 = arith.constant -0.0444806665 : f32
    %1238 = vector.broadcast %cst_721 : f32 to vector<16x16xf32>
    %1239 = arith.mulf %1234, %1238 : vector<16x16xf32>
    %1240 = arith.addf %1229, %1239 : vector<16x16xf32>
    %cst_722 = arith.constant -0.125184491 : f32
    %1241 = vector.broadcast %cst_722 : f32 to vector<16x16xf32>
    %1242 = arith.mulf %1234, %1241 : vector<16x16xf32>
    %1243 = arith.addf %1232, %1242 : vector<16x16xf32>
    %c4_723 = arith.constant 4 : index
    %c0_724 = arith.constant 0 : index
    %c0_725 = arith.constant 0 : index
    %1244 = vector.load %arg4[%c4_723, %c0_724, %c0_725] : memref<5x20x16xf32, #tpu.memory_space<vmem>>, vector<1x16x16xf32>
    %1245 = vector.shape_cast %1244 : vector<1x16x16xf32> to vector<16x16xf32>
    %cst_726 = arith.constant -0.122980624 : f32
    %1246 = vector.broadcast %cst_726 : f32 to vector<16x16xf32>
    %1247 = arith.mulf %1245, %1246 : vector<16x16xf32>
    %1248 = arith.addf %1237, %1247 : vector<16x16xf32>
    %cst_727 = arith.constant -0.0297445636 : f32
    %1249 = vector.broadcast %cst_727 : f32 to vector<16x16xf32>
    %1250 = arith.mulf %1245, %1249 : vector<16x16xf32>
    %1251 = arith.addf %1240, %1250 : vector<16x16xf32>
    %cst_728 = arith.constant -0.00326598808 : f32
    %1252 = vector.broadcast %cst_728 : f32 to vector<16x16xf32>
    %1253 = arith.mulf %1245, %1252 : vector<16x16xf32>
    %1254 = arith.addf %1243, %1253 : vector<16x16xf32>
    %c0_729 = arith.constant 0 : index
    %c1_730 = arith.constant 1 : index
    %c0_731 = arith.constant 0 : index
    %1255 = vector.load %arg4[%c0_729, %c1_730, %c0_731] : memref<5x20x16xf32, #tpu.memory_space<vmem>>, vector<1x16x16xf32>
    %1256 = vector.shape_cast %1255 : vector<1x16x16xf32> to vector<16x16xf32>
    %cst_732 = arith.constant -0.0782203972 : f32
    %1257 = vector.broadcast %cst_732 : f32 to vector<16x16xf32>
    %1258 = arith.mulf %1256, %1257 : vector<16x16xf32>
    %1259 = arith.addf %1248, %1258 : vector<16x16xf32>
    %cst_733 = arith.constant -3.986980e-02 : f32
    %1260 = vector.broadcast %cst_733 : f32 to vector<16x16xf32>
    %1261 = arith.mulf %1256, %1260 : vector<16x16xf32>
    %1262 = arith.addf %1251, %1261 : vector<16x16xf32>
    %cst_734 = arith.constant 0.10388422 : f32
    %1263 = vector.broadcast %cst_734 : f32 to vector<16x16xf32>
    %1264 = arith.mulf %1256, %1263 : vector<16x16xf32>
    %1265 = arith.addf %1254, %1264 : vector<16x16xf32>
    %c1_735 = arith.constant 1 : index
    %c1_736 = arith.constant 1 : index
    %c0_737 = arith.constant 0 : index
    %1266 = vector.load %arg4[%c1_735, %c1_736, %c0_737] : memref<5x20x16xf32, #tpu.memory_space<vmem>>, vector<1x16x16xf32>
    %1267 = vector.shape_cast %1266 : vector<1x16x16xf32> to vector<16x16xf32>
    %cst_738 = arith.constant -0.0697920769 : f32
    %1268 = vector.broadcast %cst_738 : f32 to vector<16x16xf32>
    %1269 = arith.mulf %1267, %1268 : vector<16x16xf32>
    %1270 = arith.addf %1259, %1269 : vector<16x16xf32>
    %cst_739 = arith.constant -0.0462406464 : f32
    %1271 = vector.broadcast %cst_739 : f32 to vector<16x16xf32>
    %1272 = arith.mulf %1267, %1271 : vector<16x16xf32>
    %1273 = arith.addf %1262, %1272 : vector<16x16xf32>
    %cst_740 = arith.constant 0.0742795393 : f32
    %1274 = vector.broadcast %cst_740 : f32 to vector<16x16xf32>
    %1275 = arith.mulf %1267, %1274 : vector<16x16xf32>
    %1276 = arith.addf %1265, %1275 : vector<16x16xf32>
    %c2_741 = arith.constant 2 : index
    %c1_742 = arith.constant 1 : index
    %c0_743 = arith.constant 0 : index
    %1277 = vector.load %arg4[%c2_741, %c1_742, %c0_743] : memref<5x20x16xf32, #tpu.memory_space<vmem>>, vector<1x16x16xf32>
    %1278 = vector.shape_cast %1277 : vector<1x16x16xf32> to vector<16x16xf32>
    %cst_744 = arith.constant 0.0484881252 : f32
    %1279 = vector.broadcast %cst_744 : f32 to vector<16x16xf32>
    %1280 = arith.mulf %1278, %1279 : vector<16x16xf32>
    %1281 = arith.addf %1270, %1280 : vector<16x16xf32>
    %cst_745 = arith.constant -0.024676865 : f32
    %1282 = vector.broadcast %cst_745 : f32 to vector<16x16xf32>
    %1283 = arith.mulf %1278, %1282 : vector<16x16xf32>
    %1284 = arith.addf %1273, %1283 : vector<16x16xf32>
    %cst_746 = arith.constant -0.0251410063 : f32
    %1285 = vector.broadcast %cst_746 : f32 to vector<16x16xf32>
    %1286 = arith.mulf %1278, %1285 : vector<16x16xf32>
    %1287 = arith.addf %1276, %1286 : vector<16x16xf32>
    %c3_747 = arith.constant 3 : index
    %c1_748 = arith.constant 1 : index
    %c0_749 = arith.constant 0 : index
    %1288 = vector.load %arg4[%c3_747, %c1_748, %c0_749] : memref<5x20x16xf32, #tpu.memory_space<vmem>>, vector<1x16x16xf32>
    %1289 = vector.shape_cast %1288 : vector<1x16x16xf32> to vector<16x16xf32>
    %cst_750 = arith.constant 0.012078139 : f32
    %1290 = vector.broadcast %cst_750 : f32 to vector<16x16xf32>
    %1291 = arith.mulf %1289, %1290 : vector<16x16xf32>
    %1292 = arith.addf %1281, %1291 : vector<16x16xf32>
    %cst_751 = arith.constant -0.0305724908 : f32
    %1293 = vector.broadcast %cst_751 : f32 to vector<16x16xf32>
    %1294 = arith.mulf %1289, %1293 : vector<16x16xf32>
    %1295 = arith.addf %1284, %1294 : vector<16x16xf32>
    %cst_752 = arith.constant 0.0570479073 : f32
    %1296 = vector.broadcast %cst_752 : f32 to vector<16x16xf32>
    %1297 = arith.mulf %1289, %1296 : vector<16x16xf32>
    %1298 = arith.addf %1287, %1297 : vector<16x16xf32>
    %c4_753 = arith.constant 4 : index
    %c1_754 = arith.constant 1 : index
    %c0_755 = arith.constant 0 : index
    %1299 = vector.load %arg4[%c4_753, %c1_754, %c0_755] : memref<5x20x16xf32, #tpu.memory_space<vmem>>, vector<1x16x16xf32>
    %1300 = vector.shape_cast %1299 : vector<1x16x16xf32> to vector<16x16xf32>
    %cst_756 = arith.constant 0.177049235 : f32
    %1301 = vector.broadcast %cst_756 : f32 to vector<16x16xf32>
    %1302 = arith.mulf %1300, %1301 : vector<16x16xf32>
    %1303 = arith.addf %1292, %1302 : vector<16x16xf32>
    %cst_757 = arith.constant -0.141220495 : f32
    %1304 = vector.broadcast %cst_757 : f32 to vector<16x16xf32>
    %1305 = arith.mulf %1300, %1304 : vector<16x16xf32>
    %1306 = arith.addf %1295, %1305 : vector<16x16xf32>
    %cst_758 = arith.constant 0.035808336 : f32
    %1307 = vector.broadcast %cst_758 : f32 to vector<16x16xf32>
    %1308 = arith.mulf %1300, %1307 : vector<16x16xf32>
    %1309 = arith.addf %1298, %1308 : vector<16x16xf32>
    %c0_759 = arith.constant 0 : index
    %c2_760 = arith.constant 2 : index
    %c0_761 = arith.constant 0 : index
    %1310 = vector.load %arg4[%c0_759, %c2_760, %c0_761] : memref<5x20x16xf32, #tpu.memory_space<vmem>>, vector<1x16x16xf32>
    %1311 = vector.shape_cast %1310 : vector<1x16x16xf32> to vector<16x16xf32>
    %cst_762 = arith.constant 0.129033014 : f32
    %1312 = vector.broadcast %cst_762 : f32 to vector<16x16xf32>
    %1313 = arith.mulf %1311, %1312 : vector<16x16xf32>
    %1314 = arith.addf %1303, %1313 : vector<16x16xf32>
    %cst_763 = arith.constant 0.0909271165 : f32
    %1315 = vector.broadcast %cst_763 : f32 to vector<16x16xf32>
    %1316 = arith.mulf %1311, %1315 : vector<16x16xf32>
    %1317 = arith.addf %1306, %1316 : vector<16x16xf32>
    %cst_764 = arith.constant 0.00715175876 : f32
    %1318 = vector.broadcast %cst_764 : f32 to vector<16x16xf32>
    %1319 = arith.mulf %1311, %1318 : vector<16x16xf32>
    %1320 = arith.addf %1309, %1319 : vector<16x16xf32>
    %c1_765 = arith.constant 1 : index
    %c2_766 = arith.constant 2 : index
    %c0_767 = arith.constant 0 : index
    %1321 = vector.load %arg4[%c1_765, %c2_766, %c0_767] : memref<5x20x16xf32, #tpu.memory_space<vmem>>, vector<1x16x16xf32>
    %1322 = vector.shape_cast %1321 : vector<1x16x16xf32> to vector<16x16xf32>
    %cst_768 = arith.constant 0.0895540341 : f32
    %1323 = vector.broadcast %cst_768 : f32 to vector<16x16xf32>
    %1324 = arith.mulf %1322, %1323 : vector<16x16xf32>
    %1325 = arith.addf %1314, %1324 : vector<16x16xf32>
    %cst_769 = arith.constant 0.0836002826 : f32
    %1326 = vector.broadcast %cst_769 : f32 to vector<16x16xf32>
    %1327 = arith.mulf %1322, %1326 : vector<16x16xf32>
    %1328 = arith.addf %1317, %1327 : vector<16x16xf32>
    %cst_770 = arith.constant -0.160734862 : f32
    %1329 = vector.broadcast %cst_770 : f32 to vector<16x16xf32>
    %1330 = arith.mulf %1322, %1329 : vector<16x16xf32>
    %1331 = arith.addf %1320, %1330 : vector<16x16xf32>
    %c2_771 = arith.constant 2 : index
    %c2_772 = arith.constant 2 : index
    %c0_773 = arith.constant 0 : index
    %1332 = vector.load %arg4[%c2_771, %c2_772, %c0_773] : memref<5x20x16xf32, #tpu.memory_space<vmem>>, vector<1x16x16xf32>
    %1333 = vector.shape_cast %1332 : vector<1x16x16xf32> to vector<16x16xf32>
    %cst_774 = arith.constant -0.102532208 : f32
    %1334 = vector.broadcast %cst_774 : f32 to vector<16x16xf32>
    %1335 = arith.mulf %1333, %1334 : vector<16x16xf32>
    %1336 = arith.addf %1325, %1335 : vector<16x16xf32>
    %cst_775 = arith.constant -0.120820217 : f32
    %1337 = vector.broadcast %cst_775 : f32 to vector<16x16xf32>
    %1338 = arith.mulf %1333, %1337 : vector<16x16xf32>
    %1339 = arith.addf %1328, %1338 : vector<16x16xf32>
    %cst_776 = arith.constant 0.137686461 : f32
    %1340 = vector.broadcast %cst_776 : f32 to vector<16x16xf32>
    %1341 = arith.mulf %1333, %1340 : vector<16x16xf32>
    %1342 = arith.addf %1331, %1341 : vector<16x16xf32>
    %c3_777 = arith.constant 3 : index
    %c2_778 = arith.constant 2 : index
    %c0_779 = arith.constant 0 : index
    %1343 = vector.load %arg4[%c3_777, %c2_778, %c0_779] : memref<5x20x16xf32, #tpu.memory_space<vmem>>, vector<1x16x16xf32>
    %1344 = vector.shape_cast %1343 : vector<1x16x16xf32> to vector<16x16xf32>
    %cst_780 = arith.constant -0.054111734 : f32
    %1345 = vector.broadcast %cst_780 : f32 to vector<16x16xf32>
    %1346 = arith.mulf %1344, %1345 : vector<16x16xf32>
    %1347 = arith.addf %1336, %1346 : vector<16x16xf32>
    %cst_781 = arith.constant 0.0781144127 : f32
    %1348 = vector.broadcast %cst_781 : f32 to vector<16x16xf32>
    %1349 = arith.mulf %1344, %1348 : vector<16x16xf32>
    %1350 = arith.addf %1339, %1349 : vector<16x16xf32>
    %cst_782 = arith.constant 0.0110783614 : f32
    %1351 = vector.broadcast %cst_782 : f32 to vector<16x16xf32>
    %1352 = arith.mulf %1344, %1351 : vector<16x16xf32>
    %1353 = arith.addf %1342, %1352 : vector<16x16xf32>
    %c4_783 = arith.constant 4 : index
    %c2_784 = arith.constant 2 : index
    %c0_785 = arith.constant 0 : index
    %1354 = vector.load %arg4[%c4_783, %c2_784, %c0_785] : memref<5x20x16xf32, #tpu.memory_space<vmem>>, vector<1x16x16xf32>
    %1355 = vector.shape_cast %1354 : vector<1x16x16xf32> to vector<16x16xf32>
    %cst_786 = arith.constant -0.0552612394 : f32
    %1356 = vector.broadcast %cst_786 : f32 to vector<16x16xf32>
    %1357 = arith.mulf %1355, %1356 : vector<16x16xf32>
    %1358 = arith.addf %1347, %1357 : vector<16x16xf32>
    %cst_787 = arith.constant 1.962540e-02 : f32
    %1359 = vector.broadcast %cst_787 : f32 to vector<16x16xf32>
    %1360 = arith.mulf %1355, %1359 : vector<16x16xf32>
    %1361 = arith.addf %1350, %1360 : vector<16x16xf32>
    %cst_788 = arith.constant 7.246310e-02 : f32
    %1362 = vector.broadcast %cst_788 : f32 to vector<16x16xf32>
    %1363 = arith.mulf %1355, %1362 : vector<16x16xf32>
    %1364 = arith.addf %1353, %1363 : vector<16x16xf32>
    %c0_789 = arith.constant 0 : index
    %c3_790 = arith.constant 3 : index
    %c0_791 = arith.constant 0 : index
    %1365 = vector.load %arg4[%c0_789, %c3_790, %c0_791] : memref<5x20x16xf32, #tpu.memory_space<vmem>>, vector<1x16x16xf32>
    %1366 = vector.shape_cast %1365 : vector<1x16x16xf32> to vector<16x16xf32>
    %cst_792 = arith.constant 0.0366416574 : f32
    %1367 = vector.broadcast %cst_792 : f32 to vector<16x16xf32>
    %1368 = arith.mulf %1366, %1367 : vector<16x16xf32>
    %1369 = arith.addf %1358, %1368 : vector<16x16xf32>
    %cst_793 = arith.constant 0.0963513255 : f32
    %1370 = vector.broadcast %cst_793 : f32 to vector<16x16xf32>
    %1371 = arith.mulf %1366, %1370 : vector<16x16xf32>
    %1372 = arith.addf %1361, %1371 : vector<16x16xf32>
    %cst_794 = arith.constant -0.0494799428 : f32
    %1373 = vector.broadcast %cst_794 : f32 to vector<16x16xf32>
    %1374 = arith.mulf %1366, %1373 : vector<16x16xf32>
    %1375 = arith.addf %1364, %1374 : vector<16x16xf32>
    %c1_795 = arith.constant 1 : index
    %c3_796 = arith.constant 3 : index
    %c0_797 = arith.constant 0 : index
    %1376 = vector.load %arg4[%c1_795, %c3_796, %c0_797] : memref<5x20x16xf32, #tpu.memory_space<vmem>>, vector<1x16x16xf32>
    %1377 = vector.shape_cast %1376 : vector<1x16x16xf32> to vector<16x16xf32>
    %cst_798 = arith.constant 0.0555923246 : f32
    %1378 = vector.broadcast %cst_798 : f32 to vector<16x16xf32>
    %1379 = arith.mulf %1377, %1378 : vector<16x16xf32>
    %1380 = arith.addf %1369, %1379 : vector<16x16xf32>
    %cst_799 = arith.constant 0.00283963117 : f32
    %1381 = vector.broadcast %cst_799 : f32 to vector<16x16xf32>
    %1382 = arith.mulf %1377, %1381 : vector<16x16xf32>
    %1383 = arith.addf %1372, %1382 : vector<16x16xf32>
    %cst_800 = arith.constant -0.11937058 : f32
    %1384 = vector.broadcast %cst_800 : f32 to vector<16x16xf32>
    %1385 = arith.mulf %1377, %1384 : vector<16x16xf32>
    %1386 = arith.addf %1375, %1385 : vector<16x16xf32>
    %c2_801 = arith.constant 2 : index
    %c3_802 = arith.constant 3 : index
    %c0_803 = arith.constant 0 : index
    %1387 = vector.load %arg4[%c2_801, %c3_802, %c0_803] : memref<5x20x16xf32, #tpu.memory_space<vmem>>, vector<1x16x16xf32>
    %1388 = vector.shape_cast %1387 : vector<1x16x16xf32> to vector<16x16xf32>
    %cst_804 = arith.constant 0.053476613 : f32
    %1389 = vector.broadcast %cst_804 : f32 to vector<16x16xf32>
    %1390 = arith.mulf %1388, %1389 : vector<16x16xf32>
    %1391 = arith.addf %1380, %1390 : vector<16x16xf32>
    %cst_805 = arith.constant -0.0133079179 : f32
    %1392 = vector.broadcast %cst_805 : f32 to vector<16x16xf32>
    %1393 = arith.mulf %1388, %1392 : vector<16x16xf32>
    %1394 = arith.addf %1383, %1393 : vector<16x16xf32>
    %cst_806 = arith.constant 0.151211813 : f32
    %1395 = vector.broadcast %cst_806 : f32 to vector<16x16xf32>
    %1396 = arith.mulf %1388, %1395 : vector<16x16xf32>
    %1397 = arith.addf %1386, %1396 : vector<16x16xf32>
    %c3_807 = arith.constant 3 : index
    %c3_808 = arith.constant 3 : index
    %c0_809 = arith.constant 0 : index
    %1398 = vector.load %arg4[%c3_807, %c3_808, %c0_809] : memref<5x20x16xf32, #tpu.memory_space<vmem>>, vector<1x16x16xf32>
    %1399 = vector.shape_cast %1398 : vector<1x16x16xf32> to vector<16x16xf32>
    %cst_810 = arith.constant -0.106724553 : f32
    %1400 = vector.broadcast %cst_810 : f32 to vector<16x16xf32>
    %1401 = arith.mulf %1399, %1400 : vector<16x16xf32>
    %1402 = arith.addf %1391, %1401 : vector<16x16xf32>
    %cst_811 = arith.constant 0.130791128 : f32
    %1403 = vector.broadcast %cst_811 : f32 to vector<16x16xf32>
    %1404 = arith.mulf %1399, %1403 : vector<16x16xf32>
    %1405 = arith.addf %1394, %1404 : vector<16x16xf32>
    %cst_812 = arith.constant -0.159716293 : f32
    %1406 = vector.broadcast %cst_812 : f32 to vector<16x16xf32>
    %1407 = arith.mulf %1399, %1406 : vector<16x16xf32>
    %1408 = arith.addf %1397, %1407 : vector<16x16xf32>
    %c4_813 = arith.constant 4 : index
    %c3_814 = arith.constant 3 : index
    %c0_815 = arith.constant 0 : index
    %1409 = vector.load %arg4[%c4_813, %c3_814, %c0_815] : memref<5x20x16xf32, #tpu.memory_space<vmem>>, vector<1x16x16xf32>
    %1410 = vector.shape_cast %1409 : vector<1x16x16xf32> to vector<16x16xf32>
    %cst_816 = arith.constant 0.147279635 : f32
    %1411 = vector.broadcast %cst_816 : f32 to vector<16x16xf32>
    %1412 = arith.mulf %1410, %1411 : vector<16x16xf32>
    %1413 = arith.addf %1402, %1412 : vector<16x16xf32>
    %cst_817 = arith.constant 0.0969608426 : f32
    %1414 = vector.broadcast %cst_817 : f32 to vector<16x16xf32>
    %1415 = arith.mulf %1410, %1414 : vector<16x16xf32>
    %1416 = arith.addf %1405, %1415 : vector<16x16xf32>
    %cst_818 = arith.constant 0.0964668691 : f32
    %1417 = vector.broadcast %cst_818 : f32 to vector<16x16xf32>
    %1418 = arith.mulf %1410, %1417 : vector<16x16xf32>
    %1419 = arith.addf %1408, %1418 : vector<16x16xf32>
    %c0_819 = arith.constant 0 : index
    %c4_820 = arith.constant 4 : index
    %c0_821 = arith.constant 0 : index
    %1420 = vector.load %arg4[%c0_819, %c4_820, %c0_821] : memref<5x20x16xf32, #tpu.memory_space<vmem>>, vector<1x16x16xf32>
    %1421 = vector.shape_cast %1420 : vector<1x16x16xf32> to vector<16x16xf32>
    %cst_822 = arith.constant 0.0099491747 : f32
    %1422 = vector.broadcast %cst_822 : f32 to vector<16x16xf32>
    %1423 = arith.mulf %1421, %1422 : vector<16x16xf32>
    %1424 = arith.addf %1413, %1423 : vector<16x16xf32>
    %cst_823 = arith.constant -0.0132231833 : f32
    %1425 = vector.broadcast %cst_823 : f32 to vector<16x16xf32>
    %1426 = arith.mulf %1421, %1425 : vector<16x16xf32>
    %1427 = arith.addf %1416, %1426 : vector<16x16xf32>
    %cst_824 = arith.constant -0.0762658864 : f32
    %1428 = vector.broadcast %cst_824 : f32 to vector<16x16xf32>
    %1429 = arith.mulf %1421, %1428 : vector<16x16xf32>
    %1430 = arith.addf %1419, %1429 : vector<16x16xf32>
    %c1_825 = arith.constant 1 : index
    %c4_826 = arith.constant 4 : index
    %c0_827 = arith.constant 0 : index
    %1431 = vector.load %arg4[%c1_825, %c4_826, %c0_827] : memref<5x20x16xf32, #tpu.memory_space<vmem>>, vector<1x16x16xf32>
    %1432 = vector.shape_cast %1431 : vector<1x16x16xf32> to vector<16x16xf32>
    %cst_828 = arith.constant 0.0657012537 : f32
    %1433 = vector.broadcast %cst_828 : f32 to vector<16x16xf32>
    %1434 = arith.mulf %1432, %1433 : vector<16x16xf32>
    %1435 = arith.addf %1424, %1434 : vector<16x16xf32>
    %cst_829 = arith.constant 0.0662311465 : f32
    %1436 = vector.broadcast %cst_829 : f32 to vector<16x16xf32>
    %1437 = arith.mulf %1432, %1436 : vector<16x16xf32>
    %1438 = arith.addf %1427, %1437 : vector<16x16xf32>
    %cst_830 = arith.constant -0.0804032683 : f32
    %1439 = vector.broadcast %cst_830 : f32 to vector<16x16xf32>
    %1440 = arith.mulf %1432, %1439 : vector<16x16xf32>
    %1441 = arith.addf %1430, %1440 : vector<16x16xf32>
    %c2_831 = arith.constant 2 : index
    %c4_832 = arith.constant 4 : index
    %c0_833 = arith.constant 0 : index
    %1442 = vector.load %arg4[%c2_831, %c4_832, %c0_833] : memref<5x20x16xf32, #tpu.memory_space<vmem>>, vector<1x16x16xf32>
    %1443 = vector.shape_cast %1442 : vector<1x16x16xf32> to vector<16x16xf32>
    %cst_834 = arith.constant -0.0378929563 : f32
    %1444 = vector.broadcast %cst_834 : f32 to vector<16x16xf32>
    %1445 = arith.mulf %1443, %1444 : vector<16x16xf32>
    %1446 = arith.addf %1435, %1445 : vector<16x16xf32>
    %cst_835 = arith.constant -0.0221573841 : f32
    %1447 = vector.broadcast %cst_835 : f32 to vector<16x16xf32>
    %1448 = arith.mulf %1443, %1447 : vector<16x16xf32>
    %1449 = arith.addf %1438, %1448 : vector<16x16xf32>
    %cst_836 = arith.constant 0.00336760283 : f32
    %1450 = vector.broadcast %cst_836 : f32 to vector<16x16xf32>
    %1451 = arith.mulf %1443, %1450 : vector<16x16xf32>
    %1452 = arith.addf %1441, %1451 : vector<16x16xf32>
    %c3_837 = arith.constant 3 : index
    %c4_838 = arith.constant 4 : index
    %c0_839 = arith.constant 0 : index
    %1453 = vector.load %arg4[%c3_837, %c4_838, %c0_839] : memref<5x20x16xf32, #tpu.memory_space<vmem>>, vector<1x16x16xf32>
    %1454 = vector.shape_cast %1453 : vector<1x16x16xf32> to vector<16x16xf32>
    %cst_840 = arith.constant -0.0227193441 : f32
    %1455 = vector.broadcast %cst_840 : f32 to vector<16x16xf32>
    %1456 = arith.mulf %1454, %1455 : vector<16x16xf32>
    %1457 = arith.addf %1446, %1456 : vector<16x16xf32>
    %cst_841 = arith.constant -0.0621350109 : f32
    %1458 = vector.broadcast %cst_841 : f32 to vector<16x16xf32>
    %1459 = arith.mulf %1454, %1458 : vector<16x16xf32>
    %1460 = arith.addf %1449, %1459 : vector<16x16xf32>
    %cst_842 = arith.constant -0.118759625 : f32
    %1461 = vector.broadcast %cst_842 : f32 to vector<16x16xf32>
    %1462 = arith.mulf %1454, %1461 : vector<16x16xf32>
    %1463 = arith.addf %1452, %1462 : vector<16x16xf32>
    %c4_843 = arith.constant 4 : index
    %c4_844 = arith.constant 4 : index
    %c0_845 = arith.constant 0 : index
    %1464 = vector.load %arg4[%c4_843, %c4_844, %c0_845] : memref<5x20x16xf32, #tpu.memory_space<vmem>>, vector<1x16x16xf32>
    %1465 = vector.shape_cast %1464 : vector<1x16x16xf32> to vector<16x16xf32>
    %cst_846 = arith.constant -0.0913629457 : f32
    %1466 = vector.broadcast %cst_846 : f32 to vector<16x16xf32>
    %1467 = arith.mulf %1465, %1466 : vector<16x16xf32>
    %1468 = arith.addf %1457, %1467 : vector<16x16xf32>
    %cst_847 = arith.constant 0.0634622723 : f32
    %1469 = vector.broadcast %cst_847 : f32 to vector<16x16xf32>
    %1470 = arith.mulf %1465, %1469 : vector<16x16xf32>
    %1471 = arith.addf %1460, %1470 : vector<16x16xf32>
    %cst_848 = arith.constant 4.419590e-02 : f32
    %1472 = vector.broadcast %cst_848 : f32 to vector<16x16xf32>
    %1473 = arith.mulf %1465, %1472 : vector<16x16xf32>
    %1474 = arith.addf %1463, %1473 : vector<16x16xf32>
    %cst_849 = arith.constant -3.000000e+00 : f32
    %cst_850 = arith.constant 3.000000e+00 : f32
    %1475 = vector.broadcast %cst_849 : f32 to vector<16x16xf32>
    %1476 = arith.maximumf %1475, %1468 : vector<16x16xf32>
    %1477 = vector.broadcast %cst_850 : f32 to vector<16x16xf32>
    %1478 = arith.minimumf %1477, %1476 : vector<16x16xf32>
    %c0_851 = arith.constant 0 : index
    %c21 = arith.constant 21 : index
    %c0_852 = arith.constant 0 : index
    %c0_853 = arith.constant 0 : index
    %1479 = vector.load %arg3[%c0_851, %c21, %c0_852, %c0_853] : memref<1x30x16x16xf32, #tpu.memory_space<vmem>>, vector<1x1x16x16xf32>
    %1480 = vector.shape_cast %1479 : vector<1x1x16x16xf32> to vector<16x16xf32>
    %1481 = vector.shape_cast %1478 : vector<16x16xf32> to vector<1x1x16x16xf32>
    tpu.vector_store %arg3[%c0_851, %c21, %c0_852, %c0_853], %1481 {strides = array<i32>} : memref<1x30x16x16xf32, #tpu.memory_space<vmem>>, vector<1x1x16x16xf32>,
    %cst_854 = arith.constant -3.000000e+00 : f32
    %cst_855 = arith.constant 3.000000e+00 : f32
    %1482 = vector.broadcast %cst_854 : f32 to vector<16x16xf32>
    %1483 = arith.maximumf %1482, %1471 : vector<16x16xf32>
    %1484 = vector.broadcast %cst_855 : f32 to vector<16x16xf32>
    %1485 = arith.minimumf %1484, %1483 : vector<16x16xf32>
    %c0_856 = arith.constant 0 : index
    %c22 = arith.constant 22 : index
    %c0_857 = arith.constant 0 : index
    %c0_858 = arith.constant 0 : index
    %1486 = vector.load %arg3[%c0_856, %c22, %c0_857, %c0_858] : memref<1x30x16x16xf32, #tpu.memory_space<vmem>>, vector<1x1x16x16xf32>
    %1487 = vector.shape_cast %1486 : vector<1x1x16x16xf32> to vector<16x16xf32>
    %1488 = vector.shape_cast %1485 : vector<16x16xf32> to vector<1x1x16x16xf32>
    tpu.vector_store %arg3[%c0_856, %c22, %c0_857, %c0_858], %1488 {strides = array<i32>} : memref<1x30x16x16xf32, #tpu.memory_space<vmem>>, vector<1x1x16x16xf32>,
    %cst_859 = arith.constant -3.000000e+00 : f32
    %cst_860 = arith.constant 3.000000e+00 : f32
    %1489 = vector.broadcast %cst_859 : f32 to vector<16x16xf32>
    %1490 = arith.maximumf %1489, %1474 : vector<16x16xf32>
    %1491 = vector.broadcast %cst_860 : f32 to vector<16x16xf32>
    %1492 = arith.minimumf %1491, %1490 : vector<16x16xf32>
    %c0_861 = arith.constant 0 : index
    %c23 = arith.constant 23 : index
    %c0_862 = arith.constant 0 : index
    %c0_863 = arith.constant 0 : index
    %1493 = vector.load %arg3[%c0_861, %c23, %c0_862, %c0_863] : memref<1x30x16x16xf32, #tpu.memory_space<vmem>>, vector<1x1x16x16xf32>
    %1494 = vector.shape_cast %1493 : vector<1x1x16x16xf32> to vector<16x16xf32>
    %1495 = vector.shape_cast %1492 : vector<16x16xf32> to vector<1x1x16x16xf32>
    tpu.vector_store %arg3[%c0_861, %c23, %c0_862, %c0_863], %1495 {strides = array<i32>} : memref<1x30x16x16xf32, #tpu.memory_space<vmem>>, vector<1x1x16x16xf32>,
    %c0_864 = arith.constant 0 : index
    %c0_865 = arith.constant 0 : index
    %c0_866 = arith.constant 0 : index
    %1496 = vector.load %arg4[%c0_864, %c0_865, %c0_866] : memref<5x20x16xf32, #tpu.memory_space<vmem>>, vector<1x16x16xf32>
    %1497 = vector.shape_cast %1496 : vector<1x16x16xf32> to vector<16x16xf32>
    %cst_867 = arith.constant -0.120024949 : f32
    %1498 = vector.broadcast %cst_867 : f32 to vector<16x16xf32>
    %1499 = arith.mulf %1497, %1498 : vector<16x16xf32>
    %cst_868 = arith.constant 0.0300240945 : f32
    %1500 = vector.broadcast %cst_868 : f32 to vector<16x16xf32>
    %1501 = arith.mulf %1497, %1500 : vector<16x16xf32>
    %cst_869 = arith.constant -0.0676673055 : f32
    %1502 = vector.broadcast %cst_869 : f32 to vector<16x16xf32>
    %1503 = arith.mulf %1497, %1502 : vector<16x16xf32>
    %c1_870 = arith.constant 1 : index
    %c0_871 = arith.constant 0 : index
    %c0_872 = arith.constant 0 : index
    %1504 = vector.load %arg4[%c1_870, %c0_871, %c0_872] : memref<5x20x16xf32, #tpu.memory_space<vmem>>, vector<1x16x16xf32>
    %1505 = vector.shape_cast %1504 : vector<1x16x16xf32> to vector<16x16xf32>
    %cst_873 = arith.constant -0.0345423631 : f32
    %1506 = vector.broadcast %cst_873 : f32 to vector<16x16xf32>
    %1507 = arith.mulf %1505, %1506 : vector<16x16xf32>
    %1508 = arith.addf %1499, %1507 : vector<16x16xf32>
    %cst_874 = arith.constant 0.0424431674 : f32
    %1509 = vector.broadcast %cst_874 : f32 to vector<16x16xf32>
    %1510 = arith.mulf %1505, %1509 : vector<16x16xf32>
    %1511 = arith.addf %1501, %1510 : vector<16x16xf32>
    %cst_875 = arith.constant 0.0648520812 : f32
    %1512 = vector.broadcast %cst_875 : f32 to vector<16x16xf32>
    %1513 = arith.mulf %1505, %1512 : vector<16x16xf32>
    %1514 = arith.addf %1503, %1513 : vector<16x16xf32>
    %c2_876 = arith.constant 2 : index
    %c0_877 = arith.constant 0 : index
    %c0_878 = arith.constant 0 : index
    %1515 = vector.load %arg4[%c2_876, %c0_877, %c0_878] : memref<5x20x16xf32, #tpu.memory_space<vmem>>, vector<1x16x16xf32>
    %1516 = vector.shape_cast %1515 : vector<1x16x16xf32> to vector<16x16xf32>
    %cst_879 = arith.constant 0.052629251 : f32
    %1517 = vector.broadcast %cst_879 : f32 to vector<16x16xf32>
    %1518 = arith.mulf %1516, %1517 : vector<16x16xf32>
    %1519 = arith.addf %1508, %1518 : vector<16x16xf32>
    %cst_880 = arith.constant 0.00353418477 : f32
    %1520 = vector.broadcast %cst_880 : f32 to vector<16x16xf32>
    %1521 = arith.mulf %1516, %1520 : vector<16x16xf32>
    %1522 = arith.addf %1511, %1521 : vector<16x16xf32>
    %cst_881 = arith.constant 0.0856254994 : f32
    %1523 = vector.broadcast %cst_881 : f32 to vector<16x16xf32>
    %1524 = arith.mulf %1516, %1523 : vector<16x16xf32>
    %1525 = arith.addf %1514, %1524 : vector<16x16xf32>
    %c3_882 = arith.constant 3 : index
    %c0_883 = arith.constant 0 : index
    %c0_884 = arith.constant 0 : index
    %1526 = vector.load %arg4[%c3_882, %c0_883, %c0_884] : memref<5x20x16xf32, #tpu.memory_space<vmem>>, vector<1x16x16xf32>
    %1527 = vector.shape_cast %1526 : vector<1x16x16xf32> to vector<16x16xf32>
    %cst_885 = arith.constant 0.148322478 : f32
    %1528 = vector.broadcast %cst_885 : f32 to vector<16x16xf32>
    %1529 = arith.mulf %1527, %1528 : vector<16x16xf32>
    %1530 = arith.addf %1519, %1529 : vector<16x16xf32>
    %cst_886 = arith.constant -0.0144426534 : f32
    %1531 = vector.broadcast %cst_886 : f32 to vector<16x16xf32>
    %1532 = arith.mulf %1527, %1531 : vector<16x16xf32>
    %1533 = arith.addf %1522, %1532 : vector<16x16xf32>
    %cst_887 = arith.constant -0.0921045616 : f32
    %1534 = vector.broadcast %cst_887 : f32 to vector<16x16xf32>
    %1535 = arith.mulf %1527, %1534 : vector<16x16xf32>
    %1536 = arith.addf %1525, %1535 : vector<16x16xf32>
    %c4_888 = arith.constant 4 : index
    %c0_889 = arith.constant 0 : index
    %c0_890 = arith.constant 0 : index
    %1537 = vector.load %arg4[%c4_888, %c0_889, %c0_890] : memref<5x20x16xf32, #tpu.memory_space<vmem>>, vector<1x16x16xf32>
    %1538 = vector.shape_cast %1537 : vector<1x16x16xf32> to vector<16x16xf32>
    %cst_891 = arith.constant -0.0961551368 : f32
    %1539 = vector.broadcast %cst_891 : f32 to vector<16x16xf32>
    %1540 = arith.mulf %1538, %1539 : vector<16x16xf32>
    %1541 = arith.addf %1530, %1540 : vector<16x16xf32>
    %cst_892 = arith.constant 0.0364951082 : f32
    %1542 = vector.broadcast %cst_892 : f32 to vector<16x16xf32>
    %1543 = arith.mulf %1538, %1542 : vector<16x16xf32>
    %1544 = arith.addf %1533, %1543 : vector<16x16xf32>
    %cst_893 = arith.constant -0.00662346138 : f32
    %1545 = vector.broadcast %cst_893 : f32 to vector<16x16xf32>
    %1546 = arith.mulf %1538, %1545 : vector<16x16xf32>
    %1547 = arith.addf %1536, %1546 : vector<16x16xf32>
    %c0_894 = arith.constant 0 : index
    %c1_895 = arith.constant 1 : index
    %c0_896 = arith.constant 0 : index
    %1548 = vector.load %arg4[%c0_894, %c1_895, %c0_896] : memref<5x20x16xf32, #tpu.memory_space<vmem>>, vector<1x16x16xf32>
    %1549 = vector.shape_cast %1548 : vector<1x16x16xf32> to vector<16x16xf32>
    %cst_897 = arith.constant 0.265598893 : f32
    %1550 = vector.broadcast %cst_897 : f32 to vector<16x16xf32>
    %1551 = arith.mulf %1549, %1550 : vector<16x16xf32>
    %1552 = arith.addf %1541, %1551 : vector<16x16xf32>
    %cst_898 = arith.constant -0.105731495 : f32
    %1553 = vector.broadcast %cst_898 : f32 to vector<16x16xf32>
    %1554 = arith.mulf %1549, %1553 : vector<16x16xf32>
    %1555 = arith.addf %1544, %1554 : vector<16x16xf32>
    %cst_899 = arith.constant 0.0373970978 : f32
    %1556 = vector.broadcast %cst_899 : f32 to vector<16x16xf32>
    %1557 = arith.mulf %1549, %1556 : vector<16x16xf32>
    %1558 = arith.addf %1547, %1557 : vector<16x16xf32>
    %c1_900 = arith.constant 1 : index
    %c1_901 = arith.constant 1 : index
    %c0_902 = arith.constant 0 : index
    %1559 = vector.load %arg4[%c1_900, %c1_901, %c0_902] : memref<5x20x16xf32, #tpu.memory_space<vmem>>, vector<1x16x16xf32>
    %1560 = vector.shape_cast %1559 : vector<1x16x16xf32> to vector<16x16xf32>
    %cst_903 = arith.constant -0.0666533783 : f32
    %1561 = vector.broadcast %cst_903 : f32 to vector<16x16xf32>
    %1562 = arith.mulf %1560, %1561 : vector<16x16xf32>
    %1563 = arith.addf %1552, %1562 : vector<16x16xf32>
    %cst_904 = arith.constant 6.595350e-02 : f32
    %1564 = vector.broadcast %cst_904 : f32 to vector<16x16xf32>
    %1565 = arith.mulf %1560, %1564 : vector<16x16xf32>
    %1566 = arith.addf %1555, %1565 : vector<16x16xf32>
    %cst_905 = arith.constant -0.0866008326 : f32
    %1567 = vector.broadcast %cst_905 : f32 to vector<16x16xf32>
    %1568 = arith.mulf %1560, %1567 : vector<16x16xf32>
    %1569 = arith.addf %1558, %1568 : vector<16x16xf32>
    %c2_906 = arith.constant 2 : index
    %c1_907 = arith.constant 1 : index
    %c0_908 = arith.constant 0 : index
    %1570 = vector.load %arg4[%c2_906, %c1_907, %c0_908] : memref<5x20x16xf32, #tpu.memory_space<vmem>>, vector<1x16x16xf32>
    %1571 = vector.shape_cast %1570 : vector<1x16x16xf32> to vector<16x16xf32>
    %cst_909 = arith.constant -0.0313228928 : f32
    %1572 = vector.broadcast %cst_909 : f32 to vector<16x16xf32>
    %1573 = arith.mulf %1571, %1572 : vector<16x16xf32>
    %1574 = arith.addf %1563, %1573 : vector<16x16xf32>
    %cst_910 = arith.constant 0.227518201 : f32
    %1575 = vector.broadcast %cst_910 : f32 to vector<16x16xf32>
    %1576 = arith.mulf %1571, %1575 : vector<16x16xf32>
    %1577 = arith.addf %1566, %1576 : vector<16x16xf32>
    %cst_911 = arith.constant 1.731500e-01 : f32
    %1578 = vector.broadcast %cst_911 : f32 to vector<16x16xf32>
    %1579 = arith.mulf %1571, %1578 : vector<16x16xf32>
    %1580 = arith.addf %1569, %1579 : vector<16x16xf32>
    %c3_912 = arith.constant 3 : index
    %c1_913 = arith.constant 1 : index
    %c0_914 = arith.constant 0 : index
    %1581 = vector.load %arg4[%c3_912, %c1_913, %c0_914] : memref<5x20x16xf32, #tpu.memory_space<vmem>>, vector<1x16x16xf32>
    %1582 = vector.shape_cast %1581 : vector<1x16x16xf32> to vector<16x16xf32>
    %cst_915 = arith.constant -3.418420e-02 : f32
    %1583 = vector.broadcast %cst_915 : f32 to vector<16x16xf32>
    %1584 = arith.mulf %1582, %1583 : vector<16x16xf32>
    %1585 = arith.addf %1574, %1584 : vector<16x16xf32>
    %cst_916 = arith.constant 0.0222710297 : f32
    %1586 = vector.broadcast %cst_916 : f32 to vector<16x16xf32>
    %1587 = arith.mulf %1582, %1586 : vector<16x16xf32>
    %1588 = arith.addf %1577, %1587 : vector<16x16xf32>
    %cst_917 = arith.constant 0.0850075706 : f32
    %1589 = vector.broadcast %cst_917 : f32 to vector<16x16xf32>
    %1590 = arith.mulf %1582, %1589 : vector<16x16xf32>
    %1591 = arith.addf %1580, %1590 : vector<16x16xf32>
    %c4_918 = arith.constant 4 : index
    %c1_919 = arith.constant 1 : index
    %c0_920 = arith.constant 0 : index
    %1592 = vector.load %arg4[%c4_918, %c1_919, %c0_920] : memref<5x20x16xf32, #tpu.memory_space<vmem>>, vector<1x16x16xf32>
    %1593 = vector.shape_cast %1592 : vector<1x16x16xf32> to vector<16x16xf32>
    %cst_921 = arith.constant -0.187203273 : f32
    %1594 = vector.broadcast %cst_921 : f32 to vector<16x16xf32>
    %1595 = arith.mulf %1593, %1594 : vector<16x16xf32>
    %1596 = arith.addf %1585, %1595 : vector<16x16xf32>
    %cst_922 = arith.constant -0.00361951231 : f32
    %1597 = vector.broadcast %cst_922 : f32 to vector<16x16xf32>
    %1598 = arith.mulf %1593, %1597 : vector<16x16xf32>
    %1599 = arith.addf %1588, %1598 : vector<16x16xf32>
    %cst_923 = arith.constant 0.0527860075 : f32
    %1600 = vector.broadcast %cst_923 : f32 to vector<16x16xf32>
    %1601 = arith.mulf %1593, %1600 : vector<16x16xf32>
    %1602 = arith.addf %1591, %1601 : vector<16x16xf32>
    %c0_924 = arith.constant 0 : index
    %c2_925 = arith.constant 2 : index
    %c0_926 = arith.constant 0 : index
    %1603 = vector.load %arg4[%c0_924, %c2_925, %c0_926] : memref<5x20x16xf32, #tpu.memory_space<vmem>>, vector<1x16x16xf32>
    %1604 = vector.shape_cast %1603 : vector<1x16x16xf32> to vector<16x16xf32>
    %cst_927 = arith.constant 0.107392274 : f32
    %1605 = vector.broadcast %cst_927 : f32 to vector<16x16xf32>
    %1606 = arith.mulf %1604, %1605 : vector<16x16xf32>
    %1607 = arith.addf %1596, %1606 : vector<16x16xf32>
    %cst_928 = arith.constant 0.014173734 : f32
    %1608 = vector.broadcast %cst_928 : f32 to vector<16x16xf32>
    %1609 = arith.mulf %1604, %1608 : vector<16x16xf32>
    %1610 = arith.addf %1599, %1609 : vector<16x16xf32>
    %cst_929 = arith.constant -0.041415792 : f32
    %1611 = vector.broadcast %cst_929 : f32 to vector<16x16xf32>
    %1612 = arith.mulf %1604, %1611 : vector<16x16xf32>
    %1613 = arith.addf %1602, %1612 : vector<16x16xf32>
    %c1_930 = arith.constant 1 : index
    %c2_931 = arith.constant 2 : index
    %c0_932 = arith.constant 0 : index
    %1614 = vector.load %arg4[%c1_930, %c2_931, %c0_932] : memref<5x20x16xf32, #tpu.memory_space<vmem>>, vector<1x16x16xf32>
    %1615 = vector.shape_cast %1614 : vector<1x16x16xf32> to vector<16x16xf32>
    %cst_933 = arith.constant 0.101105742 : f32
    %1616 = vector.broadcast %cst_933 : f32 to vector<16x16xf32>
    %1617 = arith.mulf %1615, %1616 : vector<16x16xf32>
    %1618 = arith.addf %1607, %1617 : vector<16x16xf32>
    %cst_934 = arith.constant -0.105583854 : f32
    %1619 = vector.broadcast %cst_934 : f32 to vector<16x16xf32>
    %1620 = arith.mulf %1615, %1619 : vector<16x16xf32>
    %1621 = arith.addf %1610, %1620 : vector<16x16xf32>
    %cst_935 = arith.constant -0.138494104 : f32
    %1622 = vector.broadcast %cst_935 : f32 to vector<16x16xf32>
    %1623 = arith.mulf %1615, %1622 : vector<16x16xf32>
    %1624 = arith.addf %1613, %1623 : vector<16x16xf32>
    %c2_936 = arith.constant 2 : index
    %c2_937 = arith.constant 2 : index
    %c0_938 = arith.constant 0 : index
    %1625 = vector.load %arg4[%c2_936, %c2_937, %c0_938] : memref<5x20x16xf32, #tpu.memory_space<vmem>>, vector<1x16x16xf32>
    %1626 = vector.shape_cast %1625 : vector<1x16x16xf32> to vector<16x16xf32>
    %cst_939 = arith.constant 0.154194191 : f32
    %1627 = vector.broadcast %cst_939 : f32 to vector<16x16xf32>
    %1628 = arith.mulf %1626, %1627 : vector<16x16xf32>
    %1629 = arith.addf %1618, %1628 : vector<16x16xf32>
    %cst_940 = arith.constant -0.0753892735 : f32
    %1630 = vector.broadcast %cst_940 : f32 to vector<16x16xf32>
    %1631 = arith.mulf %1626, %1630 : vector<16x16xf32>
    %1632 = arith.addf %1621, %1631 : vector<16x16xf32>
    %cst_941 = arith.constant 0.0577575676 : f32
    %1633 = vector.broadcast %cst_941 : f32 to vector<16x16xf32>
    %1634 = arith.mulf %1626, %1633 : vector<16x16xf32>
    %1635 = arith.addf %1624, %1634 : vector<16x16xf32>
    %c3_942 = arith.constant 3 : index
    %c2_943 = arith.constant 2 : index
    %c0_944 = arith.constant 0 : index
    %1636 = vector.load %arg4[%c3_942, %c2_943, %c0_944] : memref<5x20x16xf32, #tpu.memory_space<vmem>>, vector<1x16x16xf32>
    %1637 = vector.shape_cast %1636 : vector<1x16x16xf32> to vector<16x16xf32>
    %cst_945 = arith.constant -0.177504018 : f32
    %1638 = vector.broadcast %cst_945 : f32 to vector<16x16xf32>
    %1639 = arith.mulf %1637, %1638 : vector<16x16xf32>
    %1640 = arith.addf %1629, %1639 : vector<16x16xf32>
    %cst_946 = arith.constant 0.056910906 : f32
    %1641 = vector.broadcast %cst_946 : f32 to vector<16x16xf32>
    %1642 = arith.mulf %1637, %1641 : vector<16x16xf32>
    %1643 = arith.addf %1632, %1642 : vector<16x16xf32>
    %cst_947 = arith.constant -0.06889195 : f32
    %1644 = vector.broadcast %cst_947 : f32 to vector<16x16xf32>
    %1645 = arith.mulf %1637, %1644 : vector<16x16xf32>
    %1646 = arith.addf %1635, %1645 : vector<16x16xf32>
    %c4_948 = arith.constant 4 : index
    %c2_949 = arith.constant 2 : index
    %c0_950 = arith.constant 0 : index
    %1647 = vector.load %arg4[%c4_948, %c2_949, %c0_950] : memref<5x20x16xf32, #tpu.memory_space<vmem>>, vector<1x16x16xf32>
    %1648 = vector.shape_cast %1647 : vector<1x16x16xf32> to vector<16x16xf32>
    %cst_951 = arith.constant -6.486980e-03 : f32
    %1649 = vector.broadcast %cst_951 : f32 to vector<16x16xf32>
    %1650 = arith.mulf %1648, %1649 : vector<16x16xf32>
    %1651 = arith.addf %1640, %1650 : vector<16x16xf32>
    %cst_952 = arith.constant -0.053331051 : f32
    %1652 = vector.broadcast %cst_952 : f32 to vector<16x16xf32>
    %1653 = arith.mulf %1648, %1652 : vector<16x16xf32>
    %1654 = arith.addf %1643, %1653 : vector<16x16xf32>
    %cst_953 = arith.constant -0.122837633 : f32
    %1655 = vector.broadcast %cst_953 : f32 to vector<16x16xf32>
    %1656 = arith.mulf %1648, %1655 : vector<16x16xf32>
    %1657 = arith.addf %1646, %1656 : vector<16x16xf32>
    %c0_954 = arith.constant 0 : index
    %c3_955 = arith.constant 3 : index
    %c0_956 = arith.constant 0 : index
    %1658 = vector.load %arg4[%c0_954, %c3_955, %c0_956] : memref<5x20x16xf32, #tpu.memory_space<vmem>>, vector<1x16x16xf32>
    %1659 = vector.shape_cast %1658 : vector<1x16x16xf32> to vector<16x16xf32>
    %cst_957 = arith.constant -0.0296491217 : f32
    %1660 = vector.broadcast %cst_957 : f32 to vector<16x16xf32>
    %1661 = arith.mulf %1659, %1660 : vector<16x16xf32>
    %1662 = arith.addf %1651, %1661 : vector<16x16xf32>
    %cst_958 = arith.constant -0.116048068 : f32
    %1663 = vector.broadcast %cst_958 : f32 to vector<16x16xf32>
    %1664 = arith.mulf %1659, %1663 : vector<16x16xf32>
    %1665 = arith.addf %1654, %1664 : vector<16x16xf32>
    %cst_959 = arith.constant -0.0390349515 : f32
    %1666 = vector.broadcast %cst_959 : f32 to vector<16x16xf32>
    %1667 = arith.mulf %1659, %1666 : vector<16x16xf32>
    %1668 = arith.addf %1657, %1667 : vector<16x16xf32>
    %c1_960 = arith.constant 1 : index
    %c3_961 = arith.constant 3 : index
    %c0_962 = arith.constant 0 : index
    %1669 = vector.load %arg4[%c1_960, %c3_961, %c0_962] : memref<5x20x16xf32, #tpu.memory_space<vmem>>, vector<1x16x16xf32>
    %1670 = vector.shape_cast %1669 : vector<1x16x16xf32> to vector<16x16xf32>
    %cst_963 = arith.constant 0.0449978374 : f32
    %1671 = vector.broadcast %cst_963 : f32 to vector<16x16xf32>
    %1672 = arith.mulf %1670, %1671 : vector<16x16xf32>
    %1673 = arith.addf %1662, %1672 : vector<16x16xf32>
    %cst_964 = arith.constant 0.119401038 : f32
    %1674 = vector.broadcast %cst_964 : f32 to vector<16x16xf32>
    %1675 = arith.mulf %1670, %1674 : vector<16x16xf32>
    %1676 = arith.addf %1665, %1675 : vector<16x16xf32>
    %cst_965 = arith.constant -0.0287039038 : f32
    %1677 = vector.broadcast %cst_965 : f32 to vector<16x16xf32>
    %1678 = arith.mulf %1670, %1677 : vector<16x16xf32>
    %1679 = arith.addf %1668, %1678 : vector<16x16xf32>
    %c2_966 = arith.constant 2 : index
    %c3_967 = arith.constant 3 : index
    %c0_968 = arith.constant 0 : index
    %1680 = vector.load %arg4[%c2_966, %c3_967, %c0_968] : memref<5x20x16xf32, #tpu.memory_space<vmem>>, vector<1x16x16xf32>
    %1681 = vector.shape_cast %1680 : vector<1x16x16xf32> to vector<16x16xf32>
    %cst_969 = arith.constant -0.0693981871 : f32
    %1682 = vector.broadcast %cst_969 : f32 to vector<16x16xf32>
    %1683 = arith.mulf %1681, %1682 : vector<16x16xf32>
    %1684 = arith.addf %1673, %1683 : vector<16x16xf32>
    %cst_970 = arith.constant 0.0659392253 : f32
    %1685 = vector.broadcast %cst_970 : f32 to vector<16x16xf32>
    %1686 = arith.mulf %1681, %1685 : vector<16x16xf32>
    %1687 = arith.addf %1676, %1686 : vector<16x16xf32>
    %cst_971 = arith.constant 0.0439409316 : f32
    %1688 = vector.broadcast %cst_971 : f32 to vector<16x16xf32>
    %1689 = arith.mulf %1681, %1688 : vector<16x16xf32>
    %1690 = arith.addf %1679, %1689 : vector<16x16xf32>
    %c3_972 = arith.constant 3 : index
    %c3_973 = arith.constant 3 : index
    %c0_974 = arith.constant 0 : index
    %1691 = vector.load %arg4[%c3_972, %c3_973, %c0_974] : memref<5x20x16xf32, #tpu.memory_space<vmem>>, vector<1x16x16xf32>
    %1692 = vector.shape_cast %1691 : vector<1x16x16xf32> to vector<16x16xf32>
    %cst_975 = arith.constant -0.0182907954 : f32
    %1693 = vector.broadcast %cst_975 : f32 to vector<16x16xf32>
    %1694 = arith.mulf %1692, %1693 : vector<16x16xf32>
    %1695 = arith.addf %1684, %1694 : vector<16x16xf32>
    %cst_976 = arith.constant 0.0362679288 : f32
    %1696 = vector.broadcast %cst_976 : f32 to vector<16x16xf32>
    %1697 = arith.mulf %1692, %1696 : vector<16x16xf32>
    %1698 = arith.addf %1687, %1697 : vector<16x16xf32>
    %cst_977 = arith.constant 0.1565772 : f32
    %1699 = vector.broadcast %cst_977 : f32 to vector<16x16xf32>
    %1700 = arith.mulf %1692, %1699 : vector<16x16xf32>
    %1701 = arith.addf %1690, %1700 : vector<16x16xf32>
    %c4_978 = arith.constant 4 : index
    %c3_979 = arith.constant 3 : index
    %c0_980 = arith.constant 0 : index
    %1702 = vector.load %arg4[%c4_978, %c3_979, %c0_980] : memref<5x20x16xf32, #tpu.memory_space<vmem>>, vector<1x16x16xf32>
    %1703 = vector.shape_cast %1702 : vector<1x16x16xf32> to vector<16x16xf32>
    %cst_981 = arith.constant -0.0195845291 : f32
    %1704 = vector.broadcast %cst_981 : f32 to vector<16x16xf32>
    %1705 = arith.mulf %1703, %1704 : vector<16x16xf32>
    %1706 = arith.addf %1695, %1705 : vector<16x16xf32>
    %cst_982 = arith.constant 0.0375286154 : f32
    %1707 = vector.broadcast %cst_982 : f32 to vector<16x16xf32>
    %1708 = arith.mulf %1703, %1707 : vector<16x16xf32>
    %1709 = arith.addf %1698, %1708 : vector<16x16xf32>
    %cst_983 = arith.constant -0.132597029 : f32
    %1710 = vector.broadcast %cst_983 : f32 to vector<16x16xf32>
    %1711 = arith.mulf %1703, %1710 : vector<16x16xf32>
    %1712 = arith.addf %1701, %1711 : vector<16x16xf32>
    %c0_984 = arith.constant 0 : index
    %c4_985 = arith.constant 4 : index
    %c0_986 = arith.constant 0 : index
    %1713 = vector.load %arg4[%c0_984, %c4_985, %c0_986] : memref<5x20x16xf32, #tpu.memory_space<vmem>>, vector<1x16x16xf32>
    %1714 = vector.shape_cast %1713 : vector<1x16x16xf32> to vector<16x16xf32>
    %cst_987 = arith.constant -0.0303648096 : f32
    %1715 = vector.broadcast %cst_987 : f32 to vector<16x16xf32>
    %1716 = arith.mulf %1714, %1715 : vector<16x16xf32>
    %1717 = arith.addf %1706, %1716 : vector<16x16xf32>
    %cst_988 = arith.constant 0.100615211 : f32
    %1718 = vector.broadcast %cst_988 : f32 to vector<16x16xf32>
    %1719 = arith.mulf %1714, %1718 : vector<16x16xf32>
    %1720 = arith.addf %1709, %1719 : vector<16x16xf32>
    %cst_989 = arith.constant -0.078516446 : f32
    %1721 = vector.broadcast %cst_989 : f32 to vector<16x16xf32>
    %1722 = arith.mulf %1714, %1721 : vector<16x16xf32>
    %1723 = arith.addf %1712, %1722 : vector<16x16xf32>
    %c1_990 = arith.constant 1 : index
    %c4_991 = arith.constant 4 : index
    %c0_992 = arith.constant 0 : index
    %1724 = vector.load %arg4[%c1_990, %c4_991, %c0_992] : memref<5x20x16xf32, #tpu.memory_space<vmem>>, vector<1x16x16xf32>
    %1725 = vector.shape_cast %1724 : vector<1x16x16xf32> to vector<16x16xf32>
    %cst_993 = arith.constant -0.105647795 : f32
    %1726 = vector.broadcast %cst_993 : f32 to vector<16x16xf32>
    %1727 = arith.mulf %1725, %1726 : vector<16x16xf32>
    %1728 = arith.addf %1717, %1727 : vector<16x16xf32>
    %cst_994 = arith.constant -0.0797693505 : f32
    %1729 = vector.broadcast %cst_994 : f32 to vector<16x16xf32>
    %1730 = arith.mulf %1725, %1729 : vector<16x16xf32>
    %1731 = arith.addf %1720, %1730 : vector<16x16xf32>
    %cst_995 = arith.constant 0.0726539418 : f32
    %1732 = vector.broadcast %cst_995 : f32 to vector<16x16xf32>
    %1733 = arith.mulf %1725, %1732 : vector<16x16xf32>
    %1734 = arith.addf %1723, %1733 : vector<16x16xf32>
    %c2_996 = arith.constant 2 : index
    %c4_997 = arith.constant 4 : index
    %c0_998 = arith.constant 0 : index
    %1735 = vector.load %arg4[%c2_996, %c4_997, %c0_998] : memref<5x20x16xf32, #tpu.memory_space<vmem>>, vector<1x16x16xf32>
    %1736 = vector.shape_cast %1735 : vector<1x16x16xf32> to vector<16x16xf32>
    %cst_999 = arith.constant -0.138532773 : f32
    %1737 = vector.broadcast %cst_999 : f32 to vector<16x16xf32>
    %1738 = arith.mulf %1736, %1737 : vector<16x16xf32>
    %1739 = arith.addf %1728, %1738 : vector<16x16xf32>
    %cst_1000 = arith.constant -0.0690036416 : f32
    %1740 = vector.broadcast %cst_1000 : f32 to vector<16x16xf32>
    %1741 = arith.mulf %1736, %1740 : vector<16x16xf32>
    %1742 = arith.addf %1731, %1741 : vector<16x16xf32>
    %cst_1001 = arith.constant 0.0525458343 : f32
    %1743 = vector.broadcast %cst_1001 : f32 to vector<16x16xf32>
    %1744 = arith.mulf %1736, %1743 : vector<16x16xf32>
    %1745 = arith.addf %1734, %1744 : vector<16x16xf32>
    %c3_1002 = arith.constant 3 : index
    %c4_1003 = arith.constant 4 : index
    %c0_1004 = arith.constant 0 : index
    %1746 = vector.load %arg4[%c3_1002, %c4_1003, %c0_1004] : memref<5x20x16xf32, #tpu.memory_space<vmem>>, vector<1x16x16xf32>
    %1747 = vector.shape_cast %1746 : vector<1x16x16xf32> to vector<16x16xf32>
    %cst_1005 = arith.constant 0.142621532 : f32
    %1748 = vector.broadcast %cst_1005 : f32 to vector<16x16xf32>
    %1749 = arith.mulf %1747, %1748 : vector<16x16xf32>
    %1750 = arith.addf %1739, %1749 : vector<16x16xf32>
    %cst_1006 = arith.constant -0.0220778901 : f32
    %1751 = vector.broadcast %cst_1006 : f32 to vector<16x16xf32>
    %1752 = arith.mulf %1747, %1751 : vector<16x16xf32>
    %1753 = arith.addf %1742, %1752 : vector<16x16xf32>
    %cst_1007 = arith.constant 0.121009767 : f32
    %1754 = vector.broadcast %cst_1007 : f32 to vector<16x16xf32>
    %1755 = arith.mulf %1747, %1754 : vector<16x16xf32>
    %1756 = arith.addf %1745, %1755 : vector<16x16xf32>
    %c4_1008 = arith.constant 4 : index
    %c4_1009 = arith.constant 4 : index
    %c0_1010 = arith.constant 0 : index
    %1757 = vector.load %arg4[%c4_1008, %c4_1009, %c0_1010] : memref<5x20x16xf32, #tpu.memory_space<vmem>>, vector<1x16x16xf32>
    %1758 = vector.shape_cast %1757 : vector<1x16x16xf32> to vector<16x16xf32>
    %cst_1011 = arith.constant 0.0465014838 : f32
    %1759 = vector.broadcast %cst_1011 : f32 to vector<16x16xf32>
    %1760 = arith.mulf %1758, %1759 : vector<16x16xf32>
    %1761 = arith.addf %1750, %1760 : vector<16x16xf32>
    %cst_1012 = arith.constant 0.00206539128 : f32
    %1762 = vector.broadcast %cst_1012 : f32 to vector<16x16xf32>
    %1763 = arith.mulf %1758, %1762 : vector<16x16xf32>
    %1764 = arith.addf %1753, %1763 : vector<16x16xf32>
    %cst_1013 = arith.constant -0.0327968374 : f32
    %1765 = vector.broadcast %cst_1013 : f32 to vector<16x16xf32>
    %1766 = arith.mulf %1758, %1765 : vector<16x16xf32>
    %1767 = arith.addf %1756, %1766 : vector<16x16xf32>
    %cst_1014 = arith.constant -3.000000e+00 : f32
    %cst_1015 = arith.constant 3.000000e+00 : f32
    %1768 = vector.broadcast %cst_1014 : f32 to vector<16x16xf32>
    %1769 = arith.maximumf %1768, %1761 : vector<16x16xf32>
    %1770 = vector.broadcast %cst_1015 : f32 to vector<16x16xf32>
    %1771 = arith.minimumf %1770, %1769 : vector<16x16xf32>
    %c0_1016 = arith.constant 0 : index
    %c24 = arith.constant 24 : index
    %c0_1017 = arith.constant 0 : index
    %c0_1018 = arith.constant 0 : index
    %1772 = vector.load %arg3[%c0_1016, %c24, %c0_1017, %c0_1018] : memref<1x30x16x16xf32, #tpu.memory_space<vmem>>, vector<1x1x16x16xf32>
    %1773 = vector.shape_cast %1772 : vector<1x1x16x16xf32> to vector<16x16xf32>
    %1774 = vector.shape_cast %1771 : vector<16x16xf32> to vector<1x1x16x16xf32>
    tpu.vector_store %arg3[%c0_1016, %c24, %c0_1017, %c0_1018], %1774 {strides = array<i32>} : memref<1x30x16x16xf32, #tpu.memory_space<vmem>>, vector<1x1x16x16xf32>,
    %cst_1019 = arith.constant -3.000000e+00 : f32
    %cst_1020 = arith.constant 3.000000e+00 : f32
    %1775 = vector.broadcast %cst_1019 : f32 to vector<16x16xf32>
    %1776 = arith.maximumf %1775, %1764 : vector<16x16xf32>
    %1777 = vector.broadcast %cst_1020 : f32 to vector<16x16xf32>
    %1778 = arith.minimumf %1777, %1776 : vector<16x16xf32>
    %c0_1021 = arith.constant 0 : index
    %c25 = arith.constant 25 : index
    %c0_1022 = arith.constant 0 : index
    %c0_1023 = arith.constant 0 : index
    %1779 = vector.load %arg3[%c0_1021, %c25, %c0_1022, %c0_1023] : memref<1x30x16x16xf32, #tpu.memory_space<vmem>>, vector<1x1x16x16xf32>
    %1780 = vector.shape_cast %1779 : vector<1x1x16x16xf32> to vector<16x16xf32>
    %1781 = vector.shape_cast %1778 : vector<16x16xf32> to vector<1x1x16x16xf32>
    tpu.vector_store %arg3[%c0_1021, %c25, %c0_1022, %c0_1023], %1781 {strides = array<i32>} : memref<1x30x16x16xf32, #tpu.memory_space<vmem>>, vector<1x1x16x16xf32>,
    %cst_1024 = arith.constant -3.000000e+00 : f32
    %cst_1025 = arith.constant 3.000000e+00 : f32
    %1782 = vector.broadcast %cst_1024 : f32 to vector<16x16xf32>
    %1783 = arith.maximumf %1782, %1767 : vector<16x16xf32>
    %1784 = vector.broadcast %cst_1025 : f32 to vector<16x16xf32>
    %1785 = arith.minimumf %1784, %1783 : vector<16x16xf32>
    %c0_1026 = arith.constant 0 : index
    %c26 = arith.constant 26 : index
    %c0_1027 = arith.constant 0 : index
    %c0_1028 = arith.constant 0 : index
    %1786 = vector.load %arg3[%c0_1026, %c26, %c0_1027, %c0_1028] : memref<1x30x16x16xf32, #tpu.memory_space<vmem>>, vector<1x1x16x16xf32>
    %1787 = vector.shape_cast %1786 : vector<1x1x16x16xf32> to vector<16x16xf32>
    %1788 = vector.shape_cast %1785 : vector<16x16xf32> to vector<1x1x16x16xf32>
    tpu.vector_store %arg3[%c0_1026, %c26, %c0_1027, %c0_1028], %1788 {strides = array<i32>} : memref<1x30x16x16xf32, #tpu.memory_space<vmem>>, vector<1x1x16x16xf32>,
    %c0_1029 = arith.constant 0 : index
    %c0_1030 = arith.constant 0 : index
    %c0_1031 = arith.constant 0 : index
    %1789 = vector.load %arg4[%c0_1029, %c0_1030, %c0_1031] : memref<5x20x16xf32, #tpu.memory_space<vmem>>, vector<1x16x16xf32>
    %1790 = vector.shape_cast %1789 : vector<1x16x16xf32> to vector<16x16xf32>
    %cst_1032 = arith.constant 0.154742792 : f32
    %1791 = vector.broadcast %cst_1032 : f32 to vector<16x16xf32>
    %1792 = arith.mulf %1790, %1791 : vector<16x16xf32>
    %cst_1033 = arith.constant -0.0365398303 : f32
    %1793 = vector.broadcast %cst_1033 : f32 to vector<16x16xf32>
    %1794 = arith.mulf %1790, %1793 : vector<16x16xf32>
    %cst_1034 = arith.constant 0.0298919436 : f32
    %1795 = vector.broadcast %cst_1034 : f32 to vector<16x16xf32>
    %1796 = arith.mulf %1790, %1795 : vector<16x16xf32>
    %c1_1035 = arith.constant 1 : index
    %c0_1036 = arith.constant 0 : index
    %c0_1037 = arith.constant 0 : index
    %1797 = vector.load %arg4[%c1_1035, %c0_1036, %c0_1037] : memref<5x20x16xf32, #tpu.memory_space<vmem>>, vector<1x16x16xf32>
    %1798 = vector.shape_cast %1797 : vector<1x16x16xf32> to vector<16x16xf32>
    %cst_1038 = arith.constant -0.00923716743 : f32
    %1799 = vector.broadcast %cst_1038 : f32 to vector<16x16xf32>
    %1800 = arith.mulf %1798, %1799 : vector<16x16xf32>
    %1801 = arith.addf %1792, %1800 : vector<16x16xf32>
    %cst_1039 = arith.constant 1.126650e-01 : f32
    %1802 = vector.broadcast %cst_1039 : f32 to vector<16x16xf32>
    %1803 = arith.mulf %1798, %1802 : vector<16x16xf32>
    %1804 = arith.addf %1794, %1803 : vector<16x16xf32>
    %cst_1040 = arith.constant -0.0293369591 : f32
    %1805 = vector.broadcast %cst_1040 : f32 to vector<16x16xf32>
    %1806 = arith.mulf %1798, %1805 : vector<16x16xf32>
    %1807 = arith.addf %1796, %1806 : vector<16x16xf32>
    %c2_1041 = arith.constant 2 : index
    %c0_1042 = arith.constant 0 : index
    %c0_1043 = arith.constant 0 : index
    %1808 = vector.load %arg4[%c2_1041, %c0_1042, %c0_1043] : memref<5x20x16xf32, #tpu.memory_space<vmem>>, vector<1x16x16xf32>
    %1809 = vector.shape_cast %1808 : vector<1x16x16xf32> to vector<16x16xf32>
    %cst_1044 = arith.constant -0.075433746 : f32
    %1810 = vector.broadcast %cst_1044 : f32 to vector<16x16xf32>
    %1811 = arith.mulf %1809, %1810 : vector<16x16xf32>
    %1812 = arith.addf %1801, %1811 : vector<16x16xf32>
    %cst_1045 = arith.constant -0.0653580725 : f32
    %1813 = vector.broadcast %cst_1045 : f32 to vector<16x16xf32>
    %1814 = arith.mulf %1809, %1813 : vector<16x16xf32>
    %1815 = arith.addf %1804, %1814 : vector<16x16xf32>
    %cst_1046 = arith.constant 0.00100065663 : f32
    %1816 = vector.broadcast %cst_1046 : f32 to vector<16x16xf32>
    %1817 = arith.mulf %1809, %1816 : vector<16x16xf32>
    %1818 = arith.addf %1807, %1817 : vector<16x16xf32>
    %c3_1047 = arith.constant 3 : index
    %c0_1048 = arith.constant 0 : index
    %c0_1049 = arith.constant 0 : index
    %1819 = vector.load %arg4[%c3_1047, %c0_1048, %c0_1049] : memref<5x20x16xf32, #tpu.memory_space<vmem>>, vector<1x16x16xf32>
    %1820 = vector.shape_cast %1819 : vector<1x16x16xf32> to vector<16x16xf32>
    %cst_1050 = arith.constant -0.172482952 : f32
    %1821 = vector.broadcast %cst_1050 : f32 to vector<16x16xf32>
    %1822 = arith.mulf %1820, %1821 : vector<16x16xf32>
    %1823 = arith.addf %1812, %1822 : vector<16x16xf32>
    %cst_1051 = arith.constant -0.170786247 : f32
    %1824 = vector.broadcast %cst_1051 : f32 to vector<16x16xf32>
    %1825 = arith.mulf %1820, %1824 : vector<16x16xf32>
    %1826 = arith.addf %1815, %1825 : vector<16x16xf32>
    %cst_1052 = arith.constant 0.147334516 : f32
    %1827 = vector.broadcast %cst_1052 : f32 to vector<16x16xf32>
    %1828 = arith.mulf %1820, %1827 : vector<16x16xf32>
    %1829 = arith.addf %1818, %1828 : vector<16x16xf32>
    %c4_1053 = arith.constant 4 : index
    %c0_1054 = arith.constant 0 : index
    %c0_1055 = arith.constant 0 : index
    %1830 = vector.load %arg4[%c4_1053, %c0_1054, %c0_1055] : memref<5x20x16xf32, #tpu.memory_space<vmem>>, vector<1x16x16xf32>
    %1831 = vector.shape_cast %1830 : vector<1x16x16xf32> to vector<16x16xf32>
    %cst_1056 = arith.constant -0.0034896594 : f32
    %1832 = vector.broadcast %cst_1056 : f32 to vector<16x16xf32>
    %1833 = arith.mulf %1831, %1832 : vector<16x16xf32>
    %1834 = arith.addf %1823, %1833 : vector<16x16xf32>
    %cst_1057 = arith.constant -0.0138546899 : f32
    %1835 = vector.broadcast %cst_1057 : f32 to vector<16x16xf32>
    %1836 = arith.mulf %1831, %1835 : vector<16x16xf32>
    %1837 = arith.addf %1826, %1836 : vector<16x16xf32>
    %cst_1058 = arith.constant -0.0131139057 : f32
    %1838 = vector.broadcast %cst_1058 : f32 to vector<16x16xf32>
    %1839 = arith.mulf %1831, %1838 : vector<16x16xf32>
    %1840 = arith.addf %1829, %1839 : vector<16x16xf32>
    %c0_1059 = arith.constant 0 : index
    %c1_1060 = arith.constant 1 : index
    %c0_1061 = arith.constant 0 : index
    %1841 = vector.load %arg4[%c0_1059, %c1_1060, %c0_1061] : memref<5x20x16xf32, #tpu.memory_space<vmem>>, vector<1x16x16xf32>
    %1842 = vector.shape_cast %1841 : vector<1x16x16xf32> to vector<16x16xf32>
    %cst_1062 = arith.constant -0.00561965024 : f32
    %1843 = vector.broadcast %cst_1062 : f32 to vector<16x16xf32>
    %1844 = arith.mulf %1842, %1843 : vector<16x16xf32>
    %1845 = arith.addf %1834, %1844 : vector<16x16xf32>
    %cst_1063 = arith.constant 0.00753900409 : f32
    %1846 = vector.broadcast %cst_1063 : f32 to vector<16x16xf32>
    %1847 = arith.mulf %1842, %1846 : vector<16x16xf32>
    %1848 = arith.addf %1837, %1847 : vector<16x16xf32>
    %cst_1064 = arith.constant -0.065062508 : f32
    %1849 = vector.broadcast %cst_1064 : f32 to vector<16x16xf32>
    %1850 = arith.mulf %1842, %1849 : vector<16x16xf32>
    %1851 = arith.addf %1840, %1850 : vector<16x16xf32>
    %c1_1065 = arith.constant 1 : index
    %c1_1066 = arith.constant 1 : index
    %c0_1067 = arith.constant 0 : index
    %1852 = vector.load %arg4[%c1_1065, %c1_1066, %c0_1067] : memref<5x20x16xf32, #tpu.memory_space<vmem>>, vector<1x16x16xf32>
    %1853 = vector.shape_cast %1852 : vector<1x16x16xf32> to vector<16x16xf32>
    %cst_1068 = arith.constant 4.564030e-02 : f32
    %1854 = vector.broadcast %cst_1068 : f32 to vector<16x16xf32>
    %1855 = arith.mulf %1853, %1854 : vector<16x16xf32>
    %1856 = arith.addf %1845, %1855 : vector<16x16xf32>
    %cst_1069 = arith.constant 0.091304861 : f32
    %1857 = vector.broadcast %cst_1069 : f32 to vector<16x16xf32>
    %1858 = arith.mulf %1853, %1857 : vector<16x16xf32>
    %1859 = arith.addf %1848, %1858 : vector<16x16xf32>
    %cst_1070 = arith.constant 0.00291051716 : f32
    %1860 = vector.broadcast %cst_1070 : f32 to vector<16x16xf32>
    %1861 = arith.mulf %1853, %1860 : vector<16x16xf32>
    %1862 = arith.addf %1851, %1861 : vector<16x16xf32>
    %c2_1071 = arith.constant 2 : index
    %c1_1072 = arith.constant 1 : index
    %c0_1073 = arith.constant 0 : index
    %1863 = vector.load %arg4[%c2_1071, %c1_1072, %c0_1073] : memref<5x20x16xf32, #tpu.memory_space<vmem>>, vector<1x16x16xf32>
    %1864 = vector.shape_cast %1863 : vector<1x16x16xf32> to vector<16x16xf32>
    %cst_1074 = arith.constant -0.0311608966 : f32
    %1865 = vector.broadcast %cst_1074 : f32 to vector<16x16xf32>
    %1866 = arith.mulf %1864, %1865 : vector<16x16xf32>
    %1867 = arith.addf %1856, %1866 : vector<16x16xf32>
    %cst_1075 = arith.constant -0.148107827 : f32
    %1868 = vector.broadcast %cst_1075 : f32 to vector<16x16xf32>
    %1869 = arith.mulf %1864, %1868 : vector<16x16xf32>
    %1870 = arith.addf %1859, %1869 : vector<16x16xf32>
    %cst_1076 = arith.constant 0.0799313784 : f32
    %1871 = vector.broadcast %cst_1076 : f32 to vector<16x16xf32>
    %1872 = arith.mulf %1864, %1871 : vector<16x16xf32>
    %1873 = arith.addf %1862, %1872 : vector<16x16xf32>
    %c3_1077 = arith.constant 3 : index
    %c1_1078 = arith.constant 1 : index
    %c0_1079 = arith.constant 0 : index
    %1874 = vector.load %arg4[%c3_1077, %c1_1078, %c0_1079] : memref<5x20x16xf32, #tpu.memory_space<vmem>>, vector<1x16x16xf32>
    %1875 = vector.shape_cast %1874 : vector<1x16x16xf32> to vector<16x16xf32>
    %cst_1080 = arith.constant -0.0537866801 : f32
    %1876 = vector.broadcast %cst_1080 : f32 to vector<16x16xf32>
    %1877 = arith.mulf %1875, %1876 : vector<16x16xf32>
    %1878 = arith.addf %1867, %1877 : vector<16x16xf32>
    %cst_1081 = arith.constant 0.0191644654 : f32
    %1879 = vector.broadcast %cst_1081 : f32 to vector<16x16xf32>
    %1880 = arith.mulf %1875, %1879 : vector<16x16xf32>
    %1881 = arith.addf %1870, %1880 : vector<16x16xf32>
    %cst_1082 = arith.constant -0.115941525 : f32
    %1882 = vector.broadcast %cst_1082 : f32 to vector<16x16xf32>
    %1883 = arith.mulf %1875, %1882 : vector<16x16xf32>
    %1884 = arith.addf %1873, %1883 : vector<16x16xf32>
    %c4_1083 = arith.constant 4 : index
    %c1_1084 = arith.constant 1 : index
    %c0_1085 = arith.constant 0 : index
    %1885 = vector.load %arg4[%c4_1083, %c1_1084, %c0_1085] : memref<5x20x16xf32, #tpu.memory_space<vmem>>, vector<1x16x16xf32>
    %1886 = vector.shape_cast %1885 : vector<1x16x16xf32> to vector<16x16xf32>
    %cst_1086 = arith.constant -0.0719036683 : f32
    %1887 = vector.broadcast %cst_1086 : f32 to vector<16x16xf32>
    %1888 = arith.mulf %1886, %1887 : vector<16x16xf32>
    %1889 = arith.addf %1878, %1888 : vector<16x16xf32>
    %cst_1087 = arith.constant 0.108807392 : f32
    %1890 = vector.broadcast %cst_1087 : f32 to vector<16x16xf32>
    %1891 = arith.mulf %1886, %1890 : vector<16x16xf32>
    %1892 = arith.addf %1881, %1891 : vector<16x16xf32>
    %cst_1088 = arith.constant -0.158266261 : f32
    %1893 = vector.broadcast %cst_1088 : f32 to vector<16x16xf32>
    %1894 = arith.mulf %1886, %1893 : vector<16x16xf32>
    %1895 = arith.addf %1884, %1894 : vector<16x16xf32>
    %c0_1089 = arith.constant 0 : index
    %c2_1090 = arith.constant 2 : index
    %c0_1091 = arith.constant 0 : index
    %1896 = vector.load %arg4[%c0_1089, %c2_1090, %c0_1091] : memref<5x20x16xf32, #tpu.memory_space<vmem>>, vector<1x16x16xf32>
    %1897 = vector.shape_cast %1896 : vector<1x16x16xf32> to vector<16x16xf32>
    %cst_1092 = arith.constant 8.812610e-02 : f32
    %1898 = vector.broadcast %cst_1092 : f32 to vector<16x16xf32>
    %1899 = arith.mulf %1897, %1898 : vector<16x16xf32>
    %1900 = arith.addf %1889, %1899 : vector<16x16xf32>
    %cst_1093 = arith.constant 0.129118979 : f32
    %1901 = vector.broadcast %cst_1093 : f32 to vector<16x16xf32>
    %1902 = arith.mulf %1897, %1901 : vector<16x16xf32>
    %1903 = arith.addf %1892, %1902 : vector<16x16xf32>
    %cst_1094 = arith.constant -0.0316863917 : f32
    %1904 = vector.broadcast %cst_1094 : f32 to vector<16x16xf32>
    %1905 = arith.mulf %1897, %1904 : vector<16x16xf32>
    %1906 = arith.addf %1895, %1905 : vector<16x16xf32>
    %c1_1095 = arith.constant 1 : index
    %c2_1096 = arith.constant 2 : index
    %c0_1097 = arith.constant 0 : index
    %1907 = vector.load %arg4[%c1_1095, %c2_1096, %c0_1097] : memref<5x20x16xf32, #tpu.memory_space<vmem>>, vector<1x16x16xf32>
    %1908 = vector.shape_cast %1907 : vector<1x16x16xf32> to vector<16x16xf32>
    %cst_1098 = arith.constant 0.115317255 : f32
    %1909 = vector.broadcast %cst_1098 : f32 to vector<16x16xf32>
    %1910 = arith.mulf %1908, %1909 : vector<16x16xf32>
    %1911 = arith.addf %1900, %1910 : vector<16x16xf32>
    %cst_1099 = arith.constant -0.0808054134 : f32
    %1912 = vector.broadcast %cst_1099 : f32 to vector<16x16xf32>
    %1913 = arith.mulf %1908, %1912 : vector<16x16xf32>
    %1914 = arith.addf %1903, %1913 : vector<16x16xf32>
    %cst_1100 = arith.constant -0.0322825536 : f32
    %1915 = vector.broadcast %cst_1100 : f32 to vector<16x16xf32>
    %1916 = arith.mulf %1908, %1915 : vector<16x16xf32>
    %1917 = arith.addf %1906, %1916 : vector<16x16xf32>
    %c2_1101 = arith.constant 2 : index
    %c2_1102 = arith.constant 2 : index
    %c0_1103 = arith.constant 0 : index
    %1918 = vector.load %arg4[%c2_1101, %c2_1102, %c0_1103] : memref<5x20x16xf32, #tpu.memory_space<vmem>>, vector<1x16x16xf32>
    %1919 = vector.shape_cast %1918 : vector<1x16x16xf32> to vector<16x16xf32>
    %cst_1104 = arith.constant 0.0865207687 : f32
    %1920 = vector.broadcast %cst_1104 : f32 to vector<16x16xf32>
    %1921 = arith.mulf %1919, %1920 : vector<16x16xf32>
    %1922 = arith.addf %1911, %1921 : vector<16x16xf32>
    %cst_1105 = arith.constant -4.441670e-02 : f32
    %1923 = vector.broadcast %cst_1105 : f32 to vector<16x16xf32>
    %1924 = arith.mulf %1919, %1923 : vector<16x16xf32>
    %1925 = arith.addf %1914, %1924 : vector<16x16xf32>
    %cst_1106 = arith.constant -0.130005375 : f32
    %1926 = vector.broadcast %cst_1106 : f32 to vector<16x16xf32>
    %1927 = arith.mulf %1919, %1926 : vector<16x16xf32>
    %1928 = arith.addf %1917, %1927 : vector<16x16xf32>
    %c3_1107 = arith.constant 3 : index
    %c2_1108 = arith.constant 2 : index
    %c0_1109 = arith.constant 0 : index
    %1929 = vector.load %arg4[%c3_1107, %c2_1108, %c0_1109] : memref<5x20x16xf32, #tpu.memory_space<vmem>>, vector<1x16x16xf32>
    %1930 = vector.shape_cast %1929 : vector<1x16x16xf32> to vector<16x16xf32>
    %cst_1110 = arith.constant -0.0995959639 : f32
    %1931 = vector.broadcast %cst_1110 : f32 to vector<16x16xf32>
    %1932 = arith.mulf %1930, %1931 : vector<16x16xf32>
    %1933 = arith.addf %1922, %1932 : vector<16x16xf32>
    %cst_1111 = arith.constant 0.106704392 : f32
    %1934 = vector.broadcast %cst_1111 : f32 to vector<16x16xf32>
    %1935 = arith.mulf %1930, %1934 : vector<16x16xf32>
    %1936 = arith.addf %1925, %1935 : vector<16x16xf32>
    %cst_1112 = arith.constant -0.0290280376 : f32
    %1937 = vector.broadcast %cst_1112 : f32 to vector<16x16xf32>
    %1938 = arith.mulf %1930, %1937 : vector<16x16xf32>
    %1939 = arith.addf %1928, %1938 : vector<16x16xf32>
    %c4_1113 = arith.constant 4 : index
    %c2_1114 = arith.constant 2 : index
    %c0_1115 = arith.constant 0 : index
    %1940 = vector.load %arg4[%c4_1113, %c2_1114, %c0_1115] : memref<5x20x16xf32, #tpu.memory_space<vmem>>, vector<1x16x16xf32>
    %1941 = vector.shape_cast %1940 : vector<1x16x16xf32> to vector<16x16xf32>
    %cst_1116 = arith.constant -0.0397859178 : f32
    %1942 = vector.broadcast %cst_1116 : f32 to vector<16x16xf32>
    %1943 = arith.mulf %1941, %1942 : vector<16x16xf32>
    %1944 = arith.addf %1933, %1943 : vector<16x16xf32>
    %cst_1117 = arith.constant 0.189211845 : f32
    %1945 = vector.broadcast %cst_1117 : f32 to vector<16x16xf32>
    %1946 = arith.mulf %1941, %1945 : vector<16x16xf32>
    %1947 = arith.addf %1936, %1946 : vector<16x16xf32>
    %cst_1118 = arith.constant 0.0834414586 : f32
    %1948 = vector.broadcast %cst_1118 : f32 to vector<16x16xf32>
    %1949 = arith.mulf %1941, %1948 : vector<16x16xf32>
    %1950 = arith.addf %1939, %1949 : vector<16x16xf32>
    %c0_1119 = arith.constant 0 : index
    %c3_1120 = arith.constant 3 : index
    %c0_1121 = arith.constant 0 : index
    %1951 = vector.load %arg4[%c0_1119, %c3_1120, %c0_1121] : memref<5x20x16xf32, #tpu.memory_space<vmem>>, vector<1x16x16xf32>
    %1952 = vector.shape_cast %1951 : vector<1x16x16xf32> to vector<16x16xf32>
    %cst_1122 = arith.constant -0.13985306 : f32
    %1953 = vector.broadcast %cst_1122 : f32 to vector<16x16xf32>
    %1954 = arith.mulf %1952, %1953 : vector<16x16xf32>
    %1955 = arith.addf %1944, %1954 : vector<16x16xf32>
    %cst_1123 = arith.constant 0.0857218131 : f32
    %1956 = vector.broadcast %cst_1123 : f32 to vector<16x16xf32>
    %1957 = arith.mulf %1952, %1956 : vector<16x16xf32>
    %1958 = arith.addf %1947, %1957 : vector<16x16xf32>
    %cst_1124 = arith.constant 0.052829355 : f32
    %1959 = vector.broadcast %cst_1124 : f32 to vector<16x16xf32>
    %1960 = arith.mulf %1952, %1959 : vector<16x16xf32>
    %1961 = arith.addf %1950, %1960 : vector<16x16xf32>
    %c1_1125 = arith.constant 1 : index
    %c3_1126 = arith.constant 3 : index
    %c0_1127 = arith.constant 0 : index
    %1962 = vector.load %arg4[%c1_1125, %c3_1126, %c0_1127] : memref<5x20x16xf32, #tpu.memory_space<vmem>>, vector<1x16x16xf32>
    %1963 = vector.shape_cast %1962 : vector<1x16x16xf32> to vector<16x16xf32>
    %cst_1128 = arith.constant 0.0394207872 : f32
    %1964 = vector.broadcast %cst_1128 : f32 to vector<16x16xf32>
    %1965 = arith.mulf %1963, %1964 : vector<16x16xf32>
    %1966 = arith.addf %1955, %1965 : vector<16x16xf32>
    %cst_1129 = arith.constant 0.128804371 : f32
    %1967 = vector.broadcast %cst_1129 : f32 to vector<16x16xf32>
    %1968 = arith.mulf %1963, %1967 : vector<16x16xf32>
    %1969 = arith.addf %1958, %1968 : vector<16x16xf32>
    %cst_1130 = arith.constant -0.0490001589 : f32
    %1970 = vector.broadcast %cst_1130 : f32 to vector<16x16xf32>
    %1971 = arith.mulf %1963, %1970 : vector<16x16xf32>
    %1972 = arith.addf %1961, %1971 : vector<16x16xf32>
    %c2_1131 = arith.constant 2 : index
    %c3_1132 = arith.constant 3 : index
    %c0_1133 = arith.constant 0 : index
    %1973 = vector.load %arg4[%c2_1131, %c3_1132, %c0_1133] : memref<5x20x16xf32, #tpu.memory_space<vmem>>, vector<1x16x16xf32>
    %1974 = vector.shape_cast %1973 : vector<1x16x16xf32> to vector<16x16xf32>
    %cst_1134 = arith.constant 0.0592224188 : f32
    %1975 = vector.broadcast %cst_1134 : f32 to vector<16x16xf32>
    %1976 = arith.mulf %1974, %1975 : vector<16x16xf32>
    %1977 = arith.addf %1966, %1976 : vector<16x16xf32>
    %cst_1135 = arith.constant -0.113829426 : f32
    %1978 = vector.broadcast %cst_1135 : f32 to vector<16x16xf32>
    %1979 = arith.mulf %1974, %1978 : vector<16x16xf32>
    %1980 = arith.addf %1969, %1979 : vector<16x16xf32>
    %cst_1136 = arith.constant 0.0244306028 : f32
    %1981 = vector.broadcast %cst_1136 : f32 to vector<16x16xf32>
    %1982 = arith.mulf %1974, %1981 : vector<16x16xf32>
    %1983 = arith.addf %1972, %1982 : vector<16x16xf32>
    %c3_1137 = arith.constant 3 : index
    %c3_1138 = arith.constant 3 : index
    %c0_1139 = arith.constant 0 : index
    %1984 = vector.load %arg4[%c3_1137, %c3_1138, %c0_1139] : memref<5x20x16xf32, #tpu.memory_space<vmem>>, vector<1x16x16xf32>
    %1985 = vector.shape_cast %1984 : vector<1x16x16xf32> to vector<16x16xf32>
    %cst_1140 = arith.constant 3.873760e-02 : f32
    %1986 = vector.broadcast %cst_1140 : f32 to vector<16x16xf32>
    %1987 = arith.mulf %1985, %1986 : vector<16x16xf32>
    %1988 = arith.addf %1977, %1987 : vector<16x16xf32>
    %cst_1141 = arith.constant -0.111890294 : f32
    %1989 = vector.broadcast %cst_1141 : f32 to vector<16x16xf32>
    %1990 = arith.mulf %1985, %1989 : vector<16x16xf32>
    %1991 = arith.addf %1980, %1990 : vector<16x16xf32>
    %cst_1142 = arith.constant 0.0168020558 : f32
    %1992 = vector.broadcast %cst_1142 : f32 to vector<16x16xf32>
    %1993 = arith.mulf %1985, %1992 : vector<16x16xf32>
    %1994 = arith.addf %1983, %1993 : vector<16x16xf32>
    %c4_1143 = arith.constant 4 : index
    %c3_1144 = arith.constant 3 : index
    %c0_1145 = arith.constant 0 : index
    %1995 = vector.load %arg4[%c4_1143, %c3_1144, %c0_1145] : memref<5x20x16xf32, #tpu.memory_space<vmem>>, vector<1x16x16xf32>
    %1996 = vector.shape_cast %1995 : vector<1x16x16xf32> to vector<16x16xf32>
    %cst_1146 = arith.constant -0.152781263 : f32
    %1997 = vector.broadcast %cst_1146 : f32 to vector<16x16xf32>
    %1998 = arith.mulf %1996, %1997 : vector<16x16xf32>
    %1999 = arith.addf %1988, %1998 : vector<16x16xf32>
    %cst_1147 = arith.constant 0.0951014161 : f32
    %2000 = vector.broadcast %cst_1147 : f32 to vector<16x16xf32>
    %2001 = arith.mulf %1996, %2000 : vector<16x16xf32>
    %2002 = arith.addf %1991, %2001 : vector<16x16xf32>
    %cst_1148 = arith.constant -0.123143978 : f32
    %2003 = vector.broadcast %cst_1148 : f32 to vector<16x16xf32>
    %2004 = arith.mulf %1996, %2003 : vector<16x16xf32>
    %2005 = arith.addf %1994, %2004 : vector<16x16xf32>
    %c0_1149 = arith.constant 0 : index
    %c4_1150 = arith.constant 4 : index
    %c0_1151 = arith.constant 0 : index
    %2006 = vector.load %arg4[%c0_1149, %c4_1150, %c0_1151] : memref<5x20x16xf32, #tpu.memory_space<vmem>>, vector<1x16x16xf32>
    %2007 = vector.shape_cast %2006 : vector<1x16x16xf32> to vector<16x16xf32>
    %cst_1152 = arith.constant 0.0841370448 : f32
    %2008 = vector.broadcast %cst_1152 : f32 to vector<16x16xf32>
    %2009 = arith.mulf %2007, %2008 : vector<16x16xf32>
    %2010 = arith.addf %1999, %2009 : vector<16x16xf32>
    %cst_1153 = arith.constant -0.0888180658 : f32
    %2011 = vector.broadcast %cst_1153 : f32 to vector<16x16xf32>
    %2012 = arith.mulf %2007, %2011 : vector<16x16xf32>
    %2013 = arith.addf %2002, %2012 : vector<16x16xf32>
    %cst_1154 = arith.constant 0.00200302061 : f32
    %2014 = vector.broadcast %cst_1154 : f32 to vector<16x16xf32>
    %2015 = arith.mulf %2007, %2014 : vector<16x16xf32>
    %2016 = arith.addf %2005, %2015 : vector<16x16xf32>
    %c1_1155 = arith.constant 1 : index
    %c4_1156 = arith.constant 4 : index
    %c0_1157 = arith.constant 0 : index
    %2017 = vector.load %arg4[%c1_1155, %c4_1156, %c0_1157] : memref<5x20x16xf32, #tpu.memory_space<vmem>>, vector<1x16x16xf32>
    %2018 = vector.shape_cast %2017 : vector<1x16x16xf32> to vector<16x16xf32>
    %cst_1158 = arith.constant -0.148989603 : f32
    %2019 = vector.broadcast %cst_1158 : f32 to vector<16x16xf32>
    %2020 = arith.mulf %2018, %2019 : vector<16x16xf32>
    %2021 = arith.addf %2010, %2020 : vector<16x16xf32>
    %cst_1159 = arith.constant -0.0293509196 : f32
    %2022 = vector.broadcast %cst_1159 : f32 to vector<16x16xf32>
    %2023 = arith.mulf %2018, %2022 : vector<16x16xf32>
    %2024 = arith.addf %2013, %2023 : vector<16x16xf32>
    %cst_1160 = arith.constant -0.00536385924 : f32
    %2025 = vector.broadcast %cst_1160 : f32 to vector<16x16xf32>
    %2026 = arith.mulf %2018, %2025 : vector<16x16xf32>
    %2027 = arith.addf %2016, %2026 : vector<16x16xf32>
    %c2_1161 = arith.constant 2 : index
    %c4_1162 = arith.constant 4 : index
    %c0_1163 = arith.constant 0 : index
    %2028 = vector.load %arg4[%c2_1161, %c4_1162, %c0_1163] : memref<5x20x16xf32, #tpu.memory_space<vmem>>, vector<1x16x16xf32>
    %2029 = vector.shape_cast %2028 : vector<1x16x16xf32> to vector<16x16xf32>
    %cst_1164 = arith.constant 0.0394439287 : f32
    %2030 = vector.broadcast %cst_1164 : f32 to vector<16x16xf32>
    %2031 = arith.mulf %2029, %2030 : vector<16x16xf32>
    %2032 = arith.addf %2021, %2031 : vector<16x16xf32>
    %cst_1165 = arith.constant 0.0257952418 : f32
    %2033 = vector.broadcast %cst_1165 : f32 to vector<16x16xf32>
    %2034 = arith.mulf %2029, %2033 : vector<16x16xf32>
    %2035 = arith.addf %2024, %2034 : vector<16x16xf32>
    %cst_1166 = arith.constant -0.0577385537 : f32
    %2036 = vector.broadcast %cst_1166 : f32 to vector<16x16xf32>
    %2037 = arith.mulf %2029, %2036 : vector<16x16xf32>
    %2038 = arith.addf %2027, %2037 : vector<16x16xf32>
    %c3_1167 = arith.constant 3 : index
    %c4_1168 = arith.constant 4 : index
    %c0_1169 = arith.constant 0 : index
    %2039 = vector.load %arg4[%c3_1167, %c4_1168, %c0_1169] : memref<5x20x16xf32, #tpu.memory_space<vmem>>, vector<1x16x16xf32>
    %2040 = vector.shape_cast %2039 : vector<1x16x16xf32> to vector<16x16xf32>
    %cst_1170 = arith.constant 0.0686935037 : f32
    %2041 = vector.broadcast %cst_1170 : f32 to vector<16x16xf32>
    %2042 = arith.mulf %2040, %2041 : vector<16x16xf32>
    %2043 = arith.addf %2032, %2042 : vector<16x16xf32>
    %cst_1171 = arith.constant -0.00821268185 : f32
    %2044 = vector.broadcast %cst_1171 : f32 to vector<16x16xf32>
    %2045 = arith.mulf %2040, %2044 : vector<16x16xf32>
    %2046 = arith.addf %2035, %2045 : vector<16x16xf32>
    %cst_1172 = arith.constant -0.0452430099 : f32
    %2047 = vector.broadcast %cst_1172 : f32 to vector<16x16xf32>
    %2048 = arith.mulf %2040, %2047 : vector<16x16xf32>
    %2049 = arith.addf %2038, %2048 : vector<16x16xf32>
    %c4_1173 = arith.constant 4 : index
    %c4_1174 = arith.constant 4 : index
    %c0_1175 = arith.constant 0 : index
    %2050 = vector.load %arg4[%c4_1173, %c4_1174, %c0_1175] : memref<5x20x16xf32, #tpu.memory_space<vmem>>, vector<1x16x16xf32>
    %2051 = vector.shape_cast %2050 : vector<1x16x16xf32> to vector<16x16xf32>
    %cst_1176 = arith.constant 0.0541472696 : f32
    %2052 = vector.broadcast %cst_1176 : f32 to vector<16x16xf32>
    %2053 = arith.mulf %2051, %2052 : vector<16x16xf32>
    %2054 = arith.addf %2043, %2053 : vector<16x16xf32>
    %cst_1177 = arith.constant 0.0567842685 : f32
    %2055 = vector.broadcast %cst_1177 : f32 to vector<16x16xf32>
    %2056 = arith.mulf %2051, %2055 : vector<16x16xf32>
    %2057 = arith.addf %2046, %2056 : vector<16x16xf32>
    %cst_1178 = arith.constant 0.112511478 : f32
    %2058 = vector.broadcast %cst_1178 : f32 to vector<16x16xf32>
    %2059 = arith.mulf %2051, %2058 : vector<16x16xf32>
    %2060 = arith.addf %2049, %2059 : vector<16x16xf32>
    %cst_1179 = arith.constant -3.000000e+00 : f32
    %cst_1180 = arith.constant 3.000000e+00 : f32
    %2061 = vector.broadcast %cst_1179 : f32 to vector<16x16xf32>
    %2062 = arith.maximumf %2061, %2054 : vector<16x16xf32>
    %2063 = vector.broadcast %cst_1180 : f32 to vector<16x16xf32>
    %2064 = arith.minimumf %2063, %2062 : vector<16x16xf32>
    %c0_1181 = arith.constant 0 : index
    %c27 = arith.constant 27 : index
    %c0_1182 = arith.constant 0 : index
    %c0_1183 = arith.constant 0 : index
    %2065 = vector.load %arg3[%c0_1181, %c27, %c0_1182, %c0_1183] : memref<1x30x16x16xf32, #tpu.memory_space<vmem>>, vector<1x1x16x16xf32>
    %2066 = vector.shape_cast %2065 : vector<1x1x16x16xf32> to vector<16x16xf32>
    %2067 = vector.shape_cast %2064 : vector<16x16xf32> to vector<1x1x16x16xf32>
    tpu.vector_store %arg3[%c0_1181, %c27, %c0_1182, %c0_1183], %2067 {strides = array<i32>} : memref<1x30x16x16xf32, #tpu.memory_space<vmem>>, vector<1x1x16x16xf32>,
    %cst_1184 = arith.constant -3.000000e+00 : f32
    %cst_1185 = arith.constant 3.000000e+00 : f32
    %2068 = vector.broadcast %cst_1184 : f32 to vector<16x16xf32>
    %2069 = arith.maximumf %2068, %2057 : vector<16x16xf32>
    %2070 = vector.broadcast %cst_1185 : f32 to vector<16x16xf32>
    %2071 = arith.minimumf %2070, %2069 : vector<16x16xf32>
    %c0_1186 = arith.constant 0 : index
    %c28 = arith.constant 28 : index
    %c0_1187 = arith.constant 0 : index
    %c0_1188 = arith.constant 0 : index
    %2072 = vector.load %arg3[%c0_1186, %c28, %c0_1187, %c0_1188] : memref<1x30x16x16xf32, #tpu.memory_space<vmem>>, vector<1x1x16x16xf32>
    %2073 = vector.shape_cast %2072 : vector<1x1x16x16xf32> to vector<16x16xf32>
    %2074 = vector.shape_cast %2071 : vector<16x16xf32> to vector<1x1x16x16xf32>
    tpu.vector_store %arg3[%c0_1186, %c28, %c0_1187, %c0_1188], %2074 {strides = array<i32>} : memref<1x30x16x16xf32, #tpu.memory_space<vmem>>, vector<1x1x16x16xf32>,
    %cst_1189 = arith.constant -3.000000e+00 : f32
    %cst_1190 = arith.constant 3.000000e+00 : f32
    %2075 = vector.broadcast %cst_1189 : f32 to vector<16x16xf32>
    %2076 = arith.maximumf %2075, %2060 : vector<16x16xf32>
    %2077 = vector.broadcast %cst_1190 : f32 to vector<16x16xf32>
    %2078 = arith.minimumf %2077, %2076 : vector<16x16xf32>
    %c0_1191 = arith.constant 0 : index
    %c29 = arith.constant 29 : index
    %c0_1192 = arith.constant 0 : index
    %c0_1193 = arith.constant 0 : index
    %2079 = vector.load %arg3[%c0_1191, %c29, %c0_1192, %c0_1193] : memref<1x30x16x16xf32, #tpu.memory_space<vmem>>, vector<1x1x16x16xf32>
    %2080 = vector.shape_cast %2079 : vector<1x1x16x16xf32> to vector<16x16xf32>
    %2081 = vector.shape_cast %2078 : vector<16x16xf32> to vector<1x1x16x16xf32>
    tpu.vector_store %arg3[%c0_1191, %c29, %c0_1192, %c0_1193], %2081 {strides = array<i32>} : memref<1x30x16x16xf32, #tpu.memory_space<vmem>>, vector<1x1x16x16xf32>,
    return
  }
  func.func @transform_0(%arg0: i32, %arg1: i32) -> (i32, i32, i32) {
    %c0_i32 = arith.constant 0 : i32
    %c0_i32_0 = arith.constant 0 : i32
    %c0_i32_1 = arith.constant 0 : i32
    return %arg0, %c0_i32, %c0_i32_0 : i32, i32, i32
  }
  func.func @transform_1(%arg0: i32, %arg1: i32) -> (i32, i32, i32, i32) {
    %c0_i32 = arith.constant 0 : i32
    %c0_i32_0 = arith.constant 0 : i32
    %c0_i32_1 = arith.constant 0 : i32
    return %arg0, %c0_i32, %arg1, %c0_i32_0 : i32, i32, i32, i32
  }
}

</mosaic_0001>

<llo_original>
// kernel: tpu_custom_call.1
$region0: #{tpu_custom_call.1}
  #allocation0 [shape = 'u32[]', space=smem, size = 0x4, offset = 0x4, fixed_abs, tag = 'smem constant byte address 0x4 - core index']
  #allocation1 [shape = 'u32[144,128]{1,0:T(1,128)}', space=vmem, size = 0x12000, scoped, tag = 'internal scratch']
  #allocation2 [shape = 'f32[5,20,16]{2,1,0:T(8,128)}', space=vmem, size = 0xf000, scoped, tag = 'scratch operand']
  %s0 = inlined_call_operand.vmem [shape: f32[2,20,20], index: 0, kind: input, shape index: {}]
  %s1 = inlined_call_operand.vmem [shape: f32[2,30,16,16], index: 1, kind: output, shape index: {}]
  %s2 = sld [smem:[#allocation0]]
  $region37: #{tpu_custom_call.1} parent=0
    _
  %s4 = ssub.s32 1, %s2
  %s5 = scalar_select 0, %s4, %s2
  loop: start=0, step=1, limit=4
  $region2: #{tpu_custom_call.1} parent=0 // loop_pre_header
    _
  $region3: #{tpu_custom_call.1} parent=0 // loop_header
    %s7 = sphi 0, %s11
    %p8 = scmp.ge.s32.totalorder %s7, 4
    %s14 = sphi 0, %s26
    %s15 = sphi 0, %s22
    %s16 = sphi 0, %s14
    %s17 = sphi 0, %s15
    %s18 = sphi 0, %s16
    %s19 = sphi 0, %s17
    %s29 = sphi 0, %s31
    %s32 = sphi 0, %s29
    %s33 = sphi 0, %s32
    %s49 = sphi 0, %s33
    %s57 = sphi 0, %s59
    %s60 = sphi 0, %s57
    %s61 = sphi 0, %s60
    %s77 = sphi 0, %s61
  $region4: #{tpu_custom_call.1} parent=0 // loop_header_branch
    %10 = sbr.rel (%p8) target = $region8
  $region5: #{tpu_custom_call.1} parent=0 // loop_body
    %s12 = ssub.s32 %s7, 1
    %s13 = ssub.s32 %s7, 2
    %s20 = sadd.s32 1, %s15
    %p21 = scmp.ge.s32.totalorder %s20, 1
    %s22 = scalar_select %p21, 0, %s20
    %s23 = sadd.s32 1, %s14
    %s24 = scalar_select %p21, %s23, %s14
    %p25 = scmp.ge.s32.totalorder %s24, 2
    %s26 = scalar_select %p25, 0, %s24
    %s27 = ssub.s32 %s14, %s26
    %p28 = scmp.eq.s32.totalorder %s27, 0
    %s30 = sadd.s32 %s29, 1
    %s31 = scalar_select %p28, %s29, %s30
    %p34 = pneg %p28
    %p35 = scmp.eq.s32.totalorder %s7, 1
    %p36 = por %p34, %p35
    %p37 = scmp.ne.s32.totalorder %s29, %s32
    %p38 = scmp.eq.s32.totalorder %s7, 0
    %p39 = por %p37, %p38
    %p40 = scmp.ne.s32.totalorder %s29, %s32
    %p41 = scmp.eq.s32.totalorder %s12, 1
    %p42 = por %p40, %p41
    %p43 = scmp.ne.s32.totalorder %s32, %s33
    %p44 = scmp.eq.s32.totalorder %s12, 0
    %p45 = por %p43, %p44
    %p46 = scmp.ne.s32.totalorder %s32, %s33
    %p47 = scmp.eq.s32.totalorder %s13, 1
    %p48 = por %p46, %p47
    %p50 = scmp.ne.s32.totalorder %s33, %s49
    %p51 = scmp.eq.s32.totalorder %s13, 0
    %p52 = por %p50, %p51
    %s53 = ssub.s32 %s14, %s26
    %s54 = ssub.s32 %s15, %s22
    %s55 = sor.u32 %s53, %s54
    %p56 = scmp.eq.s32.totalorder %s55, 0
    %s58 = sadd.s32 %s57, 1
    %s59 = scalar_select %p56, %s57, %s58
    %p62 = pneg %p56
    %p63 = scmp.eq.s32.totalorder %s7, 1
    %p64 = por %p62, %p63
    %p65 = scmp.ne.s32.totalorder %s57, %s60
    %p66 = scmp.eq.s32.totalorder %s7, 0
    %p67 = por %p65, %p66
    %p68 = scmp.ne.s32.totalorder %s57, %s60
    %p69 = scmp.eq.s32.totalorder %s12, 1
    %p70 = por %p68, %p69
    %p71 = scmp.ne.s32.totalorder %s60, %s61
    %p72 = scmp.eq.s32.totalorder %s12, 0
    %p73 = por %p71, %p72
    %p74 = scmp.ne.s32.totalorder %s60, %s61
    %p75 = scmp.eq.s32.totalorder %s13, 1
    %p76 = por %p74, %p75
    %p78 = scmp.ne.s32.totalorder %s61, %s77
    %p79 = scmp.eq.s32.totalorder %s13, 0
    %p80 = por %p78, %p79
    %p81 = scmp.le.s32.totalorder 1, %s7
    %p82 = scmp.lt.s32.totalorder %s7, 3
    %p83 = pnand %p81, %p82
    %p84 = pneg %p83
    // Predicated region
    $region9: #{tpu_custom_call.1} parent=5 // pred_check
      _
    $region10: #{tpu_custom_call.1} parent=5 // pred_check_branch
      %86 = sbr.rel (%p83) target = $region12
    $region11: #{tpu_custom_call.1} parent=5 // pred_region
      %s87 = ssub.s32 %s7, 1
    $region12: #{tpu_custom_call.1} parent=5 // pred_fallthru
      _
    %p88 = scmp.lt.s32.totalorder %s7, 2
    // Predicated region
    $region13: #{tpu_custom_call.1} parent=5 // pred_check
      %p89 = pneg %p88
    $region14: #{tpu_custom_call.1} parent=5 // pred_check_branch
      %91 = sbr.rel (%p89) target = $region16
    $region15: #{tpu_custom_call.1} parent=5 // pred_region
      // Predicated region
      $region17: #{tpu_custom_call.1} parent=15 // pred_check
        %p92 = pneg %p39
      $region18: #{tpu_custom_call.1} parent=15 // pred_check_branch
        %94 = sbr.rel (%p92) target = $region20
      $region19: #{tpu_custom_call.1} parent=15 // pred_region
        %p95 = scmp.lt.s32.totalorder %s14, 1
        %s96 = scalar_select %p95, %s14, 1
        %s97 = smul.addr %s96, 3
        %s98 = smul.addr %s97, 8
        %s99 = scalar_lea.vmem %s0, %s98
      $region20: #{tpu_custom_call.1} parent=15 // pred_fallthru
        _
    $region16: #{tpu_custom_call.1} parent=5 // pred_fallthru
      _
    %p100 = scmp.le.s32.totalorder 1, %s7
    %p101 = scmp.lt.s32.totalorder %s7, 3
    %p102 = pnand %p100, %p101
    %p103 = pneg %p102
    // Predicated region
    $region21: #{tpu_custom_call.1} parent=5 // pred_check
      _
    $region22: #{tpu_custom_call.1} parent=5 // pred_check_branch
      %105 = sbr.rel (%p102) target = $region24
    $region23: #{tpu_custom_call.1} parent=5 // pred_region
      %s106 = ssub.s32 %s7, 1
      %p107 = scmp.lt.s32.totalorder %s16, 1
      %s108 = scalar_select %p107, %s16, 1
      %s109 = smul.addr %s108, 3
      %s110 = smul.addr %s109, 8
      %s111 = scalar_lea.vmem %s0, %s110
      %p112 = pneg %p45
      %p113 = pneg %p42
      %p114 = pneg %p73
      %p115 = pneg %p70
      %s116 = smul.u32 2, %s17
      %p117 = scmp.lt.s32.totalorder %s16, 1
      %s118 = scalar_select %p117, %s16, 1
      %p119 = scmp.lt.s32.totalorder %s116, 1
      %s120 = scalar_select %p119, %s116, 1
      %s121 = smul.addr %s118, 60
      %s122 = sadd.s32 %s120, %s121
      %s123 = smul.addr %s122, 8
      %s124 = scalar_lea.vmem %s1, %s123
      %p125 = scmp.lt.s32.totalorder %s16, 1
      %s126 = scalar_select %p125, %s16, 1
      %s127 = smul.addr %s126, 3
      %s128 = smul.addr %s127, 8
      %s129 = scalar_lea.vmem %s0, %s128
      %s130 = smul.u32 2, %s17
      %p131 = scmp.lt.s32.totalorder %s16, 1
      %s132 = scalar_select %p131, %s16, 1
      %p133 = scmp.lt.s32.totalorder %s130, 1
      %s134 = scalar_select %p133, %s130, 1
      %s135 = smul.addr %s132, 60
      %s136 = sadd.s32 %s134, %s135
      %s137 = smul.addr %s136, 8
      %s138 = scalar_lea.vmem %s1, %s137
      %s139 = smul.u32 2, %s17
      %s140 = smul.u32 %s17, 16
      %s141 = scalar_lea.vmem %s129, %s140
      %v142 = vld [vmem:[%s141] sm:$0xff]
      %v143 = vld [vmem:[%s141 + $0x8] sm:$0xff]
      %v144 = vld [vmem:[%s141 + $0x10] sm:$0xf]
      %vm145 = vcmask 130048
      %146 = vst.msk [vmem:[#allocation2] sm:$0xff] %vm145, %v142
      %147 = vst.msk [vmem:[#allocation2 + $0x8] sm:$0xff] %vm145, %v143
      %vm148 = vcmask 125952
      %149 = vst.msk [vmem:[#allocation2 + $0x10] sm:$0xf] %vm148, %v144
      %v150 = vld [vmem:[%s141] sm:$0xff]
      %v151 = vld [vmem:[%s141 + $0x8] sm:$0xff]
      %v152 = vld [vmem:[%s141 + $0x10] sm:$0xf]
      %156 = vrot.lane.b32.xlu0 %v150, 127
      %v157 = vpop.permute.xlu0 %156
      %158 = vrot.lane.b32.xlu0 %v151, 127
      %v159 = vpop.permute.xlu0 %158
      %160 = vrot.lane.b32.xlu0 %v152, 127
      %v161 = vpop.permute.xlu0 %160
      %s165 = scalar_lea.vmem [#allocation2], 24
      %166 = vst.msk [vmem:[%s165] sm:$0xff] %vm145, %v157
      %167 = vst.msk [vmem:[%s165 + $0x8] sm:$0xff] %vm145, %v159
      %168 = vst.msk [vmem:[%s165 + $0x10] sm:$0xf] %vm148, %v161
      %v169 = vld [vmem:[%s141] sm:$0xff]
      %v170 = vld [vmem:[%s141 + $0x8] sm:$0xff]
      %v171 = vld [vmem:[%s141 + $0x10] sm:$0xf]
      %175 = vrot.lane.b32.xlu0 %v169, 126
      %v176 = vpop.permute.xlu0 %175
      %177 = vrot.lane.b32.xlu0 %v170, 126
      %v178 = vpop.permute.xlu0 %177
      %179 = vrot.lane.b32.xlu0 %v171, 126
      %v180 = vpop.permute.xlu0 %179
      %s184 = scalar_lea.vmem [#allocation2], 48
      %185 = vst.msk [vmem:[%s184] sm:$0xff] %vm145, %v176
      %186 = vst.msk [vmem:[%s184 + $0x8] sm:$0xff] %vm145, %v178
      %187 = vst.msk [vmem:[%s184 + $0x10] sm:$0xf] %vm148, %v180
      %v188 = vld [vmem:[%s141] sm:$0xff]
      %v189 = vld [vmem:[%s141 + $0x8] sm:$0xff]
      %v190 = vld [vmem:[%s141 + $0x10] sm:$0xf]
      %194 = vrot.lane.b32.xlu0 %v188, 125
      %v195 = vpop.permute.xlu0 %194
      %196 = vrot.lane.b32.xlu0 %v189, 125
      %v197 = vpop.permute.xlu0 %196
      %198 = vrot.lane.b32.xlu0 %v190, 125
      %v199 = vpop.permute.xlu0 %198
      %s203 = scalar_lea.vmem [#allocation2], 72
      %204 = vst.msk [vmem:[%s203] sm:$0xff] %vm145, %v195
      %205 = vst.msk [vmem:[%s203 + $0x8] sm:$0xff] %vm145, %v197
      %206 = vst.msk [vmem:[%s203 + $0x10] sm:$0xf] %vm148, %v199
      %v207 = vld [vmem:[%s141] sm:$0xff]
      %v208 = vld [vmem:[%s141 + $0x8] sm:$0xff]
      %v209 = vld [vmem:[%s141 + $0x10] sm:$0xf]
      %213 = vrot.lane.b32.xlu0 %v207, 124
      %v214 = vpop.permute.xlu0 %213
      %215 = vrot.lane.b32.xlu0 %v208, 124
      %v216 = vpop.permute.xlu0 %215
      %217 = vrot.lane.b32.xlu0 %v209, 124
      %v218 = vpop.permute.xlu0 %217
      %s222 = scalar_lea.vmem [#allocation2], 96
      %223 = vst.msk [vmem:[%s222] sm:$0xff] %vm145, %v214
      %224 = vst.msk [vmem:[%s222 + $0x8] sm:$0xff] %vm145, %v216
      %225 = vst.msk [vmem:[%s222 + $0x10] sm:$0xf] %vm148, %v218
      %v226 = vld [vmem:[%s165 + $0x1] sm:$0xff]
      %v227 = vld [vmem:[%s165 + $0x9] sm:$0xff]
      %v228 = vmul.f32 %v226, -0.09568497
      %v229 = vmul.f32 %v227, -0.09568497
      %v230 = vmul.f32 %v226, -0.14729963
      %v231 = vmul.f32 %v227, -0.14729963
      %v232 = vmul.f32 %v226, -0.039517574
      %v233 = vmul.f32 %v227, -0.039517574
      %v234 = vld [vmem:[%s184 + $0x1] sm:$0xff]
      %v235 = vld [vmem:[%s184 + $0x9] sm:$0xff]
      %v236 = vmul.f32 %v234, 0.024763815
      %v237 = vmul.f32 %v235, 0.024763815
      %v238 = vadd.f32 %v228, %v236
      %v239 = vadd.f32 %v229, %v237
      %v240 = vmul.f32 %v234, -0.017627517
      %v241 = vmul.f32 %v235, -0.017627517
      %v242 = vadd.f32 %v230, %v240
      %v243 = vadd.f32 %v231, %v241
      %v244 = vmul.f32 %v234, 0.041681394
      %v245 = vmul.f32 %v235, 0.041681394
      %v246 = vadd.f32 %v232, %v244
      %v247 = vadd.f32 %v233, %v245
      %v248 = vld [vmem:[%s203 + $0x1] sm:$0xff]
      %v249 = vld [vmem:[%s203 + $0x9] sm:$0xff]
      %v250 = vmul.f32 %v248, -0.109211326
      %v251 = vmul.f32 %v249, -0.109211326
      %v252 = vadd.f32 %v238, %v250
      %v253 = vadd.f32 %v239, %v251
      %v254 = vmul.f32 %v248, 0.076869234
      %v255 = vmul.f32 %v249, 0.076869234
      %v256 = vadd.f32 %v242, %v254
      %v257 = vadd.f32 %v243, %v255
      %v258 = vmul.f32 %v248, -0.062406376
      %v259 = vmul.f32 %v249, -0.062406376
      %v260 = vadd.f32 %v246, %v258
      %v261 = vadd.f32 %v247, %v259
      %v262 = vld [vmem:[%s165 + $0x2] sm:$0xff]
      %v263 = vld [vmem:[%s165 + $0xa] sm:$0xff]
      %v264 = vmul.f32 %v262, 0.08033434
      %v265 = vmul.f32 %v263, 0.08033434
      %v266 = vadd.f32 %v252, %v264
      %v267 = vadd.f32 %v253, %v265
      %v268 = vmul.f32 %v262, -0.20020314
      %v269 = vmul.f32 %v263, -0.20020314
      %v270 = vadd.f32 %v256, %v268
      %v271 = vadd.f32 %v257, %v269
      %v272 = vmul.f32 %v262, 0.0015887935
      %v273 = vmul.f32 %v263, 0.0015887935
      %v274 = vadd.f32 %v260, %v272
      %v275 = vadd.f32 %v261, %v273
      %v276 = vld [vmem:[%s184 + $0x2] sm:$0xff]
      %v277 = vld [vmem:[%s184 + $0xa] sm:$0xff]
      %v278 = vmul.f32 %v276, -0.108425014
      %v279 = vmul.f32 %v277, -0.108425014
      %v280 = vadd.f32 %v266, %v278
      %v281 = vadd.f32 %v267, %v279
      %v282 = vmul.f32 %v276, -0.13975786
      %v283 = vmul.f32 %v277, -0.13975786
      %v284 = vadd.f32 %v270, %v282
      %v285 = vadd.f32 %v271, %v283
      %v286 = vmul.f32 %v276, 0.08801458
      %v287 = vmul.f32 %v277, 0.08801458
      %v288 = vadd.f32 %v274, %v286
      %v289 = vadd.f32 %v275, %v287
      %v290 = vld [vmem:[%s203 + $0x2] sm:$0xff]
      %v291 = vld [vmem:[%s203 + $0xa] sm:$0xff]
      %v292 = vmul.f32 %v290, -0.06239115
      %v293 = vmul.f32 %v291, -0.06239115
      %v294 = vadd.f32 %v280, %v292
      %v295 = vadd.f32 %v281, %v293
      %v296 = vmul.f32 %v290, -0.039152984
      %v297 = vmul.f32 %v291, -0.039152984
      %v298 = vadd.f32 %v284, %v296
      %v299 = vadd.f32 %v285, %v297
      %v300 = vmul.f32 %v290, 0.07779648
      %v301 = vmul.f32 %v291, 0.07779648
      %v302 = vadd.f32 %v288, %v300
      %v303 = vadd.f32 %v289, %v301
      %v304 = vld [vmem:[%s165 + $0x3] sm:$0xff]
      %v305 = vld [vmem:[%s165 + $0xb] sm:$0xff]
      %v306 = vmul.f32 %v304, -0.09919163
      %v307 = vmul.f32 %v305, -0.09919163
      %v308 = vadd.f32 %v294, %v306
      %v309 = vadd.f32 %v295, %v307
      %v310 = vmul.f32 %v304, -0.1375602
      %v311 = vmul.f32 %v305, -0.1375602
      %v312 = vadd.f32 %v298, %v310
      %v313 = vadd.f32 %v299, %v311
      %v314 = vmul.f32 %v304, 0.11828255
      %v315 = vmul.f32 %v305, 0.11828255
      %v316 = vadd.f32 %v302, %v314
      %v317 = vadd.f32 %v303, %v315
      %v318 = vld [vmem:[%s184 + $0x3] sm:$0xff]
      %v319 = vld [vmem:[%s184 + $0xb] sm:$0xff]
      %v320 = vmul.f32 %v318, -0.005771303
      %v321 = vmul.f32 %v319, -0.005771303
      %v322 = vadd.f32 %v308, %v320
      %v323 = vadd.f32 %v309, %v321
      %v324 = vmul.f32 %v318, -0.022870772
      %v325 = vmul.f32 %v319, -0.022870772
      %v326 = vadd.f32 %v312, %v324
      %v327 = vadd.f32 %v313, %v325
      %v328 = vmul.f32 %v318, -0.094044626
      %v329 = vmul.f32 %v319, -0.094044626
      %v330 = vadd.f32 %v316, %v328
      %v331 = vadd.f32 %v317, %v329
      %v332 = vld [vmem:[%s203 + $0x3] sm:$0xff]
      %v333 = vld [vmem:[%s203 + $0xb] sm:$0xff]
      %v334 = vmul.f32 %v332, -0.07967157
      %v335 = vmul.f32 %v333, -0.07967157
      %v336 = vadd.f32 %v322, %v334
      %v337 = vadd.f32 %v323, %v335
      %v338 = vmul.f32 %v332, -0.059914198
      %v339 = vmul.f32 %v333, -0.059914198
      %v340 = vadd.f32 %v326, %v338
      %v341 = vadd.f32 %v327, %v339
      %v342 = vmul.f32 %v332, 0.050879423
      %v343 = vmul.f32 %v333, 0.050879423
      %v344 = vadd.f32 %v330, %v342
      %v345 = vadd.f32 %v331, %v343
      %v346 = vmax.f32 %v336, -3.0
      %v347 = vmax.f32 %v337, -3.0
      %v348 = vmin.f32 %v346, 3.0
      %v349 = vmin.f32 %v347, 3.0
      %350 = vst.msk [vmem:[%s138] sm:$0xff] %vm145, %v348
      %351 = vst.msk [vmem:[%s138 + $0x8] sm:$0xff] %vm145, %v349
      %v352 = vmax.f32 %v340, -3.0
      %v353 = vmax.f32 %v341, -3.0
      %v354 = vmin.f32 %v352, 3.0
      %v355 = vmin.f32 %v353, 3.0
      %s356 = scalar_lea.vmem %s138, 16
      %357 = vst.msk [vmem:[%s356] sm:$0xff] %vm145, %v354
      %358 = vst.msk [vmem:[%s356 + $0x8] sm:$0xff] %vm145, %v355
      %v359 = vmax.f32 %v344, -3.0
      %v360 = vmax.f32 %v345, -3.0
      %v361 = vmin.f32 %v359, 3.0
      %v362 = vmin.f32 %v360, 3.0
      %s363 = scalar_lea.vmem %s138, 32
      %364 = vst.msk [vmem:[%s363] sm:$0xff] %vm145, %v361
      %365 = vst.msk [vmem:[%s363 + $0x8] sm:$0xff] %vm145, %v362
      %v366 = vld [vmem:[%s165 + $0x1] sm:$0xff]
      %v367 = vld [vmem:[%s165 + $0x9] sm:$0xff]
      %v368 = vmul.f32 %v366, 0.047263015
      %v369 = vmul.f32 %v367, 0.047263015
      %v370 = vmul.f32 %v366, 0.051648322
      %v371 = vmul.f32 %v367, 0.051648322
      %v372 = vmul.f32 %v366, 0.11519388
      %v373 = vmul.f32 %v367, 0.11519388
      %v374 = vld [vmem:[%s184 + $0x1] sm:$0xff]
      %v375 = vld [vmem:[%s184 + $0x9] sm:$0xff]
      %v376 = vmul.f32 %v374, -0.08061747
      %v377 = vmul.f32 %v375, -0.08061747
      %v378 = vadd.f32 %v368, %v376
      %v379 = vadd.f32 %v369, %v377
      %v380 = vmul.f32 %v374, 0.10997742
      %v381 = vmul.f32 %v375, 0.10997742
      %v382 = vadd.f32 %v370, %v380
      %v383 = vadd.f32 %v371, %v381
      %v384 = vmul.f32 %v374, -0.14929546
      %v385 = vmul.f32 %v375, -0.14929546
      %v386 = vadd.f32 %v372, %v384
      %v387 = vadd.f32 %v373, %v385
      %v388 = vld [vmem:[%s203 + $0x1] sm:$0xff]
      %v389 = vld [vmem:[%s203 + $0x9] sm:$0xff]
      %v390 = vmul.f32 %v388, -0.00050765596
      %v391 = vmul.f32 %v389, -0.00050765596
      %v392 = vadd.f32 %v378, %v390
      %v393 = vadd.f32 %v379, %v391
      %v394 = vmul.f32 %v388, 0.052965473
      %v395 = vmul.f32 %v389, 0.052965473
      %v396 = vadd.f32 %v382, %v394
      %v397 = vadd.f32 %v383, %v395
      %v398 = vmul.f32 %v388, 0.036714632
      %v399 = vmul.f32 %v389, 0.036714632
      %v400 = vadd.f32 %v386, %v398
      %v401 = vadd.f32 %v387, %v399
      %v402 = vld [vmem:[%s165 + $0x2] sm:$0xff]
      %v403 = vld [vmem:[%s165 + $0xa] sm:$0xff]
      %v404 = vmul.f32 %v402, -0.1394522
      %v405 = vmul.f32 %v403, -0.1394522
      %v406 = vadd.f32 %v392, %v404
      %v407 = vadd.f32 %v393, %v405
      %v408 = vmul.f32 %v402, 0.03786108
      %v409 = vmul.f32 %v403, 0.03786108
      %v410 = vadd.f32 %v396, %v408
      %v411 = vadd.f32 %v397, %v409
      %v412 = vmul.f32 %v402, -0.12231681
      %v413 = vmul.f32 %v403, -0.12231681
      %v414 = vadd.f32 %v400, %v412
      %v415 = vadd.f32 %v401, %v413
      %v416 = vld [vmem:[%s184 + $0x2] sm:$0xff]
      %v417 = vld [vmem:[%s184 + $0xa] sm:$0xff]
      %v418 = vmul.f32 %v416, 0.09181806
      %v419 = vmul.f32 %v417, 0.09181806
      %v420 = vadd.f32 %v406, %v418
      %v421 = vadd.f32 %v407, %v419
      %v422 = vmul.f32 %v416, -0.08117003
      %v423 = vmul.f32 %v417, -0.08117003
      %v424 = vadd.f32 %v410, %v422
      %v425 = vadd.f32 %v411, %v423
      %v426 = vmul.f32 %v416, 0.042011913
      %v427 = vmul.f32 %v417, 0.042011913
      %v428 = vadd.f32 %v414, %v426
      %v429 = vadd.f32 %v415, %v427
      %v430 = vld [vmem:[%s203 + $0x2] sm:$0xff]
      %v431 = vld [vmem:[%s203 + $0xa] sm:$0xff]
      %v432 = vmul.f32 %v430, -0.059428114
      %v433 = vmul.f32 %v431, -0.059428114
      %v434 = vadd.f32 %v420, %v432
      %v435 = vadd.f32 %v421, %v433
      %v436 = vmul.f32 %v430, 0.0004605547
      %v437 = vmul.f32 %v431, 0.0004605547
      %v438 = vadd.f32 %v424, %v436
      %v439 = vadd.f32 %v425, %v437
      %v440 = vmul.f32 %v430, -0.016022226
      %v441 = vmul.f32 %v431, -0.016022226
      %v442 = vadd.f32 %v428, %v440
      %v443 = vadd.f32 %v429, %v441
      %v444 = vld [vmem:[%s165 + $0x3] sm:$0xff]
      %v445 = vld [vmem:[%s165 + $0xb] sm:$0xff]
      %v446 = vmul.f32 %v444, 0.007397697
      %v447 = vmul.f32 %v445, 0.007397697
      %v448 = vadd.f32 %v434, %v446
      %v449 = vadd.f32 %v435, %v447
      %v450 = vmul.f32 %v444, -0.00833938
      %v451 = vmul.f32 %v445, -0.00833938
      %v452 = vadd.f32 %v438, %v450
      %v453 = vadd.f32 %v439, %v451
      %v454 = vmul.f32 %v444, 0.06509969
      %v455 = vmul.f32 %v445, 0.06509969
      %v456 = vadd.f32 %v442, %v454
      %v457 = vadd.f32 %v443, %v455
      %v458 = vld [vmem:[%s184 + $0x3] sm:$0xff]
      %v459 = vld [vmem:[%s184 + $0xb] sm:$0xff]
      %v460 = vmul.f32 %v458, 0.005569199
      %v461 = vmul.f32 %v459, 0.005569199
      %v462 = vadd.f32 %v448, %v460
      %v463 = vadd.f32 %v449, %v461
      %v464 = vmul.f32 %v458, 0.12362847
      %v465 = vmul.f32 %v459, 0.12362847
      %v466 = vadd.f32 %v452, %v464
      %v467 = vadd.f32 %v453, %v465
      %v468 = vmul.f32 %v458, 0.11296913
      %v469 = vmul.f32 %v459, 0.11296913
      %v470 = vadd.f32 %v456, %v468
      %v471 = vadd.f32 %v457, %v469
      %v472 = vld [vmem:[%s203 + $0x3] sm:$0xff]
      %v473 = vld [vmem:[%s203 + $0xb] sm:$0xff]
      %v474 = vmul.f32 %v472, 0.007546656
      %v475 = vmul.f32 %v473, 0.007546656
      %v476 = vadd.f32 %v462, %v474
      %v477 = vadd.f32 %v463, %v475
      %v478 = vmul.f32 %v472, -0.027425244
      %v479 = vmul.f32 %v473, -0.027425244
      %v480 = vadd.f32 %v466, %v478
      %v481 = vadd.f32 %v467, %v479
      %v482 = vmul.f32 %v472, 0.008593322
      %v483 = vmul.f32 %v473, 0.008593322
      %v484 = vadd.f32 %v470, %v482
      %v485 = vadd.f32 %v471, %v483
      %v486 = vmax.f32 %v476, -3.0
      %v487 = vmax.f32 %v477, -3.0
      %v488 = vmin.f32 %v486, 3.0
      %v489 = vmin.f32 %v487, 3.0
      %s490 = scalar_lea.vmem %s138, 48
      %491 = vst.msk [vmem:[%s490] sm:$0xff] %vm145, %v488
      %492 = vst.msk [vmem:[%s490 + $0x8] sm:$0xff] %vm145, %v489
      %v493 = vmax.f32 %v480, -3.0
      %v494 = vmax.f32 %v481, -3.0
      %v495 = vmin.f32 %v493, 3.0
      %v496 = vmin.f32 %v494, 3.0
      %s497 = scalar_lea.vmem %s138, 64
      %498 = vst.msk [vmem:[%s497] sm:$0xff] %vm145, %v495
      %499 = vst.msk [vmem:[%s497 + $0x8] sm:$0xff] %vm145, %v496
      %v500 = vmax.f32 %v484, -3.0
      %v501 = vmax.f32 %v485, -3.0
      %v502 = vmin.f32 %v500, 3.0
      %v503 = vmin.f32 %v501, 3.0
      %s504 = scalar_lea.vmem %s138, 80
      %505 = vst.msk [vmem:[%s504] sm:$0xff] %vm145, %v502
      %506 = vst.msk [vmem:[%s504 + $0x8] sm:$0xff] %vm145, %v503
      %v507 = vld [vmem:[%s165 + $0x1] sm:$0xff]
      %v508 = vld [vmem:[%s165 + $0x9] sm:$0xff]
      %v509 = vmul.f32 %v507, -0.024307402
      %v510 = vmul.f32 %v508, -0.024307402
      %v511 = vmul.f32 %v507, 0.09093439
      %v512 = vmul.f32 %v508, 0.09093439
      %v513 = vmul.f32 %v507, -0.019971225
      %v514 = vmul.f32 %v508, -0.019971225
      %v515 = vld [vmem:[%s184 + $0x1] sm:$0xff]
      %v516 = vld [vmem:[%s184 + $0x9] sm:$0xff]
      %v517 = vmul.f32 %v515, -0.03883005
      %v518 = vmul.f32 %v516, -0.03883005
      %v519 = vadd.f32 %v509, %v517
      %v520 = vadd.f32 %v510, %v518
      %v521 = vmul.f32 %v515, 0.011117478
      %v522 = vmul.f32 %v516, 0.011117478
      %v523 = vadd.f32 %v511, %v521
      %v524 = vadd.f32 %v512, %v522
      %v525 = vmul.f32 %v515, -0.13901049
      %v526 = vmul.f32 %v516, -0.13901049
      %v527 = vadd.f32 %v513, %v525
      %v528 = vadd.f32 %v514, %v526
      %v529 = vld [vmem:[%s203 + $0x1] sm:$0xff]
      %v530 = vld [vmem:[%s203 + $0x9] sm:$0xff]
      %v531 = vmul.f32 %v529, 0.04396056
      %v532 = vmul.f32 %v530, 0.04396056
      %v533 = vadd.f32 %v519, %v531
      %v534 = vadd.f32 %v520, %v532
      %v535 = vmul.f32 %v529, 0.14300834
      %v536 = vmul.f32 %v530, 0.14300834
      %v537 = vadd.f32 %v523, %v535
      %v538 = vadd.f32 %v524, %v536
      %v539 = vmul.f32 %v529, -0.022433562
      %v540 = vmul.f32 %v530, -0.022433562
      %v541 = vadd.f32 %v527, %v539
      %v542 = vadd.f32 %v528, %v540
      %v543 = vld [vmem:[%s165 + $0x2] sm:$0xff]
      %v544 = vld [vmem:[%s165 + $0xa] sm:$0xff]
      %v545 = vmul.f32 %v543, 0.0526356
      %v546 = vmul.f32 %v544, 0.0526356
      %v547 = vadd.f32 %v533, %v545
      %v548 = vadd.f32 %v534, %v546
      %v549 = vmul.f32 %v543, 0.09214491
      %v550 = vmul.f32 %v544, 0.09214491
      %v551 = vadd.f32 %v537, %v549
      %v552 = vadd.f32 %v538, %v550
      %v553 = vmul.f32 %v543, 0.2995176
      %v554 = vmul.f32 %v544, 0.2995176
      %v555 = vadd.f32 %v541, %v553
      %v556 = vadd.f32 %v542, %v554
      %v557 = vld [vmem:[%s184 + $0x2] sm:$0xff]
      %v558 = vld [vmem:[%s184 + $0xa] sm:$0xff]
      %v559 = vmul.f32 %v557, -0.0766492
      %v560 = vmul.f32 %v558, -0.0766492
      %v561 = vadd.f32 %v547, %v559
      %v562 = vadd.f32 %v548, %v560
      %v563 = vmul.f32 %v557, -0.014931501
      %v564 = vmul.f32 %v558, -0.014931501
      %v565 = vadd.f32 %v551, %v563
      %v566 = vadd.f32 %v552, %v564
      %v567 = vmul.f32 %v557, 0.0186282
      %v568 = vmul.f32 %v558, 0.0186282
      %v569 = vadd.f32 %v555, %v567
      %v570 = vadd.f32 %v556, %v568
      %v571 = vld [vmem:[%s203 + $0x2] sm:$0xff]
      %v572 = vld [vmem:[%s203 + $0xa] sm:$0xff]
      %v573 = vmul.f32 %v571, 0.045462716
      %v574 = vmul.f32 %v572, 0.045462716
      %v575 = vadd.f32 %v561, %v573
      %v576 = vadd.f32 %v562, %v574
      %v577 = vmul.f32 %v571, -0.096760236
      %v578 = vmul.f32 %v572, -0.096760236
      %v579 = vadd.f32 %v565, %v577
      %v580 = vadd.f32 %v566, %v578
      %v581 = vmul.f32 %v571, -0.017054874
      %v582 = vmul.f32 %v572, -0.017054874
      %v583 = vadd.f32 %v569, %v581
      %v584 = vadd.f32 %v570, %v582
      %v585 = vld [vmem:[%s165 + $0x3] sm:$0xff]
      %v586 = vld [vmem:[%s165 + $0xb] sm:$0xff]
      %v587 = vmul.f32 %v585, -0.24557787
      %v588 = vmul.f32 %v586, -0.24557787
      %v589 = vadd.f32 %v575, %v587
      %v590 = vadd.f32 %v576, %v588
      %v591 = vmul.f32 %v585, 0.061870653
      %v592 = vmul.f32 %v586, 0.061870653
      %v593 = vadd.f32 %v579, %v591
      %v594 = vadd.f32 %v580, %v592
      %v595 = vmul.f32 %v585, 0.013812541
      %v596 = vmul.f32 %v586, 0.013812541
      %v597 = vadd.f32 %v583, %v595
      %v598 = vadd.f32 %v584, %v596
      %v599 = vld [vmem:[%s184 + $0x3] sm:$0xff]
      %v600 = vld [vmem:[%s184 + $0xb] sm:$0xff]
      %v601 = vmul.f32 %v599, 0.07679675
      %v602 = vmul.f32 %v600, 0.07679675
      %v603 = vadd.f32 %v589, %v601
      %v604 = vadd.f32 %v590, %v602
      %v605 = vmul.f32 %v599, 0.088148095
      %v606 = vmul.f32 %v600, 0.088148095
      %v607 = vadd.f32 %v593, %v605
      %v608 = vadd.f32 %v594, %v606
      %v609 = vmul.f32 %v599, -0.04668786
      %v610 = vmul.f32 %v600, -0.04668786
      %v611 = vadd.f32 %v597, %v609
      %v612 = vadd.f32 %v598, %v610
      %v613 = vld [vmem:[%s203 + $0x3] sm:$0xff]
      %v614 = vld [vmem:[%s203 + $0xb] sm:$0xff]
      %v615 = vmul.f32 %v613, 0.061005477
      %v616 = vmul.f32 %v614, 0.061005477
      %v617 = vadd.f32 %v603, %v615
      %v618 = vadd.f32 %v604, %v616
      %v619 = vmul.f32 %v613, 0.025665103
      %v620 = vmul.f32 %v614, 0.025665103
      %v621 = vadd.f32 %v607, %v619
      %v622 = vadd.f32 %v608, %v620
      %v623 = vmul.f32 %v613, -0.050703347
      %v624 = vmul.f32 %v614, -0.050703347
      %v625 = vadd.f32 %v611, %v623
      %v626 = vadd.f32 %v612, %v624
      %v627 = vmax.f32 %v617, -3.0
      %v628 = vmax.f32 %v618, -3.0
      %v629 = vmin.f32 %v627, 3.0
      %v630 = vmin.f32 %v628, 3.0
      %s631 = scalar_lea.vmem %s138, 96
      %632 = vst.msk [vmem:[%s631] sm:$0xff] %vm145, %v629
      %633 = vst.msk [vmem:[%s631 + $0x8] sm:$0xff] %vm145, %v630
      %v634 = vmax.f32 %v621, -3.0
      %v635 = vmax.f32 %v622, -3.0
      %v636 = vmin.f32 %v634, 3.0
      %v637 = vmin.f32 %v635, 3.0
      %s638 = scalar_lea.vmem %s138, 112
      %639 = vst.msk [vmem:[%s638] sm:$0xff] %vm145, %v636
      %640 = vst.msk [vmem:[%s638 + $0x8] sm:$0xff] %vm145, %v637
      %v641 = vmax.f32 %v625, -3.0
      %v642 = vmax.f32 %v626, -3.0
      %v643 = vmin.f32 %v641, 3.0
      %v644 = vmin.f32 %v642, 3.0
      %s645 = scalar_lea.vmem %s138, 128
      %646 = vst.msk [vmem:[%s645] sm:$0xff] %vm145, %v643
      %647 = vst.msk [vmem:[%s645 + $0x8] sm:$0xff] %vm145, %v644
      %v648 = vld [vmem:[%s165 + $0x1] sm:$0xff]
      %v649 = vld [vmem:[%s165 + $0x9] sm:$0xff]
      %v650 = vmul.f32 %v648, 0.13572387
      %v651 = vmul.f32 %v649, 0.13572387
      %v652 = vmul.f32 %v648, 0.009296437
      %v653 = vmul.f32 %v649, 0.009296437
      %v654 = vmul.f32 %v648, 0.12592578
      %v655 = vmul.f32 %v649, 0.12592578
      %v656 = vld [vmem:[%s184 + $0x1] sm:$0xff]
      %v657 = vld [vmem:[%s184 + $0x9] sm:$0xff]
      %v658 = vmul.f32 %v656, -0.030689234
      %v659 = vmul.f32 %v657, -0.030689234
      %v660 = vadd.f32 %v650, %v658
      %v661 = vadd.f32 %v651, %v659
      %v662 = vmul.f32 %v656, 0.066847645
      %v663 = vmul.f32 %v657, 0.066847645
      %v664 = vadd.f32 %v652, %v662
      %v665 = vadd.f32 %v653, %v663
      %v666 = vmul.f32 %v656, 0.10673838
      %v667 = vmul.f32 %v657, 0.10673838
      %v668 = vadd.f32 %v654, %v666
      %v669 = vadd.f32 %v655, %v667
      %v670 = vld [vmem:[%s203 + $0x1] sm:$0xff]
      %v671 = vld [vmem:[%s203 + $0x9] sm:$0xff]
      %v672 = vmul.f32 %v670, 0.07163016
      %v673 = vmul.f32 %v671, 0.07163016
      %v674 = vadd.f32 %v660, %v672
      %v675 = vadd.f32 %v661, %v673
      %v676 = vmul.f32 %v670, 0.043945823
      %v677 = vmul.f32 %v671, 0.043945823
      %v678 = vadd.f32 %v664, %v676
      %v679 = vadd.f32 %v665, %v677
      %v680 = vmul.f32 %v670, -0.0925029
      %v681 = vmul.f32 %v671, -0.0925029
      %v682 = vadd.f32 %v668, %v680
      %v683 = vadd.f32 %v669, %v681
      %v684 = vld [vmem:[%s165 + $0x2] sm:$0xff]
      %v685 = vld [vmem:[%s165 + $0xa] sm:$0xff]
      %v686 = vmul.f32 %v684, 0.019893007
      %v687 = vmul.f32 %v685, 0.019893007
      %v688 = vadd.f32 %v674, %v686
      %v689 = vadd.f32 %v675, %v687
      %v690 = vmul.f32 %v684, 0.08009176
      %v691 = vmul.f32 %v685, 0.08009176
      %v692 = vadd.f32 %v678, %v690
      %v693 = vadd.f32 %v679, %v691
      %v694 = vmul.f32 %v684, -0.032558147
      %v695 = vmul.f32 %v685, -0.032558147
      %v696 = vadd.f32 %v682, %v694
      %v697 = vadd.f32 %v683, %v695
      %v698 = vld [vmem:[%s184 + $0x2] sm:$0xff]
      %v699 = vld [vmem:[%s184 + $0xa] sm:$0xff]
      %v700 = vmul.f32 %v698, 0.033989634
      %v701 = vmul.f32 %v699, 0.033989634
      %v702 = vadd.f32 %v688, %v700
      %v703 = vadd.f32 %v689, %v701
      %v704 = vmul.f32 %v698, 0.043906625
      %v705 = vmul.f32 %v699, 0.043906625
      %v706 = vadd.f32 %v692, %v704
      %v707 = vadd.f32 %v693, %v705
      %v708 = vmul.f32 %v698, -0.040378924
      %v709 = vmul.f32 %v699, -0.040378924
      %v710 = vadd.f32 %v696, %v708
      %v711 = vadd.f32 %v697, %v709
      %v712 = vld [vmem:[%s203 + $0x2] sm:$0xff]
      %v713 = vld [vmem:[%s203 + $0xa] sm:$0xff]
      %v714 = vmul.f32 %v712, 0.0549172
      %v715 = vmul.f32 %v713, 0.0549172
      %v716 = vadd.f32 %v702, %v714
      %v717 = vadd.f32 %v703, %v715
      %v718 = vmul.f32 %v712, -0.05675297
      %v719 = vmul.f32 %v713, -0.05675297
      %v720 = vadd.f32 %v706, %v718
      %v721 = vadd.f32 %v707, %v719
      %v722 = vmul.f32 %v712, -0.086628996
      %v723 = vmul.f32 %v713, -0.086628996
      %v724 = vadd.f32 %v710, %v722
      %v725 = vadd.f32 %v711, %v723
      %v726 = vld [vmem:[%s165 + $0x3] sm:$0xff]
      %v727 = vld [vmem:[%s165 + $0xb] sm:$0xff]
      %v728 = vmul.f32 %v726, 0.060376693
      %v729 = vmul.f32 %v727, 0.060376693
      %v730 = vadd.f32 %v716, %v728
      %v731 = vadd.f32 %v717, %v729
      %v732 = vmul.f32 %v726, -0.1146405
      %v733 = vmul.f32 %v727, -0.1146405
      %v734 = vadd.f32 %v720, %v732
      %v735 = vadd.f32 %v721, %v733
      %v736 = vmul.f32 %v726, -0.06545187
      %v737 = vmul.f32 %v727, -0.06545187
      %v738 = vadd.f32 %v724, %v736
      %v739 = vadd.f32 %v725, %v737
      %v740 = vld [vmem:[%s184 + $0x3] sm:$0xff]
      %v741 = vld [vmem:[%s184 + $0xb] sm:$0xff]
      %v742 = vmul.f32 %v740, 0.004797214
      %v743 = vmul.f32 %v741, 0.004797214
      %v744 = vadd.f32 %v730, %v742
      %v745 = vadd.f32 %v731, %v743
      %v746 = vmul.f32 %v740, 0.024062186
      %v747 = vmul.f32 %v741, 0.024062186
      %v748 = vadd.f32 %v734, %v746
      %v749 = vadd.f32 %v735, %v747
      %v750 = vmul.f32 %v740, -0.054039937
      %v751 = vmul.f32 %v741, -0.054039937
      %v752 = vadd.f32 %v738, %v750
      %v753 = vadd.f32 %v739, %v751
      %v754 = vld [vmem:[%s203 + $0x3] sm:$0xff]
      %v755 = vld [vmem:[%s203 + $0xb] sm:$0xff]
      %v756 = vmul.f32 %v754, 0.027045883
      %v757 = vmul.f32 %v755, 0.027045883
      %v758 = vadd.f32 %v744, %v756
      %v759 = vadd.f32 %v745, %v757
      %v760 = vmul.f32 %v754, -0.038714755
      %v761 = vmul.f32 %v755, -0.038714755
      %v762 = vadd.f32 %v748, %v760
      %v763 = vadd.f32 %v749, %v761
      %v764 = vmul.f32 %v754, -0.013435348
      %v765 = vmul.f32 %v755, -0.013435348
      %v766 = vadd.f32 %v752, %v764
      %v767 = vadd.f32 %v753, %v765
      %v768 = vmax.f32 %v758, -3.0
      %v769 = vmax.f32 %v759, -3.0
      %v770 = vmin.f32 %v768, 3.0
      %v771 = vmin.f32 %v769, 3.0
      %s772 = scalar_lea.vmem %s138, 144
      %773 = vst.msk [vmem:[%s772] sm:$0xff] %vm145, %v770
      %774 = vst.msk [vmem:[%s772 + $0x8] sm:$0xff] %vm145, %v771
      %v775 = vmax.f32 %v762, -3.0
      %v776 = vmax.f32 %v763, -3.0
      %v777 = vmin.f32 %v775, 3.0
      %v778 = vmin.f32 %v776, 3.0
      %s779 = scalar_lea.vmem %s138, 160
      %780 = vst.msk [vmem:[%s779] sm:$0xff] %vm145, %v777
      %781 = vst.msk [vmem:[%s779 + $0x8] sm:$0xff] %vm145, %v778
      %v782 = vmax.f32 %v766, -3.0
      %v783 = vmax.f32 %v767, -3.0
      %v784 = vmin.f32 %v782, 3.0
      %v785 = vmin.f32 %v783, 3.0
      %s786 = scalar_lea.vmem %s138, 176
      %787 = vst.msk [vmem:[%s786] sm:$0xff] %vm145, %v784
      %788 = vst.msk [vmem:[%s786 + $0x8] sm:$0xff] %vm145, %v785
      %v789 = vld [vmem:[%s165 + $0x1] sm:$0xff]
      %v790 = vld [vmem:[%s165 + $0x9] sm:$0xff]
      %v791 = vmul.f32 %v789, -0.009125558
      %v792 = vmul.f32 %v790, -0.009125558
      %v793 = vmul.f32 %v789, 0.016651493
      %v794 = vmul.f32 %v790, 0.016651493
      %v795 = vmul.f32 %v789, 0.031105638
      %v796 = vmul.f32 %v790, 0.031105638
      %v797 = vld [vmem:[%s184 + $0x1] sm:$0xff]
      %v798 = vld [vmem:[%s184 + $0x9] sm:$0xff]
      %v799 = vmul.f32 %v797, -0.00090917636
      %v800 = vmul.f32 %v798, -0.00090917636
      %v801 = vadd.f32 %v791, %v799
      %v802 = vadd.f32 %v792, %v800
      %v803 = vmul.f32 %v797, -0.013243484
      %v804 = vmul.f32 %v798, -0.013243484
      %v805 = vadd.f32 %v793, %v803
      %v806 = vadd.f32 %v794, %v804
      %v807 = vmul.f32 %v797, 0.08222511
      %v808 = vmul.f32 %v798, 0.08222511
      %v809 = vadd.f32 %v795, %v807
      %v810 = vadd.f32 %v796, %v808
      %v811 = vld [vmem:[%s203 + $0x1] sm:$0xff]
      %v812 = vld [vmem:[%s203 + $0x9] sm:$0xff]
      %v813 = vmul.f32 %v811, -0.09167392
      %v814 = vmul.f32 %v812, -0.09167392
      %v815 = vadd.f32 %v801, %v813
      %v816 = vadd.f32 %v802, %v814
      %v817 = vmul.f32 %v811, -0.07229877
      %v818 = vmul.f32 %v812, -0.07229877
      %v819 = vadd.f32 %v805, %v817
      %v820 = vadd.f32 %v806, %v818
      %v821 = vmul.f32 %v811, 0.09382111
      %v822 = vmul.f32 %v812, 0.09382111
      %v823 = vadd.f32 %v809, %v821
      %v824 = vadd.f32 %v810, %v822
      %v825 = vld [vmem:[%s165 + $0x2] sm:$0xff]
      %v826 = vld [vmem:[%s165 + $0xa] sm:$0xff]
      %v827 = vmul.f32 %v825, -0.065618776
      %v828 = vmul.f32 %v826, -0.065618776
      %v829 = vadd.f32 %v815, %v827
      %v830 = vadd.f32 %v816, %v828
      %v831 = vmul.f32 %v825, -0.22453247
      %v832 = vmul.f32 %v826, -0.22453247
      %v833 = vadd.f32 %v819, %v831
      %v834 = vadd.f32 %v820, %v832
      %v835 = vmul.f32 %v825, 0.0018000733
      %v836 = vmul.f32 %v826, 0.0018000733
      %v837 = vadd.f32 %v823, %v835
      %v838 = vadd.f32 %v824, %v836
      %v839 = vld [vmem:[%s184 + $0x2] sm:$0xff]
      %v840 = vld [vmem:[%s184 + $0xa] sm:$0xff]
      %v841 = vmul.f32 %v839, -0.05646828
      %v842 = vmul.f32 %v840, -0.05646828
      %v843 = vadd.f32 %v829, %v841
      %v844 = vadd.f32 %v830, %v842
      %v845 = vmul.f32 %v839, 0.09017239
      %v846 = vmul.f32 %v840, 0.09017239
      %v847 = vadd.f32 %v833, %v845
      %v848 = vadd.f32 %v834, %v846
      %v849 = vmul.f32 %v839, -0.035133254
      %v850 = vmul.f32 %v840, -0.035133254
      %v851 = vadd.f32 %v837, %v849
      %v852 = vadd.f32 %v838, %v850
      %v853 = vld [vmem:[%s203 + $0x2] sm:$0xff]
      %v854 = vld [vmem:[%s203 + $0xa] sm:$0xff]
      %v855 = vmul.f32 %v853, 0.010417741
      %v856 = vmul.f32 %v854, 0.010417741
      %v857 = vadd.f32 %v843, %v855
      %v858 = vadd.f32 %v844, %v856
      %v859 = vmul.f32 %v853, 0.15504189
      %v860 = vmul.f32 %v854, 0.15504189
      %v861 = vadd.f32 %v847, %v859
      %v862 = vadd.f32 %v848, %v860
      %v863 = vmul.f32 %v853, 0.1495276
      %v864 = vmul.f32 %v854, 0.1495276
      %v865 = vadd.f32 %v851, %v863
      %v866 = vadd.f32 %v852, %v864
      %v867 = vld [vmem:[%s165 + $0x3] sm:$0xff]
      %v868 = vld [vmem:[%s165 + $0xb] sm:$0xff]
      %v869 = vmul.f32 %v867, 0.043589305
      %v870 = vmul.f32 %v868, 0.043589305
      %v871 = vadd.f32 %v857, %v869
      %v872 = vadd.f32 %v858, %v870
      %v873 = vmul.f32 %v867, 0.026315076
      %v874 = vmul.f32 %v868, 0.026315076
      %v875 = vadd.f32 %v861, %v873
      %v876 = vadd.f32 %v862, %v874
      %v877 = vmul.f32 %v867, -0.17168541
      %v878 = vmul.f32 %v868, -0.17168541
      %v879 = vadd.f32 %v865, %v877
      %v880 = vadd.f32 %v866, %v878
      %v881 = vld [vmem:[%s184 + $0x3] sm:$0xff]
      %v882 = vld [vmem:[%s184 + $0xb] sm:$0xff]
      %v883 = vmul.f32 %v881, -0.05772567
      %v884 = vmul.f32 %v882, -0.05772567
      %v885 = vadd.f32 %v871, %v883
      %v886 = vadd.f32 %v872, %v884
      %v887 = vmul.f32 %v881, -0.110576384
      %v888 = vmul.f32 %v882, -0.110576384
      %v889 = vadd.f32 %v875, %v887
      %v890 = vadd.f32 %v876, %v888
      %v891 = vmul.f32 %v881, 0.023328798
      %v892 = vmul.f32 %v882, 0.023328798
      %v893 = vadd.f32 %v879, %v891
      %v894 = vadd.f32 %v880, %v892
      %v895 = vld [vmem:[%s203 + $0x3] sm:$0xff]
      %v896 = vld [vmem:[%s203 + $0xb] sm:$0xff]
      %v897 = vmul.f32 %v895, -0.045782167
      %v898 = vmul.f32 %v896, -0.045782167
      %v899 = vadd.f32 %v885, %v897
      %v900 = vadd.f32 %v886, %v898
      %v901 = vmul.f32 %v895, 0.020685501
      %v902 = vmul.f32 %v896, 0.020685501
      %v903 = vadd.f32 %v889, %v901
      %v904 = vadd.f32 %v890, %v902
      %v905 = vmul.f32 %v895, -0.007111709
      %v906 = vmul.f32 %v896, -0.007111709
      %v907 = vadd.f32 %v893, %v905
      %v908 = vadd.f32 %v894, %v906
      %v909 = vmax.f32 %v899, -3.0
      %v910 = vmax.f32 %v900, -3.0
      %v911 = vmin.f32 %v909, 3.0
      %v912 = vmin.f32 %v910, 3.0
      %s913 = scalar_lea.vmem %s138, 192
      %914 = vst.msk [vmem:[%s913] sm:$0xff] %vm145, %v911
      %915 = vst.msk [vmem:[%s913 + $0x8] sm:$0xff] %vm145, %v912
      %v916 = vmax.f32 %v903, -3.0
      %v917 = vmax.f32 %v904, -3.0
      %v918 = vmin.f32 %v916, 3.0
      %v919 = vmin.f32 %v917, 3.0
      %s920 = scalar_lea.vmem %s138, 208
      %921 = vst.msk [vmem:[%s920] sm:$0xff] %vm145, %v918
      %922 = vst.msk [vmem:[%s920 + $0x8] sm:$0xff] %vm145, %v919
      %v923 = vmax.f32 %v907, -3.0
      %v924 = vmax.f32 %v908, -3.0
      %v925 = vmin.f32 %v923, 3.0
      %v926 = vmin.f32 %v924, 3.0
      %s927 = scalar_lea.vmem %s138, 224
      %928 = vst.msk [vmem:[%s927] sm:$0xff] %vm145, %v925
      %929 = vst.msk [vmem:[%s927 + $0x8] sm:$0xff] %vm145, %v926
      %v930 = vld [vmem:[#allocation2] sm:$0xff]
      %v931 = vld [vmem:[#allocation2 + $0x8] sm:$0xff]
      %v932 = vmul.f32 %v930, 0.14167008
      %v933 = vmul.f32 %v931, 0.14167008
      %v934 = vmul.f32 %v930, -0.14063306
      %v935 = vmul.f32 %v931, -0.14063306
      %v936 = vmul.f32 %v930, 0.063558854
      %v937 = vmul.f32 %v931, 0.063558854
      %v938 = vld [vmem:[%s165] sm:$0xff]
      %v939 = vld [vmem:[%s165 + $0x8] sm:$0xff]
      %v940 = vmul.f32 %v938, -0.10975375
      %v941 = vmul.f32 %v939, -0.10975375
      %v942 = vadd.f32 %v932, %v940
      %v943 = vadd.f32 %v933, %v941
      %v944 = vmul.f32 %v938, 0.018177057
      %v945 = vmul.f32 %v939, 0.018177057
      %v946 = vadd.f32 %v934, %v944
      %v947 = vadd.f32 %v935, %v945
      %v948 = vmul.f32 %v938, 0.029915152
      %v949 = vmul.f32 %v939, 0.029915152
      %v950 = vadd.f32 %v936, %v948
      %v951 = vadd.f32 %v937, %v949
      %v952 = vld [vmem:[%s184] sm:$0xff]
      %v953 = vld [vmem:[%s184 + $0x8] sm:$0xff]
      %v954 = vmul.f32 %v952, -0.020921214
      %v955 = vmul.f32 %v953, -0.020921214
      %v956 = vadd.f32 %v942, %v954
      %v957 = vadd.f32 %v943, %v955
      %v958 = vmul.f32 %v952, 0.10314111
      %v959 = vmul.f32 %v953, 0.10314111
      %v960 = vadd.f32 %v946, %v958
      %v961 = vadd.f32 %v947, %v959
      %v962 = vmul.f32 %v952, -0.005659334
      %v963 = vmul.f32 %v953, -0.005659334
      %v964 = vadd.f32 %v950, %v962
      %v965 = vadd.f32 %v951, %v963
      %v966 = vld [vmem:[%s203] sm:$0xff]
      %v967 = vld [vmem:[%s203 + $0x8] sm:$0xff]
      %v968 = vmul.f32 %v966, 0.12543489
      %v969 = vmul.f32 %v967, 0.12543489
      %v970 = vadd.f32 %v956, %v968
      %v971 = vadd.f32 %v957, %v969
      %v972 = vmul.f32 %v966, -0.13570628
      %v973 = vmul.f32 %v967, -0.13570628
      %v974 = vadd.f32 %v960, %v972
      %v975 = vadd.f32 %v961, %v973
      %v976 = vmul.f32 %v966, 0.041318297
      %v977 = vmul.f32 %v967, 0.041318297
      %v978 = vadd.f32 %v964, %v976
      %v979 = vadd.f32 %v965, %v977
      %v980 = vld [vmem:[%s222] sm:$0xff]
      %v981 = vld [vmem:[%s222 + $0x8] sm:$0xff]
      %v982 = vmul.f32 %v980, 0.03577546
      %v983 = vmul.f32 %v981, 0.03577546
      %v984 = vadd.f32 %v970, %v982
      %v985 = vadd.f32 %v971, %v983
      %v986 = vmul.f32 %v980, 0.04665266
      %v987 = vmul.f32 %v981, 0.04665266
      %v988 = vadd.f32 %v974, %v986
      %v989 = vadd.f32 %v975, %v987
      %v990 = vmul.f32 %v980, 0.085179694
      %v991 = vmul.f32 %v981, 0.085179694
      %v992 = vadd.f32 %v978, %v990
      %v993 = vadd.f32 %v979, %v991
      %v994 = vld [vmem:[#allocation2 + $0x1] sm:$0xff]
      %v995 = vld [vmem:[#allocation2 + $0x9] sm:$0xff]
      %v996 = vmul.f32 %v994, 0.071002
      %v997 = vmul.f32 %v995, 0.071002
      %v998 = vadd.f32 %v984, %v996
      %v999 = vadd.f32 %v985, %v997
      %v1000 = vmul.f32 %v994, -0.08775913
      %v1001 = vmul.f32 %v995, -0.08775913
      %v1002 = vadd.f32 %v988, %v1000
      %v1003 = vadd.f32 %v989, %v1001
      %v1004 = vmul.f32 %v994, -0.03928475
      %v1005 = vmul.f32 %v995, -0.03928475
      %v1006 = vadd.f32 %v992, %v1004
      %v1007 = vadd.f32 %v993, %v1005
      %v1008 = vld [vmem:[%s165 + $0x1] sm:$0xff]
      %v1009 = vld [vmem:[%s165 + $0x9] sm:$0xff]
      %v1010 = vmul.f32 %v1008, 0.018773044
      %v1011 = vmul.f32 %v1009, 0.018773044
      %v1012 = vadd.f32 %v998, %v1010
      %v1013 = vadd.f32 %v999, %v1011
      %v1014 = vmul.f32 %v1008, -0.023492418
      %v1015 = vmul.f32 %v1009, -0.023492418
      %v1016 = vadd.f32 %v1002, %v1014
      %v1017 = vadd.f32 %v1003, %v1015
      %v1018 = vmul.f32 %v1008, 0.14584078
      %v1019 = vmul.f32 %v1009, 0.14584078
      %v1020 = vadd.f32 %v1006, %v1018
      %v1021 = vadd.f32 %v1007, %v1019
      %v1022 = vld [vmem:[%s184 + $0x1] sm:$0xff]
      %v1023 = vld [vmem:[%s184 + $0x9] sm:$0xff]
      %v1024 = vmul.f32 %v1022, 0.009752105
      %v1025 = vmul.f32 %v1023, 0.009752105
      %v1026 = vadd.f32 %v1012, %v1024
      %v1027 = vadd.f32 %v1013, %v1025
      %v1028 = vmul.f32 %v1022, 0.011831182
      %v1029 = vmul.f32 %v1023, 0.011831182
      %v1030 = vadd.f32 %v1016, %v1028
      %v1031 = vadd.f32 %v1017, %v1029
      %v1032 = vmul.f32 %v1022, 0.11027866
      %v1033 = vmul.f32 %v1023, 0.11027866
      %v1034 = vadd.f32 %v1020, %v1032
      %v1035 = vadd.f32 %v1021, %v1033
      %v1036 = vld [vmem:[%s203 + $0x1] sm:$0xff]
      %v1037 = vld [vmem:[%s203 + $0x9] sm:$0xff]
      %v1038 = vmul.f32 %v1036, 0.034773696
      %v1039 = vmul.f32 %v1037, 0.034773696
      %v1040 = vadd.f32 %v1026, %v1038
      %v1041 = vadd.f32 %v1027, %v1039
      %v1042 = vmul.f32 %v1036, 0.0626698
      %v1043 = vmul.f32 %v1037, 0.0626698
      %v1044 = vadd.f32 %v1030, %v1042
      %v1045 = vadd.f32 %v1031, %v1043
      %v1046 = vmul.f32 %v1036, -0.07306919
      %v1047 = vmul.f32 %v1037, -0.07306919
      %v1048 = vadd.f32 %v1034, %v1046
      %v1049 = vadd.f32 %v1035, %v1047
      %v1050 = vld [vmem:[%s222 + $0x1] sm:$0xff]
      %v1051 = vld [vmem:[%s222 + $0x9] sm:$0xff]
      %v1052 = vmul.f32 %v1050, 0.012852038
      %v1053 = vmul.f32 %v1051, 0.012852038
      %v1054 = vadd.f32 %v1040, %v1052
      %v1055 = vadd.f32 %v1041, %v1053
      %v1056 = vmul.f32 %v1050, -0.022772508
      %v1057 = vmul.f32 %v1051, -0.022772508
      %v1058 = vadd.f32 %v1044, %v1056
      %v1059 = vadd.f32 %v1045, %v1057
      %v1060 = vmul.f32 %v1050, 0.115173034
      %v1061 = vmul.f32 %v1051, 0.115173034
      %v1062 = vadd.f32 %v1048, %v1060
      %v1063 = vadd.f32 %v1049, %v1061
      %v1064 = vld [vmem:[#allocation2 + $0x2] sm:$0xff]
      %v1065 = vld [vmem:[#allocation2 + $0xa] sm:$0xff]
      %v1066 = vmul.f32 %v1064, -0.11250866
      %v1067 = vmul.f32 %v1065, -0.11250866
      %v1068 = vadd.f32 %v1054, %v1066
      %v1069 = vadd.f32 %v1055, %v1067
      %v1070 = vmul.f32 %v1064, -0.03682328
      %v1071 = vmul.f32 %v1065, -0.03682328
      %v1072 = vadd.f32 %v1058, %v1070
      %v1073 = vadd.f32 %v1059, %v1071
      %v1074 = vmul.f32 %v1064, -0.14617877
      %v1075 = vmul.f32 %v1065, -0.14617877
      %v1076 = vadd.f32 %v1062, %v1074
      %v1077 = vadd.f32 %v1063, %v1075
      %v1078 = vld [vmem:[%s165 + $0x2] sm:$0xff]
      %v1079 = vld [vmem:[%s165 + $0xa] sm:$0xff]
      %v1080 = vmul.f32 %v1078, -0.10774959
      %v1081 = vmul.f32 %v1079, -0.10774959
      %v1082 = vadd.f32 %v1068, %v1080
      %v1083 = vadd.f32 %v1069, %v1081
      %v1084 = vmul.f32 %v1078, -0.12812698
      %v1085 = vmul.f32 %v1079, -0.12812698
      %v1086 = vadd.f32 %v1072, %v1084
      %v1087 = vadd.f32 %v1073, %v1085
      %v1088 = vmul.f32 %v1078, -0.04596303
      %v1089 = vmul.f32 %v1079, -0.04596303
      %v1090 = vadd.f32 %v1076, %v1088
      %v1091 = vadd.f32 %v1077, %v1089
      %v1092 = vld [vmem:[%s184 + $0x2] sm:$0xff]
      %v1093 = vld [vmem:[%s184 + $0xa] sm:$0xff]
      %v1094 = vmul.f32 %v1092, 0.2032982
      %v1095 = vmul.f32 %v1093, 0.2032982
      %v1096 = vadd.f32 %v1082, %v1094
      %v1097 = vadd.f32 %v1083, %v1095
      %v1098 = vmul.f32 %v1092, 0.03864502
      %v1099 = vmul.f32 %v1093, 0.03864502
      %v1100 = vadd.f32 %v1086, %v1098
      %v1101 = vadd.f32 %v1087, %v1099
      %v1102 = vmul.f32 %v1092, -0.017046127
      %v1103 = vmul.f32 %v1093, -0.017046127
      %v1104 = vadd.f32 %v1090, %v1102
      %v1105 = vadd.f32 %v1091, %v1103
      %v1106 = vld [vmem:[%s203 + $0x2] sm:$0xff]
      %v1107 = vld [vmem:[%s203 + $0xa] sm:$0xff]
      %v1108 = vmul.f32 %v1106, 0.08977375
      %v1109 = vmul.f32 %v1107, 0.08977375
      %v1110 = vadd.f32 %v1096, %v1108
      %v1111 = vadd.f32 %v1097, %v1109
      %v1112 = vmul.f32 %v1106, -0.06135774
      %v1113 = vmul.f32 %v1107, -0.06135774
      %v1114 = vadd.f32 %v1100, %v1112
      %v1115 = vadd.f32 %v1101, %v1113
      %v1116 = vmul.f32 %v1106, -0.13998048
      %v1117 = vmul.f32 %v1107, -0.13998048
      %v1118 = vadd.f32 %v1104, %v1116
      %v1119 = vadd.f32 %v1105, %v1117
      %v1120 = vld [vmem:[%s222 + $0x2] sm:$0xff]
      %v1121 = vld [vmem:[%s222 + $0xa] sm:$0xff]
      %v1122 = vmul.f32 %v1120, -0.016096251
      %v1123 = vmul.f32 %v1121, -0.016096251
      %v1124 = vadd.f32 %v1110, %v1122
      %v1125 = vadd.f32 %v1111, %v1123
      %v1126 = vmul.f32 %v1120, 0.031322047
      %v1127 = vmul.f32 %v1121, 0.031322047
      %v1128 = vadd.f32 %v1114, %v1126
      %v1129 = vadd.f32 %v1115, %v1127
      %v1130 = vmul.f32 %v1120, 0.12622358
      %v1131 = vmul.f32 %v1121, 0.12622358
      %v1132 = vadd.f32 %v1118, %v1130
      %v1133 = vadd.f32 %v1119, %v1131
      %v1134 = vld [vmem:[#allocation2 + $0x3] sm:$0xff]
      %v1135 = vld [vmem:[#allocation2 + $0xb] sm:$0xff]
      %v1136 = vmul.f32 %v1134, 0.21222939
      %v1137 = vmul.f32 %v1135, 0.21222939
      %v1138 = vadd.f32 %v1124, %v1136
      %v1139 = vadd.f32 %v1125, %v1137
      %v1140 = vmul.f32 %v1134, -0.16538167
      %v1141 = vmul.f32 %v1135, -0.16538167
      %v1142 = vadd.f32 %v1128, %v1140
      %v1143 = vadd.f32 %v1129, %v1141
      %v1144 = vmul.f32 %v1134, -0.014304176
      %v1145 = vmul.f32 %v1135, -0.014304176
      %v1146 = vadd.f32 %v1132, %v1144
      %v1147 = vadd.f32 %v1133, %v1145
      %v1148 = vld [vmem:[%s165 + $0x3] sm:$0xff]
      %v1149 = vld [vmem:[%s165 + $0xb] sm:$0xff]
      %v1150 = vmul.f32 %v1148, 0.07158855
      %v1151 = vmul.f32 %v1149, 0.07158855
      %v1152 = vadd.f32 %v1138, %v1150
      %v1153 = vadd.f32 %v1139, %v1151
      %v1154 = vmul.f32 %v1148, -0.15669368
      %v1155 = vmul.f32 %v1149, -0.15669368
      %v1156 = vadd.f32 %v1142, %v1154
      %v1157 = vadd.f32 %v1143, %v1155
      %v1158 = vmul.f32 %v1148, -0.069710426
      %v1159 = vmul.f32 %v1149, -0.069710426
      %v1160 = vadd.f32 %v1146, %v1158
      %v1161 = vadd.f32 %v1147, %v1159
      %v1162 = vld [vmem:[%s184 + $0x3] sm:$0xff]
      %v1163 = vld [vmem:[%s184 + $0xb] sm:$0xff]
      %v1164 = vmul.f32 %v1162, -0.13779612
      %v1165 = vmul.f32 %v1163, -0.13779612
      %v1166 = vadd.f32 %v1152, %v1164
      %v1167 = vadd.f32 %v1153, %v1165
      %v1168 = vmul.f32 %v1162, -0.0026175063
      %v1169 = vmul.f32 %v1163, -0.0026175063
      %v1170 = vadd.f32 %v1156, %v1168
      %v1171 = vadd.f32 %v1157, %v1169
      %v1172 = vmul.f32 %v1162, -0.12132686
      %v1173 = vmul.f32 %v1163, -0.12132686
      %v1174 = vadd.f32 %v1160, %v1172
      %v1175 = vadd.f32 %v1161, %v1173
      %v1176 = vld [vmem:[%s203 + $0x3] sm:$0xff]
      %v1177 = vld [vmem:[%s203 + $0xb] sm:$0xff]
      %v1178 = vmul.f32 %v1176, 0.093123145
      %v1179 = vmul.f32 %v1177, 0.093123145
      %v1180 = vadd.f32 %v1166, %v1178
      %v1181 = vadd.f32 %v1167, %v1179
      %v1182 = vmul.f32 %v1176, -0.056685135
      %v1183 = vmul.f32 %v1177, -0.056685135
      %v1184 = vadd.f32 %v1170, %v1182
      %v1185 = vadd.f32 %v1171, %v1183
      %v1186 = vmul.f32 %v1176, 0.015862947
      %v1187 = vmul.f32 %v1177, 0.015862947
      %v1188 = vadd.f32 %v1174, %v1186
      %v1189 = vadd.f32 %v1175, %v1187
      %v1190 = vld [vmem:[%s222 + $0x3] sm:$0xff]
      %v1191 = vld [vmem:[%s222 + $0xb] sm:$0xff]
      %v1192 = vmul.f32 %v1190, 0.040501077
      %v1193 = vmul.f32 %v1191, 0.040501077
      %v1194 = vadd.f32 %v1180, %v1192
      %v1195 = vadd.f32 %v1181, %v1193
      %v1196 = vmul.f32 %v1190, -0.05842289
      %v1197 = vmul.f32 %v1191, -0.05842289
      %v1198 = vadd.f32 %v1184, %v1196
      %v1199 = vadd.f32 %v1185, %v1197
      %v1200 = vmul.f32 %v1190, 0.093092345
      %v1201 = vmul.f32 %v1191, 0.093092345
      %v1202 = vadd.f32 %v1188, %v1200
      %v1203 = vadd.f32 %v1189, %v1201
      %v1204 = vld [vmem:[#allocation2 + $0x4] sm:$0xff]
      %v1205 = vld [vmem:[#allocation2 + $0xc] sm:$0xff]
      %v1206 = vmul.f32 %v1204, 0.034492504
      %v1207 = vmul.f32 %v1205, 0.034492504
      %v1208 = vadd.f32 %v1194, %v1206
      %v1209 = vadd.f32 %v1195, %v1207
      %v1210 = vmul.f32 %v1204, -0.19518693
      %v1211 = vmul.f32 %v1205, -0.19518693
      %v1212 = vadd.f32 %v1198, %v1210
      %v1213 = vadd.f32 %v1199, %v1211
      %v1214 = vmul.f32 %v1204, -0.05046031
      %v1215 = vmul.f32 %v1205, -0.05046031
      %v1216 = vadd.f32 %v1202, %v1214
      %v1217 = vadd.f32 %v1203, %v1215
      %v1218 = vld [vmem:[%s165 + $0x4] sm:$0xff]
      %v1219 = vld [vmem:[%s165 + $0xc] sm:$0xff]
      %v1220 = vmul.f32 %v1218, -0.08493938
      %v1221 = vmul.f32 %v1219, -0.08493938
      %v1222 = vadd.f32 %v1208, %v1220
      %v1223 = vadd.f32 %v1209, %v1221
      %v1224 = vmul.f32 %v1218, -0.00014616338
      %v1225 = vmul.f32 %v1219, -0.00014616338
      %v1226 = vadd.f32 %v1212, %v1224
      %v1227 = vadd.f32 %v1213, %v1225
      %v1228 = vmul.f32 %v1218, 0.087817274
      %v1229 = vmul.f32 %v1219, 0.087817274
      %v1230 = vadd.f32 %v1216, %v1228
      %v1231 = vadd.f32 %v1217, %v1229
      %v1232 = vld [vmem:[%s184 + $0x4] sm:$0xff]
      %v1233 = vld [vmem:[%s184 + $0xc] sm:$0xff]
      %v1234 = vmul.f32 %v1232, -0.034650955
      %v1235 = vmul.f32 %v1233, -0.034650955
      %v1236 = vadd.f32 %v1222, %v1234
      %v1237 = vadd.f32 %v1223, %v1235
      %v1238 = vmul.f32 %v1232, 0.008307735
      %v1239 = vmul.f32 %v1233, 0.008307735
      %v1240 = vadd.f32 %v1226, %v1238
      %v1241 = vadd.f32 %v1227, %v1239
      %v1242 = vmul.f32 %v1232, -0.010005769
      %v1243 = vmul.f32 %v1233, -0.010005769
      %v1244 = vadd.f32 %v1230, %v1242
      %v1245 = vadd.f32 %v1231, %v1243
      %v1246 = vld [vmem:[%s203 + $0x4] sm:$0xff]
      %v1247 = vld [vmem:[%s203 + $0xc] sm:$0xff]
      %v1248 = vmul.f32 %v1246, -6.667273e-06
      %v1249 = vmul.f32 %v1247, -6.667273e-06
      %v1250 = vadd.f32 %v1236, %v1248
      %v1251 = vadd.f32 %v1237, %v1249
      %v1252 = vmul.f32 %v1246, 0.0064743534
      %v1253 = vmul.f32 %v1247, 0.0064743534
      %v1254 = vadd.f32 %v1240, %v1252
      %v1255 = vadd.f32 %v1241, %v1253
      %v1256 = vmul.f32 %v1246, 0.03286827
      %v1257 = vmul.f32 %v1247, 0.03286827
      %v1258 = vadd.f32 %v1244, %v1256
      %v1259 = vadd.f32 %v1245, %v1257
      %v1260 = vld [vmem:[%s222 + $0x4] sm:$0xff]
      %v1261 = vld [vmem:[%s222 + $0xc] sm:$0xff]
      %v1262 = vmul.f32 %v1260, -0.035561766
      %v1263 = vmul.f32 %v1261, -0.035561766
      %v1264 = vadd.f32 %v1250, %v1262
      %v1265 = vadd.f32 %v1251, %v1263
      %v1266 = vmul.f32 %v1260, 0.08413663
      %v1267 = vmul.f32 %v1261, 0.08413663
      %v1268 = vadd.f32 %v1254, %v1266
      %v1269 = vadd.f32 %v1255, %v1267
      %v1270 = vmul.f32 %v1260, -0.11038648
      %v1271 = vmul.f32 %v1261, -0.11038648
      %v1272 = vadd.f32 %v1258, %v1270
      %v1273 = vadd.f32 %v1259, %v1271
      %v1274 = vmax.f32 %v1264, -3.0
      %v1275 = vmax.f32 %v1265, -3.0
      %v1276 = vmin.f32 %v1274, 3.0
      %v1277 = vmin.f32 %v1275, 3.0
      %s1278 = scalar_lea.vmem %s138, 240
      %1279 = vst.msk [vmem:[%s1278] sm:$0xff] %vm145, %v1276
      %1280 = vst.msk [vmem:[%s1278 + $0x8] sm:$0xff] %vm145, %v1277
      %v1281 = vmax.f32 %v1268, -3.0
      %v1282 = vmax.f32 %v1269, -3.0
      %v1283 = vmin.f32 %v1281, 3.0
      %v1284 = vmin.f32 %v1282, 3.0
      %s1285 = scalar_lea.vmem %s138, 256
      %1286 = vst.msk [vmem:[%s1285] sm:$0xff] %vm145, %v1283
      %1287 = vst.msk [vmem:[%s1285 + $0x8] sm:$0xff] %vm145, %v1284
      %v1288 = vmax.f32 %v1272, -3.0
      %v1289 = vmax.f32 %v1273, -3.0
      %v1290 = vmin.f32 %v1288, 3.0
      %v1291 = vmin.f32 %v1289, 3.0
      %s1292 = scalar_lea.vmem %s138, 272
      %1293 = vst.msk [vmem:[%s1292] sm:$0xff] %vm145, %v1290
      %1294 = vst.msk [vmem:[%s1292 + $0x8] sm:$0xff] %vm145, %v1291
      %v1295 = vld [vmem:[#allocation2] sm:$0xff]
      %v1296 = vld [vmem:[#allocation2 + $0x8] sm:$0xff]
      %v1297 = vmul.f32 %v1295, 0.11497592
      %v1298 = vmul.f32 %v1296, 0.11497592
      %v1299 = vmul.f32 %v1295, -0.20254047
      %v1300 = vmul.f32 %v1296, -0.20254047
      %v1301 = vmul.f32 %v1295, 0.06361419
      %v1302 = vmul.f32 %v1296, 0.06361419
      %v1303 = vld [vmem:[%s165] sm:$0xff]
      %v1304 = vld [vmem:[%s165 + $0x8] sm:$0xff]
      %v1305 = vmul.f32 %v1303, -0.082276724
      %v1306 = vmul.f32 %v1304, -0.082276724
      %v1307 = vadd.f32 %v1297, %v1305
      %v1308 = vadd.f32 %v1298, %v1306
      %v1309 = vmul.f32 %v1303, 0.06369113
      %v1310 = vmul.f32 %v1304, 0.06369113
      %v1311 = vadd.f32 %v1299, %v1309
      %v1312 = vadd.f32 %v1300, %v1310
      %v1313 = vmul.f32 %v1303, -0.12147536
      %v1314 = vmul.f32 %v1304, -0.12147536
      %v1315 = vadd.f32 %v1301, %v1313
      %v1316 = vadd.f32 %v1302, %v1314
      %v1317 = vld [vmem:[%s184] sm:$0xff]
      %v1318 = vld [vmem:[%s184 + $0x8] sm:$0xff]
      %v1319 = vmul.f32 %v1317, -0.105576314
      %v1320 = vmul.f32 %v1318, -0.105576314
      %v1321 = vadd.f32 %v1307, %v1319
      %v1322 = vadd.f32 %v1308, %v1320
      %v1323 = vmul.f32 %v1317, 0.034367457
      %v1324 = vmul.f32 %v1318, 0.034367457
      %v1325 = vadd.f32 %v1311, %v1323
      %v1326 = vadd.f32 %v1312, %v1324
      %v1327 = vmul.f32 %v1317, -0.011266743
      %v1328 = vmul.f32 %v1318, -0.011266743
      %v1329 = vadd.f32 %v1315, %v1327
      %v1330 = vadd.f32 %v1316, %v1328
      %v1331 = vld [vmem:[%s203] sm:$0xff]
      %v1332 = vld [vmem:[%s203 + $0x8] sm:$0xff]
      %v1333 = vmul.f32 %v1331, -0.11520323
      %v1334 = vmul.f32 %v1332, -0.11520323
      %v1335 = vadd.f32 %v1321, %v1333
      %v1336 = vadd.f32 %v1322, %v1334
      %v1337 = vmul.f32 %v1331, -0.09318783
      %v1338 = vmul.f32 %v1332, -0.09318783
      %v1339 = vadd.f32 %v1325, %v1337
      %v1340 = vadd.f32 %v1326, %v1338
      %v1341 = vmul.f32 %v1331, -0.09491096
      %v1342 = vmul.f32 %v1332, -0.09491096
      %v1343 = vadd.f32 %v1329, %v1341
      %v1344 = vadd.f32 %v1330, %v1342
      %v1345 = vld [vmem:[%s222] sm:$0xff]
      %v1346 = vld [vmem:[%s222 + $0x8] sm:$0xff]
      %v1347 = vmul.f32 %v1345, 0.07974296
      %v1348 = vmul.f32 %v1346, 0.07974296
      %v1349 = vadd.f32 %v1335, %v1347
      %v1350 = vadd.f32 %v1336, %v1348
      %v1351 = vmul.f32 %v1345, -0.07133
      %v1352 = vmul.f32 %v1346, -0.07133
      %v1353 = vadd.f32 %v1339, %v1351
      %v1354 = vadd.f32 %v1340, %v1352
      %v1355 = vmul.f32 %v1345, -0.15318196
      %v1356 = vmul.f32 %v1346, -0.15318196
      %v1357 = vadd.f32 %v1343, %v1355
      %v1358 = vadd.f32 %v1344, %v1356
      %v1359 = vld [vmem:[#allocation2 + $0x1] sm:$0xff]
      %v1360 = vld [vmem:[#allocation2 + $0x9] sm:$0xff]
      %v1361 = vmul.f32 %v1359, 0.19106485
      %v1362 = vmul.f32 %v1360, 0.19106485
      %v1363 = vadd.f32 %v1349, %v1361
      %v1364 = vadd.f32 %v1350, %v1362
      %v1365 = vmul.f32 %v1359, 0.096534975
      %v1366 = vmul.f32 %v1360, 0.096534975
      %v1367 = vadd.f32 %v1353, %v1365
      %v1368 = vadd.f32 %v1354, %v1366
      %v1369 = vmul.f32 %v1359, 0.08268232
      %v1370 = vmul.f32 %v1360, 0.08268232
      %v1371 = vadd.f32 %v1357, %v1369
      %v1372 = vadd.f32 %v1358, %v1370
      %v1373 = vld [vmem:[%s165 + $0x1] sm:$0xff]
      %v1374 = vld [vmem:[%s165 + $0x9] sm:$0xff]
      %v1375 = vmul.f32 %v1373, -0.1305667
      %v1376 = vmul.f32 %v1374, -0.1305667
      %v1377 = vadd.f32 %v1363, %v1375
      %v1378 = vadd.f32 %v1364, %v1376
      %v1379 = vmul.f32 %v1373, 0.034153905
      %v1380 = vmul.f32 %v1374, 0.034153905
      %v1381 = vadd.f32 %v1367, %v1379
      %v1382 = vadd.f32 %v1368, %v1380
      %v1383 = vmul.f32 %v1373, 0.028117977
      %v1384 = vmul.f32 %v1374, 0.028117977
      %v1385 = vadd.f32 %v1371, %v1383
      %v1386 = vadd.f32 %v1372, %v1384
      %v1387 = vld [vmem:[%s184 + $0x1] sm:$0xff]
      %v1388 = vld [vmem:[%s184 + $0x9] sm:$0xff]
      %v1389 = vmul.f32 %v1387, 0.025614716
      %v1390 = vmul.f32 %v1388, 0.025614716
      %v1391 = vadd.f32 %v1377, %v1389
      %v1392 = vadd.f32 %v1378, %v1390
      %v1393 = vmul.f32 %v1387, -0.041552804
      %v1394 = vmul.f32 %v1388, -0.041552804
      %v1395 = vadd.f32 %v1381, %v1393
      %v1396 = vadd.f32 %v1382, %v1394
      %v1397 = vmul.f32 %v1387, 0.16911246
      %v1398 = vmul.f32 %v1388, 0.16911246
      %v1399 = vadd.f32 %v1385, %v1397
      %v1400 = vadd.f32 %v1386, %v1398
      %v1401 = vld [vmem:[%s203 + $0x1] sm:$0xff]
      %v1402 = vld [vmem:[%s203 + $0x9] sm:$0xff]
      %v1403 = vmul.f32 %v1401, 0.048167855
      %v1404 = vmul.f32 %v1402, 0.048167855
      %v1405 = vadd.f32 %v1391, %v1403
      %v1406 = vadd.f32 %v1392, %v1404
      %v1407 = vmul.f32 %v1401, 0.04155979
      %v1408 = vmul.f32 %v1402, 0.04155979
      %v1409 = vadd.f32 %v1395, %v1407
      %v1410 = vadd.f32 %v1396, %v1408
      %v1411 = vmul.f32 %v1401, 0.0084451595
      %v1412 = vmul.f32 %v1402, 0.0084451595
      %v1413 = vadd.f32 %v1399, %v1411
      %v1414 = vadd.f32 %v1400, %v1412
      %v1415 = vld [vmem:[%s222 + $0x1] sm:$0xff]
      %v1416 = vld [vmem:[%s222 + $0x9] sm:$0xff]
      %v1417 = vmul.f32 %v1415, 0.107544124
      %v1418 = vmul.f32 %v1416, 0.107544124
      %v1419 = vadd.f32 %v1405, %v1417
      %v1420 = vadd.f32 %v1406, %v1418
      %v1421 = vmul.f32 %v1415, -0.15739101
      %v1422 = vmul.f32 %v1416, -0.15739101
      %v1423 = vadd.f32 %v1409, %v1421
      %v1424 = vadd.f32 %v1410, %v1422
      %v1425 = vmul.f32 %v1415, 0.09120312
      %v1426 = vmul.f32 %v1416, 0.09120312
      %v1427 = vadd.f32 %v1413, %v1425
      %v1428 = vadd.f32 %v1414, %v1426
      %v1429 = vld [vmem:[#allocation2 + $0x2] sm:$0xff]
      %v1430 = vld [vmem:[#allocation2 + $0xa] sm:$0xff]
      %v1431 = vmul.f32 %v1429, -0.029412396
      %v1432 = vmul.f32 %v1430, -0.029412396
      %v1433 = vadd.f32 %v1419, %v1431
      %v1434 = vadd.f32 %v1420, %v1432
      %v1435 = vmul.f32 %v1429, -0.0692164
      %v1436 = vmul.f32 %v1430, -0.0692164
      %v1437 = vadd.f32 %v1423, %v1435
      %v1438 = vadd.f32 %v1424, %v1436
      %v1439 = vmul.f32 %v1429, -0.013755704
      %v1440 = vmul.f32 %v1430, -0.013755704
      %v1441 = vadd.f32 %v1427, %v1439
      %v1442 = vadd.f32 %v1428, %v1440
      %v1443 = vld [vmem:[%s165 + $0x2] sm:$0xff]
      %v1444 = vld [vmem:[%s165 + $0xa] sm:$0xff]
      %v1445 = vmul.f32 %v1443, 0.030776486
      %v1446 = vmul.f32 %v1444, 0.030776486
      %v1447 = vadd.f32 %v1433, %v1445
      %v1448 = vadd.f32 %v1434, %v1446
      %v1449 = vmul.f32 %v1443, -0.06264989
      %v1450 = vmul.f32 %v1444, -0.06264989
      %v1451 = vadd.f32 %v1437, %v1449
      %v1452 = vadd.f32 %v1438, %v1450
      %v1453 = vmul.f32 %v1443, -0.012154427
      %v1454 = vmul.f32 %v1444, -0.012154427
      %v1455 = vadd.f32 %v1441, %v1453
      %v1456 = vadd.f32 %v1442, %v1454
      %v1457 = vld [vmem:[%s184 + $0x2] sm:$0xff]
      %v1458 = vld [vmem:[%s184 + $0xa] sm:$0xff]
      %v1459 = vmul.f32 %v1457, 0.10735971
      %v1460 = vmul.f32 %v1458, 0.10735971
      %v1461 = vadd.f32 %v1447, %v1459
      %v1462 = vadd.f32 %v1448, %v1460
      %v1463 = vmul.f32 %v1457, -0.108871885
      %v1464 = vmul.f32 %v1458, -0.108871885
      %v1465 = vadd.f32 %v1451, %v1463
      %v1466 = vadd.f32 %v1452, %v1464
      %v1467 = vmul.f32 %v1457, -0.0044314917
      %v1468 = vmul.f32 %v1458, -0.0044314917
      %v1469 = vadd.f32 %v1455, %v1467
      %v1470 = vadd.f32 %v1456, %v1468
      %v1471 = vld [vmem:[%s203 + $0x2] sm:$0xff]
      %v1472 = vld [vmem:[%s203 + $0xa] sm:$0xff]
      %v1473 = vmul.f32 %v1471, -0.11343654
      %v1474 = vmul.f32 %v1472, -0.11343654
      %v1475 = vadd.f32 %v1461, %v1473
      %v1476 = vadd.f32 %v1462, %v1474
      %v1477 = vmul.f32 %v1471, -0.06231231
      %v1478 = vmul.f32 %v1472, -0.06231231
      %v1479 = vadd.f32 %v1465, %v1477
      %v1480 = vadd.f32 %v1466, %v1478
      %v1481 = vmul.f32 %v1471, 0.16751166
      %v1482 = vmul.f32 %v1472, 0.16751166
      %v1483 = vadd.f32 %v1469, %v1481
      %v1484 = vadd.f32 %v1470, %v1482
      %v1485 = vld [vmem:[%s222 + $0x2] sm:$0xff]
      %v1486 = vld [vmem:[%s222 + $0xa] sm:$0xff]
      %v1487 = vmul.f32 %v1485, 0.016044283
      %v1488 = vmul.f32 %v1486, 0.016044283
      %v1489 = vadd.f32 %v1475, %v1487
      %v1490 = vadd.f32 %v1476, %v1488
      %v1491 = vmul.f32 %v1485, -0.16007406
      %v1492 = vmul.f32 %v1486, -0.16007406
      %v1493 = vadd.f32 %v1479, %v1491
      %v1494 = vadd.f32 %v1480, %v1492
      %v1495 = vmul.f32 %v1485, 0.060513884
      %v1496 = vmul.f32 %v1486, 0.060513884
      %v1497 = vadd.f32 %v1483, %v1495
      %v1498 = vadd.f32 %v1484, %v1496
      %v1499 = vld [vmem:[#allocation2 + $0x3] sm:$0xff]
      %v1500 = vld [vmem:[#allocation2 + $0xb] sm:$0xff]
      %v1501 = vmul.f32 %v1499, 0.058852132
      %v1502 = vmul.f32 %v1500, 0.058852132
      %v1503 = vadd.f32 %v1489, %v1501
      %v1504 = vadd.f32 %v1490, %v1502
      %v1505 = vmul.f32 %v1499, 0.061086014
      %v1506 = vmul.f32 %v1500, 0.061086014
      %v1507 = vadd.f32 %v1493, %v1505
      %v1508 = vadd.f32 %v1494, %v1506
      %v1509 = vmul.f32 %v1499, 0.22665006
      %v1510 = vmul.f32 %v1500, 0.22665006
      %v1511 = vadd.f32 %v1497, %v1509
      %v1512 = vadd.f32 %v1498, %v1510
      %v1513 = vld [vmem:[%s165 + $0x3] sm:$0xff]
      %v1514 = vld [vmem:[%s165 + $0xb] sm:$0xff]
      %v1515 = vmul.f32 %v1513, -0.07118465
      %v1516 = vmul.f32 %v1514, -0.07118465
      %v1517 = vadd.f32 %v1503, %v1515
      %v1518 = vadd.f32 %v1504, %v1516
      %v1519 = vmul.f32 %v1513, -0.04121269
      %v1520 = vmul.f32 %v1514, -0.04121269
      %v1521 = vadd.f32 %v1507, %v1519
      %v1522 = vadd.f32 %v1508, %v1520
      %v1523 = vmul.f32 %v1513, 0.07648026
      %v1524 = vmul.f32 %v1514, 0.07648026
      %v1525 = vadd.f32 %v1511, %v1523
      %v1526 = vadd.f32 %v1512, %v1524
      %v1527 = vld [vmem:[%s184 + $0x3] sm:$0xff]
      %v1528 = vld [vmem:[%s184 + $0xb] sm:$0xff]
      %v1529 = vmul.f32 %v1527, 0.06774124
      %v1530 = vmul.f32 %v1528, 0.06774124
      %v1531 = vadd.f32 %v1517, %v1529
      %v1532 = vadd.f32 %v1518, %v1530
      %v1533 = vmul.f32 %v1527, -0.0031319214
      %v1534 = vmul.f32 %v1528, -0.0031319214
      %v1535 = vadd.f32 %v1521, %v1533
      %v1536 = vadd.f32 %v1522, %v1534
      %v1537 = vmul.f32 %v1527, 0.022241173
      %v1538 = vmul.f32 %v1528, 0.022241173
      %v1539 = vadd.f32 %v1525, %v1537
      %v1540 = vadd.f32 %v1526, %v1538
      %v1541 = vld [vmem:[%s203 + $0x3] sm:$0xff]
      %v1542 = vld [vmem:[%s203 + $0xb] sm:$0xff]
      %v1543 = vmul.f32 %v1541, 0.0266271
      %v1544 = vmul.f32 %v1542, 0.0266271
      %v1545 = vadd.f32 %v1531, %v1543
      %v1546 = vadd.f32 %v1532, %v1544
      %v1547 = vmul.f32 %v1541, -0.070338465
      %v1548 = vmul.f32 %v1542, -0.070338465
      %v1549 = vadd.f32 %v1535, %v1547
      %v1550 = vadd.f32 %v1536, %v1548
      %v1551 = vmul.f32 %v1541, -0.046613272
      %v1552 = vmul.f32 %v1542, -0.046613272
      %v1553 = vadd.f32 %v1539, %v1551
      %v1554 = vadd.f32 %v1540, %v1552
      %v1555 = vld [vmem:[%s222 + $0x3] sm:$0xff]
      %v1556 = vld [vmem:[%s222 + $0xb] sm:$0xff]
      %v1557 = vmul.f32 %v1555, -0.10194528
      %v1558 = vmul.f32 %v1556, -0.10194528
      %v1559 = vadd.f32 %v1545, %v1557
      %v1560 = vadd.f32 %v1546, %v1558
      %v1561 = vmul.f32 %v1555, 0.066505544
      %v1562 = vmul.f32 %v1556, 0.066505544
      %v1563 = vadd.f32 %v1549, %v1561
      %v1564 = vadd.f32 %v1550, %v1562
      %v1565 = vmul.f32 %v1555, 0.04112803
      %v1566 = vmul.f32 %v1556, 0.04112803
      %v1567 = vadd.f32 %v1553, %v1565
      %v1568 = vadd.f32 %v1554, %v1566
      %v1569 = vld [vmem:[#allocation2 + $0x4] sm:$0xff]
      %v1570 = vld [vmem:[#allocation2 + $0xc] sm:$0xff]
      %v1571 = vmul.f32 %v1569, -0.06298496
      %v1572 = vmul.f32 %v1570, -0.06298496
      %v1573 = vadd.f32 %v1559, %v1571
      %v1574 = vadd.f32 %v1560, %v1572
      %v1575 = vmul.f32 %v1569, -0.08503685
      %v1576 = vmul.f32 %v1570, -0.08503685
      %v1577 = vadd.f32 %v1563, %v1575
      %v1578 = vadd.f32 %v1564, %v1576
      %v1579 = vmul.f32 %v1569, -0.0035553323
      %v1580 = vmul.f32 %v1570, -0.0035553323
      %v1581 = vadd.f32 %v1567, %v1579
      %v1582 = vadd.f32 %v1568, %v1580
      %v1583 = vld [vmem:[%s165 + $0x4] sm:$0xff]
      %v1584 = vld [vmem:[%s165 + $0xc] sm:$0xff]
      %v1585 = vmul.f32 %v1583, -0.03561796
      %v1586 = vmul.f32 %v1584, -0.03561796
      %v1587 = vadd.f32 %v1573, %v1585
      %v1588 = vadd.f32 %v1574, %v1586
      %v1589 = vmul.f32 %v1583, 0.006175402
      %v1590 = vmul.f32 %v1584, 0.006175402
      %v1591 = vadd.f32 %v1577, %v1589
      %v1592 = vadd.f32 %v1578, %v1590
      %v1593 = vmul.f32 %v1583, 0.015845375
      %v1594 = vmul.f32 %v1584, 0.015845375
      %v1595 = vadd.f32 %v1581, %v1593
      %v1596 = vadd.f32 %v1582, %v1594
      %v1597 = vld [vmem:[%s184 + $0x4] sm:$0xff]
      %v1598 = vld [vmem:[%s184 + $0xc] sm:$0xff]
      %v1599 = vmul.f32 %v1597, -0.11715084
      %v1600 = vmul.f32 %v1598, -0.11715084
      %v1601 = vadd.f32 %v1587, %v1599
      %v1602 = vadd.f32 %v1588, %v1600
      %v1603 = vmul.f32 %v1597, 0.11130047
      %v1604 = vmul.f32 %v1598, 0.11130047
      %v1605 = vadd.f32 %v1591, %v1603
      %v1606 = vadd.f32 %v1592, %v1604
      %v1607 = vmul.f32 %v1597, -0.12203896
      %v1608 = vmul.f32 %v1598, -0.12203896
      %v1609 = vadd.f32 %v1595, %v1607
      %v1610 = vadd.f32 %v1596, %v1608
      %v1611 = vld [vmem:[%s203 + $0x4] sm:$0xff]
      %v1612 = vld [vmem:[%s203 + $0xc] sm:$0xff]
      %v1613 = vmul.f32 %v1611, -0.059211504
      %v1614 = vmul.f32 %v1612, -0.059211504
      %v1615 = vadd.f32 %v1601, %v1613
      %v1616 = vadd.f32 %v1602, %v1614
      %v1617 = vmul.f32 %v1611, -0.089327656
      %v1618 = vmul.f32 %v1612, -0.089327656
      %v1619 = vadd.f32 %v1605, %v1617
      %v1620 = vadd.f32 %v1606, %v1618
      %v1621 = vmul.f32 %v1611, 0.06673816
      %v1622 = vmul.f32 %v1612, 0.06673816
      %v1623 = vadd.f32 %v1609, %v1621
      %v1624 = vadd.f32 %v1610, %v1622
      %v1625 = vld [vmem:[%s222 + $0x4] sm:$0xff]
      %v1626 = vld [vmem:[%s222 + $0xc] sm:$0xff]
      %v1627 = vmul.f32 %v1625, -0.22657825
      %v1628 = vmul.f32 %v1626, -0.22657825
      %v1629 = vadd.f32 %v1615, %v1627
      %v1630 = vadd.f32 %v1616, %v1628
      %v1631 = vmul.f32 %v1625, 0.01069082
      %v1632 = vmul.f32 %v1626, 0.01069082
      %v1633 = vadd.f32 %v1619, %v1631
      %v1634 = vadd.f32 %v1620, %v1632
      %v1635 = vmul.f32 %v1625, -0.03284535
      %v1636 = vmul.f32 %v1626, -0.03284535
      %v1637 = vadd.f32 %v1623, %v1635
      %v1638 = vadd.f32 %v1624, %v1636
      %v1639 = vmax.f32 %v1629, -3.0
      %v1640 = vmax.f32 %v1630, -3.0
      %v1641 = vmin.f32 %v1639, 3.0
      %v1642 = vmin.f32 %v1640, 3.0
      %s1643 = scalar_lea.vmem %s138, 288
      %1644 = vst.msk [vmem:[%s1643] sm:$0xff] %vm145, %v1641
      %1645 = vst.msk [vmem:[%s1643 + $0x8] sm:$0xff] %vm145, %v1642
      %v1646 = vmax.f32 %v1633, -3.0
      %v1647 = vmax.f32 %v1634, -3.0
      %v1648 = vmin.f32 %v1646, 3.0
      %v1649 = vmin.f32 %v1647, 3.0
      %s1650 = scalar_lea.vmem %s138, 304
      %1651 = vst.msk [vmem:[%s1650] sm:$0xff] %vm145, %v1648
      %1652 = vst.msk [vmem:[%s1650 + $0x8] sm:$0xff] %vm145, %v1649
      %v1653 = vmax.f32 %v1637, -3.0
      %v1654 = vmax.f32 %v1638, -3.0
      %v1655 = vmin.f32 %v1653, 3.0
      %v1656 = vmin.f32 %v1654, 3.0
      %s1657 = scalar_lea.vmem %s138, 320
      %1658 = vst.msk [vmem:[%s1657] sm:$0xff] %vm145, %v1655
      %1659 = vst.msk [vmem:[%s1657 + $0x8] sm:$0xff] %vm145, %v1656
      %v1660 = vld [vmem:[#allocation2] sm:$0xff]
      %v1661 = vld [vmem:[#allocation2 + $0x8] sm:$0xff]
      %v1662 = vmul.f32 %v1660, 0.10319207
      %v1663 = vmul.f32 %v1661, 0.10319207
      %v1664 = vmul.f32 %v1660, 0.04246435
      %v1665 = vmul.f32 %v1661, 0.04246435
      %v1666 = vmul.f32 %v1660, 0.010381275
      %v1667 = vmul.f32 %v1661, 0.010381275
      %v1668 = vld [vmem:[%s165] sm:$0xff]
      %v1669 = vld [vmem:[%s165 + $0x8] sm:$0xff]
      %v1670 = vmul.f32 %v1668, -0.095860414
      %v1671 = vmul.f32 %v1669, -0.095860414
      %v1672 = vadd.f32 %v1662, %v1670
      %v1673 = vadd.f32 %v1663, %v1671
      %v1674 = vmul.f32 %v1668, 0.11606845
      %v1675 = vmul.f32 %v1669, 0.11606845
      %v1676 = vadd.f32 %v1664, %v1674
      %v1677 = vadd.f32 %v1665, %v1675
      %v1678 = vmul.f32 %v1668, -0.07550118
      %v1679 = vmul.f32 %v1669, -0.07550118
      %v1680 = vadd.f32 %v1666, %v1678
      %v1681 = vadd.f32 %v1667, %v1679
      %v1682 = vld [vmem:[%s184] sm:$0xff]
      %v1683 = vld [vmem:[%s184 + $0x8] sm:$0xff]
      %v1684 = vmul.f32 %v1682, 0.0177805
      %v1685 = vmul.f32 %v1683, 0.0177805
      %v1686 = vadd.f32 %v1672, %v1684
      %v1687 = vadd.f32 %v1673, %v1685
      %v1688 = vmul.f32 %v1682, 0.036754064
      %v1689 = vmul.f32 %v1683, 0.036754064
      %v1690 = vadd.f32 %v1676, %v1688
      %v1691 = vadd.f32 %v1677, %v1689
      %v1692 = vmul.f32 %v1682, 0.050508518
      %v1693 = vmul.f32 %v1683, 0.050508518
      %v1694 = vadd.f32 %v1680, %v1692
      %v1695 = vadd.f32 %v1681, %v1693
      %v1696 = vld [vmem:[%s203] sm:$0xff]
      %v1697 = vld [vmem:[%s203 + $0x8] sm:$0xff]
      %v1698 = vmul.f32 %v1696, -0.08078319
      %v1699 = vmul.f32 %v1697, -0.08078319
      %v1700 = vadd.f32 %v1686, %v1698
      %v1701 = vadd.f32 %v1687, %v1699
      %v1702 = vmul.f32 %v1696, -0.044480667
      %v1703 = vmul.f32 %v1697, -0.044480667
      %v1704 = vadd.f32 %v1690, %v1702
      %v1705 = vadd.f32 %v1691, %v1703
      %v1706 = vmul.f32 %v1696, -0.12518449
      %v1707 = vmul.f32 %v1697, -0.12518449
      %v1708 = vadd.f32 %v1694, %v1706
      %v1709 = vadd.f32 %v1695, %v1707
      %v1710 = vld [vmem:[%s222] sm:$0xff]
      %v1711 = vld [vmem:[%s222 + $0x8] sm:$0xff]
      %v1712 = vmul.f32 %v1710, -0.122980624
      %v1713 = vmul.f32 %v1711, -0.122980624
      %v1714 = vadd.f32 %v1700, %v1712
      %v1715 = vadd.f32 %v1701, %v1713
      %v1716 = vmul.f32 %v1710, -0.029744564
      %v1717 = vmul.f32 %v1711, -0.029744564
      %v1718 = vadd.f32 %v1704, %v1716
      %v1719 = vadd.f32 %v1705, %v1717
      %v1720 = vmul.f32 %v1710, -0.003265988
      %v1721 = vmul.f32 %v1711, -0.003265988
      %v1722 = vadd.f32 %v1708, %v1720
      %v1723 = vadd.f32 %v1709, %v1721
      %v1724 = vld [vmem:[#allocation2 + $0x1] sm:$0xff]
      %v1725 = vld [vmem:[#allocation2 + $0x9] sm:$0xff]
      %v1726 = vmul.f32 %v1724, -0.0782204
      %v1727 = vmul.f32 %v1725, -0.0782204
      %v1728 = vadd.f32 %v1714, %v1726
      %v1729 = vadd.f32 %v1715, %v1727
      %v1730 = vmul.f32 %v1724, -0.0398698
      %v1731 = vmul.f32 %v1725, -0.0398698
      %v1732 = vadd.f32 %v1718, %v1730
      %v1733 = vadd.f32 %v1719, %v1731
      %v1734 = vmul.f32 %v1724, 0.10388422
      %v1735 = vmul.f32 %v1725, 0.10388422
      %v1736 = vadd.f32 %v1722, %v1734
      %v1737 = vadd.f32 %v1723, %v1735
      %v1738 = vld [vmem:[%s165 + $0x1] sm:$0xff]
      %v1739 = vld [vmem:[%s165 + $0x9] sm:$0xff]
      %v1740 = vmul.f32 %v1738, -0.06979208
      %v1741 = vmul.f32 %v1739, -0.06979208
      %v1742 = vadd.f32 %v1728, %v1740
      %v1743 = vadd.f32 %v1729, %v1741
      %v1744 = vmul.f32 %v1738, -0.046240646
      %v1745 = vmul.f32 %v1739, -0.046240646
      %v1746 = vadd.f32 %v1732, %v1744
      %v1747 = vadd.f32 %v1733, %v1745
      %v1748 = vmul.f32 %v1738, 0.07427954
      %v1749 = vmul.f32 %v1739, 0.07427954
      %v1750 = vadd.f32 %v1736, %v1748
      %v1751 = vadd.f32 %v1737, %v1749
      %v1752 = vld [vmem:[%s184 + $0x1] sm:$0xff]
      %v1753 = vld [vmem:[%s184 + $0x9] sm:$0xff]
      %v1754 = vmul.f32 %v1752, 0.048488125
      %v1755 = vmul.f32 %v1753, 0.048488125
      %v1756 = vadd.f32 %v1742, %v1754
      %v1757 = vadd.f32 %v1743, %v1755
      %v1758 = vmul.f32 %v1752, -0.024676865
      %v1759 = vmul.f32 %v1753, -0.024676865
      %v1760 = vadd.f32 %v1746, %v1758
      %v1761 = vadd.f32 %v1747, %v1759
      %v1762 = vmul.f32 %v1752, -0.025141006
      %v1763 = vmul.f32 %v1753, -0.025141006
      %v1764 = vadd.f32 %v1750, %v1762
      %v1765 = vadd.f32 %v1751, %v1763
      %v1766 = vld [vmem:[%s203 + $0x1] sm:$0xff]
      %v1767 = vld [vmem:[%s203 + $0x9] sm:$0xff]
      %v1768 = vmul.f32 %v1766, 0.012078139
      %v1769 = vmul.f32 %v1767, 0.012078139
      %v1770 = vadd.f32 %v1756, %v1768
      %v1771 = vadd.f32 %v1757, %v1769
      %v1772 = vmul.f32 %v1766, -0.03057249
      %v1773 = vmul.f32 %v1767, -0.03057249
      %v1774 = vadd.f32 %v1760, %v1772
      %v1775 = vadd.f32 %v1761, %v1773
      %v1776 = vmul.f32 %v1766, 0.057047907
      %v1777 = vmul.f32 %v1767, 0.057047907
      %v1778 = vadd.f32 %v1764, %v1776
      %v1779 = vadd.f32 %v1765, %v1777
      %v1780 = vld [vmem:[%s222 + $0x1] sm:$0xff]
      %v1781 = vld [vmem:[%s222 + $0x9] sm:$0xff]
      %v1782 = vmul.f32 %v1780, 0.17704923
      %v1783 = vmul.f32 %v1781, 0.17704923
      %v1784 = vadd.f32 %v1770, %v1782
      %v1785 = vadd.f32 %v1771, %v1783
      %v1786 = vmul.f32 %v1780, -0.1412205
      %v1787 = vmul.f32 %v1781, -0.1412205
      %v1788 = vadd.f32 %v1774, %v1786
      %v1789 = vadd.f32 %v1775, %v1787
      %v1790 = vmul.f32 %v1780, 0.035808336
      %v1791 = vmul.f32 %v1781, 0.035808336
      %v1792 = vadd.f32 %v1778, %v1790
      %v1793 = vadd.f32 %v1779, %v1791
      %v1794 = vld [vmem:[#allocation2 + $0x2] sm:$0xff]
      %v1795 = vld [vmem:[#allocation2 + $0xa] sm:$0xff]
      %v1796 = vmul.f32 %v1794, 0.12903301
      %v1797 = vmul.f32 %v1795, 0.12903301
      %v1798 = vadd.f32 %v1784, %v1796
      %v1799 = vadd.f32 %v1785, %v1797
      %v1800 = vmul.f32 %v1794, 0.09092712
      %v1801 = vmul.f32 %v1795, 0.09092712
      %v1802 = vadd.f32 %v1788, %v1800
      %v1803 = vadd.f32 %v1789, %v1801
      %v1804 = vmul.f32 %v1794, 0.0071517588
      %v1805 = vmul.f32 %v1795, 0.0071517588
      %v1806 = vadd.f32 %v1792, %v1804
      %v1807 = vadd.f32 %v1793, %v1805
      %v1808 = vld [vmem:[%s165 + $0x2] sm:$0xff]
      %v1809 = vld [vmem:[%s165 + $0xa] sm:$0xff]
      %v1810 = vmul.f32 %v1808, 0.089554034
      %v1811 = vmul.f32 %v1809, 0.089554034
      %v1812 = vadd.f32 %v1798, %v1810
      %v1813 = vadd.f32 %v1799, %v1811
      %v1814 = vmul.f32 %v1808, 0.08360028
      %v1815 = vmul.f32 %v1809, 0.08360028
      %v1816 = vadd.f32 %v1802, %v1814
      %v1817 = vadd.f32 %v1803, %v1815
      %v1818 = vmul.f32 %v1808, -0.16073486
      %v1819 = vmul.f32 %v1809, -0.16073486
      %v1820 = vadd.f32 %v1806, %v1818
      %v1821 = vadd.f32 %v1807, %v1819
      %v1822 = vld [vmem:[%s184 + $0x2] sm:$0xff]
      %v1823 = vld [vmem:[%s184 + $0xa] sm:$0xff]
      %v1824 = vmul.f32 %v1822, -0.10253221
      %v1825 = vmul.f32 %v1823, -0.10253221
      %v1826 = vadd.f32 %v1812, %v1824
      %v1827 = vadd.f32 %v1813, %v1825
      %v1828 = vmul.f32 %v1822, -0.12082022
      %v1829 = vmul.f32 %v1823, -0.12082022
      %v1830 = vadd.f32 %v1816, %v1828
      %v1831 = vadd.f32 %v1817, %v1829
      %v1832 = vmul.f32 %v1822, 0.13768646
      %v1833 = vmul.f32 %v1823, 0.13768646
      %v1834 = vadd.f32 %v1820, %v1832
      %v1835 = vadd.f32 %v1821, %v1833
      %v1836 = vld [vmem:[%s203 + $0x2] sm:$0xff]
      %v1837 = vld [vmem:[%s203 + $0xa] sm:$0xff]
      %v1838 = vmul.f32 %v1836, -0.054111734
      %v1839 = vmul.f32 %v1837, -0.054111734
      %v1840 = vadd.f32 %v1826, %v1838
      %v1841 = vadd.f32 %v1827, %v1839
      %v1842 = vmul.f32 %v1836, 0.07811441
      %v1843 = vmul.f32 %v1837, 0.07811441
      %v1844 = vadd.f32 %v1830, %v1842
      %v1845 = vadd.f32 %v1831, %v1843
      %v1846 = vmul.f32 %v1836, 0.011078361
      %v1847 = vmul.f32 %v1837, 0.011078361
      %v1848 = vadd.f32 %v1834, %v1846
      %v1849 = vadd.f32 %v1835, %v1847
      %v1850 = vld [vmem:[%s222 + $0x2] sm:$0xff]
      %v1851 = vld [vmem:[%s222 + $0xa] sm:$0xff]
      %v1852 = vmul.f32 %v1850, -0.05526124
      %v1853 = vmul.f32 %v1851, -0.05526124
      %v1854 = vadd.f32 %v1840, %v1852
      %v1855 = vadd.f32 %v1841, %v1853
      %v1856 = vmul.f32 %v1850, 0.0196254
      %v1857 = vmul.f32 %v1851, 0.0196254
      %v1858 = vadd.f32 %v1844, %v1856
      %v1859 = vadd.f32 %v1845, %v1857
      %v1860 = vmul.f32 %v1850, 0.0724631
      %v1861 = vmul.f32 %v1851, 0.0724631
      %v1862 = vadd.f32 %v1848, %v1860
      %v1863 = vadd.f32 %v1849, %v1861
      %v1864 = vld [vmem:[#allocation2 + $0x3] sm:$0xff]
      %v1865 = vld [vmem:[#allocation2 + $0xb] sm:$0xff]
      %v1866 = vmul.f32 %v1864, 0.036641657
      %v1867 = vmul.f32 %v1865, 0.036641657
      %v1868 = vadd.f32 %v1854, %v1866
      %v1869 = vadd.f32 %v1855, %v1867
      %v1870 = vmul.f32 %v1864, 0.096351326
      %v1871 = vmul.f32 %v1865, 0.096351326
      %v1872 = vadd.f32 %v1858, %v1870
      %v1873 = vadd.f32 %v1859, %v1871
      %v1874 = vmul.f32 %v1864, -0.049479943
      %v1875 = vmul.f32 %v1865, -0.049479943
      %v1876 = vadd.f32 %v1862, %v1874
      %v1877 = vadd.f32 %v1863, %v1875
      %v1878 = vld [vmem:[%s165 + $0x3] sm:$0xff]
      %v1879 = vld [vmem:[%s165 + $0xb] sm:$0xff]
      %v1880 = vmul.f32 %v1878, 0.055592325
      %v1881 = vmul.f32 %v1879, 0.055592325
      %v1882 = vadd.f32 %v1868, %v1880
      %v1883 = vadd.f32 %v1869, %v1881
      %v1884 = vmul.f32 %v1878, 0.0028396312
      %v1885 = vmul.f32 %v1879, 0.0028396312
      %v1886 = vadd.f32 %v1872, %v1884
      %v1887 = vadd.f32 %v1873, %v1885
      %v1888 = vmul.f32 %v1878, -0.11937058
      %v1889 = vmul.f32 %v1879, -0.11937058
      %v1890 = vadd.f32 %v1876, %v1888
      %v1891 = vadd.f32 %v1877, %v1889
      %v1892 = vld [vmem:[%s184 + $0x3] sm:$0xff]
      %v1893 = vld [vmem:[%s184 + $0xb] sm:$0xff]
      %v1894 = vmul.f32 %v1892, 0.053476613
      %v1895 = vmul.f32 %v1893, 0.053476613
      %v1896 = vadd.f32 %v1882, %v1894
      %v1897 = vadd.f32 %v1883, %v1895
      %v1898 = vmul.f32 %v1892, -0.013307918
      %v1899 = vmul.f32 %v1893, -0.013307918
      %v1900 = vadd.f32 %v1886, %v1898
      %v1901 = vadd.f32 %v1887, %v1899
      %v1902 = vmul.f32 %v1892, 0.15121181
      %v1903 = vmul.f32 %v1893, 0.15121181
      %v1904 = vadd.f32 %v1890, %v1902
      %v1905 = vadd.f32 %v1891, %v1903
      %v1906 = vld [vmem:[%s203 + $0x3] sm:$0xff]
      %v1907 = vld [vmem:[%s203 + $0xb] sm:$0xff]
      %v1908 = vmul.f32 %v1906, -0.10672455
      %v1909 = vmul.f32 %v1907, -0.10672455
      %v1910 = vadd.f32 %v1896, %v1908
      %v1911 = vadd.f32 %v1897, %v1909
      %v1912 = vmul.f32 %v1906, 0.13079113
      %v1913 = vmul.f32 %v1907, 0.13079113
      %v1914 = vadd.f32 %v1900, %v1912
      %v1915 = vadd.f32 %v1901, %v1913
      %v1916 = vmul.f32 %v1906, -0.1597163
      %v1917 = vmul.f32 %v1907, -0.1597163
      %v1918 = vadd.f32 %v1904, %v1916
      %v1919 = vadd.f32 %v1905, %v1917
      %v1920 = vld [vmem:[%s222 + $0x3] sm:$0xff]
      %v1921 = vld [vmem:[%s222 + $0xb] sm:$0xff]
      %v1922 = vmul.f32 %v1920, 0.14727964
      %v1923 = vmul.f32 %v1921, 0.14727964
      %v1924 = vadd.f32 %v1910, %v1922
      %v1925 = vadd.f32 %v1911, %v1923
      %v1926 = vmul.f32 %v1920, 0.09696084
      %v1927 = vmul.f32 %v1921, 0.09696084
      %v1928 = vadd.f32 %v1914, %v1926
      %v1929 = vadd.f32 %v1915, %v1927
      %v1930 = vmul.f32 %v1920, 0.09646687
      %v1931 = vmul.f32 %v1921, 0.09646687
      %v1932 = vadd.f32 %v1918, %v1930
      %v1933 = vadd.f32 %v1919, %v1931
      %v1934 = vld [vmem:[#allocation2 + $0x4] sm:$0xff]
      %v1935 = vld [vmem:[#allocation2 + $0xc] sm:$0xff]
      %v1936 = vmul.f32 %v1934, 0.009949175
      %v1937 = vmul.f32 %v1935, 0.009949175
      %v1938 = vadd.f32 %v1924, %v1936
      %v1939 = vadd.f32 %v1925, %v1937
      %v1940 = vmul.f32 %v1934, -0.013223183
      %v1941 = vmul.f32 %v1935, -0.013223183
      %v1942 = vadd.f32 %v1928, %v1940
      %v1943 = vadd.f32 %v1929, %v1941
      %v1944 = vmul.f32 %v1934, -0.07626589
      %v1945 = vmul.f32 %v1935, -0.07626589
      %v1946 = vadd.f32 %v1932, %v1944
      %v1947 = vadd.f32 %v1933, %v1945
      %v1948 = vld [vmem:[%s165 + $0x4] sm:$0xff]
      %v1949 = vld [vmem:[%s165 + $0xc] sm:$0xff]
      %v1950 = vmul.f32 %v1948, 0.06570125
      %v1951 = vmul.f32 %v1949, 0.06570125
      %v1952 = vadd.f32 %v1938, %v1950
      %v1953 = vadd.f32 %v1939, %v1951
      %v1954 = vmul.f32 %v1948, 0.06623115
      %v1955 = vmul.f32 %v1949, 0.06623115
      %v1956 = vadd.f32 %v1942, %v1954
      %v1957 = vadd.f32 %v1943, %v1955
      %v1958 = vmul.f32 %v1948, -0.08040327
      %v1959 = vmul.f32 %v1949, -0.08040327
      %v1960 = vadd.f32 %v1946, %v1958
      %v1961 = vadd.f32 %v1947, %v1959
      %v1962 = vld [vmem:[%s184 + $0x4] sm:$0xff]
      %v1963 = vld [vmem:[%s184 + $0xc] sm:$0xff]
      %v1964 = vmul.f32 %v1962, -0.037892956
      %v1965 = vmul.f32 %v1963, -0.037892956
      %v1966 = vadd.f32 %v1952, %v1964
      %v1967 = vadd.f32 %v1953, %v1965
      %v1968 = vmul.f32 %v1962, -0.022157384
      %v1969 = vmul.f32 %v1963, -0.022157384
      %v1970 = vadd.f32 %v1956, %v1968
      %v1971 = vadd.f32 %v1957, %v1969
      %v1972 = vmul.f32 %v1962, 0.0033676028
      %v1973 = vmul.f32 %v1963, 0.0033676028
      %v1974 = vadd.f32 %v1960, %v1972
      %v1975 = vadd.f32 %v1961, %v1973
      %v1976 = vld [vmem:[%s203 + $0x4] sm:$0xff]
      %v1977 = vld [vmem:[%s203 + $0xc] sm:$0xff]
      %v1978 = vmul.f32 %v1976, -0.022719344
      %v1979 = vmul.f32 %v1977, -0.022719344
      %v1980 = vadd.f32 %v1966, %v1978
      %v1981 = vadd.f32 %v1967, %v1979
      %v1982 = vmul.f32 %v1976, -0.06213501
      %v1983 = vmul.f32 %v1977, -0.06213501
      %v1984 = vadd.f32 %v1970, %v1982
      %v1985 = vadd.f32 %v1971, %v1983
      %v1986 = vmul.f32 %v1976, -0.118759625
      %v1987 = vmul.f32 %v1977, -0.118759625
      %v1988 = vadd.f32 %v1974, %v1986
      %v1989 = vadd.f32 %v1975, %v1987
      %v1990 = vld [vmem:[%s222 + $0x4] sm:$0xff]
      %v1991 = vld [vmem:[%s222 + $0xc] sm:$0xff]
      %v1992 = vmul.f32 %v1990, -0.091362946
      %v1993 = vmul.f32 %v1991, -0.091362946
      %v1994 = vadd.f32 %v1980, %v1992
      %v1995 = vadd.f32 %v1981, %v1993
      %v1996 = vmul.f32 %v1990, 0.06346227
      %v1997 = vmul.f32 %v1991, 0.06346227
      %v1998 = vadd.f32 %v1984, %v1996
      %v1999 = vadd.f32 %v1985, %v1997
      %v2000 = vmul.f32 %v1990, 0.0441959
      %v2001 = vmul.f32 %v1991, 0.0441959
      %v2002 = vadd.f32 %v1988, %v2000
      %v2003 = vadd.f32 %v1989, %v2001
      %v2004 = vmax.f32 %v1994, -3.0
      %v2005 = vmax.f32 %v1995, -3.0
      %v2006 = vmin.f32 %v2004, 3.0
      %v2007 = vmin.f32 %v2005, 3.0
      %s2008 = scalar_lea.vmem %s138, 336
      %2009 = vst.msk [vmem:[%s2008] sm:$0xff] %vm145, %v2006
      %2010 = vst.msk [vmem:[%s2008 + $0x8] sm:$0xff] %vm145, %v2007
      %v2011 = vmax.f32 %v1998, -3.0
      %v2012 = vmax.f32 %v1999, -3.0
      %v2013 = vmin.f32 %v2011, 3.0
      %v2014 = vmin.f32 %v2012, 3.0
      %s2015 = scalar_lea.vmem %s138, 352
      %2016 = vst.msk [vmem:[%s2015] sm:$0xff] %vm145, %v2013
      %2017 = vst.msk [vmem:[%s2015 + $0x8] sm:$0xff] %vm145, %v2014
      %v2018 = vmax.f32 %v2002, -3.0
      %v2019 = vmax.f32 %v2003, -3.0
      %v2020 = vmin.f32 %v2018, 3.0
      %v2021 = vmin.f32 %v2019, 3.0
      %s2022 = scalar_lea.vmem %s138, 368
      %2023 = vst.msk [vmem:[%s2022] sm:$0xff] %vm145, %v2020
      %2024 = vst.msk [vmem:[%s2022 + $0x8] sm:$0xff] %vm145, %v2021
      %v2025 = vld [vmem:[#allocation2] sm:$0xff]
      %v2026 = vld [vmem:[#allocation2 + $0x8] sm:$0xff]
      %v2027 = vmul.f32 %v2025, -0.12002495
      %v2028 = vmul.f32 %v2026, -0.12002495
      %v2029 = vmul.f32 %v2025, 0.030024095
      %v2030 = vmul.f32 %v2026, 0.030024095
      %v2031 = vmul.f32 %v2025, -0.067667305
      %v2032 = vmul.f32 %v2026, -0.067667305
      %v2033 = vld [vmem:[%s165] sm:$0xff]
      %v2034 = vld [vmem:[%s165 + $0x8] sm:$0xff]
      %v2035 = vmul.f32 %v2033, -0.034542363
      %v2036 = vmul.f32 %v2034, -0.034542363
      %v2037 = vadd.f32 %v2027, %v2035
      %v2038 = vadd.f32 %v2028, %v2036
      %v2039 = vmul.f32 %v2033, 0.042443167
      %v2040 = vmul.f32 %v2034, 0.042443167
      %v2041 = vadd.f32 %v2029, %v2039
      %v2042 = vadd.f32 %v2030, %v2040
      %v2043 = vmul.f32 %v2033, 0.06485208
      %v2044 = vmul.f32 %v2034, 0.06485208
      %v2045 = vadd.f32 %v2031, %v2043
      %v2046 = vadd.f32 %v2032, %v2044
      %v2047 = vld [vmem:[%s184] sm:$0xff]
      %v2048 = vld [vmem:[%s184 + $0x8] sm:$0xff]
      %v2049 = vmul.f32 %v2047, 0.05262925
      %v2050 = vmul.f32 %v2048, 0.05262925
      %v2051 = vadd.f32 %v2037, %v2049
      %v2052 = vadd.f32 %v2038, %v2050
      %v2053 = vmul.f32 %v2047, 0.0035341848
      %v2054 = vmul.f32 %v2048, 0.0035341848
      %v2055 = vadd.f32 %v2041, %v2053
      %v2056 = vadd.f32 %v2042, %v2054
      %v2057 = vmul.f32 %v2047, 0.0856255
      %v2058 = vmul.f32 %v2048, 0.0856255
      %v2059 = vadd.f32 %v2045, %v2057
      %v2060 = vadd.f32 %v2046, %v2058
      %v2061 = vld [vmem:[%s203] sm:$0xff]
      %v2062 = vld [vmem:[%s203 + $0x8] sm:$0xff]
      %v2063 = vmul.f32 %v2061, 0.14832248
      %v2064 = vmul.f32 %v2062, 0.14832248
      %v2065 = vadd.f32 %v2051, %v2063
      %v2066 = vadd.f32 %v2052, %v2064
      %v2067 = vmul.f32 %v2061, -0.014442653
      %v2068 = vmul.f32 %v2062, -0.014442653
      %v2069 = vadd.f32 %v2055, %v2067
      %v2070 = vadd.f32 %v2056, %v2068
      %v2071 = vmul.f32 %v2061, -0.09210456
      %v2072 = vmul.f32 %v2062, -0.09210456
      %v2073 = vadd.f32 %v2059, %v2071
      %v2074 = vadd.f32 %v2060, %v2072
      %v2075 = vld [vmem:[%s222] sm:$0xff]
      %v2076 = vld [vmem:[%s222 + $0x8] sm:$0xff]
      %v2077 = vmul.f32 %v2075, -0.09615514
      %v2078 = vmul.f32 %v2076, -0.09615514
      %v2079 = vadd.f32 %v2065, %v2077
      %v2080 = vadd.f32 %v2066, %v2078
      %v2081 = vmul.f32 %v2075, 0.03649511
      %v2082 = vmul.f32 %v2076, 0.03649511
      %v2083 = vadd.f32 %v2069, %v2081
      %v2084 = vadd.f32 %v2070, %v2082
      %v2085 = vmul.f32 %v2075, -0.0066234614
      %v2086 = vmul.f32 %v2076, -0.0066234614
      %v2087 = vadd.f32 %v2073, %v2085
      %v2088 = vadd.f32 %v2074, %v2086
      %v2089 = vld [vmem:[#allocation2 + $0x1] sm:$0xff]
      %v2090 = vld [vmem:[#allocation2 + $0x9] sm:$0xff]
      %v2091 = vmul.f32 %v2089, 0.2655989
      %v2092 = vmul.f32 %v2090, 0.2655989
      %v2093 = vadd.f32 %v2079, %v2091
      %v2094 = vadd.f32 %v2080, %v2092
      %v2095 = vmul.f32 %v2089, -0.105731495
      %v2096 = vmul.f32 %v2090, -0.105731495
      %v2097 = vadd.f32 %v2083, %v2095
      %v2098 = vadd.f32 %v2084, %v2096
      %v2099 = vmul.f32 %v2089, 0.037397098
      %v2100 = vmul.f32 %v2090, 0.037397098
      %v2101 = vadd.f32 %v2087, %v2099
      %v2102 = vadd.f32 %v2088, %v2100
      %v2103 = vld [vmem:[%s165 + $0x1] sm:$0xff]
      %v2104 = vld [vmem:[%s165 + $0x9] sm:$0xff]
      %v2105 = vmul.f32 %v2103, -0.06665338
      %v2106 = vmul.f32 %v2104, -0.06665338
      %v2107 = vadd.f32 %v2093, %v2105
      %v2108 = vadd.f32 %v2094, %v2106
      %v2109 = vmul.f32 %v2103, 0.0659535
      %v2110 = vmul.f32 %v2104, 0.0659535
      %v2111 = vadd.f32 %v2097, %v2109
      %v2112 = vadd.f32 %v2098, %v2110
      %v2113 = vmul.f32 %v2103, -0.08660083
      %v2114 = vmul.f32 %v2104, -0.08660083
      %v2115 = vadd.f32 %v2101, %v2113
      %v2116 = vadd.f32 %v2102, %v2114
      %v2117 = vld [vmem:[%s184 + $0x1] sm:$0xff]
      %v2118 = vld [vmem:[%s184 + $0x9] sm:$0xff]
      %v2119 = vmul.f32 %v2117, -0.031322893
      %v2120 = vmul.f32 %v2118, -0.031322893
      %v2121 = vadd.f32 %v2107, %v2119
      %v2122 = vadd.f32 %v2108, %v2120
      %v2123 = vmul.f32 %v2117, 0.2275182
      %v2124 = vmul.f32 %v2118, 0.2275182
      %v2125 = vadd.f32 %v2111, %v2123
      %v2126 = vadd.f32 %v2112, %v2124
      %v2127 = vmul.f32 %v2117, 0.17315
      %v2128 = vmul.f32 %v2118, 0.17315
      %v2129 = vadd.f32 %v2115, %v2127
      %v2130 = vadd.f32 %v2116, %v2128
      %v2131 = vld [vmem:[%s203 + $0x1] sm:$0xff]
      %v2132 = vld [vmem:[%s203 + $0x9] sm:$0xff]
      %v2133 = vmul.f32 %v2131, -0.0341842
      %v2134 = vmul.f32 %v2132, -0.0341842
      %v2135 = vadd.f32 %v2121, %v2133
      %v2136 = vadd.f32 %v2122, %v2134
      %v2137 = vmul.f32 %v2131, 0.02227103
      %v2138 = vmul.f32 %v2132, 0.02227103
      %v2139 = vadd.f32 %v2125, %v2137
      %v2140 = vadd.f32 %v2126, %v2138
      %v2141 = vmul.f32 %v2131, 0.08500757
      %v2142 = vmul.f32 %v2132, 0.08500757
      %v2143 = vadd.f32 %v2129, %v2141
      %v2144 = vadd.f32 %v2130, %v2142
      %v2145 = vld [vmem:[%s222 + $0x1] sm:$0xff]
      %v2146 = vld [vmem:[%s222 + $0x9] sm:$0xff]
      %v2147 = vmul.f32 %v2145, -0.18720327
      %v2148 = vmul.f32 %v2146, -0.18720327
      %v2149 = vadd.f32 %v2135, %v2147
      %v2150 = vadd.f32 %v2136, %v2148
      %v2151 = vmul.f32 %v2145, -0.0036195123
      %v2152 = vmul.f32 %v2146, -0.0036195123
      %v2153 = vadd.f32 %v2139, %v2151
      %v2154 = vadd.f32 %v2140, %v2152
      %v2155 = vmul.f32 %v2145, 0.052786008
      %v2156 = vmul.f32 %v2146, 0.052786008
      %v2157 = vadd.f32 %v2143, %v2155
      %v2158 = vadd.f32 %v2144, %v2156
      %v2159 = vld [vmem:[#allocation2 + $0x2] sm:$0xff]
      %v2160 = vld [vmem:[#allocation2 + $0xa] sm:$0xff]
      %v2161 = vmul.f32 %v2159, 0.107392274
      %v2162 = vmul.f32 %v2160, 0.107392274
      %v2163 = vadd.f32 %v2149, %v2161
      %v2164 = vadd.f32 %v2150, %v2162
      %v2165 = vmul.f32 %v2159, 0.014173734
      %v2166 = vmul.f32 %v2160, 0.014173734
      %v2167 = vadd.f32 %v2153, %v2165
      %v2168 = vadd.f32 %v2154, %v2166
      %v2169 = vmul.f32 %v2159, -0.041415792
      %v2170 = vmul.f32 %v2160, -0.041415792
      %v2171 = vadd.f32 %v2157, %v2169
      %v2172 = vadd.f32 %v2158, %v2170
      %v2173 = vld [vmem:[%s165 + $0x2] sm:$0xff]
      %v2174 = vld [vmem:[%s165 + $0xa] sm:$0xff]
      %v2175 = vmul.f32 %v2173, 0.10110574
      %v2176 = vmul.f32 %v2174, 0.10110574
      %v2177 = vadd.f32 %v2163, %v2175
      %v2178 = vadd.f32 %v2164, %v2176
      %v2179 = vmul.f32 %v2173, -0.105583854
      %v2180 = vmul.f32 %v2174, -0.105583854
      %v2181 = vadd.f32 %v2167, %v2179
      %v2182 = vadd.f32 %v2168, %v2180
      %v2183 = vmul.f32 %v2173, -0.1384941
      %v2184 = vmul.f32 %v2174, -0.1384941
      %v2185 = vadd.f32 %v2171, %v2183
      %v2186 = vadd.f32 %v2172, %v2184
      %v2187 = vld [vmem:[%s184 + $0x2] sm:$0xff]
      %v2188 = vld [vmem:[%s184 + $0xa] sm:$0xff]
      %v2189 = vmul.f32 %v2187, 0.15419419
      %v2190 = vmul.f32 %v2188, 0.15419419
      %v2191 = vadd.f32 %v2177, %v2189
      %v2192 = vadd.f32 %v2178, %v2190
      %v2193 = vmul.f32 %v2187, -0.07538927
      %v2194 = vmul.f32 %v2188, -0.07538927
      %v2195 = vadd.f32 %v2181, %v2193
      %v2196 = vadd.f32 %v2182, %v2194
      %v2197 = vmul.f32 %v2187, 0.057757568
      %v2198 = vmul.f32 %v2188, 0.057757568
      %v2199 = vadd.f32 %v2185, %v2197
      %v2200 = vadd.f32 %v2186, %v2198
      %v2201 = vld [vmem:[%s203 + $0x2] sm:$0xff]
      %v2202 = vld [vmem:[%s203 + $0xa] sm:$0xff]
      %v2203 = vmul.f32 %v2201, -0.17750402
      %v2204 = vmul.f32 %v2202, -0.17750402
      %v2205 = vadd.f32 %v2191, %v2203
      %v2206 = vadd.f32 %v2192, %v2204
      %v2207 = vmul.f32 %v2201, 0.056910906
      %v2208 = vmul.f32 %v2202, 0.056910906
      %v2209 = vadd.f32 %v2195, %v2207
      %v2210 = vadd.f32 %v2196, %v2208
      %v2211 = vmul.f32 %v2201, -0.06889195
      %v2212 = vmul.f32 %v2202, -0.06889195
      %v2213 = vadd.f32 %v2199, %v2211
      %v2214 = vadd.f32 %v2200, %v2212
      %v2215 = vld [vmem:[%s222 + $0x2] sm:$0xff]
      %v2216 = vld [vmem:[%s222 + $0xa] sm:$0xff]
      %v2217 = vmul.f32 %v2215, -0.00648698
      %v2218 = vmul.f32 %v2216, -0.00648698
      %v2219 = vadd.f32 %v2205, %v2217
      %v2220 = vadd.f32 %v2206, %v2218
      %v2221 = vmul.f32 %v2215, -0.05333105
      %v2222 = vmul.f32 %v2216, -0.05333105
      %v2223 = vadd.f32 %v2209, %v2221
      %v2224 = vadd.f32 %v2210, %v2222
      %v2225 = vmul.f32 %v2215, -0.12283763
      %v2226 = vmul.f32 %v2216, -0.12283763
      %v2227 = vadd.f32 %v2213, %v2225
      %v2228 = vadd.f32 %v2214, %v2226
      %v2229 = vld [vmem:[#allocation2 + $0x3] sm:$0xff]
      %v2230 = vld [vmem:[#allocation2 + $0xb] sm:$0xff]
      %v2231 = vmul.f32 %v2229, -0.029649122
      %v2232 = vmul.f32 %v2230, -0.029649122
      %v2233 = vadd.f32 %v2219, %v2231
      %v2234 = vadd.f32 %v2220, %v2232
      %v2235 = vmul.f32 %v2229, -0.11604807
      %v2236 = vmul.f32 %v2230, -0.11604807
      %v2237 = vadd.f32 %v2223, %v2235
      %v2238 = vadd.f32 %v2224, %v2236
      %v2239 = vmul.f32 %v2229, -0.03903495
      %v2240 = vmul.f32 %v2230, -0.03903495
      %v2241 = vadd.f32 %v2227, %v2239
      %v2242 = vadd.f32 %v2228, %v2240
      %v2243 = vld [vmem:[%s165 + $0x3] sm:$0xff]
      %v2244 = vld [vmem:[%s165 + $0xb] sm:$0xff]
      %v2245 = vmul.f32 %v2243, 0.044997837
      %v2246 = vmul.f32 %v2244, 0.044997837
      %v2247 = vadd.f32 %v2233, %v2245
      %v2248 = vadd.f32 %v2234, %v2246
      %v2249 = vmul.f32 %v2243, 0.11940104
      %v2250 = vmul.f32 %v2244, 0.11940104
      %v2251 = vadd.f32 %v2237, %v2249
      %v2252 = vadd.f32 %v2238, %v2250
      %v2253 = vmul.f32 %v2243, -0.028703904
      %v2254 = vmul.f32 %v2244, -0.028703904
      %v2255 = vadd.f32 %v2241, %v2253
      %v2256 = vadd.f32 %v2242, %v2254
      %v2257 = vld [vmem:[%s184 + $0x3] sm:$0xff]
      %v2258 = vld [vmem:[%s184 + $0xb] sm:$0xff]
      %v2259 = vmul.f32 %v2257, -0.06939819
      %v2260 = vmul.f32 %v2258, -0.06939819
      %v2261 = vadd.f32 %v2247, %v2259
      %v2262 = vadd.f32 %v2248, %v2260
      %v2263 = vmul.f32 %v2257, 0.065939225
      %v2264 = vmul.f32 %v2258, 0.065939225
      %v2265 = vadd.f32 %v2251, %v2263
      %v2266 = vadd.f32 %v2252, %v2264
      %v2267 = vmul.f32 %v2257, 0.04394093
      %v2268 = vmul.f32 %v2258, 0.04394093
      %v2269 = vadd.f32 %v2255, %v2267
      %v2270 = vadd.f32 %v2256, %v2268
      %v2271 = vld [vmem:[%s203 + $0x3] sm:$0xff]
      %v2272 = vld [vmem:[%s203 + $0xb] sm:$0xff]
      %v2273 = vmul.f32 %v2271, -0.018290795
      %v2274 = vmul.f32 %v2272, -0.018290795
      %v2275 = vadd.f32 %v2261, %v2273
      %v2276 = vadd.f32 %v2262, %v2274
      %v2277 = vmul.f32 %v2271, 0.03626793
      %v2278 = vmul.f32 %v2272, 0.03626793
      %v2279 = vadd.f32 %v2265, %v2277
      %v2280 = vadd.f32 %v2266, %v2278
      %v2281 = vmul.f32 %v2271, 0.1565772
      %v2282 = vmul.f32 %v2272, 0.1565772
      %v2283 = vadd.f32 %v2269, %v2281
      %v2284 = vadd.f32 %v2270, %v2282
      %v2285 = vld [vmem:[%s222 + $0x3] sm:$0xff]
      %v2286 = vld [vmem:[%s222 + $0xb] sm:$0xff]
      %v2287 = vmul.f32 %v2285, -0.01958453
      %v2288 = vmul.f32 %v2286, -0.01958453
      %v2289 = vadd.f32 %v2275, %v2287
      %v2290 = vadd.f32 %v2276, %v2288
      %v2291 = vmul.f32 %v2285, 0.037528615
      %v2292 = vmul.f32 %v2286, 0.037528615
      %v2293 = vadd.f32 %v2279, %v2291
      %v2294 = vadd.f32 %v2280, %v2292
      %v2295 = vmul.f32 %v2285, -0.13259703
      %v2296 = vmul.f32 %v2286, -0.13259703
      %v2297 = vadd.f32 %v2283, %v2295
      %v2298 = vadd.f32 %v2284, %v2296
      %v2299 = vld [vmem:[#allocation2 + $0x4] sm:$0xff]
      %v2300 = vld [vmem:[#allocation2 + $0xc] sm:$0xff]
      %v2301 = vmul.f32 %v2299, -0.03036481
      %v2302 = vmul.f32 %v2300, -0.03036481
      %v2303 = vadd.f32 %v2289, %v2301
      %v2304 = vadd.f32 %v2290, %v2302
      %v2305 = vmul.f32 %v2299, 0.10061521
      %v2306 = vmul.f32 %v2300, 0.10061521
      %v2307 = vadd.f32 %v2293, %v2305
      %v2308 = vadd.f32 %v2294, %v2306
      %v2309 = vmul.f32 %v2299, -0.078516446
      %v2310 = vmul.f32 %v2300, -0.078516446
      %v2311 = vadd.f32 %v2297, %v2309
      %v2312 = vadd.f32 %v2298, %v2310
      %v2313 = vld [vmem:[%s165 + $0x4] sm:$0xff]
      %v2314 = vld [vmem:[%s165 + $0xc] sm:$0xff]
      %v2315 = vmul.f32 %v2313, -0.105647795
      %v2316 = vmul.f32 %v2314, -0.105647795
      %v2317 = vadd.f32 %v2303, %v2315
      %v2318 = vadd.f32 %v2304, %v2316
      %v2319 = vmul.f32 %v2313, -0.07976935
      %v2320 = vmul.f32 %v2314, -0.07976935
      %v2321 = vadd.f32 %v2307, %v2319
      %v2322 = vadd.f32 %v2308, %v2320
      %v2323 = vmul.f32 %v2313, 0.07265394
      %v2324 = vmul.f32 %v2314, 0.07265394
      %v2325 = vadd.f32 %v2311, %v2323
      %v2326 = vadd.f32 %v2312, %v2324
      %v2327 = vld [vmem:[%s184 + $0x4] sm:$0xff]
      %v2328 = vld [vmem:[%s184 + $0xc] sm:$0xff]
      %v2329 = vmul.f32 %v2327, -0.13853277
      %v2330 = vmul.f32 %v2328, -0.13853277
      %v2331 = vadd.f32 %v2317, %v2329
      %v2332 = vadd.f32 %v2318, %v2330
      %v2333 = vmul.f32 %v2327, -0.06900364
      %v2334 = vmul.f32 %v2328, -0.06900364
      %v2335 = vadd.f32 %v2321, %v2333
      %v2336 = vadd.f32 %v2322, %v2334
      %v2337 = vmul.f32 %v2327, 0.052545834
      %v2338 = vmul.f32 %v2328, 0.052545834
      %v2339 = vadd.f32 %v2325, %v2337
      %v2340 = vadd.f32 %v2326, %v2338
      %v2341 = vld [vmem:[%s203 + $0x4] sm:$0xff]
      %v2342 = vld [vmem:[%s203 + $0xc] sm:$0xff]
      %v2343 = vmul.f32 %v2341, 0.14262153
      %v2344 = vmul.f32 %v2342, 0.14262153
      %v2345 = vadd.f32 %v2331, %v2343
      %v2346 = vadd.f32 %v2332, %v2344
      %v2347 = vmul.f32 %v2341, -0.02207789
      %v2348 = vmul.f32 %v2342, -0.02207789
      %v2349 = vadd.f32 %v2335, %v2347
      %v2350 = vadd.f32 %v2336, %v2348
      %v2351 = vmul.f32 %v2341, 0.12100977
      %v2352 = vmul.f32 %v2342, 0.12100977
      %v2353 = vadd.f32 %v2339, %v2351
      %v2354 = vadd.f32 %v2340, %v2352
      %v2355 = vld [vmem:[%s222 + $0x4] sm:$0xff]
      %v2356 = vld [vmem:[%s222 + $0xc] sm:$0xff]
      %v2357 = vmul.f32 %v2355, 0.046501484
      %v2358 = vmul.f32 %v2356, 0.046501484
      %v2359 = vadd.f32 %v2345, %v2357
      %v2360 = vadd.f32 %v2346, %v2358
      %v2361 = vmul.f32 %v2355, 0.0020653913
      %v2362 = vmul.f32 %v2356, 0.0020653913
      %v2363 = vadd.f32 %v2349, %v2361
      %v2364 = vadd.f32 %v2350, %v2362
      %v2365 = vmul.f32 %v2355, -0.032796837
      %v2366 = vmul.f32 %v2356, -0.032796837
      %v2367 = vadd.f32 %v2353, %v2365
      %v2368 = vadd.f32 %v2354, %v2366
      %v2369 = vmax.f32 %v2359, -3.0
      %v2370 = vmax.f32 %v2360, -3.0
      %v2371 = vmin.f32 %v2369, 3.0
      %v2372 = vmin.f32 %v2370, 3.0
      %s2373 = scalar_lea.vmem %s138, 384
      %2374 = vst.msk [vmem:[%s2373] sm:$0xff] %vm145, %v2371
      %2375 = vst.msk [vmem:[%s2373 + $0x8] sm:$0xff] %vm145, %v2372
      %v2376 = vmax.f32 %v2363, -3.0
      %v2377 = vmax.f32 %v2364, -3.0
      %v2378 = vmin.f32 %v2376, 3.0
      %v2379 = vmin.f32 %v2377, 3.0
      %s2380 = scalar_lea.vmem %s138, 400
      %2381 = vst.msk [vmem:[%s2380] sm:$0xff] %vm145, %v2378
      %2382 = vst.msk [vmem:[%s2380 + $0x8] sm:$0xff] %vm145, %v2379
      %v2383 = vmax.f32 %v2367, -3.0
      %v2384 = vmax.f32 %v2368, -3.0
      %v2385 = vmin.f32 %v2383, 3.0
      %v2386 = vmin.f32 %v2384, 3.0
      %s2387 = scalar_lea.vmem %s138, 416
      %2388 = vst.msk [vmem:[%s2387] sm:$0xff] %vm145, %v2385
      %2389 = vst.msk [vmem:[%s2387 + $0x8] sm:$0xff] %vm145, %v2386
      %v2390 = vld [vmem:[#allocation2] sm:$0xff]
      %v2391 = vld [vmem:[#allocation2 + $0x8] sm:$0xff]
      %v2392 = vmul.f32 %v2390, 0.15474279
      %v2393 = vmul.f32 %v2391, 0.15474279
      %v2394 = vmul.f32 %v2390, -0.03653983
      %v2395 = vmul.f32 %v2391, -0.03653983
      %v2396 = vmul.f32 %v2390, 0.029891944
      %v2397 = vmul.f32 %v2391, 0.029891944
      %v2398 = vld [vmem:[%s165] sm:$0xff]
      %v2399 = vld [vmem:[%s165 + $0x8] sm:$0xff]
      %v2400 = vmul.f32 %v2398, -0.009237167
      %v2401 = vmul.f32 %v2399, -0.009237167
      %v2402 = vadd.f32 %v2392, %v2400
      %v2403 = vadd.f32 %v2393, %v2401
      %v2404 = vmul.f32 %v2398, 0.112665
      %v2405 = vmul.f32 %v2399, 0.112665
      %v2406 = vadd.f32 %v2394, %v2404
      %v2407 = vadd.f32 %v2395, %v2405
      %v2408 = vmul.f32 %v2398, -0.02933696
      %v2409 = vmul.f32 %v2399, -0.02933696
      %v2410 = vadd.f32 %v2396, %v2408
      %v2411 = vadd.f32 %v2397, %v2409
      %v2412 = vld [vmem:[%s184] sm:$0xff]
      %v2413 = vld [vmem:[%s184 + $0x8] sm:$0xff]
      %v2414 = vmul.f32 %v2412, -0.075433746
      %v2415 = vmul.f32 %v2413, -0.075433746
      %v2416 = vadd.f32 %v2402, %v2414
      %v2417 = vadd.f32 %v2403, %v2415
      %v2418 = vmul.f32 %v2412, -0.06535807
      %v2419 = vmul.f32 %v2413, -0.06535807
      %v2420 = vadd.f32 %v2406, %v2418
      %v2421 = vadd.f32 %v2407, %v2419
      %v2422 = vmul.f32 %v2412, 0.0010006566
      %v2423 = vmul.f32 %v2413, 0.0010006566
      %v2424 = vadd.f32 %v2410, %v2422
      %v2425 = vadd.f32 %v2411, %v2423
      %v2426 = vld [vmem:[%s203] sm:$0xff]
      %v2427 = vld [vmem:[%s203 + $0x8] sm:$0xff]
      %v2428 = vmul.f32 %v2426, -0.17248295
      %v2429 = vmul.f32 %v2427, -0.17248295
      %v2430 = vadd.f32 %v2416, %v2428
      %v2431 = vadd.f32 %v2417, %v2429
      %v2432 = vmul.f32 %v2426, -0.17078625
      %v2433 = vmul.f32 %v2427, -0.17078625
      %v2434 = vadd.f32 %v2420, %v2432
      %v2435 = vadd.f32 %v2421, %v2433
      %v2436 = vmul.f32 %v2426, 0.14733452
      %v2437 = vmul.f32 %v2427, 0.14733452
      %v2438 = vadd.f32 %v2424, %v2436
      %v2439 = vadd.f32 %v2425, %v2437
      %v2440 = vld [vmem:[%s222] sm:$0xff]
      %v2441 = vld [vmem:[%s222 + $0x8] sm:$0xff]
      %v2442 = vmul.f32 %v2440, -0.0034896594
      %v2443 = vmul.f32 %v2441, -0.0034896594
      %v2444 = vadd.f32 %v2430, %v2442
      %v2445 = vadd.f32 %v2431, %v2443
      %v2446 = vmul.f32 %v2440, -0.01385469
      %v2447 = vmul.f32 %v2441, -0.01385469
      %v2448 = vadd.f32 %v2434, %v2446
      %v2449 = vadd.f32 %v2435, %v2447
      %v2450 = vmul.f32 %v2440, -0.013113906
      %v2451 = vmul.f32 %v2441, -0.013113906
      %v2452 = vadd.f32 %v2438, %v2450
      %v2453 = vadd.f32 %v2439, %v2451
      %v2454 = vld [vmem:[#allocation2 + $0x1] sm:$0xff]
      %v2455 = vld [vmem:[#allocation2 + $0x9] sm:$0xff]
      %v2456 = vmul.f32 %v2454, -0.0056196502
      %v2457 = vmul.f32 %v2455, -0.0056196502
      %v2458 = vadd.f32 %v2444, %v2456
      %v2459 = vadd.f32 %v2445, %v2457
      %v2460 = vmul.f32 %v2454, 0.007539004
      %v2461 = vmul.f32 %v2455, 0.007539004
      %v2462 = vadd.f32 %v2448, %v2460
      %v2463 = vadd.f32 %v2449, %v2461
      %v2464 = vmul.f32 %v2454, -0.06506251
      %v2465 = vmul.f32 %v2455, -0.06506251
      %v2466 = vadd.f32 %v2452, %v2464
      %v2467 = vadd.f32 %v2453, %v2465
      %v2468 = vld [vmem:[%s165 + $0x1] sm:$0xff]
      %v2469 = vld [vmem:[%s165 + $0x9] sm:$0xff]
      %v2470 = vmul.f32 %v2468, 0.0456403
      %v2471 = vmul.f32 %v2469, 0.0456403
      %v2472 = vadd.f32 %v2458, %v2470
      %v2473 = vadd.f32 %v2459, %v2471
      %v2474 = vmul.f32 %v2468, 0.09130486
      %v2475 = vmul.f32 %v2469, 0.09130486
      %v2476 = vadd.f32 %v2462, %v2474
      %v2477 = vadd.f32 %v2463, %v2475
      %v2478 = vmul.f32 %v2468, 0.0029105172
      %v2479 = vmul.f32 %v2469, 0.0029105172
      %v2480 = vadd.f32 %v2466, %v2478
      %v2481 = vadd.f32 %v2467, %v2479
      %v2482 = vld [vmem:[%s184 + $0x1] sm:$0xff]
      %v2483 = vld [vmem:[%s184 + $0x9] sm:$0xff]
      %v2484 = vmul.f32 %v2482, -0.031160897
      %v2485 = vmul.f32 %v2483, -0.031160897
      %v2486 = vadd.f32 %v2472, %v2484
      %v2487 = vadd.f32 %v2473, %v2485
      %v2488 = vmul.f32 %v2482, -0.14810783
      %v2489 = vmul.f32 %v2483, -0.14810783
      %v2490 = vadd.f32 %v2476, %v2488
      %v2491 = vadd.f32 %v2477, %v2489
      %v2492 = vmul.f32 %v2482, 0.07993138
      %v2493 = vmul.f32 %v2483, 0.07993138
      %v2494 = vadd.f32 %v2480, %v2492
      %v2495 = vadd.f32 %v2481, %v2493
      %v2496 = vld [vmem:[%s203 + $0x1] sm:$0xff]
      %v2497 = vld [vmem:[%s203 + $0x9] sm:$0xff]
      %v2498 = vmul.f32 %v2496, -0.05378668
      %v2499 = vmul.f32 %v2497, -0.05378668
      %v2500 = vadd.f32 %v2486, %v2498
      %v2501 = vadd.f32 %v2487, %v2499
      %v2502 = vmul.f32 %v2496, 0.019164465
      %v2503 = vmul.f32 %v2497, 0.019164465
      %v2504 = vadd.f32 %v2490, %v2502
      %v2505 = vadd.f32 %v2491, %v2503
      %v2506 = vmul.f32 %v2496, -0.115941525
      %v2507 = vmul.f32 %v2497, -0.115941525
      %v2508 = vadd.f32 %v2494, %v2506
      %v2509 = vadd.f32 %v2495, %v2507
      %v2510 = vld [vmem:[%s222 + $0x1] sm:$0xff]
      %v2511 = vld [vmem:[%s222 + $0x9] sm:$0xff]
      %v2512 = vmul.f32 %v2510, -0.07190367
      %v2513 = vmul.f32 %v2511, -0.07190367
      %v2514 = vadd.f32 %v2500, %v2512
      %v2515 = vadd.f32 %v2501, %v2513
      %v2516 = vmul.f32 %v2510, 0.10880739
      %v2517 = vmul.f32 %v2511, 0.10880739
      %v2518 = vadd.f32 %v2504, %v2516
      %v2519 = vadd.f32 %v2505, %v2517
      %v2520 = vmul.f32 %v2510, -0.15826626
      %v2521 = vmul.f32 %v2511, -0.15826626
      %v2522 = vadd.f32 %v2508, %v2520
      %v2523 = vadd.f32 %v2509, %v2521
      %v2524 = vld [vmem:[#allocation2 + $0x2] sm:$0xff]
      %v2525 = vld [vmem:[#allocation2 + $0xa] sm:$0xff]
      %v2526 = vmul.f32 %v2524, 0.0881261
      %v2527 = vmul.f32 %v2525, 0.0881261
      %v2528 = vadd.f32 %v2514, %v2526
      %v2529 = vadd.f32 %v2515, %v2527
      %v2530 = vmul.f32 %v2524, 0.12911898
      %v2531 = vmul.f32 %v2525, 0.12911898
      %v2532 = vadd.f32 %v2518, %v2530
      %v2533 = vadd.f32 %v2519, %v2531
      %v2534 = vmul.f32 %v2524, -0.03168639
      %v2535 = vmul.f32 %v2525, -0.03168639
      %v2536 = vadd.f32 %v2522, %v2534
      %v2537 = vadd.f32 %v2523, %v2535
      %v2538 = vld [vmem:[%s165 + $0x2] sm:$0xff]
      %v2539 = vld [vmem:[%s165 + $0xa] sm:$0xff]
      %v2540 = vmul.f32 %v2538, 0.115317255
      %v2541 = vmul.f32 %v2539, 0.115317255
      %v2542 = vadd.f32 %v2528, %v2540
      %v2543 = vadd.f32 %v2529, %v2541
      %v2544 = vmul.f32 %v2538, -0.08080541
      %v2545 = vmul.f32 %v2539, -0.08080541
      %v2546 = vadd.f32 %v2532, %v2544
      %v2547 = vadd.f32 %v2533, %v2545
      %v2548 = vmul.f32 %v2538, -0.032282554
      %v2549 = vmul.f32 %v2539, -0.032282554
      %v2550 = vadd.f32 %v2536, %v2548
      %v2551 = vadd.f32 %v2537, %v2549
      %v2552 = vld [vmem:[%s184 + $0x2] sm:$0xff]
      %v2553 = vld [vmem:[%s184 + $0xa] sm:$0xff]
      %v2554 = vmul.f32 %v2552, 0.08652077
      %v2555 = vmul.f32 %v2553, 0.08652077
      %v2556 = vadd.f32 %v2542, %v2554
      %v2557 = vadd.f32 %v2543, %v2555
      %v2558 = vmul.f32 %v2552, -0.0444167
      %v2559 = vmul.f32 %v2553, -0.0444167
      %v2560 = vadd.f32 %v2546, %v2558
      %v2561 = vadd.f32 %v2547, %v2559
      %v2562 = vmul.f32 %v2552, -0.13000537
      %v2563 = vmul.f32 %v2553, -0.13000537
      %v2564 = vadd.f32 %v2550, %v2562
      %v2565 = vadd.f32 %v2551, %v2563
      %v2566 = vld [vmem:[%s203 + $0x2] sm:$0xff]
      %v2567 = vld [vmem:[%s203 + $0xa] sm:$0xff]
      %v2568 = vmul.f32 %v2566, -0.099595964
      %v2569 = vmul.f32 %v2567, -0.099595964
      %v2570 = vadd.f32 %v2556, %v2568
      %v2571 = vadd.f32 %v2557, %v2569
      %v2572 = vmul.f32 %v2566, 0.10670439
      %v2573 = vmul.f32 %v2567, 0.10670439
      %v2574 = vadd.f32 %v2560, %v2572
      %v2575 = vadd.f32 %v2561, %v2573
      %v2576 = vmul.f32 %v2566, -0.029028038
      %v2577 = vmul.f32 %v2567, -0.029028038
      %v2578 = vadd.f32 %v2564, %v2576
      %v2579 = vadd.f32 %v2565, %v2577
      %v2580 = vld [vmem:[%s222 + $0x2] sm:$0xff]
      %v2581 = vld [vmem:[%s222 + $0xa] sm:$0xff]
      %v2582 = vmul.f32 %v2580, -0.039785918
      %v2583 = vmul.f32 %v2581, -0.039785918
      %v2584 = vadd.f32 %v2570, %v2582
      %v2585 = vadd.f32 %v2571, %v2583
      %v2586 = vmul.f32 %v2580, 0.18921185
      %v2587 = vmul.f32 %v2581, 0.18921185
      %v2588 = vadd.f32 %v2574, %v2586
      %v2589 = vadd.f32 %v2575, %v2587
      %v2590 = vmul.f32 %v2580, 0.08344146
      %v2591 = vmul.f32 %v2581, 0.08344146
      %v2592 = vadd.f32 %v2578, %v2590
      %v2593 = vadd.f32 %v2579, %v2591
      %v2594 = vld [vmem:[#allocation2 + $0x3] sm:$0xff]
      %v2595 = vld [vmem:[#allocation2 + $0xb] sm:$0xff]
      %v2596 = vmul.f32 %v2594, -0.13985306
      %v2597 = vmul.f32 %v2595, -0.13985306
      %v2598 = vadd.f32 %v2584, %v2596
      %v2599 = vadd.f32 %v2585, %v2597
      %v2600 = vmul.f32 %v2594, 0.08572181
      %v2601 = vmul.f32 %v2595, 0.08572181
      %v2602 = vadd.f32 %v2588, %v2600
      %v2603 = vadd.f32 %v2589, %v2601
      %v2604 = vmul.f32 %v2594, 0.052829355
      %v2605 = vmul.f32 %v2595, 0.052829355
      %v2606 = vadd.f32 %v2592, %v2604
      %v2607 = vadd.f32 %v2593, %v2605
      %v2608 = vld [vmem:[%s165 + $0x3] sm:$0xff]
      %v2609 = vld [vmem:[%s165 + $0xb] sm:$0xff]
      %v2610 = vmul.f32 %v2608, 0.039420787
      %v2611 = vmul.f32 %v2609, 0.039420787
      %v2612 = vadd.f32 %v2598, %v2610
      %v2613 = vadd.f32 %v2599, %v2611
      %v2614 = vmul.f32 %v2608, 0.12880437
      %v2615 = vmul.f32 %v2609, 0.12880437
      %v2616 = vadd.f32 %v2602, %v2614
      %v2617 = vadd.f32 %v2603, %v2615
      %v2618 = vmul.f32 %v2608, -0.04900016
      %v2619 = vmul.f32 %v2609, -0.04900016
      %v2620 = vadd.f32 %v2606, %v2618
      %v2621 = vadd.f32 %v2607, %v2619
      %v2622 = vld [vmem:[%s184 + $0x3] sm:$0xff]
      %v2623 = vld [vmem:[%s184 + $0xb] sm:$0xff]
      %v2624 = vmul.f32 %v2622, 0.05922242
      %v2625 = vmul.f32 %v2623, 0.05922242
      %v2626 = vadd.f32 %v2612, %v2624
      %v2627 = vadd.f32 %v2613, %v2625
      %v2628 = vmul.f32 %v2622, -0.11382943
      %v2629 = vmul.f32 %v2623, -0.11382943
      %v2630 = vadd.f32 %v2616, %v2628
      %v2631 = vadd.f32 %v2617, %v2629
      %v2632 = vmul.f32 %v2622, 0.024430603
      %v2633 = vmul.f32 %v2623, 0.024430603
      %v2634 = vadd.f32 %v2620, %v2632
      %v2635 = vadd.f32 %v2621, %v2633
      %v2636 = vld [vmem:[%s203 + $0x3] sm:$0xff]
      %v2637 = vld [vmem:[%s203 + $0xb] sm:$0xff]
      %v2638 = vmul.f32 %v2636, 0.0387376
      %v2639 = vmul.f32 %v2637, 0.0387376
      %v2640 = vadd.f32 %v2626, %v2638
      %v2641 = vadd.f32 %v2627, %v2639
      %v2642 = vmul.f32 %v2636, -0.11189029
      %v2643 = vmul.f32 %v2637, -0.11189029
      %v2644 = vadd.f32 %v2630, %v2642
      %v2645 = vadd.f32 %v2631, %v2643
      %v2646 = vmul.f32 %v2636, 0.016802056
      %v2647 = vmul.f32 %v2637, 0.016802056
      %v2648 = vadd.f32 %v2634, %v2646
      %v2649 = vadd.f32 %v2635, %v2647
      %v2650 = vld [vmem:[%s222 + $0x3] sm:$0xff]
      %v2651 = vld [vmem:[%s222 + $0xb] sm:$0xff]
      %v2652 = vmul.f32 %v2650, -0.15278126
      %v2653 = vmul.f32 %v2651, -0.15278126
      %v2654 = vadd.f32 %v2640, %v2652
      %v2655 = vadd.f32 %v2641, %v2653
      %v2656 = vmul.f32 %v2650, 0.095101416
      %v2657 = vmul.f32 %v2651, 0.095101416
      %v2658 = vadd.f32 %v2644, %v2656
      %v2659 = vadd.f32 %v2645, %v2657
      %v2660 = vmul.f32 %v2650, -0.12314398
      %v2661 = vmul.f32 %v2651, -0.12314398
      %v2662 = vadd.f32 %v2648, %v2660
      %v2663 = vadd.f32 %v2649, %v2661
      %v2664 = vld [vmem:[#allocation2 + $0x4] sm:$0xff]
      %v2665 = vld [vmem:[#allocation2 + $0xc] sm:$0xff]
      %v2666 = vmul.f32 %v2664, 0.084137045
      %v2667 = vmul.f32 %v2665, 0.084137045
      %v2668 = vadd.f32 %v2654, %v2666
      %v2669 = vadd.f32 %v2655, %v2667
      %v2670 = vmul.f32 %v2664, -0.088818066
      %v2671 = vmul.f32 %v2665, -0.088818066
      %v2672 = vadd.f32 %v2658, %v2670
      %v2673 = vadd.f32 %v2659, %v2671
      %v2674 = vmul.f32 %v2664, 0.0020030206
      %v2675 = vmul.f32 %v2665, 0.0020030206
      %v2676 = vadd.f32 %v2662, %v2674
      %v2677 = vadd.f32 %v2663, %v2675
      %v2678 = vld [vmem:[%s165 + $0x4] sm:$0xff]
      %v2679 = vld [vmem:[%s165 + $0xc] sm:$0xff]
      %v2680 = vmul.f32 %v2678, -0.1489896
      %v2681 = vmul.f32 %v2679, -0.1489896
      %v2682 = vadd.f32 %v2668, %v2680
      %v2683 = vadd.f32 %v2669, %v2681
      %v2684 = vmul.f32 %v2678, -0.02935092
      %v2685 = vmul.f32 %v2679, -0.02935092
      %v2686 = vadd.f32 %v2672, %v2684
      %v2687 = vadd.f32 %v2673, %v2685
      %v2688 = vmul.f32 %v2678, -0.0053638592
      %v2689 = vmul.f32 %v2679, -0.0053638592
      %v2690 = vadd.f32 %v2676, %v2688
      %v2691 = vadd.f32 %v2677, %v2689
      %v2692 = vld [vmem:[%s184 + $0x4] sm:$0xff]
      %v2693 = vld [vmem:[%s184 + $0xc] sm:$0xff]
      %v2694 = vmul.f32 %v2692, 0.03944393
      %v2695 = vmul.f32 %v2693, 0.03944393
      %v2696 = vadd.f32 %v2682, %v2694
      %v2697 = vadd.f32 %v2683, %v2695
      %v2698 = vmul.f32 %v2692, 0.025795242
      %v2699 = vmul.f32 %v2693, 0.025795242
      %v2700 = vadd.f32 %v2686, %v2698
      %v2701 = vadd.f32 %v2687, %v2699
      %v2702 = vmul.f32 %v2692, -0.057738554
      %v2703 = vmul.f32 %v2693, -0.057738554
      %v2704 = vadd.f32 %v2690, %v2702
      %v2705 = vadd.f32 %v2691, %v2703
      %v2706 = vld [vmem:[%s203 + $0x4] sm:$0xff]
      %v2707 = vld [vmem:[%s203 + $0xc] sm:$0xff]
      %v2708 = vmul.f32 %v2706, 0.068693504
      %v2709 = vmul.f32 %v2707, 0.068693504
      %v2710 = vadd.f32 %v2696, %v2708
      %v2711 = vadd.f32 %v2697, %v2709
      %v2712 = vmul.f32 %v2706, -0.008212682
      %v2713 = vmul.f32 %v2707, -0.008212682
      %v2714 = vadd.f32 %v2700, %v2712
      %v2715 = vadd.f32 %v2701, %v2713
      %v2716 = vmul.f32 %v2706, -0.04524301
      %v2717 = vmul.f32 %v2707, -0.04524301
      %v2718 = vadd.f32 %v2704, %v2716
      %v2719 = vadd.f32 %v2705, %v2717
      %v2720 = vld [vmem:[%s222 + $0x4] sm:$0xff]
      %v2721 = vld [vmem:[%s222 + $0xc] sm:$0xff]
      %v2722 = vmul.f32 %v2720, 0.05414727
      %v2723 = vmul.f32 %v2721, 0.05414727
      %v2724 = vadd.f32 %v2710, %v2722
      %v2725 = vadd.f32 %v2711, %v2723
      %v2726 = vmul.f32 %v2720, 0.05678427
      %v2727 = vmul.f32 %v2721, 0.05678427
      %v2728 = vadd.f32 %v2714, %v2726
      %v2729 = vadd.f32 %v2715, %v2727
      %v2730 = vmul.f32 %v2720, 0.11251148
      %v2731 = vmul.f32 %v2721, 0.11251148
      %v2732 = vadd.f32 %v2718, %v2730
      %v2733 = vadd.f32 %v2719, %v2731
      %v2734 = vmax.f32 %v2724, -3.0
      %v2735 = vmax.f32 %v2725, -3.0
      %v2736 = vmin.f32 %v2734, 3.0
      %v2737 = vmin.f32 %v2735, 3.0
      %s2738 = scalar_lea.vmem %s138, 432
      %2739 = vst.msk [vmem:[%s2738] sm:$0xff] %vm145, %v2736
      %2740 = vst.msk [vmem:[%s2738 + $0x8] sm:$0xff] %vm145, %v2737
      %v2741 = vmax.f32 %v2728, -3.0
      %v2742 = vmax.f32 %v2729, -3.0
      %v2743 = vmin.f32 %v2741, 3.0
      %v2744 = vmin.f32 %v2742, 3.0
      %s2745 = scalar_lea.vmem %s138, 448
      %2746 = vst.msk [vmem:[%s2745] sm:$0xff] %vm145, %v2743
      %2747 = vst.msk [vmem:[%s2745 + $0x8] sm:$0xff] %vm145, %v2744
      %v2748 = vmax.f32 %v2732, -3.0
      %v2749 = vmax.f32 %v2733, -3.0
      %v2750 = vmin.f32 %v2748, 3.0
      %v2751 = vmin.f32 %v2749, 3.0
      %s2752 = scalar_lea.vmem %s138, 464
      %2753 = vst.msk [vmem:[%s2752] sm:$0xff] %vm145, %v2750
      %2754 = vst.msk [vmem:[%s2752 + $0x8] sm:$0xff] %vm145, %v2751
      %s2755 = smul.u32 2, %s17
      %p2756 = scmp.lt.s32.totalorder %s16, 1
      %s2757 = scalar_select %p2756, %s16, 1
      %p2758 = scmp.lt.s32.totalorder %s2755, 1
      %s2759 = scalar_select %p2758, %s2755, 1
      %s2760 = smul.addr %s2757, 60
      %s2761 = sadd.s32 %s2759, %s2760
      %s2762 = smul.addr %s2761, 8
      %s2763 = scalar_lea.vmem %s1, %s2762
      // Predicated region
      $region25: #{tpu_custom_call.1} parent=23 // pred_check
        %p2764 = pneg %p70
      $region26: #{tpu_custom_call.1} parent=23 // pred_check_branch
        %2766 = sbr.rel (%p2764) target = $region28
      $region27: #{tpu_custom_call.1} parent=23 // pred_region
        %s2767 = smul.u32 2, %s17
      $region28: #{tpu_custom_call.1} parent=23 // pred_fallthru
        _
    $region24: #{tpu_custom_call.1} parent=5 // pred_fallthru
      _
    %p2768 = scmp.le.s32.totalorder 2, %s7
    // Predicated region
    $region29: #{tpu_custom_call.1} parent=5 // pred_check
      %p2769 = pneg %p2768
    $region30: #{tpu_custom_call.1} parent=5 // pred_check_branch
      %2771 = sbr.rel (%p2769) target = $region32
    $region31: #{tpu_custom_call.1} parent=5 // pred_region
      %s2772 = ssub.s32 %s7, 2
      // Predicated region
      $region33: #{tpu_custom_call.1} parent=31 // pred_check
        %p2773 = pneg %p76
      $region34: #{tpu_custom_call.1} parent=31 // pred_check_branch
        %2775 = sbr.rel (%p2773) target = $region36
      $region35: #{tpu_custom_call.1} parent=31 // pred_region
        %s2776 = smul.u32 2, %s19
        %p2777 = scmp.lt.s32.totalorder %s18, 1
        %s2778 = scalar_select %p2777, %s18, 1
        %p2779 = scmp.lt.s32.totalorder %s2776, 1
        %s2780 = scalar_select %p2779, %s2776, 1
        %s2781 = smul.addr %s2778, 60
        %s2782 = sadd.s32 %s2780, %s2781
        %s2783 = smul.addr %s2782, 8
        %s2784 = scalar_lea.vmem %s1, %s2783
      $region36: #{tpu_custom_call.1} parent=31 // pred_fallthru
        _
    $region32: #{tpu_custom_call.1} parent=5 // pred_fallthru
      _
  $region6: #{tpu_custom_call.1} parent=0 // loop_footer
    %s11 = sadd.s32 1, %s7
  $region7: #{tpu_custom_call.1} parent=0 // loop_footer_branch
    %6 = sbr.rel target = $region3
  $region8: #{tpu_custom_call.1} parent=0 // loop_exit
    _

</llo_original>
